<compile_context>
chip_gen: v5e
topology: v5e:2x2
jax: 0.10.0
libtpu: 0.0.40
codegen_flags: <defaults>
</compile_context>

<pallas_src>
import jax
import jax.numpy as jnp
from jax.experimental import pallas as pl
from jax.experimental.pallas import tpu as pltpu

MXU_DTYPE = jnp.bfloat16       # matmul-operand dtype; accumulation is always f32


# ------------------------------ fused kernel --------------------------------


def _make_fused_kernel(num_layers, hidden_size):
    H = hidden_size
    n_in = 3 + 3 * num_layers + 3

    def kernel(*refs):
        x_ref, convw_ref, convb_ref = refs[0:3]
        lstm_refs = refs[3:3 + 3 * num_layers]
        aw_ref, fw_ref, fb_ref = refs[3 + 3 * num_layers:n_in]
        o_ref = refs[n_in]
        xpad_scr = refs[n_in + 1]
        gx_scrs = refs[n_in + 2:n_in + 2 + num_layers]
        h_scrs = refs[n_in + 2 + num_layers:]

        f32 = jnp.float32
        x = x_ref[...]                                   # (B, T, Cin)
        B, T, Cin = x.shape

        # ---- Conv1d(k=3, pad=1) + folded BN + ReLU as ONE im2col matmul -----
        # zero only the two halo rows; copy x once.
        xpad_scr[:, 0:1, :] = jnp.zeros((B, 1, Cin), f32)
        xpad_scr[:, T + 1:T + 2, :] = jnp.zeros((B, 1, Cin), f32)
        xpad_scr[:, 1:T + 1, :] = x
        xpad = xpad_scr[...]                             # (B, T+2, Cin)
        cols = jnp.concatenate(
            [xpad[:, 0:T, :], xpad[:, 1:T + 1, :], xpad[:, 2:T + 2, :]],
            axis=-1).reshape(B * T, 3 * Cin)             # (B*T, 3*Cin)
        feat = jnp.maximum(
            jnp.dot(cols.astype(MXU_DTYPE), convw_ref[...],
                    preferred_element_type=f32) + convb_ref[...],
            0.0)                                         # (B*T, Cout), f32

        layer_in = feat                                  # (B*T, Din)

        # ---- stacked bidirectional LSTM (inter-layer dropout = identity) ----
        for l in range(num_layers):
            wih_ref, whh_ref, b_ref = lstm_refs[3 * l:3 * l + 3]
            gx_scr = gx_scrs[l]                          # (B, T, 8H) f32
            h_scr = h_scrs[l]                            # (B, T, 2H) f32
            whh = whh_ref[...]                           # (2H, 8H) block-diag, bf16

            # ONE fused input projection for both directions over all timesteps
            gx = jnp.dot(layer_in.astype(MXU_DTYPE), wih_ref[...],
                         preferred_element_type=f32) + b_ref[...]   # (B*T, 8H)
            gx_scr[...] = gx.reshape(B, T, 8 * H)

            def cell(g, c):
                # gate columns pre-permuted to (i, f, o, g):
                # one contiguous sigmoid (3H lanes) + one tanh (H lanes)
                s = jax.nn.sigmoid(g[:, :3 * H])
                gg = jnp.tanh(g[:, 3 * H:])
                c_new = s[:, H:2 * H] * c + s[:, :H] * gg
                return s[:, 2 * H:3 * H] * jnp.tanh(c_new), c_new

            h2 = jnp.zeros((B, 2 * H), f32)              # [hf | hb]
            cf = jnp.zeros((B, H), f32)
            cb = jnp.zeros((B, H), f32)
            for t in range(T):                           # static unroll
                tb = T - 1 - t
                # single recurrent matmul for BOTH directions (block-diagonal whh)
                g_rec = jnp.dot(h2.astype(MXU_DTYPE), whh,
                                preferred_element_type=f32)          # (B, 8H)
                gxf = gx_scr[:, pl.ds(t, 1), 0:4 * H]                # (B, 1, 4H)
                gxb = gx_scr[:, pl.ds(tb, 1), 4 * H:8 * H]           # (B, 1, 4H)
                gf = g_rec[:, :4 * H] + gxf[:, 0, :]
                gb = g_rec[:, 4 * H:] + gxb[:, 0, :]
                hf, cf = cell(gf, cf)
                hb, cb = cell(gb, cb)
                h_scr[:, pl.ds(t, 1), 0:H] = hf[:, None, :]
                h_scr[:, pl.ds(tb, 1), H:2 * H] = hb[:, None, :]
                h2 = jnp.concatenate([hf, hb], axis=-1)

            layer_in = h_scr[...].reshape(B * T, 2 * H)  # lane-dense input for next layer

        # ---- attention over time + final Linear (dropout = identity) --------
        h_all = h_scrs[num_layers - 1][...]              # (B, T, 2H)
        aw = aw_ref[...].reshape(1, 1, 2 * H)            # attention weight (bias dropped:
        scores = jnp.sum(h_all * aw, axis=-1)            #   constant cancels in softmax)
        m = jnp.max(scores, axis=-1, keepdims=True)
        e = jnp.exp(scores - m)
        wts = e * pl.reciprocal(jnp.sum(e, axis=-1, keepdims=True), approx=True)
        ctx = jnp.sum(wts[:, :, None] * h_all, axis=1)   # (B, 2H)
        o_ref[...] = (jnp.dot(ctx.astype(MXU_DTYPE), fw_ref[...],
                              preferred_element_type=f32) + fb_ref[...])

    return kernel


# ------------------------------ host wrapper ---------------------------------


@jax.jit
def gesture_forward(x, params):
    """x: (B, T, input_size) float32 -> logits (B, num_classes) float32."""
    B, T, Cin = x.shape
    num_layers = len(params['lstm'])
    H = params['lstm'][0]['whh_blk'].shape[0] // 2
    num_classes = params['fc_w'].shape[-1]

    args = [x, params['conv_w'], params['conv_b']]
    for layer in params['lstm']:
        args += [layer['wih_blk'], layer['whh_blk'], layer['b_blk']]
    args += [params['attn_w'], params['fc_w'], params['fc_b']]

    scratch = [pltpu.VMEM((B, T + 2, Cin), jnp.float32)]                 # padded conv input
    scratch += [pltpu.VMEM((B, T, 8 * H), jnp.float32)
                for _ in range(num_layers)]                              # staged gate projections
    scratch += [pltpu.VMEM((B, T, 2 * H), jnp.float32)
                for _ in range(num_layers)]                              # combined bi-dir hidden

    return pl.pallas_call(
        _make_fused_kernel(num_layers, H),
        out_shape=jax.ShapeDtypeStruct((B, num_classes), jnp.float32),
        in_specs=[pl.BlockSpec(memory_space=pltpu.MemorySpace.VMEM)] * len(args),
        out_specs=pl.BlockSpec(memory_space=pltpu.MemorySpace.VMEM),
        scratch_shapes=scratch,
    )(*args)


# --------------------- parameters (torch layout) + prep ----------------------


def init_torch_params(key, input_size, hidden_size, num_layers, num_classes):
    """Random parameters in PyTorch's native layouts / gate order (i, f, g, o)."""
    conv_out = 64

    def unif(k, shape, scale):
        return jax.random.uniform(k, shape, jnp.float32, -scale, scale)

    keys = iter(jax.random.split(key, 64))
    p = {
        'conv_w': unif(next(keys), (conv_out, input_size, 3), 0.2),      # conv1.weight
        'conv_b': unif(next(keys), (conv_out,), 0.2),
        'bn_gamma': 1.0 + unif(next(keys), (conv_out,), 0.1),
        'bn_beta': unif(next(keys), (conv_out,), 0.1),
        'bn_mean': unif(next(keys), (conv_out,), 0.1),                   # running stats (eval)
        'bn_var': 1.0 + unif(next(keys), (conv_out,), 0.1),
    }
    H = hidden_size
    lstm = []
    for l in range(num_layers):
        d_in = conv_out if l == 0 else 2 * H
        s = 1.0 / float(H) ** 0.5
        layer = {}
        for d in ('fwd', 'bwd'):
            layer[d] = {
                'w_ih': unif(next(keys), (4 * H, d_in), s),              # torch order i,f,g,o
                'w_hh': unif(next(keys), (4 * H, H), s),
                'b_ih': unif(next(keys), (4 * H,), s),
                'b_hh': unif(next(keys), (4 * H,), s),
            }
        lstm.append(layer)
    p['lstm'] = lstm
    p['attn_w'] = unif(next(keys), (1, 2 * H), 0.2)                      # attention_fc.weight
    p['attn_b'] = unif(next(keys), (1,), 0.2)                            # (unused: cancels in softmax)
    p['fc_w'] = unif(next(keys), (num_classes, 2 * H), 0.2)              # fc.weight
    p['fc_b'] = unif(next(keys), (num_classes,), 0.2)
    return p


def prepare_params(p, hidden_size, eps=1e-5):
    """One-time prep: fold BN into conv (im2col layout), build fused per-layer
    (Din, 8H) input-projection weights and block-diagonal (2H, 8H) recurrent
    weights, reorder gates torch(i,f,g,o) -> kernel(i,f,o,g), cast MXU weights to bf16."""
    scale = p['bn_gamma'] / jnp.sqrt(p['bn_var'] + eps)                  # (Cout,)
    w = p['conv_w'] * scale[:, None, None]                               # (Cout, Cin, 3)
    conv_w = jnp.transpose(w, (2, 1, 0)).reshape(-1, w.shape[0])         # (3*Cin, Cout) im2col
    conv_b = ((p['conv_b'] - p['bn_mean']) * scale + p['bn_beta'])[None, :]

    H = hidden_size
    # torch gate rows (i, f, g, o) -> kernel gate columns (i, f, o, g)
    perm = jnp.concatenate([jnp.arange(0, 2 * H),
                            jnp.arange(3 * H, 4 * H),
                            jnp.arange(2 * H, 3 * H)])

    def prep_dir(q):
        wih = q['w_ih'][perm, :].T                                       # (Din, 4H)
        whh = q['w_hh'][perm, :].T                                       # (H, 4H)
        b = (q['b_ih'] + q['b_hh'])[perm][None, :]                       # (1, 4H)
        return wih, whh, b

    lstm = []
    for layer in p['lstm']:
        wih_f, whh_f, b_f = prep_dir(layer['fwd'])
        wih_b, whh_b, b_b = prep_dir(layer['bwd'])
        wih_blk = jnp.concatenate([wih_f, wih_b], axis=1)                # (Din, 8H)
        whh_blk = jnp.zeros((2 * H, 8 * H), jnp.float32)
        whh_blk = whh_blk.at[:H, :4 * H].set(whh_f)                      # block-diagonal
        whh_blk = whh_blk.at[H:, 4 * H:].set(whh_b)
        b_blk = jnp.concatenate([b_f, b_b], axis=1)                      # (1, 8H)
        lstm.append({'wih_blk': wih_blk.astype(MXU_DTYPE),
                     'whh_blk': whh_blk.astype(MXU_DTYPE),
                     'b_blk': b_blk})

    return {
        'conv_w': conv_w.astype(MXU_DTYPE), 'conv_b': conv_b,
        'lstm': lstm,
        'attn_w': p['attn_w'],                                           # (1, 2H); bias dropped
        'fc_w': p['fc_w'].T.astype(MXU_DTYPE),                           # (2H, C)
        'fc_b': p['fc_b'][None, :],                                      # (1, C)
    }


# ------------------------------------ main ------------------------------------

if __name__ == "__main__":
    B, T = 2, 16
    input_size, hidden_size, num_layers, num_classes = 8, 32, 2, 5

    key = jax.random.PRNGKey(0)
    k_x, k_p = jax.random.split(key)
    x = jax.random.normal(k_x, (B, T, input_size), jnp.float32)

    torch_params = init_torch_params(k_p, input_size, hidden_size, num_layers,
                                     num_classes)
    params = prepare_params(torch_params, hidden_size)

    logits = gesture_forward(x, params)
    jax.block_until_ready(logits)
    assert logits.shape == (B, num_classes)
    assert bool(jnp.all(jnp.isfinite(logits)))
    print("KERNEL_OK")
</pallas_src>

<mosaic_0001>
module attributes {stable_mosaic.version = 11 : i64} {
  func.func @kernel(%arg0: memref<2x16x8xf32, #tpu.memory_space<vmem>>, %arg1: memref<24x64xbf16, #tpu.memory_space<vmem>>, %arg2: memref<1x64xf32, #tpu.memory_space<vmem>>, %arg3: memref<64x256xbf16, #tpu.memory_space<vmem>>, %arg4: memref<64x256xbf16, #tpu.memory_space<vmem>>, %arg5: memref<1x256xf32, #tpu.memory_space<vmem>>, %arg6: memref<64x256xbf16, #tpu.memory_space<vmem>>, %arg7: memref<64x256xbf16, #tpu.memory_space<vmem>>, %arg8: memref<1x256xf32, #tpu.memory_space<vmem>>, %arg9: memref<1x64xf32, #tpu.memory_space<vmem>>, %arg10: memref<64x5xbf16, #tpu.memory_space<vmem>>, %arg11: memref<1x5xf32, #tpu.memory_space<vmem>>, %arg12: memref<2x5xf32, #tpu.memory_space<vmem>>, %arg13: memref<2x18x8xf32, #tpu.memory_space<vmem>>, %arg14: memref<2x16x256xf32, #tpu.memory_space<vmem>>, %arg15: memref<2x16x256xf32, #tpu.memory_space<vmem>>, %arg16: memref<2x16x64xf32, #tpu.memory_space<vmem>>, %arg17: memref<2x16x64xf32, #tpu.memory_space<vmem>>) attributes {dimension_semantics = [], scalar_prefetch = 0 : i64, scratch_operands = 5 : i64, tpu.core_type = #tpu.core_type<tc>} {
    %c0 = arith.constant 0 : index
    %c0_0 = arith.constant 0 : index
    %c0_1 = arith.constant 0 : index
    %0 = vector.load %arg0[%c0, %c0_0, %c0_1] : memref<2x16x8xf32, #tpu.memory_space<vmem>>, vector<2x16x8xf32>
    %cst = arith.constant 0.000000e+00 : f32
    %1 = vector.broadcast %cst : f32 to vector<2x1x8xf32>
    %c0_2 = arith.constant 0 : index
    %c0_3 = arith.constant 0 : index
    %c0_4 = arith.constant 0 : index
    %2 = vector.load %arg13[%c0_2, %c0_3, %c0_4] : memref<2x18x8xf32, #tpu.memory_space<vmem>>, vector<2x1x8xf32>
    tpu.vector_store %arg13[%c0_2, %c0_3, %c0_4], %1 {strides = array<i32>} : memref<2x18x8xf32, #tpu.memory_space<vmem>>, vector<2x1x8xf32>,
    %cst_5 = arith.constant 0.000000e+00 : f32
    %3 = vector.broadcast %cst_5 : f32 to vector<2x1x8xf32>
    %c0_6 = arith.constant 0 : index
    %c17 = arith.constant 17 : index
    %c0_7 = arith.constant 0 : index
    %4 = vector.load %arg13[%c0_6, %c17, %c0_7] : memref<2x18x8xf32, #tpu.memory_space<vmem>>, vector<2x1x8xf32>
    tpu.vector_store %arg13[%c0_6, %c17, %c0_7], %3 {strides = array<i32>} : memref<2x18x8xf32, #tpu.memory_space<vmem>>, vector<2x1x8xf32>,
    %c0_8 = arith.constant 0 : index
    %c1 = arith.constant 1 : index
    %c0_9 = arith.constant 0 : index
    %5 = vector.load %arg13[%c0_8, %c1, %c0_9] : memref<2x18x8xf32, #tpu.memory_space<vmem>>, vector<2x16x8xf32>
    tpu.vector_store %arg13[%c0_8, %c1, %c0_9], %0 {strides = array<i32>} : memref<2x18x8xf32, #tpu.memory_space<vmem>>, vector<2x16x8xf32>,
    %c0_10 = arith.constant 0 : index
    %c0_11 = arith.constant 0 : index
    %c0_12 = arith.constant 0 : index
    %6 = vector.load %arg13[%c0_10, %c0_11, %c0_12] : memref<2x18x8xf32, #tpu.memory_space<vmem>>, vector<2x18x8xf32>
    %7 = vector.extract_strided_slice %6 {offsets = [0, 0, 0], sizes = [2, 16, 8], strides = [1, 1, 1]} : vector<2x18x8xf32> to vector<2x16x8xf32>
    %8 = vector.extract_strided_slice %6 {offsets = [0, 1, 0], sizes = [2, 16, 8], strides = [1, 1, 1]} : vector<2x18x8xf32> to vector<2x16x8xf32>
    %9 = vector.extract_strided_slice %6 {offsets = [0, 2, 0], sizes = [2, 16, 8], strides = [1, 1, 1]} : vector<2x18x8xf32> to vector<2x16x8xf32>
    %10 = tpu.concatenate %7, %8, %9 in 2 : vector<2x16x8xf32>, vector<2x16x8xf32>, vector<2x16x8xf32> -> vector<2x16x24xf32>
    %11 = vector.shape_cast %10 : vector<2x16x24xf32> to vector<32x24xf32>
    %12 = arith.truncf %11 : vector<32x24xf32> to vector<32x24xbf16>
    %c0_13 = arith.constant 0 : index
    %c0_14 = arith.constant 0 : index
    %13 = vector.load %arg1[%c0_13, %c0_14] : memref<24x64xbf16, #tpu.memory_space<vmem>>, vector<24x64xbf16>
    %cst_15 = arith.constant dense<0.000000e+00> : vector<32x64xf32>
    %14 = tpu.matmul %12, %13, %cst_15 {dimension_numbers = #tpu.dot_dimension_numbers<[1], [0], [0], [1], [0, 0, 1, 1], [], []>} : vector<32x24xbf16>, vector<24x64xbf16>, vector<32x64xf32> -> vector<32x64xf32>
    %c0_16 = arith.constant 0 : index
    %c0_17 = arith.constant 0 : index
    %15 = vector.load %arg2[%c0_16, %c0_17] : memref<1x64xf32, #tpu.memory_space<vmem>>, vector<1x64xf32>
    %16 = vector.broadcast %15 : vector<1x64xf32> to vector<32x64xf32>
    %17 = arith.addf %14, %16 : vector<32x64xf32>
    %cst_18 = arith.constant 0.000000e+00 : f32
    %18 = vector.broadcast %cst_18 : f32 to vector<32x64xf32>
    %19 = arith.maximumf %17, %18 : vector<32x64xf32>
    %c0_19 = arith.constant 0 : index
    %c0_20 = arith.constant 0 : index
    %20 = vector.load %arg4[%c0_19, %c0_20] : memref<64x256xbf16, #tpu.memory_space<vmem>>, vector<64x256xbf16>
    %21 = arith.truncf %19 : vector<32x64xf32> to vector<32x64xbf16>
    %c0_21 = arith.constant 0 : index
    %c0_22 = arith.constant 0 : index
    %22 = vector.load %arg3[%c0_21, %c0_22] : memref<64x256xbf16, #tpu.memory_space<vmem>>, vector<64x256xbf16>
    %cst_23 = arith.constant dense<0.000000e+00> : vector<32x256xf32>
    %23 = tpu.matmul %21, %22, %cst_23 {dimension_numbers = #tpu.dot_dimension_numbers<[1], [0], [0], [1], [0, 0, 1, 1], [], []>} : vector<32x64xbf16>, vector<64x256xbf16>, vector<32x256xf32> -> vector<32x256xf32>
    %c0_24 = arith.constant 0 : index
    %c0_25 = arith.constant 0 : index
    %24 = vector.load %arg5[%c0_24, %c0_25] : memref<1x256xf32, #tpu.memory_space<vmem>>, vector<1x256xf32>
    %25 = vector.broadcast %24 : vector<1x256xf32> to vector<32x256xf32>
    %26 = arith.addf %23, %25 : vector<32x256xf32>
    %27 = vector.shape_cast %26 : vector<32x256xf32> to vector<2x16x256xf32>
    %c0_26 = arith.constant 0 : index
    %c0_27 = arith.constant 0 : index
    %c0_28 = arith.constant 0 : index
    %28 = vector.load %arg14[%c0_26, %c0_27, %c0_28] : memref<2x16x256xf32, #tpu.memory_space<vmem>>, vector<2x16x256xf32>
    tpu.vector_store %arg14[%c0_26, %c0_27, %c0_28], %27 {strides = array<i32>} : memref<2x16x256xf32, #tpu.memory_space<vmem>>, vector<2x16x256xf32>,
    %cst_29 = arith.constant 0.000000e+00 : f32
    %29 = vector.broadcast %cst_29 : f32 to vector<2x64xf32>
    %cst_30 = arith.constant 0.000000e+00 : f32
    %30 = vector.broadcast %cst_30 : f32 to vector<2x32xf32>
    %cst_31 = arith.constant 0.000000e+00 : f32
    %31 = vector.broadcast %cst_31 : f32 to vector<2x32xf32>
    %32 = arith.truncf %29 : vector<2x64xf32> to vector<2x64xbf16>
    %cst_32 = arith.constant dense<0.000000e+00> : vector<2x256xf32>
    %33 = tpu.matmul %32, %20, %cst_32 {dimension_numbers = #tpu.dot_dimension_numbers<[1], [0], [0], [1], [0, 0, 1, 1], [], []>} : vector<2x64xbf16>, vector<64x256xbf16>, vector<2x256xf32> -> vector<2x256xf32>
    %c0_33 = arith.constant 0 : index
    %c0_34 = arith.constant 0 : index
    %c0_35 = arith.constant 0 : index
    %34 = vector.load %arg14[%c0_33, %c0_34, %c0_35] : memref<2x16x256xf32, #tpu.memory_space<vmem>>, vector<2x1x128xf32>
    %c0_36 = arith.constant 0 : index
    %c15 = arith.constant 15 : index
    %c128 = arith.constant 128 : index
    %35 = vector.load %arg14[%c0_36, %c15, %c128] : memref<2x16x256xf32, #tpu.memory_space<vmem>>, vector<2x1x128xf32>
    %36 = vector.extract_strided_slice %33 {offsets = [0, 0], sizes = [2, 128], strides = [1, 1]} : vector<2x256xf32> to vector<2x128xf32>
    %37 = vector.shape_cast %34 : vector<2x1x128xf32> to vector<2x128xf32>
    %38 = arith.addf %36, %37 : vector<2x128xf32>
    %39 = vector.extract_strided_slice %33 {offsets = [0, 128], sizes = [2, 128], strides = [1, 1]} : vector<2x256xf32> to vector<2x128xf32>
    %40 = vector.shape_cast %35 : vector<2x1x128xf32> to vector<2x128xf32>
    %41 = arith.addf %39, %40 : vector<2x128xf32>
    %42 = vector.extract_strided_slice %38 {offsets = [0, 0], sizes = [2, 96], strides = [1, 1]} : vector<2x128xf32> to vector<2x96xf32>
    %43 = arith.negf %42 : vector<2x96xf32>
    %44 = math.exp %43 : vector<2x96xf32>
    %cst_37 = arith.constant 1.000000e+00 : f32
    %45 = vector.broadcast %cst_37 : f32 to vector<2x96xf32>
    %46 = arith.addf %45, %44 : vector<2x96xf32>
    %47 = arith.divf %45, %46 : vector<2x96xf32>
    %48 = vector.extract_strided_slice %38 {offsets = [0, 96], sizes = [2, 32], strides = [1, 1]} : vector<2x128xf32> to vector<2x32xf32>
    %49 = math.tanh %48 : vector<2x32xf32>
    %50 = vector.extract_strided_slice %47 {offsets = [0, 32], sizes = [2, 32], strides = [1, 1]} : vector<2x96xf32> to vector<2x32xf32>
    %51 = arith.mulf %50, %30 : vector<2x32xf32>
    %52 = vector.extract_strided_slice %47 {offsets = [0, 0], sizes = [2, 32], strides = [1, 1]} : vector<2x96xf32> to vector<2x32xf32>
    %53 = arith.mulf %52, %49 : vector<2x32xf32>
    %54 = arith.addf %51, %53 : vector<2x32xf32>
    %55 = vector.extract_strided_slice %47 {offsets = [0, 64], sizes = [2, 32], strides = [1, 1]} : vector<2x96xf32> to vector<2x32xf32>
    %56 = math.tanh %54 : vector<2x32xf32>
    %57 = arith.mulf %55, %56 : vector<2x32xf32>
    %58 = vector.extract_strided_slice %41 {offsets = [0, 0], sizes = [2, 96], strides = [1, 1]} : vector<2x128xf32> to vector<2x96xf32>
    %59 = arith.negf %58 : vector<2x96xf32>
    %60 = math.exp %59 : vector<2x96xf32>
    %cst_38 = arith.constant 1.000000e+00 : f32
    %61 = vector.broadcast %cst_38 : f32 to vector<2x96xf32>
    %62 = arith.addf %61, %60 : vector<2x96xf32>
    %63 = arith.divf %61, %62 : vector<2x96xf32>
    %64 = vector.extract_strided_slice %41 {offsets = [0, 96], sizes = [2, 32], strides = [1, 1]} : vector<2x128xf32> to vector<2x32xf32>
    %65 = math.tanh %64 : vector<2x32xf32>
    %66 = vector.extract_strided_slice %63 {offsets = [0, 32], sizes = [2, 32], strides = [1, 1]} : vector<2x96xf32> to vector<2x32xf32>
    %67 = arith.mulf %66, %31 : vector<2x32xf32>
    %68 = vector.extract_strided_slice %63 {offsets = [0, 0], sizes = [2, 32], strides = [1, 1]} : vector<2x96xf32> to vector<2x32xf32>
    %69 = arith.mulf %68, %65 : vector<2x32xf32>
    %70 = arith.addf %67, %69 : vector<2x32xf32>
    %71 = vector.extract_strided_slice %63 {offsets = [0, 64], sizes = [2, 32], strides = [1, 1]} : vector<2x96xf32> to vector<2x32xf32>
    %72 = math.tanh %70 : vector<2x32xf32>
    %73 = arith.mulf %71, %72 : vector<2x32xf32>
    %74 = vector.shape_cast %57 : vector<2x32xf32> to vector<2x1x32xf32>
    %c0_39 = arith.constant 0 : index
    %c0_40 = arith.constant 0 : index
    %c0_41 = arith.constant 0 : index
    %75 = vector.load %arg16[%c0_39, %c0_40, %c0_41] : memref<2x16x64xf32, #tpu.memory_space<vmem>>, vector<2x1x32xf32>
    tpu.vector_store %arg16[%c0_39, %c0_40, %c0_41], %74 {strides = array<i32>} : memref<2x16x64xf32, #tpu.memory_space<vmem>>, vector<2x1x32xf32>,
    %76 = vector.shape_cast %73 : vector<2x32xf32> to vector<2x1x32xf32>
    %c0_42 = arith.constant 0 : index
    %c15_43 = arith.constant 15 : index
    %c32 = arith.constant 32 : index
    %77 = vector.load %arg16[%c0_42, %c15_43, %c32] : memref<2x16x64xf32, #tpu.memory_space<vmem>>, vector<2x1x32xf32>
    tpu.vector_store %arg16[%c0_42, %c15_43, %c32], %76 {strides = array<i32>} : memref<2x16x64xf32, #tpu.memory_space<vmem>>, vector<2x1x32xf32>,
    %78 = tpu.concatenate %57, %73 in 1 : vector<2x32xf32>, vector<2x32xf32> -> vector<2x64xf32>
    %79 = arith.truncf %78 : vector<2x64xf32> to vector<2x64xbf16>
    %cst_44 = arith.constant dense<0.000000e+00> : vector<2x256xf32>
    %80 = tpu.matmul %79, %20, %cst_44 {dimension_numbers = #tpu.dot_dimension_numbers<[1], [0], [0], [1], [0, 0, 1, 1], [], []>} : vector<2x64xbf16>, vector<64x256xbf16>, vector<2x256xf32> -> vector<2x256xf32>
    %c0_45 = arith.constant 0 : index
    %c1_46 = arith.constant 1 : index
    %c0_47 = arith.constant 0 : index
    %81 = vector.load %arg14[%c0_45, %c1_46, %c0_47] : memref<2x16x256xf32, #tpu.memory_space<vmem>>, vector<2x1x128xf32>
    %c0_48 = arith.constant 0 : index
    %c14 = arith.constant 14 : index
    %c128_49 = arith.constant 128 : index
    %82 = vector.load %arg14[%c0_48, %c14, %c128_49] : memref<2x16x256xf32, #tpu.memory_space<vmem>>, vector<2x1x128xf32>
    %83 = vector.extract_strided_slice %80 {offsets = [0, 0], sizes = [2, 128], strides = [1, 1]} : vector<2x256xf32> to vector<2x128xf32>
    %84 = vector.shape_cast %81 : vector<2x1x128xf32> to vector<2x128xf32>
    %85 = arith.addf %83, %84 : vector<2x128xf32>
    %86 = vector.extract_strided_slice %80 {offsets = [0, 128], sizes = [2, 128], strides = [1, 1]} : vector<2x256xf32> to vector<2x128xf32>
    %87 = vector.shape_cast %82 : vector<2x1x128xf32> to vector<2x128xf32>
    %88 = arith.addf %86, %87 : vector<2x128xf32>
    %89 = vector.extract_strided_slice %85 {offsets = [0, 0], sizes = [2, 96], strides = [1, 1]} : vector<2x128xf32> to vector<2x96xf32>
    %90 = arith.negf %89 : vector<2x96xf32>
    %91 = math.exp %90 : vector<2x96xf32>
    %cst_50 = arith.constant 1.000000e+00 : f32
    %92 = vector.broadcast %cst_50 : f32 to vector<2x96xf32>
    %93 = arith.addf %92, %91 : vector<2x96xf32>
    %94 = arith.divf %92, %93 : vector<2x96xf32>
    %95 = vector.extract_strided_slice %85 {offsets = [0, 96], sizes = [2, 32], strides = [1, 1]} : vector<2x128xf32> to vector<2x32xf32>
    %96 = math.tanh %95 : vector<2x32xf32>
    %97 = vector.extract_strided_slice %94 {offsets = [0, 32], sizes = [2, 32], strides = [1, 1]} : vector<2x96xf32> to vector<2x32xf32>
    %98 = arith.mulf %97, %54 : vector<2x32xf32>
    %99 = vector.extract_strided_slice %94 {offsets = [0, 0], sizes = [2, 32], strides = [1, 1]} : vector<2x96xf32> to vector<2x32xf32>
    %100 = arith.mulf %99, %96 : vector<2x32xf32>
    %101 = arith.addf %98, %100 : vector<2x32xf32>
    %102 = vector.extract_strided_slice %94 {offsets = [0, 64], sizes = [2, 32], strides = [1, 1]} : vector<2x96xf32> to vector<2x32xf32>
    %103 = math.tanh %101 : vector<2x32xf32>
    %104 = arith.mulf %102, %103 : vector<2x32xf32>
    %105 = vector.extract_strided_slice %88 {offsets = [0, 0], sizes = [2, 96], strides = [1, 1]} : vector<2x128xf32> to vector<2x96xf32>
    %106 = arith.negf %105 : vector<2x96xf32>
    %107 = math.exp %106 : vector<2x96xf32>
    %cst_51 = arith.constant 1.000000e+00 : f32
    %108 = vector.broadcast %cst_51 : f32 to vector<2x96xf32>
    %109 = arith.addf %108, %107 : vector<2x96xf32>
    %110 = arith.divf %108, %109 : vector<2x96xf32>
    %111 = vector.extract_strided_slice %88 {offsets = [0, 96], sizes = [2, 32], strides = [1, 1]} : vector<2x128xf32> to vector<2x32xf32>
    %112 = math.tanh %111 : vector<2x32xf32>
    %113 = vector.extract_strided_slice %110 {offsets = [0, 32], sizes = [2, 32], strides = [1, 1]} : vector<2x96xf32> to vector<2x32xf32>
    %114 = arith.mulf %113, %70 : vector<2x32xf32>
    %115 = vector.extract_strided_slice %110 {offsets = [0, 0], sizes = [2, 32], strides = [1, 1]} : vector<2x96xf32> to vector<2x32xf32>
    %116 = arith.mulf %115, %112 : vector<2x32xf32>
    %117 = arith.addf %114, %116 : vector<2x32xf32>
    %118 = vector.extract_strided_slice %110 {offsets = [0, 64], sizes = [2, 32], strides = [1, 1]} : vector<2x96xf32> to vector<2x32xf32>
    %119 = math.tanh %117 : vector<2x32xf32>
    %120 = arith.mulf %118, %119 : vector<2x32xf32>
    %121 = vector.shape_cast %104 : vector<2x32xf32> to vector<2x1x32xf32>
    %c0_52 = arith.constant 0 : index
    %c1_53 = arith.constant 1 : index
    %c0_54 = arith.constant 0 : index
    %122 = vector.load %arg16[%c0_52, %c1_53, %c0_54] : memref<2x16x64xf32, #tpu.memory_space<vmem>>, vector<2x1x32xf32>
    tpu.vector_store %arg16[%c0_52, %c1_53, %c0_54], %121 {strides = array<i32>} : memref<2x16x64xf32, #tpu.memory_space<vmem>>, vector<2x1x32xf32>,
    %123 = vector.shape_cast %120 : vector<2x32xf32> to vector<2x1x32xf32>
    %c0_55 = arith.constant 0 : index
    %c14_56 = arith.constant 14 : index
    %c32_57 = arith.constant 32 : index
    %124 = vector.load %arg16[%c0_55, %c14_56, %c32_57] : memref<2x16x64xf32, #tpu.memory_space<vmem>>, vector<2x1x32xf32>
    tpu.vector_store %arg16[%c0_55, %c14_56, %c32_57], %123 {strides = array<i32>} : memref<2x16x64xf32, #tpu.memory_space<vmem>>, vector<2x1x32xf32>,
    %125 = tpu.concatenate %104, %120 in 1 : vector<2x32xf32>, vector<2x32xf32> -> vector<2x64xf32>
    %126 = arith.truncf %125 : vector<2x64xf32> to vector<2x64xbf16>
    %cst_58 = arith.constant dense<0.000000e+00> : vector<2x256xf32>
    %127 = tpu.matmul %126, %20, %cst_58 {dimension_numbers = #tpu.dot_dimension_numbers<[1], [0], [0], [1], [0, 0, 1, 1], [], []>} : vector<2x64xbf16>, vector<64x256xbf16>, vector<2x256xf32> -> vector<2x256xf32>
    %c0_59 = arith.constant 0 : index
    %c2 = arith.constant 2 : index
    %c0_60 = arith.constant 0 : index
    %128 = vector.load %arg14[%c0_59, %c2, %c0_60] : memref<2x16x256xf32, #tpu.memory_space<vmem>>, vector<2x1x128xf32>
    %c0_61 = arith.constant 0 : index
    %c13 = arith.constant 13 : index
    %c128_62 = arith.constant 128 : index
    %129 = vector.load %arg14[%c0_61, %c13, %c128_62] : memref<2x16x256xf32, #tpu.memory_space<vmem>>, vector<2x1x128xf32>
    %130 = vector.extract_strided_slice %127 {offsets = [0, 0], sizes = [2, 128], strides = [1, 1]} : vector<2x256xf32> to vector<2x128xf32>
    %131 = vector.shape_cast %128 : vector<2x1x128xf32> to vector<2x128xf32>
    %132 = arith.addf %130, %131 : vector<2x128xf32>
    %133 = vector.extract_strided_slice %127 {offsets = [0, 128], sizes = [2, 128], strides = [1, 1]} : vector<2x256xf32> to vector<2x128xf32>
    %134 = vector.shape_cast %129 : vector<2x1x128xf32> to vector<2x128xf32>
    %135 = arith.addf %133, %134 : vector<2x128xf32>
    %136 = vector.extract_strided_slice %132 {offsets = [0, 0], sizes = [2, 96], strides = [1, 1]} : vector<2x128xf32> to vector<2x96xf32>
    %137 = arith.negf %136 : vector<2x96xf32>
    %138 = math.exp %137 : vector<2x96xf32>
    %cst_63 = arith.constant 1.000000e+00 : f32
    %139 = vector.broadcast %cst_63 : f32 to vector<2x96xf32>
    %140 = arith.addf %139, %138 : vector<2x96xf32>
    %141 = arith.divf %139, %140 : vector<2x96xf32>
    %142 = vector.extract_strided_slice %132 {offsets = [0, 96], sizes = [2, 32], strides = [1, 1]} : vector<2x128xf32> to vector<2x32xf32>
    %143 = math.tanh %142 : vector<2x32xf32>
    %144 = vector.extract_strided_slice %141 {offsets = [0, 32], sizes = [2, 32], strides = [1, 1]} : vector<2x96xf32> to vector<2x32xf32>
    %145 = arith.mulf %144, %101 : vector<2x32xf32>
    %146 = vector.extract_strided_slice %141 {offsets = [0, 0], sizes = [2, 32], strides = [1, 1]} : vector<2x96xf32> to vector<2x32xf32>
    %147 = arith.mulf %146, %143 : vector<2x32xf32>
    %148 = arith.addf %145, %147 : vector<2x32xf32>
    %149 = vector.extract_strided_slice %141 {offsets = [0, 64], sizes = [2, 32], strides = [1, 1]} : vector<2x96xf32> to vector<2x32xf32>
    %150 = math.tanh %148 : vector<2x32xf32>
    %151 = arith.mulf %149, %150 : vector<2x32xf32>
    %152 = vector.extract_strided_slice %135 {offsets = [0, 0], sizes = [2, 96], strides = [1, 1]} : vector<2x128xf32> to vector<2x96xf32>
    %153 = arith.negf %152 : vector<2x96xf32>
    %154 = math.exp %153 : vector<2x96xf32>
    %cst_64 = arith.constant 1.000000e+00 : f32
    %155 = vector.broadcast %cst_64 : f32 to vector<2x96xf32>
    %156 = arith.addf %155, %154 : vector<2x96xf32>
    %157 = arith.divf %155, %156 : vector<2x96xf32>
    %158 = vector.extract_strided_slice %135 {offsets = [0, 96], sizes = [2, 32], strides = [1, 1]} : vector<2x128xf32> to vector<2x32xf32>
    %159 = math.tanh %158 : vector<2x32xf32>
    %160 = vector.extract_strided_slice %157 {offsets = [0, 32], sizes = [2, 32], strides = [1, 1]} : vector<2x96xf32> to vector<2x32xf32>
    %161 = arith.mulf %160, %117 : vector<2x32xf32>
    %162 = vector.extract_strided_slice %157 {offsets = [0, 0], sizes = [2, 32], strides = [1, 1]} : vector<2x96xf32> to vector<2x32xf32>
    %163 = arith.mulf %162, %159 : vector<2x32xf32>
    %164 = arith.addf %161, %163 : vector<2x32xf32>
    %165 = vector.extract_strided_slice %157 {offsets = [0, 64], sizes = [2, 32], strides = [1, 1]} : vector<2x96xf32> to vector<2x32xf32>
    %166 = math.tanh %164 : vector<2x32xf32>
    %167 = arith.mulf %165, %166 : vector<2x32xf32>
    %168 = vector.shape_cast %151 : vector<2x32xf32> to vector<2x1x32xf32>
    %c0_65 = arith.constant 0 : index
    %c2_66 = arith.constant 2 : index
    %c0_67 = arith.constant 0 : index
    %169 = vector.load %arg16[%c0_65, %c2_66, %c0_67] : memref<2x16x64xf32, #tpu.memory_space<vmem>>, vector<2x1x32xf32>
    tpu.vector_store %arg16[%c0_65, %c2_66, %c0_67], %168 {strides = array<i32>} : memref<2x16x64xf32, #tpu.memory_space<vmem>>, vector<2x1x32xf32>,
    %170 = vector.shape_cast %167 : vector<2x32xf32> to vector<2x1x32xf32>
    %c0_68 = arith.constant 0 : index
    %c13_69 = arith.constant 13 : index
    %c32_70 = arith.constant 32 : index
    %171 = vector.load %arg16[%c0_68, %c13_69, %c32_70] : memref<2x16x64xf32, #tpu.memory_space<vmem>>, vector<2x1x32xf32>
    tpu.vector_store %arg16[%c0_68, %c13_69, %c32_70], %170 {strides = array<i32>} : memref<2x16x64xf32, #tpu.memory_space<vmem>>, vector<2x1x32xf32>,
    %172 = tpu.concatenate %151, %167 in 1 : vector<2x32xf32>, vector<2x32xf32> -> vector<2x64xf32>
    %173 = arith.truncf %172 : vector<2x64xf32> to vector<2x64xbf16>
    %cst_71 = arith.constant dense<0.000000e+00> : vector<2x256xf32>
    %174 = tpu.matmul %173, %20, %cst_71 {dimension_numbers = #tpu.dot_dimension_numbers<[1], [0], [0], [1], [0, 0, 1, 1], [], []>} : vector<2x64xbf16>, vector<64x256xbf16>, vector<2x256xf32> -> vector<2x256xf32>
    %c0_72 = arith.constant 0 : index
    %c3 = arith.constant 3 : index
    %c0_73 = arith.constant 0 : index
    %175 = vector.load %arg14[%c0_72, %c3, %c0_73] : memref<2x16x256xf32, #tpu.memory_space<vmem>>, vector<2x1x128xf32>
    %c0_74 = arith.constant 0 : index
    %c12 = arith.constant 12 : index
    %c128_75 = arith.constant 128 : index
    %176 = vector.load %arg14[%c0_74, %c12, %c128_75] : memref<2x16x256xf32, #tpu.memory_space<vmem>>, vector<2x1x128xf32>
    %177 = vector.extract_strided_slice %174 {offsets = [0, 0], sizes = [2, 128], strides = [1, 1]} : vector<2x256xf32> to vector<2x128xf32>
    %178 = vector.shape_cast %175 : vector<2x1x128xf32> to vector<2x128xf32>
    %179 = arith.addf %177, %178 : vector<2x128xf32>
    %180 = vector.extract_strided_slice %174 {offsets = [0, 128], sizes = [2, 128], strides = [1, 1]} : vector<2x256xf32> to vector<2x128xf32>
    %181 = vector.shape_cast %176 : vector<2x1x128xf32> to vector<2x128xf32>
    %182 = arith.addf %180, %181 : vector<2x128xf32>
    %183 = vector.extract_strided_slice %179 {offsets = [0, 0], sizes = [2, 96], strides = [1, 1]} : vector<2x128xf32> to vector<2x96xf32>
    %184 = arith.negf %183 : vector<2x96xf32>
    %185 = math.exp %184 : vector<2x96xf32>
    %cst_76 = arith.constant 1.000000e+00 : f32
    %186 = vector.broadcast %cst_76 : f32 to vector<2x96xf32>
    %187 = arith.addf %186, %185 : vector<2x96xf32>
    %188 = arith.divf %186, %187 : vector<2x96xf32>
    %189 = vector.extract_strided_slice %179 {offsets = [0, 96], sizes = [2, 32], strides = [1, 1]} : vector<2x128xf32> to vector<2x32xf32>
    %190 = math.tanh %189 : vector<2x32xf32>
    %191 = vector.extract_strided_slice %188 {offsets = [0, 32], sizes = [2, 32], strides = [1, 1]} : vector<2x96xf32> to vector<2x32xf32>
    %192 = arith.mulf %191, %148 : vector<2x32xf32>
    %193 = vector.extract_strided_slice %188 {offsets = [0, 0], sizes = [2, 32], strides = [1, 1]} : vector<2x96xf32> to vector<2x32xf32>
    %194 = arith.mulf %193, %190 : vector<2x32xf32>
    %195 = arith.addf %192, %194 : vector<2x32xf32>
    %196 = vector.extract_strided_slice %188 {offsets = [0, 64], sizes = [2, 32], strides = [1, 1]} : vector<2x96xf32> to vector<2x32xf32>
    %197 = math.tanh %195 : vector<2x32xf32>
    %198 = arith.mulf %196, %197 : vector<2x32xf32>
    %199 = vector.extract_strided_slice %182 {offsets = [0, 0], sizes = [2, 96], strides = [1, 1]} : vector<2x128xf32> to vector<2x96xf32>
    %200 = arith.negf %199 : vector<2x96xf32>
    %201 = math.exp %200 : vector<2x96xf32>
    %cst_77 = arith.constant 1.000000e+00 : f32
    %202 = vector.broadcast %cst_77 : f32 to vector<2x96xf32>
    %203 = arith.addf %202, %201 : vector<2x96xf32>
    %204 = arith.divf %202, %203 : vector<2x96xf32>
    %205 = vector.extract_strided_slice %182 {offsets = [0, 96], sizes = [2, 32], strides = [1, 1]} : vector<2x128xf32> to vector<2x32xf32>
    %206 = math.tanh %205 : vector<2x32xf32>
    %207 = vector.extract_strided_slice %204 {offsets = [0, 32], sizes = [2, 32], strides = [1, 1]} : vector<2x96xf32> to vector<2x32xf32>
    %208 = arith.mulf %207, %164 : vector<2x32xf32>
    %209 = vector.extract_strided_slice %204 {offsets = [0, 0], sizes = [2, 32], strides = [1, 1]} : vector<2x96xf32> to vector<2x32xf32>
    %210 = arith.mulf %209, %206 : vector<2x32xf32>
    %211 = arith.addf %208, %210 : vector<2x32xf32>
    %212 = vector.extract_strided_slice %204 {offsets = [0, 64], sizes = [2, 32], strides = [1, 1]} : vector<2x96xf32> to vector<2x32xf32>
    %213 = math.tanh %211 : vector<2x32xf32>
    %214 = arith.mulf %212, %213 : vector<2x32xf32>
    %215 = vector.shape_cast %198 : vector<2x32xf32> to vector<2x1x32xf32>
    %c0_78 = arith.constant 0 : index
    %c3_79 = arith.constant 3 : index
    %c0_80 = arith.constant 0 : index
    %216 = vector.load %arg16[%c0_78, %c3_79, %c0_80] : memref<2x16x64xf32, #tpu.memory_space<vmem>>, vector<2x1x32xf32>
    tpu.vector_store %arg16[%c0_78, %c3_79, %c0_80], %215 {strides = array<i32>} : memref<2x16x64xf32, #tpu.memory_space<vmem>>, vector<2x1x32xf32>,
    %217 = vector.shape_cast %214 : vector<2x32xf32> to vector<2x1x32xf32>
    %c0_81 = arith.constant 0 : index
    %c12_82 = arith.constant 12 : index
    %c32_83 = arith.constant 32 : index
    %218 = vector.load %arg16[%c0_81, %c12_82, %c32_83] : memref<2x16x64xf32, #tpu.memory_space<vmem>>, vector<2x1x32xf32>
    tpu.vector_store %arg16[%c0_81, %c12_82, %c32_83], %217 {strides = array<i32>} : memref<2x16x64xf32, #tpu.memory_space<vmem>>, vector<2x1x32xf32>,
    %219 = tpu.concatenate %198, %214 in 1 : vector<2x32xf32>, vector<2x32xf32> -> vector<2x64xf32>
    %220 = arith.truncf %219 : vector<2x64xf32> to vector<2x64xbf16>
    %cst_84 = arith.constant dense<0.000000e+00> : vector<2x256xf32>
    %221 = tpu.matmul %220, %20, %cst_84 {dimension_numbers = #tpu.dot_dimension_numbers<[1], [0], [0], [1], [0, 0, 1, 1], [], []>} : vector<2x64xbf16>, vector<64x256xbf16>, vector<2x256xf32> -> vector<2x256xf32>
    %c0_85 = arith.constant 0 : index
    %c4 = arith.constant 4 : index
    %c0_86 = arith.constant 0 : index
    %222 = vector.load %arg14[%c0_85, %c4, %c0_86] : memref<2x16x256xf32, #tpu.memory_space<vmem>>, vector<2x1x128xf32>
    %c0_87 = arith.constant 0 : index
    %c11 = arith.constant 11 : index
    %c128_88 = arith.constant 128 : index
    %223 = vector.load %arg14[%c0_87, %c11, %c128_88] : memref<2x16x256xf32, #tpu.memory_space<vmem>>, vector<2x1x128xf32>
    %224 = vector.extract_strided_slice %221 {offsets = [0, 0], sizes = [2, 128], strides = [1, 1]} : vector<2x256xf32> to vector<2x128xf32>
    %225 = vector.shape_cast %222 : vector<2x1x128xf32> to vector<2x128xf32>
    %226 = arith.addf %224, %225 : vector<2x128xf32>
    %227 = vector.extract_strided_slice %221 {offsets = [0, 128], sizes = [2, 128], strides = [1, 1]} : vector<2x256xf32> to vector<2x128xf32>
    %228 = vector.shape_cast %223 : vector<2x1x128xf32> to vector<2x128xf32>
    %229 = arith.addf %227, %228 : vector<2x128xf32>
    %230 = vector.extract_strided_slice %226 {offsets = [0, 0], sizes = [2, 96], strides = [1, 1]} : vector<2x128xf32> to vector<2x96xf32>
    %231 = arith.negf %230 : vector<2x96xf32>
    %232 = math.exp %231 : vector<2x96xf32>
    %cst_89 = arith.constant 1.000000e+00 : f32
    %233 = vector.broadcast %cst_89 : f32 to vector<2x96xf32>
    %234 = arith.addf %233, %232 : vector<2x96xf32>
    %235 = arith.divf %233, %234 : vector<2x96xf32>
    %236 = vector.extract_strided_slice %226 {offsets = [0, 96], sizes = [2, 32], strides = [1, 1]} : vector<2x128xf32> to vector<2x32xf32>
    %237 = math.tanh %236 : vector<2x32xf32>
    %238 = vector.extract_strided_slice %235 {offsets = [0, 32], sizes = [2, 32], strides = [1, 1]} : vector<2x96xf32> to vector<2x32xf32>
    %239 = arith.mulf %238, %195 : vector<2x32xf32>
    %240 = vector.extract_strided_slice %235 {offsets = [0, 0], sizes = [2, 32], strides = [1, 1]} : vector<2x96xf32> to vector<2x32xf32>
    %241 = arith.mulf %240, %237 : vector<2x32xf32>
    %242 = arith.addf %239, %241 : vector<2x32xf32>
    %243 = vector.extract_strided_slice %235 {offsets = [0, 64], sizes = [2, 32], strides = [1, 1]} : vector<2x96xf32> to vector<2x32xf32>
    %244 = math.tanh %242 : vector<2x32xf32>
    %245 = arith.mulf %243, %244 : vector<2x32xf32>
    %246 = vector.extract_strided_slice %229 {offsets = [0, 0], sizes = [2, 96], strides = [1, 1]} : vector<2x128xf32> to vector<2x96xf32>
    %247 = arith.negf %246 : vector<2x96xf32>
    %248 = math.exp %247 : vector<2x96xf32>
    %cst_90 = arith.constant 1.000000e+00 : f32
    %249 = vector.broadcast %cst_90 : f32 to vector<2x96xf32>
    %250 = arith.addf %249, %248 : vector<2x96xf32>
    %251 = arith.divf %249, %250 : vector<2x96xf32>
    %252 = vector.extract_strided_slice %229 {offsets = [0, 96], sizes = [2, 32], strides = [1, 1]} : vector<2x128xf32> to vector<2x32xf32>
    %253 = math.tanh %252 : vector<2x32xf32>
    %254 = vector.extract_strided_slice %251 {offsets = [0, 32], sizes = [2, 32], strides = [1, 1]} : vector<2x96xf32> to vector<2x32xf32>
    %255 = arith.mulf %254, %211 : vector<2x32xf32>
    %256 = vector.extract_strided_slice %251 {offsets = [0, 0], sizes = [2, 32], strides = [1, 1]} : vector<2x96xf32> to vector<2x32xf32>
    %257 = arith.mulf %256, %253 : vector<2x32xf32>
    %258 = arith.addf %255, %257 : vector<2x32xf32>
    %259 = vector.extract_strided_slice %251 {offsets = [0, 64], sizes = [2, 32], strides = [1, 1]} : vector<2x96xf32> to vector<2x32xf32>
    %260 = math.tanh %258 : vector<2x32xf32>
    %261 = arith.mulf %259, %260 : vector<2x32xf32>
    %262 = vector.shape_cast %245 : vector<2x32xf32> to vector<2x1x32xf32>
    %c0_91 = arith.constant 0 : index
    %c4_92 = arith.constant 4 : index
    %c0_93 = arith.constant 0 : index
    %263 = vector.load %arg16[%c0_91, %c4_92, %c0_93] : memref<2x16x64xf32, #tpu.memory_space<vmem>>, vector<2x1x32xf32>
    tpu.vector_store %arg16[%c0_91, %c4_92, %c0_93], %262 {strides = array<i32>} : memref<2x16x64xf32, #tpu.memory_space<vmem>>, vector<2x1x32xf32>,
    %264 = vector.shape_cast %261 : vector<2x32xf32> to vector<2x1x32xf32>
    %c0_94 = arith.constant 0 : index
    %c11_95 = arith.constant 11 : index
    %c32_96 = arith.constant 32 : index
    %265 = vector.load %arg16[%c0_94, %c11_95, %c32_96] : memref<2x16x64xf32, #tpu.memory_space<vmem>>, vector<2x1x32xf32>
    tpu.vector_store %arg16[%c0_94, %c11_95, %c32_96], %264 {strides = array<i32>} : memref<2x16x64xf32, #tpu.memory_space<vmem>>, vector<2x1x32xf32>,
    %266 = tpu.concatenate %245, %261 in 1 : vector<2x32xf32>, vector<2x32xf32> -> vector<2x64xf32>
    %267 = arith.truncf %266 : vector<2x64xf32> to vector<2x64xbf16>
    %cst_97 = arith.constant dense<0.000000e+00> : vector<2x256xf32>
    %268 = tpu.matmul %267, %20, %cst_97 {dimension_numbers = #tpu.dot_dimension_numbers<[1], [0], [0], [1], [0, 0, 1, 1], [], []>} : vector<2x64xbf16>, vector<64x256xbf16>, vector<2x256xf32> -> vector<2x256xf32>
    %c0_98 = arith.constant 0 : index
    %c5 = arith.constant 5 : index
    %c0_99 = arith.constant 0 : index
    %269 = vector.load %arg14[%c0_98, %c5, %c0_99] : memref<2x16x256xf32, #tpu.memory_space<vmem>>, vector<2x1x128xf32>
    %c0_100 = arith.constant 0 : index
    %c10 = arith.constant 10 : index
    %c128_101 = arith.constant 128 : index
    %270 = vector.load %arg14[%c0_100, %c10, %c128_101] : memref<2x16x256xf32, #tpu.memory_space<vmem>>, vector<2x1x128xf32>
    %271 = vector.extract_strided_slice %268 {offsets = [0, 0], sizes = [2, 128], strides = [1, 1]} : vector<2x256xf32> to vector<2x128xf32>
    %272 = vector.shape_cast %269 : vector<2x1x128xf32> to vector<2x128xf32>
    %273 = arith.addf %271, %272 : vector<2x128xf32>
    %274 = vector.extract_strided_slice %268 {offsets = [0, 128], sizes = [2, 128], strides = [1, 1]} : vector<2x256xf32> to vector<2x128xf32>
    %275 = vector.shape_cast %270 : vector<2x1x128xf32> to vector<2x128xf32>
    %276 = arith.addf %274, %275 : vector<2x128xf32>
    %277 = vector.extract_strided_slice %273 {offsets = [0, 0], sizes = [2, 96], strides = [1, 1]} : vector<2x128xf32> to vector<2x96xf32>
    %278 = arith.negf %277 : vector<2x96xf32>
    %279 = math.exp %278 : vector<2x96xf32>
    %cst_102 = arith.constant 1.000000e+00 : f32
    %280 = vector.broadcast %cst_102 : f32 to vector<2x96xf32>
    %281 = arith.addf %280, %279 : vector<2x96xf32>
    %282 = arith.divf %280, %281 : vector<2x96xf32>
    %283 = vector.extract_strided_slice %273 {offsets = [0, 96], sizes = [2, 32], strides = [1, 1]} : vector<2x128xf32> to vector<2x32xf32>
    %284 = math.tanh %283 : vector<2x32xf32>
    %285 = vector.extract_strided_slice %282 {offsets = [0, 32], sizes = [2, 32], strides = [1, 1]} : vector<2x96xf32> to vector<2x32xf32>
    %286 = arith.mulf %285, %242 : vector<2x32xf32>
    %287 = vector.extract_strided_slice %282 {offsets = [0, 0], sizes = [2, 32], strides = [1, 1]} : vector<2x96xf32> to vector<2x32xf32>
    %288 = arith.mulf %287, %284 : vector<2x32xf32>
    %289 = arith.addf %286, %288 : vector<2x32xf32>
    %290 = vector.extract_strided_slice %282 {offsets = [0, 64], sizes = [2, 32], strides = [1, 1]} : vector<2x96xf32> to vector<2x32xf32>
    %291 = math.tanh %289 : vector<2x32xf32>
    %292 = arith.mulf %290, %291 : vector<2x32xf32>
    %293 = vector.extract_strided_slice %276 {offsets = [0, 0], sizes = [2, 96], strides = [1, 1]} : vector<2x128xf32> to vector<2x96xf32>
    %294 = arith.negf %293 : vector<2x96xf32>
    %295 = math.exp %294 : vector<2x96xf32>
    %cst_103 = arith.constant 1.000000e+00 : f32
    %296 = vector.broadcast %cst_103 : f32 to vector<2x96xf32>
    %297 = arith.addf %296, %295 : vector<2x96xf32>
    %298 = arith.divf %296, %297 : vector<2x96xf32>
    %299 = vector.extract_strided_slice %276 {offsets = [0, 96], sizes = [2, 32], strides = [1, 1]} : vector<2x128xf32> to vector<2x32xf32>
    %300 = math.tanh %299 : vector<2x32xf32>
    %301 = vector.extract_strided_slice %298 {offsets = [0, 32], sizes = [2, 32], strides = [1, 1]} : vector<2x96xf32> to vector<2x32xf32>
    %302 = arith.mulf %301, %258 : vector<2x32xf32>
    %303 = vector.extract_strided_slice %298 {offsets = [0, 0], sizes = [2, 32], strides = [1, 1]} : vector<2x96xf32> to vector<2x32xf32>
    %304 = arith.mulf %303, %300 : vector<2x32xf32>
    %305 = arith.addf %302, %304 : vector<2x32xf32>
    %306 = vector.extract_strided_slice %298 {offsets = [0, 64], sizes = [2, 32], strides = [1, 1]} : vector<2x96xf32> to vector<2x32xf32>
    %307 = math.tanh %305 : vector<2x32xf32>
    %308 = arith.mulf %306, %307 : vector<2x32xf32>
    %309 = vector.shape_cast %292 : vector<2x32xf32> to vector<2x1x32xf32>
    %c0_104 = arith.constant 0 : index
    %c5_105 = arith.constant 5 : index
    %c0_106 = arith.constant 0 : index
    %310 = vector.load %arg16[%c0_104, %c5_105, %c0_106] : memref<2x16x64xf32, #tpu.memory_space<vmem>>, vector<2x1x32xf32>
    tpu.vector_store %arg16[%c0_104, %c5_105, %c0_106], %309 {strides = array<i32>} : memref<2x16x64xf32, #tpu.memory_space<vmem>>, vector<2x1x32xf32>,
    %311 = vector.shape_cast %308 : vector<2x32xf32> to vector<2x1x32xf32>
    %c0_107 = arith.constant 0 : index
    %c10_108 = arith.constant 10 : index
    %c32_109 = arith.constant 32 : index
    %312 = vector.load %arg16[%c0_107, %c10_108, %c32_109] : memref<2x16x64xf32, #tpu.memory_space<vmem>>, vector<2x1x32xf32>
    tpu.vector_store %arg16[%c0_107, %c10_108, %c32_109], %311 {strides = array<i32>} : memref<2x16x64xf32, #tpu.memory_space<vmem>>, vector<2x1x32xf32>,
    %313 = tpu.concatenate %292, %308 in 1 : vector<2x32xf32>, vector<2x32xf32> -> vector<2x64xf32>
    %314 = arith.truncf %313 : vector<2x64xf32> to vector<2x64xbf16>
    %cst_110 = arith.constant dense<0.000000e+00> : vector<2x256xf32>
    %315 = tpu.matmul %314, %20, %cst_110 {dimension_numbers = #tpu.dot_dimension_numbers<[1], [0], [0], [1], [0, 0, 1, 1], [], []>} : vector<2x64xbf16>, vector<64x256xbf16>, vector<2x256xf32> -> vector<2x256xf32>
    %c0_111 = arith.constant 0 : index
    %c6 = arith.constant 6 : index
    %c0_112 = arith.constant 0 : index
    %316 = vector.load %arg14[%c0_111, %c6, %c0_112] : memref<2x16x256xf32, #tpu.memory_space<vmem>>, vector<2x1x128xf32>
    %c0_113 = arith.constant 0 : index
    %c9 = arith.constant 9 : index
    %c128_114 = arith.constant 128 : index
    %317 = vector.load %arg14[%c0_113, %c9, %c128_114] : memref<2x16x256xf32, #tpu.memory_space<vmem>>, vector<2x1x128xf32>
    %318 = vector.extract_strided_slice %315 {offsets = [0, 0], sizes = [2, 128], strides = [1, 1]} : vector<2x256xf32> to vector<2x128xf32>
    %319 = vector.shape_cast %316 : vector<2x1x128xf32> to vector<2x128xf32>
    %320 = arith.addf %318, %319 : vector<2x128xf32>
    %321 = vector.extract_strided_slice %315 {offsets = [0, 128], sizes = [2, 128], strides = [1, 1]} : vector<2x256xf32> to vector<2x128xf32>
    %322 = vector.shape_cast %317 : vector<2x1x128xf32> to vector<2x128xf32>
    %323 = arith.addf %321, %322 : vector<2x128xf32>
    %324 = vector.extract_strided_slice %320 {offsets = [0, 0], sizes = [2, 96], strides = [1, 1]} : vector<2x128xf32> to vector<2x96xf32>
    %325 = arith.negf %324 : vector<2x96xf32>
    %326 = math.exp %325 : vector<2x96xf32>
    %cst_115 = arith.constant 1.000000e+00 : f32
    %327 = vector.broadcast %cst_115 : f32 to vector<2x96xf32>
    %328 = arith.addf %327, %326 : vector<2x96xf32>
    %329 = arith.divf %327, %328 : vector<2x96xf32>
    %330 = vector.extract_strided_slice %320 {offsets = [0, 96], sizes = [2, 32], strides = [1, 1]} : vector<2x128xf32> to vector<2x32xf32>
    %331 = math.tanh %330 : vector<2x32xf32>
    %332 = vector.extract_strided_slice %329 {offsets = [0, 32], sizes = [2, 32], strides = [1, 1]} : vector<2x96xf32> to vector<2x32xf32>
    %333 = arith.mulf %332, %289 : vector<2x32xf32>
    %334 = vector.extract_strided_slice %329 {offsets = [0, 0], sizes = [2, 32], strides = [1, 1]} : vector<2x96xf32> to vector<2x32xf32>
    %335 = arith.mulf %334, %331 : vector<2x32xf32>
    %336 = arith.addf %333, %335 : vector<2x32xf32>
    %337 = vector.extract_strided_slice %329 {offsets = [0, 64], sizes = [2, 32], strides = [1, 1]} : vector<2x96xf32> to vector<2x32xf32>
    %338 = math.tanh %336 : vector<2x32xf32>
    %339 = arith.mulf %337, %338 : vector<2x32xf32>
    %340 = vector.extract_strided_slice %323 {offsets = [0, 0], sizes = [2, 96], strides = [1, 1]} : vector<2x128xf32> to vector<2x96xf32>
    %341 = arith.negf %340 : vector<2x96xf32>
    %342 = math.exp %341 : vector<2x96xf32>
    %cst_116 = arith.constant 1.000000e+00 : f32
    %343 = vector.broadcast %cst_116 : f32 to vector<2x96xf32>
    %344 = arith.addf %343, %342 : vector<2x96xf32>
    %345 = arith.divf %343, %344 : vector<2x96xf32>
    %346 = vector.extract_strided_slice %323 {offsets = [0, 96], sizes = [2, 32], strides = [1, 1]} : vector<2x128xf32> to vector<2x32xf32>
    %347 = math.tanh %346 : vector<2x32xf32>
    %348 = vector.extract_strided_slice %345 {offsets = [0, 32], sizes = [2, 32], strides = [1, 1]} : vector<2x96xf32> to vector<2x32xf32>
    %349 = arith.mulf %348, %305 : vector<2x32xf32>
    %350 = vector.extract_strided_slice %345 {offsets = [0, 0], sizes = [2, 32], strides = [1, 1]} : vector<2x96xf32> to vector<2x32xf32>
    %351 = arith.mulf %350, %347 : vector<2x32xf32>
    %352 = arith.addf %349, %351 : vector<2x32xf32>
    %353 = vector.extract_strided_slice %345 {offsets = [0, 64], sizes = [2, 32], strides = [1, 1]} : vector<2x96xf32> to vector<2x32xf32>
    %354 = math.tanh %352 : vector<2x32xf32>
    %355 = arith.mulf %353, %354 : vector<2x32xf32>
    %356 = vector.shape_cast %339 : vector<2x32xf32> to vector<2x1x32xf32>
    %c0_117 = arith.constant 0 : index
    %c6_118 = arith.constant 6 : index
    %c0_119 = arith.constant 0 : index
    %357 = vector.load %arg16[%c0_117, %c6_118, %c0_119] : memref<2x16x64xf32, #tpu.memory_space<vmem>>, vector<2x1x32xf32>
    tpu.vector_store %arg16[%c0_117, %c6_118, %c0_119], %356 {strides = array<i32>} : memref<2x16x64xf32, #tpu.memory_space<vmem>>, vector<2x1x32xf32>,
    %358 = vector.shape_cast %355 : vector<2x32xf32> to vector<2x1x32xf32>
    %c0_120 = arith.constant 0 : index
    %c9_121 = arith.constant 9 : index
    %c32_122 = arith.constant 32 : index
    %359 = vector.load %arg16[%c0_120, %c9_121, %c32_122] : memref<2x16x64xf32, #tpu.memory_space<vmem>>, vector<2x1x32xf32>
    tpu.vector_store %arg16[%c0_120, %c9_121, %c32_122], %358 {strides = array<i32>} : memref<2x16x64xf32, #tpu.memory_space<vmem>>, vector<2x1x32xf32>,
    %360 = tpu.concatenate %339, %355 in 1 : vector<2x32xf32>, vector<2x32xf32> -> vector<2x64xf32>
    %361 = arith.truncf %360 : vector<2x64xf32> to vector<2x64xbf16>
    %cst_123 = arith.constant dense<0.000000e+00> : vector<2x256xf32>
    %362 = tpu.matmul %361, %20, %cst_123 {dimension_numbers = #tpu.dot_dimension_numbers<[1], [0], [0], [1], [0, 0, 1, 1], [], []>} : vector<2x64xbf16>, vector<64x256xbf16>, vector<2x256xf32> -> vector<2x256xf32>
    %c0_124 = arith.constant 0 : index
    %c7 = arith.constant 7 : index
    %c0_125 = arith.constant 0 : index
    %363 = vector.load %arg14[%c0_124, %c7, %c0_125] : memref<2x16x256xf32, #tpu.memory_space<vmem>>, vector<2x1x128xf32>
    %c0_126 = arith.constant 0 : index
    %c8 = arith.constant 8 : index
    %c128_127 = arith.constant 128 : index
    %364 = vector.load %arg14[%c0_126, %c8, %c128_127] : memref<2x16x256xf32, #tpu.memory_space<vmem>>, vector<2x1x128xf32>
    %365 = vector.extract_strided_slice %362 {offsets = [0, 0], sizes = [2, 128], strides = [1, 1]} : vector<2x256xf32> to vector<2x128xf32>
    %366 = vector.shape_cast %363 : vector<2x1x128xf32> to vector<2x128xf32>
    %367 = arith.addf %365, %366 : vector<2x128xf32>
    %368 = vector.extract_strided_slice %362 {offsets = [0, 128], sizes = [2, 128], strides = [1, 1]} : vector<2x256xf32> to vector<2x128xf32>
    %369 = vector.shape_cast %364 : vector<2x1x128xf32> to vector<2x128xf32>
    %370 = arith.addf %368, %369 : vector<2x128xf32>
    %371 = vector.extract_strided_slice %367 {offsets = [0, 0], sizes = [2, 96], strides = [1, 1]} : vector<2x128xf32> to vector<2x96xf32>
    %372 = arith.negf %371 : vector<2x96xf32>
    %373 = math.exp %372 : vector<2x96xf32>
    %cst_128 = arith.constant 1.000000e+00 : f32
    %374 = vector.broadcast %cst_128 : f32 to vector<2x96xf32>
    %375 = arith.addf %374, %373 : vector<2x96xf32>
    %376 = arith.divf %374, %375 : vector<2x96xf32>
    %377 = vector.extract_strided_slice %367 {offsets = [0, 96], sizes = [2, 32], strides = [1, 1]} : vector<2x128xf32> to vector<2x32xf32>
    %378 = math.tanh %377 : vector<2x32xf32>
    %379 = vector.extract_strided_slice %376 {offsets = [0, 32], sizes = [2, 32], strides = [1, 1]} : vector<2x96xf32> to vector<2x32xf32>
    %380 = arith.mulf %379, %336 : vector<2x32xf32>
    %381 = vector.extract_strided_slice %376 {offsets = [0, 0], sizes = [2, 32], strides = [1, 1]} : vector<2x96xf32> to vector<2x32xf32>
    %382 = arith.mulf %381, %378 : vector<2x32xf32>
    %383 = arith.addf %380, %382 : vector<2x32xf32>
    %384 = vector.extract_strided_slice %376 {offsets = [0, 64], sizes = [2, 32], strides = [1, 1]} : vector<2x96xf32> to vector<2x32xf32>
    %385 = math.tanh %383 : vector<2x32xf32>
    %386 = arith.mulf %384, %385 : vector<2x32xf32>
    %387 = vector.extract_strided_slice %370 {offsets = [0, 0], sizes = [2, 96], strides = [1, 1]} : vector<2x128xf32> to vector<2x96xf32>
    %388 = arith.negf %387 : vector<2x96xf32>
    %389 = math.exp %388 : vector<2x96xf32>
    %cst_129 = arith.constant 1.000000e+00 : f32
    %390 = vector.broadcast %cst_129 : f32 to vector<2x96xf32>
    %391 = arith.addf %390, %389 : vector<2x96xf32>
    %392 = arith.divf %390, %391 : vector<2x96xf32>
    %393 = vector.extract_strided_slice %370 {offsets = [0, 96], sizes = [2, 32], strides = [1, 1]} : vector<2x128xf32> to vector<2x32xf32>
    %394 = math.tanh %393 : vector<2x32xf32>
    %395 = vector.extract_strided_slice %392 {offsets = [0, 32], sizes = [2, 32], strides = [1, 1]} : vector<2x96xf32> to vector<2x32xf32>
    %396 = arith.mulf %395, %352 : vector<2x32xf32>
    %397 = vector.extract_strided_slice %392 {offsets = [0, 0], sizes = [2, 32], strides = [1, 1]} : vector<2x96xf32> to vector<2x32xf32>
    %398 = arith.mulf %397, %394 : vector<2x32xf32>
    %399 = arith.addf %396, %398 : vector<2x32xf32>
    %400 = vector.extract_strided_slice %392 {offsets = [0, 64], sizes = [2, 32], strides = [1, 1]} : vector<2x96xf32> to vector<2x32xf32>
    %401 = math.tanh %399 : vector<2x32xf32>
    %402 = arith.mulf %400, %401 : vector<2x32xf32>
    %403 = vector.shape_cast %386 : vector<2x32xf32> to vector<2x1x32xf32>
    %c0_130 = arith.constant 0 : index
    %c7_131 = arith.constant 7 : index
    %c0_132 = arith.constant 0 : index
    %404 = vector.load %arg16[%c0_130, %c7_131, %c0_132] : memref<2x16x64xf32, #tpu.memory_space<vmem>>, vector<2x1x32xf32>
    tpu.vector_store %arg16[%c0_130, %c7_131, %c0_132], %403 {strides = array<i32>} : memref<2x16x64xf32, #tpu.memory_space<vmem>>, vector<2x1x32xf32>,
    %405 = vector.shape_cast %402 : vector<2x32xf32> to vector<2x1x32xf32>
    %c0_133 = arith.constant 0 : index
    %c8_134 = arith.constant 8 : index
    %c32_135 = arith.constant 32 : index
    %406 = vector.load %arg16[%c0_133, %c8_134, %c32_135] : memref<2x16x64xf32, #tpu.memory_space<vmem>>, vector<2x1x32xf32>
    tpu.vector_store %arg16[%c0_133, %c8_134, %c32_135], %405 {strides = array<i32>} : memref<2x16x64xf32, #tpu.memory_space<vmem>>, vector<2x1x32xf32>,
    %407 = tpu.concatenate %386, %402 in 1 : vector<2x32xf32>, vector<2x32xf32> -> vector<2x64xf32>
    %408 = arith.truncf %407 : vector<2x64xf32> to vector<2x64xbf16>
    %cst_136 = arith.constant dense<0.000000e+00> : vector<2x256xf32>
    %409 = tpu.matmul %408, %20, %cst_136 {dimension_numbers = #tpu.dot_dimension_numbers<[1], [0], [0], [1], [0, 0, 1, 1], [], []>} : vector<2x64xbf16>, vector<64x256xbf16>, vector<2x256xf32> -> vector<2x256xf32>
    %c0_137 = arith.constant 0 : index
    %c8_138 = arith.constant 8 : index
    %c0_139 = arith.constant 0 : index
    %410 = vector.load %arg14[%c0_137, %c8_138, %c0_139] : memref<2x16x256xf32, #tpu.memory_space<vmem>>, vector<2x1x128xf32>
    %c0_140 = arith.constant 0 : index
    %c7_141 = arith.constant 7 : index
    %c128_142 = arith.constant 128 : index
    %411 = vector.load %arg14[%c0_140, %c7_141, %c128_142] : memref<2x16x256xf32, #tpu.memory_space<vmem>>, vector<2x1x128xf32>
    %412 = vector.extract_strided_slice %409 {offsets = [0, 0], sizes = [2, 128], strides = [1, 1]} : vector<2x256xf32> to vector<2x128xf32>
    %413 = vector.shape_cast %410 : vector<2x1x128xf32> to vector<2x128xf32>
    %414 = arith.addf %412, %413 : vector<2x128xf32>
    %415 = vector.extract_strided_slice %409 {offsets = [0, 128], sizes = [2, 128], strides = [1, 1]} : vector<2x256xf32> to vector<2x128xf32>
    %416 = vector.shape_cast %411 : vector<2x1x128xf32> to vector<2x128xf32>
    %417 = arith.addf %415, %416 : vector<2x128xf32>
    %418 = vector.extract_strided_slice %414 {offsets = [0, 0], sizes = [2, 96], strides = [1, 1]} : vector<2x128xf32> to vector<2x96xf32>
    %419 = arith.negf %418 : vector<2x96xf32>
    %420 = math.exp %419 : vector<2x96xf32>
    %cst_143 = arith.constant 1.000000e+00 : f32
    %421 = vector.broadcast %cst_143 : f32 to vector<2x96xf32>
    %422 = arith.addf %421, %420 : vector<2x96xf32>
    %423 = arith.divf %421, %422 : vector<2x96xf32>
    %424 = vector.extract_strided_slice %414 {offsets = [0, 96], sizes = [2, 32], strides = [1, 1]} : vector<2x128xf32> to vector<2x32xf32>
    %425 = math.tanh %424 : vector<2x32xf32>
    %426 = vector.extract_strided_slice %423 {offsets = [0, 32], sizes = [2, 32], strides = [1, 1]} : vector<2x96xf32> to vector<2x32xf32>
    %427 = arith.mulf %426, %383 : vector<2x32xf32>
    %428 = vector.extract_strided_slice %423 {offsets = [0, 0], sizes = [2, 32], strides = [1, 1]} : vector<2x96xf32> to vector<2x32xf32>
    %429 = arith.mulf %428, %425 : vector<2x32xf32>
    %430 = arith.addf %427, %429 : vector<2x32xf32>
    %431 = vector.extract_strided_slice %423 {offsets = [0, 64], sizes = [2, 32], strides = [1, 1]} : vector<2x96xf32> to vector<2x32xf32>
    %432 = math.tanh %430 : vector<2x32xf32>
    %433 = arith.mulf %431, %432 : vector<2x32xf32>
    %434 = vector.extract_strided_slice %417 {offsets = [0, 0], sizes = [2, 96], strides = [1, 1]} : vector<2x128xf32> to vector<2x96xf32>
    %435 = arith.negf %434 : vector<2x96xf32>
    %436 = math.exp %435 : vector<2x96xf32>
    %cst_144 = arith.constant 1.000000e+00 : f32
    %437 = vector.broadcast %cst_144 : f32 to vector<2x96xf32>
    %438 = arith.addf %437, %436 : vector<2x96xf32>
    %439 = arith.divf %437, %438 : vector<2x96xf32>
    %440 = vector.extract_strided_slice %417 {offsets = [0, 96], sizes = [2, 32], strides = [1, 1]} : vector<2x128xf32> to vector<2x32xf32>
    %441 = math.tanh %440 : vector<2x32xf32>
    %442 = vector.extract_strided_slice %439 {offsets = [0, 32], sizes = [2, 32], strides = [1, 1]} : vector<2x96xf32> to vector<2x32xf32>
    %443 = arith.mulf %442, %399 : vector<2x32xf32>
    %444 = vector.extract_strided_slice %439 {offsets = [0, 0], sizes = [2, 32], strides = [1, 1]} : vector<2x96xf32> to vector<2x32xf32>
    %445 = arith.mulf %444, %441 : vector<2x32xf32>
    %446 = arith.addf %443, %445 : vector<2x32xf32>
    %447 = vector.extract_strided_slice %439 {offsets = [0, 64], sizes = [2, 32], strides = [1, 1]} : vector<2x96xf32> to vector<2x32xf32>
    %448 = math.tanh %446 : vector<2x32xf32>
    %449 = arith.mulf %447, %448 : vector<2x32xf32>
    %450 = vector.shape_cast %433 : vector<2x32xf32> to vector<2x1x32xf32>
    %c0_145 = arith.constant 0 : index
    %c8_146 = arith.constant 8 : index
    %c0_147 = arith.constant 0 : index
    %451 = vector.load %arg16[%c0_145, %c8_146, %c0_147] : memref<2x16x64xf32, #tpu.memory_space<vmem>>, vector<2x1x32xf32>
    tpu.vector_store %arg16[%c0_145, %c8_146, %c0_147], %450 {strides = array<i32>} : memref<2x16x64xf32, #tpu.memory_space<vmem>>, vector<2x1x32xf32>,
    %452 = vector.shape_cast %449 : vector<2x32xf32> to vector<2x1x32xf32>
    %c0_148 = arith.constant 0 : index
    %c7_149 = arith.constant 7 : index
    %c32_150 = arith.constant 32 : index
    %453 = vector.load %arg16[%c0_148, %c7_149, %c32_150] : memref<2x16x64xf32, #tpu.memory_space<vmem>>, vector<2x1x32xf32>
    tpu.vector_store %arg16[%c0_148, %c7_149, %c32_150], %452 {strides = array<i32>} : memref<2x16x64xf32, #tpu.memory_space<vmem>>, vector<2x1x32xf32>,
    %454 = tpu.concatenate %433, %449 in 1 : vector<2x32xf32>, vector<2x32xf32> -> vector<2x64xf32>
    %455 = arith.truncf %454 : vector<2x64xf32> to vector<2x64xbf16>
    %cst_151 = arith.constant dense<0.000000e+00> : vector<2x256xf32>
    %456 = tpu.matmul %455, %20, %cst_151 {dimension_numbers = #tpu.dot_dimension_numbers<[1], [0], [0], [1], [0, 0, 1, 1], [], []>} : vector<2x64xbf16>, vector<64x256xbf16>, vector<2x256xf32> -> vector<2x256xf32>
    %c0_152 = arith.constant 0 : index
    %c9_153 = arith.constant 9 : index
    %c0_154 = arith.constant 0 : index
    %457 = vector.load %arg14[%c0_152, %c9_153, %c0_154] : memref<2x16x256xf32, #tpu.memory_space<vmem>>, vector<2x1x128xf32>
    %c0_155 = arith.constant 0 : index
    %c6_156 = arith.constant 6 : index
    %c128_157 = arith.constant 128 : index
    %458 = vector.load %arg14[%c0_155, %c6_156, %c128_157] : memref<2x16x256xf32, #tpu.memory_space<vmem>>, vector<2x1x128xf32>
    %459 = vector.extract_strided_slice %456 {offsets = [0, 0], sizes = [2, 128], strides = [1, 1]} : vector<2x256xf32> to vector<2x128xf32>
    %460 = vector.shape_cast %457 : vector<2x1x128xf32> to vector<2x128xf32>
    %461 = arith.addf %459, %460 : vector<2x128xf32>
    %462 = vector.extract_strided_slice %456 {offsets = [0, 128], sizes = [2, 128], strides = [1, 1]} : vector<2x256xf32> to vector<2x128xf32>
    %463 = vector.shape_cast %458 : vector<2x1x128xf32> to vector<2x128xf32>
    %464 = arith.addf %462, %463 : vector<2x128xf32>
    %465 = vector.extract_strided_slice %461 {offsets = [0, 0], sizes = [2, 96], strides = [1, 1]} : vector<2x128xf32> to vector<2x96xf32>
    %466 = arith.negf %465 : vector<2x96xf32>
    %467 = math.exp %466 : vector<2x96xf32>
    %cst_158 = arith.constant 1.000000e+00 : f32
    %468 = vector.broadcast %cst_158 : f32 to vector<2x96xf32>
    %469 = arith.addf %468, %467 : vector<2x96xf32>
    %470 = arith.divf %468, %469 : vector<2x96xf32>
    %471 = vector.extract_strided_slice %461 {offsets = [0, 96], sizes = [2, 32], strides = [1, 1]} : vector<2x128xf32> to vector<2x32xf32>
    %472 = math.tanh %471 : vector<2x32xf32>
    %473 = vector.extract_strided_slice %470 {offsets = [0, 32], sizes = [2, 32], strides = [1, 1]} : vector<2x96xf32> to vector<2x32xf32>
    %474 = arith.mulf %473, %430 : vector<2x32xf32>
    %475 = vector.extract_strided_slice %470 {offsets = [0, 0], sizes = [2, 32], strides = [1, 1]} : vector<2x96xf32> to vector<2x32xf32>
    %476 = arith.mulf %475, %472 : vector<2x32xf32>
    %477 = arith.addf %474, %476 : vector<2x32xf32>
    %478 = vector.extract_strided_slice %470 {offsets = [0, 64], sizes = [2, 32], strides = [1, 1]} : vector<2x96xf32> to vector<2x32xf32>
    %479 = math.tanh %477 : vector<2x32xf32>
    %480 = arith.mulf %478, %479 : vector<2x32xf32>
    %481 = vector.extract_strided_slice %464 {offsets = [0, 0], sizes = [2, 96], strides = [1, 1]} : vector<2x128xf32> to vector<2x96xf32>
    %482 = arith.negf %481 : vector<2x96xf32>
    %483 = math.exp %482 : vector<2x96xf32>
    %cst_159 = arith.constant 1.000000e+00 : f32
    %484 = vector.broadcast %cst_159 : f32 to vector<2x96xf32>
    %485 = arith.addf %484, %483 : vector<2x96xf32>
    %486 = arith.divf %484, %485 : vector<2x96xf32>
    %487 = vector.extract_strided_slice %464 {offsets = [0, 96], sizes = [2, 32], strides = [1, 1]} : vector<2x128xf32> to vector<2x32xf32>
    %488 = math.tanh %487 : vector<2x32xf32>
    %489 = vector.extract_strided_slice %486 {offsets = [0, 32], sizes = [2, 32], strides = [1, 1]} : vector<2x96xf32> to vector<2x32xf32>
    %490 = arith.mulf %489, %446 : vector<2x32xf32>
    %491 = vector.extract_strided_slice %486 {offsets = [0, 0], sizes = [2, 32], strides = [1, 1]} : vector<2x96xf32> to vector<2x32xf32>
    %492 = arith.mulf %491, %488 : vector<2x32xf32>
    %493 = arith.addf %490, %492 : vector<2x32xf32>
    %494 = vector.extract_strided_slice %486 {offsets = [0, 64], sizes = [2, 32], strides = [1, 1]} : vector<2x96xf32> to vector<2x32xf32>
    %495 = math.tanh %493 : vector<2x32xf32>
    %496 = arith.mulf %494, %495 : vector<2x32xf32>
    %497 = vector.shape_cast %480 : vector<2x32xf32> to vector<2x1x32xf32>
    %c0_160 = arith.constant 0 : index
    %c9_161 = arith.constant 9 : index
    %c0_162 = arith.constant 0 : index
    %498 = vector.load %arg16[%c0_160, %c9_161, %c0_162] : memref<2x16x64xf32, #tpu.memory_space<vmem>>, vector<2x1x32xf32>
    tpu.vector_store %arg16[%c0_160, %c9_161, %c0_162], %497 {strides = array<i32>} : memref<2x16x64xf32, #tpu.memory_space<vmem>>, vector<2x1x32xf32>,
    %499 = vector.shape_cast %496 : vector<2x32xf32> to vector<2x1x32xf32>
    %c0_163 = arith.constant 0 : index
    %c6_164 = arith.constant 6 : index
    %c32_165 = arith.constant 32 : index
    %500 = vector.load %arg16[%c0_163, %c6_164, %c32_165] : memref<2x16x64xf32, #tpu.memory_space<vmem>>, vector<2x1x32xf32>
    tpu.vector_store %arg16[%c0_163, %c6_164, %c32_165], %499 {strides = array<i32>} : memref<2x16x64xf32, #tpu.memory_space<vmem>>, vector<2x1x32xf32>,
    %501 = tpu.concatenate %480, %496 in 1 : vector<2x32xf32>, vector<2x32xf32> -> vector<2x64xf32>
    %502 = arith.truncf %501 : vector<2x64xf32> to vector<2x64xbf16>
    %cst_166 = arith.constant dense<0.000000e+00> : vector<2x256xf32>
    %503 = tpu.matmul %502, %20, %cst_166 {dimension_numbers = #tpu.dot_dimension_numbers<[1], [0], [0], [1], [0, 0, 1, 1], [], []>} : vector<2x64xbf16>, vector<64x256xbf16>, vector<2x256xf32> -> vector<2x256xf32>
    %c0_167 = arith.constant 0 : index
    %c10_168 = arith.constant 10 : index
    %c0_169 = arith.constant 0 : index
    %504 = vector.load %arg14[%c0_167, %c10_168, %c0_169] : memref<2x16x256xf32, #tpu.memory_space<vmem>>, vector<2x1x128xf32>
    %c0_170 = arith.constant 0 : index
    %c5_171 = arith.constant 5 : index
    %c128_172 = arith.constant 128 : index
    %505 = vector.load %arg14[%c0_170, %c5_171, %c128_172] : memref<2x16x256xf32, #tpu.memory_space<vmem>>, vector<2x1x128xf32>
    %506 = vector.extract_strided_slice %503 {offsets = [0, 0], sizes = [2, 128], strides = [1, 1]} : vector<2x256xf32> to vector<2x128xf32>
    %507 = vector.shape_cast %504 : vector<2x1x128xf32> to vector<2x128xf32>
    %508 = arith.addf %506, %507 : vector<2x128xf32>
    %509 = vector.extract_strided_slice %503 {offsets = [0, 128], sizes = [2, 128], strides = [1, 1]} : vector<2x256xf32> to vector<2x128xf32>
    %510 = vector.shape_cast %505 : vector<2x1x128xf32> to vector<2x128xf32>
    %511 = arith.addf %509, %510 : vector<2x128xf32>
    %512 = vector.extract_strided_slice %508 {offsets = [0, 0], sizes = [2, 96], strides = [1, 1]} : vector<2x128xf32> to vector<2x96xf32>
    %513 = arith.negf %512 : vector<2x96xf32>
    %514 = math.exp %513 : vector<2x96xf32>
    %cst_173 = arith.constant 1.000000e+00 : f32
    %515 = vector.broadcast %cst_173 : f32 to vector<2x96xf32>
    %516 = arith.addf %515, %514 : vector<2x96xf32>
    %517 = arith.divf %515, %516 : vector<2x96xf32>
    %518 = vector.extract_strided_slice %508 {offsets = [0, 96], sizes = [2, 32], strides = [1, 1]} : vector<2x128xf32> to vector<2x32xf32>
    %519 = math.tanh %518 : vector<2x32xf32>
    %520 = vector.extract_strided_slice %517 {offsets = [0, 32], sizes = [2, 32], strides = [1, 1]} : vector<2x96xf32> to vector<2x32xf32>
    %521 = arith.mulf %520, %477 : vector<2x32xf32>
    %522 = vector.extract_strided_slice %517 {offsets = [0, 0], sizes = [2, 32], strides = [1, 1]} : vector<2x96xf32> to vector<2x32xf32>
    %523 = arith.mulf %522, %519 : vector<2x32xf32>
    %524 = arith.addf %521, %523 : vector<2x32xf32>
    %525 = vector.extract_strided_slice %517 {offsets = [0, 64], sizes = [2, 32], strides = [1, 1]} : vector<2x96xf32> to vector<2x32xf32>
    %526 = math.tanh %524 : vector<2x32xf32>
    %527 = arith.mulf %525, %526 : vector<2x32xf32>
    %528 = vector.extract_strided_slice %511 {offsets = [0, 0], sizes = [2, 96], strides = [1, 1]} : vector<2x128xf32> to vector<2x96xf32>
    %529 = arith.negf %528 : vector<2x96xf32>
    %530 = math.exp %529 : vector<2x96xf32>
    %cst_174 = arith.constant 1.000000e+00 : f32
    %531 = vector.broadcast %cst_174 : f32 to vector<2x96xf32>
    %532 = arith.addf %531, %530 : vector<2x96xf32>
    %533 = arith.divf %531, %532 : vector<2x96xf32>
    %534 = vector.extract_strided_slice %511 {offsets = [0, 96], sizes = [2, 32], strides = [1, 1]} : vector<2x128xf32> to vector<2x32xf32>
    %535 = math.tanh %534 : vector<2x32xf32>
    %536 = vector.extract_strided_slice %533 {offsets = [0, 32], sizes = [2, 32], strides = [1, 1]} : vector<2x96xf32> to vector<2x32xf32>
    %537 = arith.mulf %536, %493 : vector<2x32xf32>
    %538 = vector.extract_strided_slice %533 {offsets = [0, 0], sizes = [2, 32], strides = [1, 1]} : vector<2x96xf32> to vector<2x32xf32>
    %539 = arith.mulf %538, %535 : vector<2x32xf32>
    %540 = arith.addf %537, %539 : vector<2x32xf32>
    %541 = vector.extract_strided_slice %533 {offsets = [0, 64], sizes = [2, 32], strides = [1, 1]} : vector<2x96xf32> to vector<2x32xf32>
    %542 = math.tanh %540 : vector<2x32xf32>
    %543 = arith.mulf %541, %542 : vector<2x32xf32>
    %544 = vector.shape_cast %527 : vector<2x32xf32> to vector<2x1x32xf32>
    %c0_175 = arith.constant 0 : index
    %c10_176 = arith.constant 10 : index
    %c0_177 = arith.constant 0 : index
    %545 = vector.load %arg16[%c0_175, %c10_176, %c0_177] : memref<2x16x64xf32, #tpu.memory_space<vmem>>, vector<2x1x32xf32>
    tpu.vector_store %arg16[%c0_175, %c10_176, %c0_177], %544 {strides = array<i32>} : memref<2x16x64xf32, #tpu.memory_space<vmem>>, vector<2x1x32xf32>,
    %546 = vector.shape_cast %543 : vector<2x32xf32> to vector<2x1x32xf32>
    %c0_178 = arith.constant 0 : index
    %c5_179 = arith.constant 5 : index
    %c32_180 = arith.constant 32 : index
    %547 = vector.load %arg16[%c0_178, %c5_179, %c32_180] : memref<2x16x64xf32, #tpu.memory_space<vmem>>, vector<2x1x32xf32>
    tpu.vector_store %arg16[%c0_178, %c5_179, %c32_180], %546 {strides = array<i32>} : memref<2x16x64xf32, #tpu.memory_space<vmem>>, vector<2x1x32xf32>,
    %548 = tpu.concatenate %527, %543 in 1 : vector<2x32xf32>, vector<2x32xf32> -> vector<2x64xf32>
    %549 = arith.truncf %548 : vector<2x64xf32> to vector<2x64xbf16>
    %cst_181 = arith.constant dense<0.000000e+00> : vector<2x256xf32>
    %550 = tpu.matmul %549, %20, %cst_181 {dimension_numbers = #tpu.dot_dimension_numbers<[1], [0], [0], [1], [0, 0, 1, 1], [], []>} : vector<2x64xbf16>, vector<64x256xbf16>, vector<2x256xf32> -> vector<2x256xf32>
    %c0_182 = arith.constant 0 : index
    %c11_183 = arith.constant 11 : index
    %c0_184 = arith.constant 0 : index
    %551 = vector.load %arg14[%c0_182, %c11_183, %c0_184] : memref<2x16x256xf32, #tpu.memory_space<vmem>>, vector<2x1x128xf32>
    %c0_185 = arith.constant 0 : index
    %c4_186 = arith.constant 4 : index
    %c128_187 = arith.constant 128 : index
    %552 = vector.load %arg14[%c0_185, %c4_186, %c128_187] : memref<2x16x256xf32, #tpu.memory_space<vmem>>, vector<2x1x128xf32>
    %553 = vector.extract_strided_slice %550 {offsets = [0, 0], sizes = [2, 128], strides = [1, 1]} : vector<2x256xf32> to vector<2x128xf32>
    %554 = vector.shape_cast %551 : vector<2x1x128xf32> to vector<2x128xf32>
    %555 = arith.addf %553, %554 : vector<2x128xf32>
    %556 = vector.extract_strided_slice %550 {offsets = [0, 128], sizes = [2, 128], strides = [1, 1]} : vector<2x256xf32> to vector<2x128xf32>
    %557 = vector.shape_cast %552 : vector<2x1x128xf32> to vector<2x128xf32>
    %558 = arith.addf %556, %557 : vector<2x128xf32>
    %559 = vector.extract_strided_slice %555 {offsets = [0, 0], sizes = [2, 96], strides = [1, 1]} : vector<2x128xf32> to vector<2x96xf32>
    %560 = arith.negf %559 : vector<2x96xf32>
    %561 = math.exp %560 : vector<2x96xf32>
    %cst_188 = arith.constant 1.000000e+00 : f32
    %562 = vector.broadcast %cst_188 : f32 to vector<2x96xf32>
    %563 = arith.addf %562, %561 : vector<2x96xf32>
    %564 = arith.divf %562, %563 : vector<2x96xf32>
    %565 = vector.extract_strided_slice %555 {offsets = [0, 96], sizes = [2, 32], strides = [1, 1]} : vector<2x128xf32> to vector<2x32xf32>
    %566 = math.tanh %565 : vector<2x32xf32>
    %567 = vector.extract_strided_slice %564 {offsets = [0, 32], sizes = [2, 32], strides = [1, 1]} : vector<2x96xf32> to vector<2x32xf32>
    %568 = arith.mulf %567, %524 : vector<2x32xf32>
    %569 = vector.extract_strided_slice %564 {offsets = [0, 0], sizes = [2, 32], strides = [1, 1]} : vector<2x96xf32> to vector<2x32xf32>
    %570 = arith.mulf %569, %566 : vector<2x32xf32>
    %571 = arith.addf %568, %570 : vector<2x32xf32>
    %572 = vector.extract_strided_slice %564 {offsets = [0, 64], sizes = [2, 32], strides = [1, 1]} : vector<2x96xf32> to vector<2x32xf32>
    %573 = math.tanh %571 : vector<2x32xf32>
    %574 = arith.mulf %572, %573 : vector<2x32xf32>
    %575 = vector.extract_strided_slice %558 {offsets = [0, 0], sizes = [2, 96], strides = [1, 1]} : vector<2x128xf32> to vector<2x96xf32>
    %576 = arith.negf %575 : vector<2x96xf32>
    %577 = math.exp %576 : vector<2x96xf32>
    %cst_189 = arith.constant 1.000000e+00 : f32
    %578 = vector.broadcast %cst_189 : f32 to vector<2x96xf32>
    %579 = arith.addf %578, %577 : vector<2x96xf32>
    %580 = arith.divf %578, %579 : vector<2x96xf32>
    %581 = vector.extract_strided_slice %558 {offsets = [0, 96], sizes = [2, 32], strides = [1, 1]} : vector<2x128xf32> to vector<2x32xf32>
    %582 = math.tanh %581 : vector<2x32xf32>
    %583 = vector.extract_strided_slice %580 {offsets = [0, 32], sizes = [2, 32], strides = [1, 1]} : vector<2x96xf32> to vector<2x32xf32>
    %584 = arith.mulf %583, %540 : vector<2x32xf32>
    %585 = vector.extract_strided_slice %580 {offsets = [0, 0], sizes = [2, 32], strides = [1, 1]} : vector<2x96xf32> to vector<2x32xf32>
    %586 = arith.mulf %585, %582 : vector<2x32xf32>
    %587 = arith.addf %584, %586 : vector<2x32xf32>
    %588 = vector.extract_strided_slice %580 {offsets = [0, 64], sizes = [2, 32], strides = [1, 1]} : vector<2x96xf32> to vector<2x32xf32>
    %589 = math.tanh %587 : vector<2x32xf32>
    %590 = arith.mulf %588, %589 : vector<2x32xf32>
    %591 = vector.shape_cast %574 : vector<2x32xf32> to vector<2x1x32xf32>
    %c0_190 = arith.constant 0 : index
    %c11_191 = arith.constant 11 : index
    %c0_192 = arith.constant 0 : index
    %592 = vector.load %arg16[%c0_190, %c11_191, %c0_192] : memref<2x16x64xf32, #tpu.memory_space<vmem>>, vector<2x1x32xf32>
    tpu.vector_store %arg16[%c0_190, %c11_191, %c0_192], %591 {strides = array<i32>} : memref<2x16x64xf32, #tpu.memory_space<vmem>>, vector<2x1x32xf32>,
    %593 = vector.shape_cast %590 : vector<2x32xf32> to vector<2x1x32xf32>
    %c0_193 = arith.constant 0 : index
    %c4_194 = arith.constant 4 : index
    %c32_195 = arith.constant 32 : index
    %594 = vector.load %arg16[%c0_193, %c4_194, %c32_195] : memref<2x16x64xf32, #tpu.memory_space<vmem>>, vector<2x1x32xf32>
    tpu.vector_store %arg16[%c0_193, %c4_194, %c32_195], %593 {strides = array<i32>} : memref<2x16x64xf32, #tpu.memory_space<vmem>>, vector<2x1x32xf32>,
    %595 = tpu.concatenate %574, %590 in 1 : vector<2x32xf32>, vector<2x32xf32> -> vector<2x64xf32>
    %596 = arith.truncf %595 : vector<2x64xf32> to vector<2x64xbf16>
    %cst_196 = arith.constant dense<0.000000e+00> : vector<2x256xf32>
    %597 = tpu.matmul %596, %20, %cst_196 {dimension_numbers = #tpu.dot_dimension_numbers<[1], [0], [0], [1], [0, 0, 1, 1], [], []>} : vector<2x64xbf16>, vector<64x256xbf16>, vector<2x256xf32> -> vector<2x256xf32>
    %c0_197 = arith.constant 0 : index
    %c12_198 = arith.constant 12 : index
    %c0_199 = arith.constant 0 : index
    %598 = vector.load %arg14[%c0_197, %c12_198, %c0_199] : memref<2x16x256xf32, #tpu.memory_space<vmem>>, vector<2x1x128xf32>
    %c0_200 = arith.constant 0 : index
    %c3_201 = arith.constant 3 : index
    %c128_202 = arith.constant 128 : index
    %599 = vector.load %arg14[%c0_200, %c3_201, %c128_202] : memref<2x16x256xf32, #tpu.memory_space<vmem>>, vector<2x1x128xf32>
    %600 = vector.extract_strided_slice %597 {offsets = [0, 0], sizes = [2, 128], strides = [1, 1]} : vector<2x256xf32> to vector<2x128xf32>
    %601 = vector.shape_cast %598 : vector<2x1x128xf32> to vector<2x128xf32>
    %602 = arith.addf %600, %601 : vector<2x128xf32>
    %603 = vector.extract_strided_slice %597 {offsets = [0, 128], sizes = [2, 128], strides = [1, 1]} : vector<2x256xf32> to vector<2x128xf32>
    %604 = vector.shape_cast %599 : vector<2x1x128xf32> to vector<2x128xf32>
    %605 = arith.addf %603, %604 : vector<2x128xf32>
    %606 = vector.extract_strided_slice %602 {offsets = [0, 0], sizes = [2, 96], strides = [1, 1]} : vector<2x128xf32> to vector<2x96xf32>
    %607 = arith.negf %606 : vector<2x96xf32>
    %608 = math.exp %607 : vector<2x96xf32>
    %cst_203 = arith.constant 1.000000e+00 : f32
    %609 = vector.broadcast %cst_203 : f32 to vector<2x96xf32>
    %610 = arith.addf %609, %608 : vector<2x96xf32>
    %611 = arith.divf %609, %610 : vector<2x96xf32>
    %612 = vector.extract_strided_slice %602 {offsets = [0, 96], sizes = [2, 32], strides = [1, 1]} : vector<2x128xf32> to vector<2x32xf32>
    %613 = math.tanh %612 : vector<2x32xf32>
    %614 = vector.extract_strided_slice %611 {offsets = [0, 32], sizes = [2, 32], strides = [1, 1]} : vector<2x96xf32> to vector<2x32xf32>
    %615 = arith.mulf %614, %571 : vector<2x32xf32>
    %616 = vector.extract_strided_slice %611 {offsets = [0, 0], sizes = [2, 32], strides = [1, 1]} : vector<2x96xf32> to vector<2x32xf32>
    %617 = arith.mulf %616, %613 : vector<2x32xf32>
    %618 = arith.addf %615, %617 : vector<2x32xf32>
    %619 = vector.extract_strided_slice %611 {offsets = [0, 64], sizes = [2, 32], strides = [1, 1]} : vector<2x96xf32> to vector<2x32xf32>
    %620 = math.tanh %618 : vector<2x32xf32>
    %621 = arith.mulf %619, %620 : vector<2x32xf32>
    %622 = vector.extract_strided_slice %605 {offsets = [0, 0], sizes = [2, 96], strides = [1, 1]} : vector<2x128xf32> to vector<2x96xf32>
    %623 = arith.negf %622 : vector<2x96xf32>
    %624 = math.exp %623 : vector<2x96xf32>
    %cst_204 = arith.constant 1.000000e+00 : f32
    %625 = vector.broadcast %cst_204 : f32 to vector<2x96xf32>
    %626 = arith.addf %625, %624 : vector<2x96xf32>
    %627 = arith.divf %625, %626 : vector<2x96xf32>
    %628 = vector.extract_strided_slice %605 {offsets = [0, 96], sizes = [2, 32], strides = [1, 1]} : vector<2x128xf32> to vector<2x32xf32>
    %629 = math.tanh %628 : vector<2x32xf32>
    %630 = vector.extract_strided_slice %627 {offsets = [0, 32], sizes = [2, 32], strides = [1, 1]} : vector<2x96xf32> to vector<2x32xf32>
    %631 = arith.mulf %630, %587 : vector<2x32xf32>
    %632 = vector.extract_strided_slice %627 {offsets = [0, 0], sizes = [2, 32], strides = [1, 1]} : vector<2x96xf32> to vector<2x32xf32>
    %633 = arith.mulf %632, %629 : vector<2x32xf32>
    %634 = arith.addf %631, %633 : vector<2x32xf32>
    %635 = vector.extract_strided_slice %627 {offsets = [0, 64], sizes = [2, 32], strides = [1, 1]} : vector<2x96xf32> to vector<2x32xf32>
    %636 = math.tanh %634 : vector<2x32xf32>
    %637 = arith.mulf %635, %636 : vector<2x32xf32>
    %638 = vector.shape_cast %621 : vector<2x32xf32> to vector<2x1x32xf32>
    %c0_205 = arith.constant 0 : index
    %c12_206 = arith.constant 12 : index
    %c0_207 = arith.constant 0 : index
    %639 = vector.load %arg16[%c0_205, %c12_206, %c0_207] : memref<2x16x64xf32, #tpu.memory_space<vmem>>, vector<2x1x32xf32>
    tpu.vector_store %arg16[%c0_205, %c12_206, %c0_207], %638 {strides = array<i32>} : memref<2x16x64xf32, #tpu.memory_space<vmem>>, vector<2x1x32xf32>,
    %640 = vector.shape_cast %637 : vector<2x32xf32> to vector<2x1x32xf32>
    %c0_208 = arith.constant 0 : index
    %c3_209 = arith.constant 3 : index
    %c32_210 = arith.constant 32 : index
    %641 = vector.load %arg16[%c0_208, %c3_209, %c32_210] : memref<2x16x64xf32, #tpu.memory_space<vmem>>, vector<2x1x32xf32>
    tpu.vector_store %arg16[%c0_208, %c3_209, %c32_210], %640 {strides = array<i32>} : memref<2x16x64xf32, #tpu.memory_space<vmem>>, vector<2x1x32xf32>,
    %642 = tpu.concatenate %621, %637 in 1 : vector<2x32xf32>, vector<2x32xf32> -> vector<2x64xf32>
    %643 = arith.truncf %642 : vector<2x64xf32> to vector<2x64xbf16>
    %cst_211 = arith.constant dense<0.000000e+00> : vector<2x256xf32>
    %644 = tpu.matmul %643, %20, %cst_211 {dimension_numbers = #tpu.dot_dimension_numbers<[1], [0], [0], [1], [0, 0, 1, 1], [], []>} : vector<2x64xbf16>, vector<64x256xbf16>, vector<2x256xf32> -> vector<2x256xf32>
    %c0_212 = arith.constant 0 : index
    %c13_213 = arith.constant 13 : index
    %c0_214 = arith.constant 0 : index
    %645 = vector.load %arg14[%c0_212, %c13_213, %c0_214] : memref<2x16x256xf32, #tpu.memory_space<vmem>>, vector<2x1x128xf32>
    %c0_215 = arith.constant 0 : index
    %c2_216 = arith.constant 2 : index
    %c128_217 = arith.constant 128 : index
    %646 = vector.load %arg14[%c0_215, %c2_216, %c128_217] : memref<2x16x256xf32, #tpu.memory_space<vmem>>, vector<2x1x128xf32>
    %647 = vector.extract_strided_slice %644 {offsets = [0, 0], sizes = [2, 128], strides = [1, 1]} : vector<2x256xf32> to vector<2x128xf32>
    %648 = vector.shape_cast %645 : vector<2x1x128xf32> to vector<2x128xf32>
    %649 = arith.addf %647, %648 : vector<2x128xf32>
    %650 = vector.extract_strided_slice %644 {offsets = [0, 128], sizes = [2, 128], strides = [1, 1]} : vector<2x256xf32> to vector<2x128xf32>
    %651 = vector.shape_cast %646 : vector<2x1x128xf32> to vector<2x128xf32>
    %652 = arith.addf %650, %651 : vector<2x128xf32>
    %653 = vector.extract_strided_slice %649 {offsets = [0, 0], sizes = [2, 96], strides = [1, 1]} : vector<2x128xf32> to vector<2x96xf32>
    %654 = arith.negf %653 : vector<2x96xf32>
    %655 = math.exp %654 : vector<2x96xf32>
    %cst_218 = arith.constant 1.000000e+00 : f32
    %656 = vector.broadcast %cst_218 : f32 to vector<2x96xf32>
    %657 = arith.addf %656, %655 : vector<2x96xf32>
    %658 = arith.divf %656, %657 : vector<2x96xf32>
    %659 = vector.extract_strided_slice %649 {offsets = [0, 96], sizes = [2, 32], strides = [1, 1]} : vector<2x128xf32> to vector<2x32xf32>
    %660 = math.tanh %659 : vector<2x32xf32>
    %661 = vector.extract_strided_slice %658 {offsets = [0, 32], sizes = [2, 32], strides = [1, 1]} : vector<2x96xf32> to vector<2x32xf32>
    %662 = arith.mulf %661, %618 : vector<2x32xf32>
    %663 = vector.extract_strided_slice %658 {offsets = [0, 0], sizes = [2, 32], strides = [1, 1]} : vector<2x96xf32> to vector<2x32xf32>
    %664 = arith.mulf %663, %660 : vector<2x32xf32>
    %665 = arith.addf %662, %664 : vector<2x32xf32>
    %666 = vector.extract_strided_slice %658 {offsets = [0, 64], sizes = [2, 32], strides = [1, 1]} : vector<2x96xf32> to vector<2x32xf32>
    %667 = math.tanh %665 : vector<2x32xf32>
    %668 = arith.mulf %666, %667 : vector<2x32xf32>
    %669 = vector.extract_strided_slice %652 {offsets = [0, 0], sizes = [2, 96], strides = [1, 1]} : vector<2x128xf32> to vector<2x96xf32>
    %670 = arith.negf %669 : vector<2x96xf32>
    %671 = math.exp %670 : vector<2x96xf32>
    %cst_219 = arith.constant 1.000000e+00 : f32
    %672 = vector.broadcast %cst_219 : f32 to vector<2x96xf32>
    %673 = arith.addf %672, %671 : vector<2x96xf32>
    %674 = arith.divf %672, %673 : vector<2x96xf32>
    %675 = vector.extract_strided_slice %652 {offsets = [0, 96], sizes = [2, 32], strides = [1, 1]} : vector<2x128xf32> to vector<2x32xf32>
    %676 = math.tanh %675 : vector<2x32xf32>
    %677 = vector.extract_strided_slice %674 {offsets = [0, 32], sizes = [2, 32], strides = [1, 1]} : vector<2x96xf32> to vector<2x32xf32>
    %678 = arith.mulf %677, %634 : vector<2x32xf32>
    %679 = vector.extract_strided_slice %674 {offsets = [0, 0], sizes = [2, 32], strides = [1, 1]} : vector<2x96xf32> to vector<2x32xf32>
    %680 = arith.mulf %679, %676 : vector<2x32xf32>
    %681 = arith.addf %678, %680 : vector<2x32xf32>
    %682 = vector.extract_strided_slice %674 {offsets = [0, 64], sizes = [2, 32], strides = [1, 1]} : vector<2x96xf32> to vector<2x32xf32>
    %683 = math.tanh %681 : vector<2x32xf32>
    %684 = arith.mulf %682, %683 : vector<2x32xf32>
    %685 = vector.shape_cast %668 : vector<2x32xf32> to vector<2x1x32xf32>
    %c0_220 = arith.constant 0 : index
    %c13_221 = arith.constant 13 : index
    %c0_222 = arith.constant 0 : index
    %686 = vector.load %arg16[%c0_220, %c13_221, %c0_222] : memref<2x16x64xf32, #tpu.memory_space<vmem>>, vector<2x1x32xf32>
    tpu.vector_store %arg16[%c0_220, %c13_221, %c0_222], %685 {strides = array<i32>} : memref<2x16x64xf32, #tpu.memory_space<vmem>>, vector<2x1x32xf32>,
    %687 = vector.shape_cast %684 : vector<2x32xf32> to vector<2x1x32xf32>
    %c0_223 = arith.constant 0 : index
    %c2_224 = arith.constant 2 : index
    %c32_225 = arith.constant 32 : index
    %688 = vector.load %arg16[%c0_223, %c2_224, %c32_225] : memref<2x16x64xf32, #tpu.memory_space<vmem>>, vector<2x1x32xf32>
    tpu.vector_store %arg16[%c0_223, %c2_224, %c32_225], %687 {strides = array<i32>} : memref<2x16x64xf32, #tpu.memory_space<vmem>>, vector<2x1x32xf32>,
    %689 = tpu.concatenate %668, %684 in 1 : vector<2x32xf32>, vector<2x32xf32> -> vector<2x64xf32>
    %690 = arith.truncf %689 : vector<2x64xf32> to vector<2x64xbf16>
    %cst_226 = arith.constant dense<0.000000e+00> : vector<2x256xf32>
    %691 = tpu.matmul %690, %20, %cst_226 {dimension_numbers = #tpu.dot_dimension_numbers<[1], [0], [0], [1], [0, 0, 1, 1], [], []>} : vector<2x64xbf16>, vector<64x256xbf16>, vector<2x256xf32> -> vector<2x256xf32>
    %c0_227 = arith.constant 0 : index
    %c14_228 = arith.constant 14 : index
    %c0_229 = arith.constant 0 : index
    %692 = vector.load %arg14[%c0_227, %c14_228, %c0_229] : memref<2x16x256xf32, #tpu.memory_space<vmem>>, vector<2x1x128xf32>
    %c0_230 = arith.constant 0 : index
    %c1_231 = arith.constant 1 : index
    %c128_232 = arith.constant 128 : index
    %693 = vector.load %arg14[%c0_230, %c1_231, %c128_232] : memref<2x16x256xf32, #tpu.memory_space<vmem>>, vector<2x1x128xf32>
    %694 = vector.extract_strided_slice %691 {offsets = [0, 0], sizes = [2, 128], strides = [1, 1]} : vector<2x256xf32> to vector<2x128xf32>
    %695 = vector.shape_cast %692 : vector<2x1x128xf32> to vector<2x128xf32>
    %696 = arith.addf %694, %695 : vector<2x128xf32>
    %697 = vector.extract_strided_slice %691 {offsets = [0, 128], sizes = [2, 128], strides = [1, 1]} : vector<2x256xf32> to vector<2x128xf32>
    %698 = vector.shape_cast %693 : vector<2x1x128xf32> to vector<2x128xf32>
    %699 = arith.addf %697, %698 : vector<2x128xf32>
    %700 = vector.extract_strided_slice %696 {offsets = [0, 0], sizes = [2, 96], strides = [1, 1]} : vector<2x128xf32> to vector<2x96xf32>
    %701 = arith.negf %700 : vector<2x96xf32>
    %702 = math.exp %701 : vector<2x96xf32>
    %cst_233 = arith.constant 1.000000e+00 : f32
    %703 = vector.broadcast %cst_233 : f32 to vector<2x96xf32>
    %704 = arith.addf %703, %702 : vector<2x96xf32>
    %705 = arith.divf %703, %704 : vector<2x96xf32>
    %706 = vector.extract_strided_slice %696 {offsets = [0, 96], sizes = [2, 32], strides = [1, 1]} : vector<2x128xf32> to vector<2x32xf32>
    %707 = math.tanh %706 : vector<2x32xf32>
    %708 = vector.extract_strided_slice %705 {offsets = [0, 32], sizes = [2, 32], strides = [1, 1]} : vector<2x96xf32> to vector<2x32xf32>
    %709 = arith.mulf %708, %665 : vector<2x32xf32>
    %710 = vector.extract_strided_slice %705 {offsets = [0, 0], sizes = [2, 32], strides = [1, 1]} : vector<2x96xf32> to vector<2x32xf32>
    %711 = arith.mulf %710, %707 : vector<2x32xf32>
    %712 = arith.addf %709, %711 : vector<2x32xf32>
    %713 = vector.extract_strided_slice %705 {offsets = [0, 64], sizes = [2, 32], strides = [1, 1]} : vector<2x96xf32> to vector<2x32xf32>
    %714 = math.tanh %712 : vector<2x32xf32>
    %715 = arith.mulf %713, %714 : vector<2x32xf32>
    %716 = vector.extract_strided_slice %699 {offsets = [0, 0], sizes = [2, 96], strides = [1, 1]} : vector<2x128xf32> to vector<2x96xf32>
    %717 = arith.negf %716 : vector<2x96xf32>
    %718 = math.exp %717 : vector<2x96xf32>
    %cst_234 = arith.constant 1.000000e+00 : f32
    %719 = vector.broadcast %cst_234 : f32 to vector<2x96xf32>
    %720 = arith.addf %719, %718 : vector<2x96xf32>
    %721 = arith.divf %719, %720 : vector<2x96xf32>
    %722 = vector.extract_strided_slice %699 {offsets = [0, 96], sizes = [2, 32], strides = [1, 1]} : vector<2x128xf32> to vector<2x32xf32>
    %723 = math.tanh %722 : vector<2x32xf32>
    %724 = vector.extract_strided_slice %721 {offsets = [0, 32], sizes = [2, 32], strides = [1, 1]} : vector<2x96xf32> to vector<2x32xf32>
    %725 = arith.mulf %724, %681 : vector<2x32xf32>
    %726 = vector.extract_strided_slice %721 {offsets = [0, 0], sizes = [2, 32], strides = [1, 1]} : vector<2x96xf32> to vector<2x32xf32>
    %727 = arith.mulf %726, %723 : vector<2x32xf32>
    %728 = arith.addf %725, %727 : vector<2x32xf32>
    %729 = vector.extract_strided_slice %721 {offsets = [0, 64], sizes = [2, 32], strides = [1, 1]} : vector<2x96xf32> to vector<2x32xf32>
    %730 = math.tanh %728 : vector<2x32xf32>
    %731 = arith.mulf %729, %730 : vector<2x32xf32>
    %732 = vector.shape_cast %715 : vector<2x32xf32> to vector<2x1x32xf32>
    %c0_235 = arith.constant 0 : index
    %c14_236 = arith.constant 14 : index
    %c0_237 = arith.constant 0 : index
    %733 = vector.load %arg16[%c0_235, %c14_236, %c0_237] : memref<2x16x64xf32, #tpu.memory_space<vmem>>, vector<2x1x32xf32>
    tpu.vector_store %arg16[%c0_235, %c14_236, %c0_237], %732 {strides = array<i32>} : memref<2x16x64xf32, #tpu.memory_space<vmem>>, vector<2x1x32xf32>,
    %734 = vector.shape_cast %731 : vector<2x32xf32> to vector<2x1x32xf32>
    %c0_238 = arith.constant 0 : index
    %c1_239 = arith.constant 1 : index
    %c32_240 = arith.constant 32 : index
    %735 = vector.load %arg16[%c0_238, %c1_239, %c32_240] : memref<2x16x64xf32, #tpu.memory_space<vmem>>, vector<2x1x32xf32>
    tpu.vector_store %arg16[%c0_238, %c1_239, %c32_240], %734 {strides = array<i32>} : memref<2x16x64xf32, #tpu.memory_space<vmem>>, vector<2x1x32xf32>,
    %736 = tpu.concatenate %715, %731 in 1 : vector<2x32xf32>, vector<2x32xf32> -> vector<2x64xf32>
    %737 = arith.truncf %736 : vector<2x64xf32> to vector<2x64xbf16>
    %cst_241 = arith.constant dense<0.000000e+00> : vector<2x256xf32>
    %738 = tpu.matmul %737, %20, %cst_241 {dimension_numbers = #tpu.dot_dimension_numbers<[1], [0], [0], [1], [0, 0, 1, 1], [], []>} : vector<2x64xbf16>, vector<64x256xbf16>, vector<2x256xf32> -> vector<2x256xf32>
    %c0_242 = arith.constant 0 : index
    %c15_243 = arith.constant 15 : index
    %c0_244 = arith.constant 0 : index
    %739 = vector.load %arg14[%c0_242, %c15_243, %c0_244] : memref<2x16x256xf32, #tpu.memory_space<vmem>>, vector<2x1x128xf32>
    %c0_245 = arith.constant 0 : index
    %c0_246 = arith.constant 0 : index
    %c128_247 = arith.constant 128 : index
    %740 = vector.load %arg14[%c0_245, %c0_246, %c128_247] : memref<2x16x256xf32, #tpu.memory_space<vmem>>, vector<2x1x128xf32>
    %741 = vector.extract_strided_slice %738 {offsets = [0, 0], sizes = [2, 128], strides = [1, 1]} : vector<2x256xf32> to vector<2x128xf32>
    %742 = vector.shape_cast %739 : vector<2x1x128xf32> to vector<2x128xf32>
    %743 = arith.addf %741, %742 : vector<2x128xf32>
    %744 = vector.extract_strided_slice %738 {offsets = [0, 128], sizes = [2, 128], strides = [1, 1]} : vector<2x256xf32> to vector<2x128xf32>
    %745 = vector.shape_cast %740 : vector<2x1x128xf32> to vector<2x128xf32>
    %746 = arith.addf %744, %745 : vector<2x128xf32>
    %747 = vector.extract_strided_slice %743 {offsets = [0, 0], sizes = [2, 96], strides = [1, 1]} : vector<2x128xf32> to vector<2x96xf32>
    %748 = arith.negf %747 : vector<2x96xf32>
    %749 = math.exp %748 : vector<2x96xf32>
    %cst_248 = arith.constant 1.000000e+00 : f32
    %750 = vector.broadcast %cst_248 : f32 to vector<2x96xf32>
    %751 = arith.addf %750, %749 : vector<2x96xf32>
    %752 = arith.divf %750, %751 : vector<2x96xf32>
    %753 = vector.extract_strided_slice %743 {offsets = [0, 96], sizes = [2, 32], strides = [1, 1]} : vector<2x128xf32> to vector<2x32xf32>
    %754 = math.tanh %753 : vector<2x32xf32>
    %755 = vector.extract_strided_slice %752 {offsets = [0, 32], sizes = [2, 32], strides = [1, 1]} : vector<2x96xf32> to vector<2x32xf32>
    %756 = arith.mulf %755, %712 : vector<2x32xf32>
    %757 = vector.extract_strided_slice %752 {offsets = [0, 0], sizes = [2, 32], strides = [1, 1]} : vector<2x96xf32> to vector<2x32xf32>
    %758 = arith.mulf %757, %754 : vector<2x32xf32>
    %759 = arith.addf %756, %758 : vector<2x32xf32>
    %760 = vector.extract_strided_slice %752 {offsets = [0, 64], sizes = [2, 32], strides = [1, 1]} : vector<2x96xf32> to vector<2x32xf32>
    %761 = math.tanh %759 : vector<2x32xf32>
    %762 = arith.mulf %760, %761 : vector<2x32xf32>
    %763 = vector.extract_strided_slice %746 {offsets = [0, 0], sizes = [2, 96], strides = [1, 1]} : vector<2x128xf32> to vector<2x96xf32>
    %764 = arith.negf %763 : vector<2x96xf32>
    %765 = math.exp %764 : vector<2x96xf32>
    %cst_249 = arith.constant 1.000000e+00 : f32
    %766 = vector.broadcast %cst_249 : f32 to vector<2x96xf32>
    %767 = arith.addf %766, %765 : vector<2x96xf32>
    %768 = arith.divf %766, %767 : vector<2x96xf32>
    %769 = vector.extract_strided_slice %746 {offsets = [0, 96], sizes = [2, 32], strides = [1, 1]} : vector<2x128xf32> to vector<2x32xf32>
    %770 = math.tanh %769 : vector<2x32xf32>
    %771 = vector.extract_strided_slice %768 {offsets = [0, 32], sizes = [2, 32], strides = [1, 1]} : vector<2x96xf32> to vector<2x32xf32>
    %772 = arith.mulf %771, %728 : vector<2x32xf32>
    %773 = vector.extract_strided_slice %768 {offsets = [0, 0], sizes = [2, 32], strides = [1, 1]} : vector<2x96xf32> to vector<2x32xf32>
    %774 = arith.mulf %773, %770 : vector<2x32xf32>
    %775 = arith.addf %772, %774 : vector<2x32xf32>
    %776 = vector.extract_strided_slice %768 {offsets = [0, 64], sizes = [2, 32], strides = [1, 1]} : vector<2x96xf32> to vector<2x32xf32>
    %777 = math.tanh %775 : vector<2x32xf32>
    %778 = arith.mulf %776, %777 : vector<2x32xf32>
    %779 = vector.shape_cast %762 : vector<2x32xf32> to vector<2x1x32xf32>
    %c0_250 = arith.constant 0 : index
    %c15_251 = arith.constant 15 : index
    %c0_252 = arith.constant 0 : index
    %780 = vector.load %arg16[%c0_250, %c15_251, %c0_252] : memref<2x16x64xf32, #tpu.memory_space<vmem>>, vector<2x1x32xf32>
    tpu.vector_store %arg16[%c0_250, %c15_251, %c0_252], %779 {strides = array<i32>} : memref<2x16x64xf32, #tpu.memory_space<vmem>>, vector<2x1x32xf32>,
    %781 = vector.shape_cast %778 : vector<2x32xf32> to vector<2x1x32xf32>
    %c0_253 = arith.constant 0 : index
    %c0_254 = arith.constant 0 : index
    %c32_255 = arith.constant 32 : index
    %782 = vector.load %arg16[%c0_253, %c0_254, %c32_255] : memref<2x16x64xf32, #tpu.memory_space<vmem>>, vector<2x1x32xf32>
    tpu.vector_store %arg16[%c0_253, %c0_254, %c32_255], %781 {strides = array<i32>} : memref<2x16x64xf32, #tpu.memory_space<vmem>>, vector<2x1x32xf32>,
    %c0_256 = arith.constant 0 : index
    %c0_257 = arith.constant 0 : index
    %c0_258 = arith.constant 0 : index
    %783 = vector.load %arg16[%c0_256, %c0_257, %c0_258] : memref<2x16x64xf32, #tpu.memory_space<vmem>>, vector<2x16x64xf32>
    %784 = vector.shape_cast %783 : vector<2x16x64xf32> to vector<32x64xf32>
    %c0_259 = arith.constant 0 : index
    %c0_260 = arith.constant 0 : index
    %785 = vector.load %arg7[%c0_259, %c0_260] : memref<64x256xbf16, #tpu.memory_space<vmem>>, vector<64x256xbf16>
    %786 = arith.truncf %784 : vector<32x64xf32> to vector<32x64xbf16>
    %c0_261 = arith.constant 0 : index
    %c0_262 = arith.constant 0 : index
    %787 = vector.load %arg6[%c0_261, %c0_262] : memref<64x256xbf16, #tpu.memory_space<vmem>>, vector<64x256xbf16>
    %cst_263 = arith.constant dense<0.000000e+00> : vector<32x256xf32>
    %788 = tpu.matmul %786, %787, %cst_263 {dimension_numbers = #tpu.dot_dimension_numbers<[1], [0], [0], [1], [0, 0, 1, 1], [], []>} : vector<32x64xbf16>, vector<64x256xbf16>, vector<32x256xf32> -> vector<32x256xf32>
    %c0_264 = arith.constant 0 : index
    %c0_265 = arith.constant 0 : index
    %789 = vector.load %arg8[%c0_264, %c0_265] : memref<1x256xf32, #tpu.memory_space<vmem>>, vector<1x256xf32>
    %790 = vector.broadcast %789 : vector<1x256xf32> to vector<32x256xf32>
    %791 = arith.addf %788, %790 : vector<32x256xf32>
    %792 = vector.shape_cast %791 : vector<32x256xf32> to vector<2x16x256xf32>
    %c0_266 = arith.constant 0 : index
    %c0_267 = arith.constant 0 : index
    %c0_268 = arith.constant 0 : index
    %793 = vector.load %arg15[%c0_266, %c0_267, %c0_268] : memref<2x16x256xf32, #tpu.memory_space<vmem>>, vector<2x16x256xf32>
    tpu.vector_store %arg15[%c0_266, %c0_267, %c0_268], %792 {strides = array<i32>} : memref<2x16x256xf32, #tpu.memory_space<vmem>>, vector<2x16x256xf32>,
    %cst_269 = arith.constant 0.000000e+00 : f32
    %794 = vector.broadcast %cst_269 : f32 to vector<2x64xf32>
    %cst_270 = arith.constant 0.000000e+00 : f32
    %795 = vector.broadcast %cst_270 : f32 to vector<2x32xf32>
    %cst_271 = arith.constant 0.000000e+00 : f32
    %796 = vector.broadcast %cst_271 : f32 to vector<2x32xf32>
    %797 = arith.truncf %794 : vector<2x64xf32> to vector<2x64xbf16>
    %cst_272 = arith.constant dense<0.000000e+00> : vector<2x256xf32>
    %798 = tpu.matmul %797, %785, %cst_272 {dimension_numbers = #tpu.dot_dimension_numbers<[1], [0], [0], [1], [0, 0, 1, 1], [], []>} : vector<2x64xbf16>, vector<64x256xbf16>, vector<2x256xf32> -> vector<2x256xf32>
    %c0_273 = arith.constant 0 : index
    %c0_274 = arith.constant 0 : index
    %c0_275 = arith.constant 0 : index
    %799 = vector.load %arg15[%c0_273, %c0_274, %c0_275] : memref<2x16x256xf32, #tpu.memory_space<vmem>>, vector<2x1x128xf32>
    %c0_276 = arith.constant 0 : index
    %c15_277 = arith.constant 15 : index
    %c128_278 = arith.constant 128 : index
    %800 = vector.load %arg15[%c0_276, %c15_277, %c128_278] : memref<2x16x256xf32, #tpu.memory_space<vmem>>, vector<2x1x128xf32>
    %801 = vector.extract_strided_slice %798 {offsets = [0, 0], sizes = [2, 128], strides = [1, 1]} : vector<2x256xf32> to vector<2x128xf32>
    %802 = vector.shape_cast %799 : vector<2x1x128xf32> to vector<2x128xf32>
    %803 = arith.addf %801, %802 : vector<2x128xf32>
    %804 = vector.extract_strided_slice %798 {offsets = [0, 128], sizes = [2, 128], strides = [1, 1]} : vector<2x256xf32> to vector<2x128xf32>
    %805 = vector.shape_cast %800 : vector<2x1x128xf32> to vector<2x128xf32>
    %806 = arith.addf %804, %805 : vector<2x128xf32>
    %807 = vector.extract_strided_slice %803 {offsets = [0, 0], sizes = [2, 96], strides = [1, 1]} : vector<2x128xf32> to vector<2x96xf32>
    %808 = arith.negf %807 : vector<2x96xf32>
    %809 = math.exp %808 : vector<2x96xf32>
    %cst_279 = arith.constant 1.000000e+00 : f32
    %810 = vector.broadcast %cst_279 : f32 to vector<2x96xf32>
    %811 = arith.addf %810, %809 : vector<2x96xf32>
    %812 = arith.divf %810, %811 : vector<2x96xf32>
    %813 = vector.extract_strided_slice %803 {offsets = [0, 96], sizes = [2, 32], strides = [1, 1]} : vector<2x128xf32> to vector<2x32xf32>
    %814 = math.tanh %813 : vector<2x32xf32>
    %815 = vector.extract_strided_slice %812 {offsets = [0, 32], sizes = [2, 32], strides = [1, 1]} : vector<2x96xf32> to vector<2x32xf32>
    %816 = arith.mulf %815, %795 : vector<2x32xf32>
    %817 = vector.extract_strided_slice %812 {offsets = [0, 0], sizes = [2, 32], strides = [1, 1]} : vector<2x96xf32> to vector<2x32xf32>
    %818 = arith.mulf %817, %814 : vector<2x32xf32>
    %819 = arith.addf %816, %818 : vector<2x32xf32>
    %820 = vector.extract_strided_slice %812 {offsets = [0, 64], sizes = [2, 32], strides = [1, 1]} : vector<2x96xf32> to vector<2x32xf32>
    %821 = math.tanh %819 : vector<2x32xf32>
    %822 = arith.mulf %820, %821 : vector<2x32xf32>
    %823 = vector.extract_strided_slice %806 {offsets = [0, 0], sizes = [2, 96], strides = [1, 1]} : vector<2x128xf32> to vector<2x96xf32>
    %824 = arith.negf %823 : vector<2x96xf32>
    %825 = math.exp %824 : vector<2x96xf32>
    %cst_280 = arith.constant 1.000000e+00 : f32
    %826 = vector.broadcast %cst_280 : f32 to vector<2x96xf32>
    %827 = arith.addf %826, %825 : vector<2x96xf32>
    %828 = arith.divf %826, %827 : vector<2x96xf32>
    %829 = vector.extract_strided_slice %806 {offsets = [0, 96], sizes = [2, 32], strides = [1, 1]} : vector<2x128xf32> to vector<2x32xf32>
    %830 = math.tanh %829 : vector<2x32xf32>
    %831 = vector.extract_strided_slice %828 {offsets = [0, 32], sizes = [2, 32], strides = [1, 1]} : vector<2x96xf32> to vector<2x32xf32>
    %832 = arith.mulf %831, %796 : vector<2x32xf32>
    %833 = vector.extract_strided_slice %828 {offsets = [0, 0], sizes = [2, 32], strides = [1, 1]} : vector<2x96xf32> to vector<2x32xf32>
    %834 = arith.mulf %833, %830 : vector<2x32xf32>
    %835 = arith.addf %832, %834 : vector<2x32xf32>
    %836 = vector.extract_strided_slice %828 {offsets = [0, 64], sizes = [2, 32], strides = [1, 1]} : vector<2x96xf32> to vector<2x32xf32>
    %837 = math.tanh %835 : vector<2x32xf32>
    %838 = arith.mulf %836, %837 : vector<2x32xf32>
    %839 = vector.shape_cast %822 : vector<2x32xf32> to vector<2x1x32xf32>
    %c0_281 = arith.constant 0 : index
    %c0_282 = arith.constant 0 : index
    %c0_283 = arith.constant 0 : index
    %840 = vector.load %arg17[%c0_281, %c0_282, %c0_283] : memref<2x16x64xf32, #tpu.memory_space<vmem>>, vector<2x1x32xf32>
    tpu.vector_store %arg17[%c0_281, %c0_282, %c0_283], %839 {strides = array<i32>} : memref<2x16x64xf32, #tpu.memory_space<vmem>>, vector<2x1x32xf32>,
    %841 = vector.shape_cast %838 : vector<2x32xf32> to vector<2x1x32xf32>
    %c0_284 = arith.constant 0 : index
    %c15_285 = arith.constant 15 : index
    %c32_286 = arith.constant 32 : index
    %842 = vector.load %arg17[%c0_284, %c15_285, %c32_286] : memref<2x16x64xf32, #tpu.memory_space<vmem>>, vector<2x1x32xf32>
    tpu.vector_store %arg17[%c0_284, %c15_285, %c32_286], %841 {strides = array<i32>} : memref<2x16x64xf32, #tpu.memory_space<vmem>>, vector<2x1x32xf32>,
    %843 = tpu.concatenate %822, %838 in 1 : vector<2x32xf32>, vector<2x32xf32> -> vector<2x64xf32>
    %844 = arith.truncf %843 : vector<2x64xf32> to vector<2x64xbf16>
    %cst_287 = arith.constant dense<0.000000e+00> : vector<2x256xf32>
    %845 = tpu.matmul %844, %785, %cst_287 {dimension_numbers = #tpu.dot_dimension_numbers<[1], [0], [0], [1], [0, 0, 1, 1], [], []>} : vector<2x64xbf16>, vector<64x256xbf16>, vector<2x256xf32> -> vector<2x256xf32>
    %c0_288 = arith.constant 0 : index
    %c1_289 = arith.constant 1 : index
    %c0_290 = arith.constant 0 : index
    %846 = vector.load %arg15[%c0_288, %c1_289, %c0_290] : memref<2x16x256xf32, #tpu.memory_space<vmem>>, vector<2x1x128xf32>
    %c0_291 = arith.constant 0 : index
    %c14_292 = arith.constant 14 : index
    %c128_293 = arith.constant 128 : index
    %847 = vector.load %arg15[%c0_291, %c14_292, %c128_293] : memref<2x16x256xf32, #tpu.memory_space<vmem>>, vector<2x1x128xf32>
    %848 = vector.extract_strided_slice %845 {offsets = [0, 0], sizes = [2, 128], strides = [1, 1]} : vector<2x256xf32> to vector<2x128xf32>
    %849 = vector.shape_cast %846 : vector<2x1x128xf32> to vector<2x128xf32>
    %850 = arith.addf %848, %849 : vector<2x128xf32>
    %851 = vector.extract_strided_slice %845 {offsets = [0, 128], sizes = [2, 128], strides = [1, 1]} : vector<2x256xf32> to vector<2x128xf32>
    %852 = vector.shape_cast %847 : vector<2x1x128xf32> to vector<2x128xf32>
    %853 = arith.addf %851, %852 : vector<2x128xf32>
    %854 = vector.extract_strided_slice %850 {offsets = [0, 0], sizes = [2, 96], strides = [1, 1]} : vector<2x128xf32> to vector<2x96xf32>
    %855 = arith.negf %854 : vector<2x96xf32>
    %856 = math.exp %855 : vector<2x96xf32>
    %cst_294 = arith.constant 1.000000e+00 : f32
    %857 = vector.broadcast %cst_294 : f32 to vector<2x96xf32>
    %858 = arith.addf %857, %856 : vector<2x96xf32>
    %859 = arith.divf %857, %858 : vector<2x96xf32>
    %860 = vector.extract_strided_slice %850 {offsets = [0, 96], sizes = [2, 32], strides = [1, 1]} : vector<2x128xf32> to vector<2x32xf32>
    %861 = math.tanh %860 : vector<2x32xf32>
    %862 = vector.extract_strided_slice %859 {offsets = [0, 32], sizes = [2, 32], strides = [1, 1]} : vector<2x96xf32> to vector<2x32xf32>
    %863 = arith.mulf %862, %819 : vector<2x32xf32>
    %864 = vector.extract_strided_slice %859 {offsets = [0, 0], sizes = [2, 32], strides = [1, 1]} : vector<2x96xf32> to vector<2x32xf32>
    %865 = arith.mulf %864, %861 : vector<2x32xf32>
    %866 = arith.addf %863, %865 : vector<2x32xf32>
    %867 = vector.extract_strided_slice %859 {offsets = [0, 64], sizes = [2, 32], strides = [1, 1]} : vector<2x96xf32> to vector<2x32xf32>
    %868 = math.tanh %866 : vector<2x32xf32>
    %869 = arith.mulf %867, %868 : vector<2x32xf32>
    %870 = vector.extract_strided_slice %853 {offsets = [0, 0], sizes = [2, 96], strides = [1, 1]} : vector<2x128xf32> to vector<2x96xf32>
    %871 = arith.negf %870 : vector<2x96xf32>
    %872 = math.exp %871 : vector<2x96xf32>
    %cst_295 = arith.constant 1.000000e+00 : f32
    %873 = vector.broadcast %cst_295 : f32 to vector<2x96xf32>
    %874 = arith.addf %873, %872 : vector<2x96xf32>
    %875 = arith.divf %873, %874 : vector<2x96xf32>
    %876 = vector.extract_strided_slice %853 {offsets = [0, 96], sizes = [2, 32], strides = [1, 1]} : vector<2x128xf32> to vector<2x32xf32>
    %877 = math.tanh %876 : vector<2x32xf32>
    %878 = vector.extract_strided_slice %875 {offsets = [0, 32], sizes = [2, 32], strides = [1, 1]} : vector<2x96xf32> to vector<2x32xf32>
    %879 = arith.mulf %878, %835 : vector<2x32xf32>
    %880 = vector.extract_strided_slice %875 {offsets = [0, 0], sizes = [2, 32], strides = [1, 1]} : vector<2x96xf32> to vector<2x32xf32>
    %881 = arith.mulf %880, %877 : vector<2x32xf32>
    %882 = arith.addf %879, %881 : vector<2x32xf32>
    %883 = vector.extract_strided_slice %875 {offsets = [0, 64], sizes = [2, 32], strides = [1, 1]} : vector<2x96xf32> to vector<2x32xf32>
    %884 = math.tanh %882 : vector<2x32xf32>
    %885 = arith.mulf %883, %884 : vector<2x32xf32>
    %886 = vector.shape_cast %869 : vector<2x32xf32> to vector<2x1x32xf32>
    %c0_296 = arith.constant 0 : index
    %c1_297 = arith.constant 1 : index
    %c0_298 = arith.constant 0 : index
    %887 = vector.load %arg17[%c0_296, %c1_297, %c0_298] : memref<2x16x64xf32, #tpu.memory_space<vmem>>, vector<2x1x32xf32>
    tpu.vector_store %arg17[%c0_296, %c1_297, %c0_298], %886 {strides = array<i32>} : memref<2x16x64xf32, #tpu.memory_space<vmem>>, vector<2x1x32xf32>,
    %888 = vector.shape_cast %885 : vector<2x32xf32> to vector<2x1x32xf32>
    %c0_299 = arith.constant 0 : index
    %c14_300 = arith.constant 14 : index
    %c32_301 = arith.constant 32 : index
    %889 = vector.load %arg17[%c0_299, %c14_300, %c32_301] : memref<2x16x64xf32, #tpu.memory_space<vmem>>, vector<2x1x32xf32>
    tpu.vector_store %arg17[%c0_299, %c14_300, %c32_301], %888 {strides = array<i32>} : memref<2x16x64xf32, #tpu.memory_space<vmem>>, vector<2x1x32xf32>,
    %890 = tpu.concatenate %869, %885 in 1 : vector<2x32xf32>, vector<2x32xf32> -> vector<2x64xf32>
    %891 = arith.truncf %890 : vector<2x64xf32> to vector<2x64xbf16>
    %cst_302 = arith.constant dense<0.000000e+00> : vector<2x256xf32>
    %892 = tpu.matmul %891, %785, %cst_302 {dimension_numbers = #tpu.dot_dimension_numbers<[1], [0], [0], [1], [0, 0, 1, 1], [], []>} : vector<2x64xbf16>, vector<64x256xbf16>, vector<2x256xf32> -> vector<2x256xf32>
    %c0_303 = arith.constant 0 : index
    %c2_304 = arith.constant 2 : index
    %c0_305 = arith.constant 0 : index
    %893 = vector.load %arg15[%c0_303, %c2_304, %c0_305] : memref<2x16x256xf32, #tpu.memory_space<vmem>>, vector<2x1x128xf32>
    %c0_306 = arith.constant 0 : index
    %c13_307 = arith.constant 13 : index
    %c128_308 = arith.constant 128 : index
    %894 = vector.load %arg15[%c0_306, %c13_307, %c128_308] : memref<2x16x256xf32, #tpu.memory_space<vmem>>, vector<2x1x128xf32>
    %895 = vector.extract_strided_slice %892 {offsets = [0, 0], sizes = [2, 128], strides = [1, 1]} : vector<2x256xf32> to vector<2x128xf32>
    %896 = vector.shape_cast %893 : vector<2x1x128xf32> to vector<2x128xf32>
    %897 = arith.addf %895, %896 : vector<2x128xf32>
    %898 = vector.extract_strided_slice %892 {offsets = [0, 128], sizes = [2, 128], strides = [1, 1]} : vector<2x256xf32> to vector<2x128xf32>
    %899 = vector.shape_cast %894 : vector<2x1x128xf32> to vector<2x128xf32>
    %900 = arith.addf %898, %899 : vector<2x128xf32>
    %901 = vector.extract_strided_slice %897 {offsets = [0, 0], sizes = [2, 96], strides = [1, 1]} : vector<2x128xf32> to vector<2x96xf32>
    %902 = arith.negf %901 : vector<2x96xf32>
    %903 = math.exp %902 : vector<2x96xf32>
    %cst_309 = arith.constant 1.000000e+00 : f32
    %904 = vector.broadcast %cst_309 : f32 to vector<2x96xf32>
    %905 = arith.addf %904, %903 : vector<2x96xf32>
    %906 = arith.divf %904, %905 : vector<2x96xf32>
    %907 = vector.extract_strided_slice %897 {offsets = [0, 96], sizes = [2, 32], strides = [1, 1]} : vector<2x128xf32> to vector<2x32xf32>
    %908 = math.tanh %907 : vector<2x32xf32>
    %909 = vector.extract_strided_slice %906 {offsets = [0, 32], sizes = [2, 32], strides = [1, 1]} : vector<2x96xf32> to vector<2x32xf32>
    %910 = arith.mulf %909, %866 : vector<2x32xf32>
    %911 = vector.extract_strided_slice %906 {offsets = [0, 0], sizes = [2, 32], strides = [1, 1]} : vector<2x96xf32> to vector<2x32xf32>
    %912 = arith.mulf %911, %908 : vector<2x32xf32>
    %913 = arith.addf %910, %912 : vector<2x32xf32>
    %914 = vector.extract_strided_slice %906 {offsets = [0, 64], sizes = [2, 32], strides = [1, 1]} : vector<2x96xf32> to vector<2x32xf32>
    %915 = math.tanh %913 : vector<2x32xf32>
    %916 = arith.mulf %914, %915 : vector<2x32xf32>
    %917 = vector.extract_strided_slice %900 {offsets = [0, 0], sizes = [2, 96], strides = [1, 1]} : vector<2x128xf32> to vector<2x96xf32>
    %918 = arith.negf %917 : vector<2x96xf32>
    %919 = math.exp %918 : vector<2x96xf32>
    %cst_310 = arith.constant 1.000000e+00 : f32
    %920 = vector.broadcast %cst_310 : f32 to vector<2x96xf32>
    %921 = arith.addf %920, %919 : vector<2x96xf32>
    %922 = arith.divf %920, %921 : vector<2x96xf32>
    %923 = vector.extract_strided_slice %900 {offsets = [0, 96], sizes = [2, 32], strides = [1, 1]} : vector<2x128xf32> to vector<2x32xf32>
    %924 = math.tanh %923 : vector<2x32xf32>
    %925 = vector.extract_strided_slice %922 {offsets = [0, 32], sizes = [2, 32], strides = [1, 1]} : vector<2x96xf32> to vector<2x32xf32>
    %926 = arith.mulf %925, %882 : vector<2x32xf32>
    %927 = vector.extract_strided_slice %922 {offsets = [0, 0], sizes = [2, 32], strides = [1, 1]} : vector<2x96xf32> to vector<2x32xf32>
    %928 = arith.mulf %927, %924 : vector<2x32xf32>
    %929 = arith.addf %926, %928 : vector<2x32xf32>
    %930 = vector.extract_strided_slice %922 {offsets = [0, 64], sizes = [2, 32], strides = [1, 1]} : vector<2x96xf32> to vector<2x32xf32>
    %931 = math.tanh %929 : vector<2x32xf32>
    %932 = arith.mulf %930, %931 : vector<2x32xf32>
    %933 = vector.shape_cast %916 : vector<2x32xf32> to vector<2x1x32xf32>
    %c0_311 = arith.constant 0 : index
    %c2_312 = arith.constant 2 : index
    %c0_313 = arith.constant 0 : index
    %934 = vector.load %arg17[%c0_311, %c2_312, %c0_313] : memref<2x16x64xf32, #tpu.memory_space<vmem>>, vector<2x1x32xf32>
    tpu.vector_store %arg17[%c0_311, %c2_312, %c0_313], %933 {strides = array<i32>} : memref<2x16x64xf32, #tpu.memory_space<vmem>>, vector<2x1x32xf32>,
    %935 = vector.shape_cast %932 : vector<2x32xf32> to vector<2x1x32xf32>
    %c0_314 = arith.constant 0 : index
    %c13_315 = arith.constant 13 : index
    %c32_316 = arith.constant 32 : index
    %936 = vector.load %arg17[%c0_314, %c13_315, %c32_316] : memref<2x16x64xf32, #tpu.memory_space<vmem>>, vector<2x1x32xf32>
    tpu.vector_store %arg17[%c0_314, %c13_315, %c32_316], %935 {strides = array<i32>} : memref<2x16x64xf32, #tpu.memory_space<vmem>>, vector<2x1x32xf32>,
    %937 = tpu.concatenate %916, %932 in 1 : vector<2x32xf32>, vector<2x32xf32> -> vector<2x64xf32>
    %938 = arith.truncf %937 : vector<2x64xf32> to vector<2x64xbf16>
    %cst_317 = arith.constant dense<0.000000e+00> : vector<2x256xf32>
    %939 = tpu.matmul %938, %785, %cst_317 {dimension_numbers = #tpu.dot_dimension_numbers<[1], [0], [0], [1], [0, 0, 1, 1], [], []>} : vector<2x64xbf16>, vector<64x256xbf16>, vector<2x256xf32> -> vector<2x256xf32>
    %c0_318 = arith.constant 0 : index
    %c3_319 = arith.constant 3 : index
    %c0_320 = arith.constant 0 : index
    %940 = vector.load %arg15[%c0_318, %c3_319, %c0_320] : memref<2x16x256xf32, #tpu.memory_space<vmem>>, vector<2x1x128xf32>
    %c0_321 = arith.constant 0 : index
    %c12_322 = arith.constant 12 : index
    %c128_323 = arith.constant 128 : index
    %941 = vector.load %arg15[%c0_321, %c12_322, %c128_323] : memref<2x16x256xf32, #tpu.memory_space<vmem>>, vector<2x1x128xf32>
    %942 = vector.extract_strided_slice %939 {offsets = [0, 0], sizes = [2, 128], strides = [1, 1]} : vector<2x256xf32> to vector<2x128xf32>
    %943 = vector.shape_cast %940 : vector<2x1x128xf32> to vector<2x128xf32>
    %944 = arith.addf %942, %943 : vector<2x128xf32>
    %945 = vector.extract_strided_slice %939 {offsets = [0, 128], sizes = [2, 128], strides = [1, 1]} : vector<2x256xf32> to vector<2x128xf32>
    %946 = vector.shape_cast %941 : vector<2x1x128xf32> to vector<2x128xf32>
    %947 = arith.addf %945, %946 : vector<2x128xf32>
    %948 = vector.extract_strided_slice %944 {offsets = [0, 0], sizes = [2, 96], strides = [1, 1]} : vector<2x128xf32> to vector<2x96xf32>
    %949 = arith.negf %948 : vector<2x96xf32>
    %950 = math.exp %949 : vector<2x96xf32>
    %cst_324 = arith.constant 1.000000e+00 : f32
    %951 = vector.broadcast %cst_324 : f32 to vector<2x96xf32>
    %952 = arith.addf %951, %950 : vector<2x96xf32>
    %953 = arith.divf %951, %952 : vector<2x96xf32>
    %954 = vector.extract_strided_slice %944 {offsets = [0, 96], sizes = [2, 32], strides = [1, 1]} : vector<2x128xf32> to vector<2x32xf32>
    %955 = math.tanh %954 : vector<2x32xf32>
    %956 = vector.extract_strided_slice %953 {offsets = [0, 32], sizes = [2, 32], strides = [1, 1]} : vector<2x96xf32> to vector<2x32xf32>
    %957 = arith.mulf %956, %913 : vector<2x32xf32>
    %958 = vector.extract_strided_slice %953 {offsets = [0, 0], sizes = [2, 32], strides = [1, 1]} : vector<2x96xf32> to vector<2x32xf32>
    %959 = arith.mulf %958, %955 : vector<2x32xf32>
    %960 = arith.addf %957, %959 : vector<2x32xf32>
    %961 = vector.extract_strided_slice %953 {offsets = [0, 64], sizes = [2, 32], strides = [1, 1]} : vector<2x96xf32> to vector<2x32xf32>
    %962 = math.tanh %960 : vector<2x32xf32>
    %963 = arith.mulf %961, %962 : vector<2x32xf32>
    %964 = vector.extract_strided_slice %947 {offsets = [0, 0], sizes = [2, 96], strides = [1, 1]} : vector<2x128xf32> to vector<2x96xf32>
    %965 = arith.negf %964 : vector<2x96xf32>
    %966 = math.exp %965 : vector<2x96xf32>
    %cst_325 = arith.constant 1.000000e+00 : f32
    %967 = vector.broadcast %cst_325 : f32 to vector<2x96xf32>
    %968 = arith.addf %967, %966 : vector<2x96xf32>
    %969 = arith.divf %967, %968 : vector<2x96xf32>
    %970 = vector.extract_strided_slice %947 {offsets = [0, 96], sizes = [2, 32], strides = [1, 1]} : vector<2x128xf32> to vector<2x32xf32>
    %971 = math.tanh %970 : vector<2x32xf32>
    %972 = vector.extract_strided_slice %969 {offsets = [0, 32], sizes = [2, 32], strides = [1, 1]} : vector<2x96xf32> to vector<2x32xf32>
    %973 = arith.mulf %972, %929 : vector<2x32xf32>
    %974 = vector.extract_strided_slice %969 {offsets = [0, 0], sizes = [2, 32], strides = [1, 1]} : vector<2x96xf32> to vector<2x32xf32>
    %975 = arith.mulf %974, %971 : vector<2x32xf32>
    %976 = arith.addf %973, %975 : vector<2x32xf32>
    %977 = vector.extract_strided_slice %969 {offsets = [0, 64], sizes = [2, 32], strides = [1, 1]} : vector<2x96xf32> to vector<2x32xf32>
    %978 = math.tanh %976 : vector<2x32xf32>
    %979 = arith.mulf %977, %978 : vector<2x32xf32>
    %980 = vector.shape_cast %963 : vector<2x32xf32> to vector<2x1x32xf32>
    %c0_326 = arith.constant 0 : index
    %c3_327 = arith.constant 3 : index
    %c0_328 = arith.constant 0 : index
    %981 = vector.load %arg17[%c0_326, %c3_327, %c0_328] : memref<2x16x64xf32, #tpu.memory_space<vmem>>, vector<2x1x32xf32>
    tpu.vector_store %arg17[%c0_326, %c3_327, %c0_328], %980 {strides = array<i32>} : memref<2x16x64xf32, #tpu.memory_space<vmem>>, vector<2x1x32xf32>,
    %982 = vector.shape_cast %979 : vector<2x32xf32> to vector<2x1x32xf32>
    %c0_329 = arith.constant 0 : index
    %c12_330 = arith.constant 12 : index
    %c32_331 = arith.constant 32 : index
    %983 = vector.load %arg17[%c0_329, %c12_330, %c32_331] : memref<2x16x64xf32, #tpu.memory_space<vmem>>, vector<2x1x32xf32>
    tpu.vector_store %arg17[%c0_329, %c12_330, %c32_331], %982 {strides = array<i32>} : memref<2x16x64xf32, #tpu.memory_space<vmem>>, vector<2x1x32xf32>,
    %984 = tpu.concatenate %963, %979 in 1 : vector<2x32xf32>, vector<2x32xf32> -> vector<2x64xf32>
    %985 = arith.truncf %984 : vector<2x64xf32> to vector<2x64xbf16>
    %cst_332 = arith.constant dense<0.000000e+00> : vector<2x256xf32>
    %986 = tpu.matmul %985, %785, %cst_332 {dimension_numbers = #tpu.dot_dimension_numbers<[1], [0], [0], [1], [0, 0, 1, 1], [], []>} : vector<2x64xbf16>, vector<64x256xbf16>, vector<2x256xf32> -> vector<2x256xf32>
    %c0_333 = arith.constant 0 : index
    %c4_334 = arith.constant 4 : index
    %c0_335 = arith.constant 0 : index
    %987 = vector.load %arg15[%c0_333, %c4_334, %c0_335] : memref<2x16x256xf32, #tpu.memory_space<vmem>>, vector<2x1x128xf32>
    %c0_336 = arith.constant 0 : index
    %c11_337 = arith.constant 11 : index
    %c128_338 = arith.constant 128 : index
    %988 = vector.load %arg15[%c0_336, %c11_337, %c128_338] : memref<2x16x256xf32, #tpu.memory_space<vmem>>, vector<2x1x128xf32>
    %989 = vector.extract_strided_slice %986 {offsets = [0, 0], sizes = [2, 128], strides = [1, 1]} : vector<2x256xf32> to vector<2x128xf32>
    %990 = vector.shape_cast %987 : vector<2x1x128xf32> to vector<2x128xf32>
    %991 = arith.addf %989, %990 : vector<2x128xf32>
    %992 = vector.extract_strided_slice %986 {offsets = [0, 128], sizes = [2, 128], strides = [1, 1]} : vector<2x256xf32> to vector<2x128xf32>
    %993 = vector.shape_cast %988 : vector<2x1x128xf32> to vector<2x128xf32>
    %994 = arith.addf %992, %993 : vector<2x128xf32>
    %995 = vector.extract_strided_slice %991 {offsets = [0, 0], sizes = [2, 96], strides = [1, 1]} : vector<2x128xf32> to vector<2x96xf32>
    %996 = arith.negf %995 : vector<2x96xf32>
    %997 = math.exp %996 : vector<2x96xf32>
    %cst_339 = arith.constant 1.000000e+00 : f32
    %998 = vector.broadcast %cst_339 : f32 to vector<2x96xf32>
    %999 = arith.addf %998, %997 : vector<2x96xf32>
    %1000 = arith.divf %998, %999 : vector<2x96xf32>
    %1001 = vector.extract_strided_slice %991 {offsets = [0, 96], sizes = [2, 32], strides = [1, 1]} : vector<2x128xf32> to vector<2x32xf32>
    %1002 = math.tanh %1001 : vector<2x32xf32>
    %1003 = vector.extract_strided_slice %1000 {offsets = [0, 32], sizes = [2, 32], strides = [1, 1]} : vector<2x96xf32> to vector<2x32xf32>
    %1004 = arith.mulf %1003, %960 : vector<2x32xf32>
    %1005 = vector.extract_strided_slice %1000 {offsets = [0, 0], sizes = [2, 32], strides = [1, 1]} : vector<2x96xf32> to vector<2x32xf32>
    %1006 = arith.mulf %1005, %1002 : vector<2x32xf32>
    %1007 = arith.addf %1004, %1006 : vector<2x32xf32>
    %1008 = vector.extract_strided_slice %1000 {offsets = [0, 64], sizes = [2, 32], strides = [1, 1]} : vector<2x96xf32> to vector<2x32xf32>
    %1009 = math.tanh %1007 : vector<2x32xf32>
    %1010 = arith.mulf %1008, %1009 : vector<2x32xf32>
    %1011 = vector.extract_strided_slice %994 {offsets = [0, 0], sizes = [2, 96], strides = [1, 1]} : vector<2x128xf32> to vector<2x96xf32>
    %1012 = arith.negf %1011 : vector<2x96xf32>
    %1013 = math.exp %1012 : vector<2x96xf32>
    %cst_340 = arith.constant 1.000000e+00 : f32
    %1014 = vector.broadcast %cst_340 : f32 to vector<2x96xf32>
    %1015 = arith.addf %1014, %1013 : vector<2x96xf32>
    %1016 = arith.divf %1014, %1015 : vector<2x96xf32>
    %1017 = vector.extract_strided_slice %994 {offsets = [0, 96], sizes = [2, 32], strides = [1, 1]} : vector<2x128xf32> to vector<2x32xf32>
    %1018 = math.tanh %1017 : vector<2x32xf32>
    %1019 = vector.extract_strided_slice %1016 {offsets = [0, 32], sizes = [2, 32], strides = [1, 1]} : vector<2x96xf32> to vector<2x32xf32>
    %1020 = arith.mulf %1019, %976 : vector<2x32xf32>
    %1021 = vector.extract_strided_slice %1016 {offsets = [0, 0], sizes = [2, 32], strides = [1, 1]} : vector<2x96xf32> to vector<2x32xf32>
    %1022 = arith.mulf %1021, %1018 : vector<2x32xf32>
    %1023 = arith.addf %1020, %1022 : vector<2x32xf32>
    %1024 = vector.extract_strided_slice %1016 {offsets = [0, 64], sizes = [2, 32], strides = [1, 1]} : vector<2x96xf32> to vector<2x32xf32>
    %1025 = math.tanh %1023 : vector<2x32xf32>
    %1026 = arith.mulf %1024, %1025 : vector<2x32xf32>
    %1027 = vector.shape_cast %1010 : vector<2x32xf32> to vector<2x1x32xf32>
    %c0_341 = arith.constant 0 : index
    %c4_342 = arith.constant 4 : index
    %c0_343 = arith.constant 0 : index
    %1028 = vector.load %arg17[%c0_341, %c4_342, %c0_343] : memref<2x16x64xf32, #tpu.memory_space<vmem>>, vector<2x1x32xf32>
    tpu.vector_store %arg17[%c0_341, %c4_342, %c0_343], %1027 {strides = array<i32>} : memref<2x16x64xf32, #tpu.memory_space<vmem>>, vector<2x1x32xf32>,
    %1029 = vector.shape_cast %1026 : vector<2x32xf32> to vector<2x1x32xf32>
    %c0_344 = arith.constant 0 : index
    %c11_345 = arith.constant 11 : index
    %c32_346 = arith.constant 32 : index
    %1030 = vector.load %arg17[%c0_344, %c11_345, %c32_346] : memref<2x16x64xf32, #tpu.memory_space<vmem>>, vector<2x1x32xf32>
    tpu.vector_store %arg17[%c0_344, %c11_345, %c32_346], %1029 {strides = array<i32>} : memref<2x16x64xf32, #tpu.memory_space<vmem>>, vector<2x1x32xf32>,
    %1031 = tpu.concatenate %1010, %1026 in 1 : vector<2x32xf32>, vector<2x32xf32> -> vector<2x64xf32>
    %1032 = arith.truncf %1031 : vector<2x64xf32> to vector<2x64xbf16>
    %cst_347 = arith.constant dense<0.000000e+00> : vector<2x256xf32>
    %1033 = tpu.matmul %1032, %785, %cst_347 {dimension_numbers = #tpu.dot_dimension_numbers<[1], [0], [0], [1], [0, 0, 1, 1], [], []>} : vector<2x64xbf16>, vector<64x256xbf16>, vector<2x256xf32> -> vector<2x256xf32>
    %c0_348 = arith.constant 0 : index
    %c5_349 = arith.constant 5 : index
    %c0_350 = arith.constant 0 : index
    %1034 = vector.load %arg15[%c0_348, %c5_349, %c0_350] : memref<2x16x256xf32, #tpu.memory_space<vmem>>, vector<2x1x128xf32>
    %c0_351 = arith.constant 0 : index
    %c10_352 = arith.constant 10 : index
    %c128_353 = arith.constant 128 : index
    %1035 = vector.load %arg15[%c0_351, %c10_352, %c128_353] : memref<2x16x256xf32, #tpu.memory_space<vmem>>, vector<2x1x128xf32>
    %1036 = vector.extract_strided_slice %1033 {offsets = [0, 0], sizes = [2, 128], strides = [1, 1]} : vector<2x256xf32> to vector<2x128xf32>
    %1037 = vector.shape_cast %1034 : vector<2x1x128xf32> to vector<2x128xf32>
    %1038 = arith.addf %1036, %1037 : vector<2x128xf32>
    %1039 = vector.extract_strided_slice %1033 {offsets = [0, 128], sizes = [2, 128], strides = [1, 1]} : vector<2x256xf32> to vector<2x128xf32>
    %1040 = vector.shape_cast %1035 : vector<2x1x128xf32> to vector<2x128xf32>
    %1041 = arith.addf %1039, %1040 : vector<2x128xf32>
    %1042 = vector.extract_strided_slice %1038 {offsets = [0, 0], sizes = [2, 96], strides = [1, 1]} : vector<2x128xf32> to vector<2x96xf32>
    %1043 = arith.negf %1042 : vector<2x96xf32>
    %1044 = math.exp %1043 : vector<2x96xf32>
    %cst_354 = arith.constant 1.000000e+00 : f32
    %1045 = vector.broadcast %cst_354 : f32 to vector<2x96xf32>
    %1046 = arith.addf %1045, %1044 : vector<2x96xf32>
    %1047 = arith.divf %1045, %1046 : vector<2x96xf32>
    %1048 = vector.extract_strided_slice %1038 {offsets = [0, 96], sizes = [2, 32], strides = [1, 1]} : vector<2x128xf32> to vector<2x32xf32>
    %1049 = math.tanh %1048 : vector<2x32xf32>
    %1050 = vector.extract_strided_slice %1047 {offsets = [0, 32], sizes = [2, 32], strides = [1, 1]} : vector<2x96xf32> to vector<2x32xf32>
    %1051 = arith.mulf %1050, %1007 : vector<2x32xf32>
    %1052 = vector.extract_strided_slice %1047 {offsets = [0, 0], sizes = [2, 32], strides = [1, 1]} : vector<2x96xf32> to vector<2x32xf32>
    %1053 = arith.mulf %1052, %1049 : vector<2x32xf32>
    %1054 = arith.addf %1051, %1053 : vector<2x32xf32>
    %1055 = vector.extract_strided_slice %1047 {offsets = [0, 64], sizes = [2, 32], strides = [1, 1]} : vector<2x96xf32> to vector<2x32xf32>
    %1056 = math.tanh %1054 : vector<2x32xf32>
    %1057 = arith.mulf %1055, %1056 : vector<2x32xf32>
    %1058 = vector.extract_strided_slice %1041 {offsets = [0, 0], sizes = [2, 96], strides = [1, 1]} : vector<2x128xf32> to vector<2x96xf32>
    %1059 = arith.negf %1058 : vector<2x96xf32>
    %1060 = math.exp %1059 : vector<2x96xf32>
    %cst_355 = arith.constant 1.000000e+00 : f32
    %1061 = vector.broadcast %cst_355 : f32 to vector<2x96xf32>
    %1062 = arith.addf %1061, %1060 : vector<2x96xf32>
    %1063 = arith.divf %1061, %1062 : vector<2x96xf32>
    %1064 = vector.extract_strided_slice %1041 {offsets = [0, 96], sizes = [2, 32], strides = [1, 1]} : vector<2x128xf32> to vector<2x32xf32>
    %1065 = math.tanh %1064 : vector<2x32xf32>
    %1066 = vector.extract_strided_slice %1063 {offsets = [0, 32], sizes = [2, 32], strides = [1, 1]} : vector<2x96xf32> to vector<2x32xf32>
    %1067 = arith.mulf %1066, %1023 : vector<2x32xf32>
    %1068 = vector.extract_strided_slice %1063 {offsets = [0, 0], sizes = [2, 32], strides = [1, 1]} : vector<2x96xf32> to vector<2x32xf32>
    %1069 = arith.mulf %1068, %1065 : vector<2x32xf32>
    %1070 = arith.addf %1067, %1069 : vector<2x32xf32>
    %1071 = vector.extract_strided_slice %1063 {offsets = [0, 64], sizes = [2, 32], strides = [1, 1]} : vector<2x96xf32> to vector<2x32xf32>
    %1072 = math.tanh %1070 : vector<2x32xf32>
    %1073 = arith.mulf %1071, %1072 : vector<2x32xf32>
    %1074 = vector.shape_cast %1057 : vector<2x32xf32> to vector<2x1x32xf32>
    %c0_356 = arith.constant 0 : index
    %c5_357 = arith.constant 5 : index
    %c0_358 = arith.constant 0 : index
    %1075 = vector.load %arg17[%c0_356, %c5_357, %c0_358] : memref<2x16x64xf32, #tpu.memory_space<vmem>>, vector<2x1x32xf32>
    tpu.vector_store %arg17[%c0_356, %c5_357, %c0_358], %1074 {strides = array<i32>} : memref<2x16x64xf32, #tpu.memory_space<vmem>>, vector<2x1x32xf32>,
    %1076 = vector.shape_cast %1073 : vector<2x32xf32> to vector<2x1x32xf32>
    %c0_359 = arith.constant 0 : index
    %c10_360 = arith.constant 10 : index
    %c32_361 = arith.constant 32 : index
    %1077 = vector.load %arg17[%c0_359, %c10_360, %c32_361] : memref<2x16x64xf32, #tpu.memory_space<vmem>>, vector<2x1x32xf32>
    tpu.vector_store %arg17[%c0_359, %c10_360, %c32_361], %1076 {strides = array<i32>} : memref<2x16x64xf32, #tpu.memory_space<vmem>>, vector<2x1x32xf32>,
    %1078 = tpu.concatenate %1057, %1073 in 1 : vector<2x32xf32>, vector<2x32xf32> -> vector<2x64xf32>
    %1079 = arith.truncf %1078 : vector<2x64xf32> to vector<2x64xbf16>
    %cst_362 = arith.constant dense<0.000000e+00> : vector<2x256xf32>
    %1080 = tpu.matmul %1079, %785, %cst_362 {dimension_numbers = #tpu.dot_dimension_numbers<[1], [0], [0], [1], [0, 0, 1, 1], [], []>} : vector<2x64xbf16>, vector<64x256xbf16>, vector<2x256xf32> -> vector<2x256xf32>
    %c0_363 = arith.constant 0 : index
    %c6_364 = arith.constant 6 : index
    %c0_365 = arith.constant 0 : index
    %1081 = vector.load %arg15[%c0_363, %c6_364, %c0_365] : memref<2x16x256xf32, #tpu.memory_space<vmem>>, vector<2x1x128xf32>
    %c0_366 = arith.constant 0 : index
    %c9_367 = arith.constant 9 : index
    %c128_368 = arith.constant 128 : index
    %1082 = vector.load %arg15[%c0_366, %c9_367, %c128_368] : memref<2x16x256xf32, #tpu.memory_space<vmem>>, vector<2x1x128xf32>
    %1083 = vector.extract_strided_slice %1080 {offsets = [0, 0], sizes = [2, 128], strides = [1, 1]} : vector<2x256xf32> to vector<2x128xf32>
    %1084 = vector.shape_cast %1081 : vector<2x1x128xf32> to vector<2x128xf32>
    %1085 = arith.addf %1083, %1084 : vector<2x128xf32>
    %1086 = vector.extract_strided_slice %1080 {offsets = [0, 128], sizes = [2, 128], strides = [1, 1]} : vector<2x256xf32> to vector<2x128xf32>
    %1087 = vector.shape_cast %1082 : vector<2x1x128xf32> to vector<2x128xf32>
    %1088 = arith.addf %1086, %1087 : vector<2x128xf32>
    %1089 = vector.extract_strided_slice %1085 {offsets = [0, 0], sizes = [2, 96], strides = [1, 1]} : vector<2x128xf32> to vector<2x96xf32>
    %1090 = arith.negf %1089 : vector<2x96xf32>
    %1091 = math.exp %1090 : vector<2x96xf32>
    %cst_369 = arith.constant 1.000000e+00 : f32
    %1092 = vector.broadcast %cst_369 : f32 to vector<2x96xf32>
    %1093 = arith.addf %1092, %1091 : vector<2x96xf32>
    %1094 = arith.divf %1092, %1093 : vector<2x96xf32>
    %1095 = vector.extract_strided_slice %1085 {offsets = [0, 96], sizes = [2, 32], strides = [1, 1]} : vector<2x128xf32> to vector<2x32xf32>
    %1096 = math.tanh %1095 : vector<2x32xf32>
    %1097 = vector.extract_strided_slice %1094 {offsets = [0, 32], sizes = [2, 32], strides = [1, 1]} : vector<2x96xf32> to vector<2x32xf32>
    %1098 = arith.mulf %1097, %1054 : vector<2x32xf32>
    %1099 = vector.extract_strided_slice %1094 {offsets = [0, 0], sizes = [2, 32], strides = [1, 1]} : vector<2x96xf32> to vector<2x32xf32>
    %1100 = arith.mulf %1099, %1096 : vector<2x32xf32>
    %1101 = arith.addf %1098, %1100 : vector<2x32xf32>
    %1102 = vector.extract_strided_slice %1094 {offsets = [0, 64], sizes = [2, 32], strides = [1, 1]} : vector<2x96xf32> to vector<2x32xf32>
    %1103 = math.tanh %1101 : vector<2x32xf32>
    %1104 = arith.mulf %1102, %1103 : vector<2x32xf32>
    %1105 = vector.extract_strided_slice %1088 {offsets = [0, 0], sizes = [2, 96], strides = [1, 1]} : vector<2x128xf32> to vector<2x96xf32>
    %1106 = arith.negf %1105 : vector<2x96xf32>
    %1107 = math.exp %1106 : vector<2x96xf32>
    %cst_370 = arith.constant 1.000000e+00 : f32
    %1108 = vector.broadcast %cst_370 : f32 to vector<2x96xf32>
    %1109 = arith.addf %1108, %1107 : vector<2x96xf32>
    %1110 = arith.divf %1108, %1109 : vector<2x96xf32>
    %1111 = vector.extract_strided_slice %1088 {offsets = [0, 96], sizes = [2, 32], strides = [1, 1]} : vector<2x128xf32> to vector<2x32xf32>
    %1112 = math.tanh %1111 : vector<2x32xf32>
    %1113 = vector.extract_strided_slice %1110 {offsets = [0, 32], sizes = [2, 32], strides = [1, 1]} : vector<2x96xf32> to vector<2x32xf32>
    %1114 = arith.mulf %1113, %1070 : vector<2x32xf32>
    %1115 = vector.extract_strided_slice %1110 {offsets = [0, 0], sizes = [2, 32], strides = [1, 1]} : vector<2x96xf32> to vector<2x32xf32>
    %1116 = arith.mulf %1115, %1112 : vector<2x32xf32>
    %1117 = arith.addf %1114, %1116 : vector<2x32xf32>
    %1118 = vector.extract_strided_slice %1110 {offsets = [0, 64], sizes = [2, 32], strides = [1, 1]} : vector<2x96xf32> to vector<2x32xf32>
    %1119 = math.tanh %1117 : vector<2x32xf32>
    %1120 = arith.mulf %1118, %1119 : vector<2x32xf32>
    %1121 = vector.shape_cast %1104 : vector<2x32xf32> to vector<2x1x32xf32>
    %c0_371 = arith.constant 0 : index
    %c6_372 = arith.constant 6 : index
    %c0_373 = arith.constant 0 : index
    %1122 = vector.load %arg17[%c0_371, %c6_372, %c0_373] : memref<2x16x64xf32, #tpu.memory_space<vmem>>, vector<2x1x32xf32>
    tpu.vector_store %arg17[%c0_371, %c6_372, %c0_373], %1121 {strides = array<i32>} : memref<2x16x64xf32, #tpu.memory_space<vmem>>, vector<2x1x32xf32>,
    %1123 = vector.shape_cast %1120 : vector<2x32xf32> to vector<2x1x32xf32>
    %c0_374 = arith.constant 0 : index
    %c9_375 = arith.constant 9 : index
    %c32_376 = arith.constant 32 : index
    %1124 = vector.load %arg17[%c0_374, %c9_375, %c32_376] : memref<2x16x64xf32, #tpu.memory_space<vmem>>, vector<2x1x32xf32>
    tpu.vector_store %arg17[%c0_374, %c9_375, %c32_376], %1123 {strides = array<i32>} : memref<2x16x64xf32, #tpu.memory_space<vmem>>, vector<2x1x32xf32>,
    %1125 = tpu.concatenate %1104, %1120 in 1 : vector<2x32xf32>, vector<2x32xf32> -> vector<2x64xf32>
    %1126 = arith.truncf %1125 : vector<2x64xf32> to vector<2x64xbf16>
    %cst_377 = arith.constant dense<0.000000e+00> : vector<2x256xf32>
    %1127 = tpu.matmul %1126, %785, %cst_377 {dimension_numbers = #tpu.dot_dimension_numbers<[1], [0], [0], [1], [0, 0, 1, 1], [], []>} : vector<2x64xbf16>, vector<64x256xbf16>, vector<2x256xf32> -> vector<2x256xf32>
    %c0_378 = arith.constant 0 : index
    %c7_379 = arith.constant 7 : index
    %c0_380 = arith.constant 0 : index
    %1128 = vector.load %arg15[%c0_378, %c7_379, %c0_380] : memref<2x16x256xf32, #tpu.memory_space<vmem>>, vector<2x1x128xf32>
    %c0_381 = arith.constant 0 : index
    %c8_382 = arith.constant 8 : index
    %c128_383 = arith.constant 128 : index
    %1129 = vector.load %arg15[%c0_381, %c8_382, %c128_383] : memref<2x16x256xf32, #tpu.memory_space<vmem>>, vector<2x1x128xf32>
    %1130 = vector.extract_strided_slice %1127 {offsets = [0, 0], sizes = [2, 128], strides = [1, 1]} : vector<2x256xf32> to vector<2x128xf32>
    %1131 = vector.shape_cast %1128 : vector<2x1x128xf32> to vector<2x128xf32>
    %1132 = arith.addf %1130, %1131 : vector<2x128xf32>
    %1133 = vector.extract_strided_slice %1127 {offsets = [0, 128], sizes = [2, 128], strides = [1, 1]} : vector<2x256xf32> to vector<2x128xf32>
    %1134 = vector.shape_cast %1129 : vector<2x1x128xf32> to vector<2x128xf32>
    %1135 = arith.addf %1133, %1134 : vector<2x128xf32>
    %1136 = vector.extract_strided_slice %1132 {offsets = [0, 0], sizes = [2, 96], strides = [1, 1]} : vector<2x128xf32> to vector<2x96xf32>
    %1137 = arith.negf %1136 : vector<2x96xf32>
    %1138 = math.exp %1137 : vector<2x96xf32>
    %cst_384 = arith.constant 1.000000e+00 : f32
    %1139 = vector.broadcast %cst_384 : f32 to vector<2x96xf32>
    %1140 = arith.addf %1139, %1138 : vector<2x96xf32>
    %1141 = arith.divf %1139, %1140 : vector<2x96xf32>
    %1142 = vector.extract_strided_slice %1132 {offsets = [0, 96], sizes = [2, 32], strides = [1, 1]} : vector<2x128xf32> to vector<2x32xf32>
    %1143 = math.tanh %1142 : vector<2x32xf32>
    %1144 = vector.extract_strided_slice %1141 {offsets = [0, 32], sizes = [2, 32], strides = [1, 1]} : vector<2x96xf32> to vector<2x32xf32>
    %1145 = arith.mulf %1144, %1101 : vector<2x32xf32>
    %1146 = vector.extract_strided_slice %1141 {offsets = [0, 0], sizes = [2, 32], strides = [1, 1]} : vector<2x96xf32> to vector<2x32xf32>
    %1147 = arith.mulf %1146, %1143 : vector<2x32xf32>
    %1148 = arith.addf %1145, %1147 : vector<2x32xf32>
    %1149 = vector.extract_strided_slice %1141 {offsets = [0, 64], sizes = [2, 32], strides = [1, 1]} : vector<2x96xf32> to vector<2x32xf32>
    %1150 = math.tanh %1148 : vector<2x32xf32>
    %1151 = arith.mulf %1149, %1150 : vector<2x32xf32>
    %1152 = vector.extract_strided_slice %1135 {offsets = [0, 0], sizes = [2, 96], strides = [1, 1]} : vector<2x128xf32> to vector<2x96xf32>
    %1153 = arith.negf %1152 : vector<2x96xf32>
    %1154 = math.exp %1153 : vector<2x96xf32>
    %cst_385 = arith.constant 1.000000e+00 : f32
    %1155 = vector.broadcast %cst_385 : f32 to vector<2x96xf32>
    %1156 = arith.addf %1155, %1154 : vector<2x96xf32>
    %1157 = arith.divf %1155, %1156 : vector<2x96xf32>
    %1158 = vector.extract_strided_slice %1135 {offsets = [0, 96], sizes = [2, 32], strides = [1, 1]} : vector<2x128xf32> to vector<2x32xf32>
    %1159 = math.tanh %1158 : vector<2x32xf32>
    %1160 = vector.extract_strided_slice %1157 {offsets = [0, 32], sizes = [2, 32], strides = [1, 1]} : vector<2x96xf32> to vector<2x32xf32>
    %1161 = arith.mulf %1160, %1117 : vector<2x32xf32>
    %1162 = vector.extract_strided_slice %1157 {offsets = [0, 0], sizes = [2, 32], strides = [1, 1]} : vector<2x96xf32> to vector<2x32xf32>
    %1163 = arith.mulf %1162, %1159 : vector<2x32xf32>
    %1164 = arith.addf %1161, %1163 : vector<2x32xf32>
    %1165 = vector.extract_strided_slice %1157 {offsets = [0, 64], sizes = [2, 32], strides = [1, 1]} : vector<2x96xf32> to vector<2x32xf32>
    %1166 = math.tanh %1164 : vector<2x32xf32>
    %1167 = arith.mulf %1165, %1166 : vector<2x32xf32>
    %1168 = vector.shape_cast %1151 : vector<2x32xf32> to vector<2x1x32xf32>
    %c0_386 = arith.constant 0 : index
    %c7_387 = arith.constant 7 : index
    %c0_388 = arith.constant 0 : index
    %1169 = vector.load %arg17[%c0_386, %c7_387, %c0_388] : memref<2x16x64xf32, #tpu.memory_space<vmem>>, vector<2x1x32xf32>
    tpu.vector_store %arg17[%c0_386, %c7_387, %c0_388], %1168 {strides = array<i32>} : memref<2x16x64xf32, #tpu.memory_space<vmem>>, vector<2x1x32xf32>,
    %1170 = vector.shape_cast %1167 : vector<2x32xf32> to vector<2x1x32xf32>
    %c0_389 = arith.constant 0 : index
    %c8_390 = arith.constant 8 : index
    %c32_391 = arith.constant 32 : index
    %1171 = vector.load %arg17[%c0_389, %c8_390, %c32_391] : memref<2x16x64xf32, #tpu.memory_space<vmem>>, vector<2x1x32xf32>
    tpu.vector_store %arg17[%c0_389, %c8_390, %c32_391], %1170 {strides = array<i32>} : memref<2x16x64xf32, #tpu.memory_space<vmem>>, vector<2x1x32xf32>,
    %1172 = tpu.concatenate %1151, %1167 in 1 : vector<2x32xf32>, vector<2x32xf32> -> vector<2x64xf32>
    %1173 = arith.truncf %1172 : vector<2x64xf32> to vector<2x64xbf16>
    %cst_392 = arith.constant dense<0.000000e+00> : vector<2x256xf32>
    %1174 = tpu.matmul %1173, %785, %cst_392 {dimension_numbers = #tpu.dot_dimension_numbers<[1], [0], [0], [1], [0, 0, 1, 1], [], []>} : vector<2x64xbf16>, vector<64x256xbf16>, vector<2x256xf32> -> vector<2x256xf32>
    %c0_393 = arith.constant 0 : index
    %c8_394 = arith.constant 8 : index
    %c0_395 = arith.constant 0 : index
    %1175 = vector.load %arg15[%c0_393, %c8_394, %c0_395] : memref<2x16x256xf32, #tpu.memory_space<vmem>>, vector<2x1x128xf32>
    %c0_396 = arith.constant 0 : index
    %c7_397 = arith.constant 7 : index
    %c128_398 = arith.constant 128 : index
    %1176 = vector.load %arg15[%c0_396, %c7_397, %c128_398] : memref<2x16x256xf32, #tpu.memory_space<vmem>>, vector<2x1x128xf32>
    %1177 = vector.extract_strided_slice %1174 {offsets = [0, 0], sizes = [2, 128], strides = [1, 1]} : vector<2x256xf32> to vector<2x128xf32>
    %1178 = vector.shape_cast %1175 : vector<2x1x128xf32> to vector<2x128xf32>
    %1179 = arith.addf %1177, %1178 : vector<2x128xf32>
    %1180 = vector.extract_strided_slice %1174 {offsets = [0, 128], sizes = [2, 128], strides = [1, 1]} : vector<2x256xf32> to vector<2x128xf32>
    %1181 = vector.shape_cast %1176 : vector<2x1x128xf32> to vector<2x128xf32>
    %1182 = arith.addf %1180, %1181 : vector<2x128xf32>
    %1183 = vector.extract_strided_slice %1179 {offsets = [0, 0], sizes = [2, 96], strides = [1, 1]} : vector<2x128xf32> to vector<2x96xf32>
    %1184 = arith.negf %1183 : vector<2x96xf32>
    %1185 = math.exp %1184 : vector<2x96xf32>
    %cst_399 = arith.constant 1.000000e+00 : f32
    %1186 = vector.broadcast %cst_399 : f32 to vector<2x96xf32>
    %1187 = arith.addf %1186, %1185 : vector<2x96xf32>
    %1188 = arith.divf %1186, %1187 : vector<2x96xf32>
    %1189 = vector.extract_strided_slice %1179 {offsets = [0, 96], sizes = [2, 32], strides = [1, 1]} : vector<2x128xf32> to vector<2x32xf32>
    %1190 = math.tanh %1189 : vector<2x32xf32>
    %1191 = vector.extract_strided_slice %1188 {offsets = [0, 32], sizes = [2, 32], strides = [1, 1]} : vector<2x96xf32> to vector<2x32xf32>
    %1192 = arith.mulf %1191, %1148 : vector<2x32xf32>
    %1193 = vector.extract_strided_slice %1188 {offsets = [0, 0], sizes = [2, 32], strides = [1, 1]} : vector<2x96xf32> to vector<2x32xf32>
    %1194 = arith.mulf %1193, %1190 : vector<2x32xf32>
    %1195 = arith.addf %1192, %1194 : vector<2x32xf32>
    %1196 = vector.extract_strided_slice %1188 {offsets = [0, 64], sizes = [2, 32], strides = [1, 1]} : vector<2x96xf32> to vector<2x32xf32>
    %1197 = math.tanh %1195 : vector<2x32xf32>
    %1198 = arith.mulf %1196, %1197 : vector<2x32xf32>
    %1199 = vector.extract_strided_slice %1182 {offsets = [0, 0], sizes = [2, 96], strides = [1, 1]} : vector<2x128xf32> to vector<2x96xf32>
    %1200 = arith.negf %1199 : vector<2x96xf32>
    %1201 = math.exp %1200 : vector<2x96xf32>
    %cst_400 = arith.constant 1.000000e+00 : f32
    %1202 = vector.broadcast %cst_400 : f32 to vector<2x96xf32>
    %1203 = arith.addf %1202, %1201 : vector<2x96xf32>
    %1204 = arith.divf %1202, %1203 : vector<2x96xf32>
    %1205 = vector.extract_strided_slice %1182 {offsets = [0, 96], sizes = [2, 32], strides = [1, 1]} : vector<2x128xf32> to vector<2x32xf32>
    %1206 = math.tanh %1205 : vector<2x32xf32>
    %1207 = vector.extract_strided_slice %1204 {offsets = [0, 32], sizes = [2, 32], strides = [1, 1]} : vector<2x96xf32> to vector<2x32xf32>
    %1208 = arith.mulf %1207, %1164 : vector<2x32xf32>
    %1209 = vector.extract_strided_slice %1204 {offsets = [0, 0], sizes = [2, 32], strides = [1, 1]} : vector<2x96xf32> to vector<2x32xf32>
    %1210 = arith.mulf %1209, %1206 : vector<2x32xf32>
    %1211 = arith.addf %1208, %1210 : vector<2x32xf32>
    %1212 = vector.extract_strided_slice %1204 {offsets = [0, 64], sizes = [2, 32], strides = [1, 1]} : vector<2x96xf32> to vector<2x32xf32>
    %1213 = math.tanh %1211 : vector<2x32xf32>
    %1214 = arith.mulf %1212, %1213 : vector<2x32xf32>
    %1215 = vector.shape_cast %1198 : vector<2x32xf32> to vector<2x1x32xf32>
    %c0_401 = arith.constant 0 : index
    %c8_402 = arith.constant 8 : index
    %c0_403 = arith.constant 0 : index
    %1216 = vector.load %arg17[%c0_401, %c8_402, %c0_403] : memref<2x16x64xf32, #tpu.memory_space<vmem>>, vector<2x1x32xf32>
    tpu.vector_store %arg17[%c0_401, %c8_402, %c0_403], %1215 {strides = array<i32>} : memref<2x16x64xf32, #tpu.memory_space<vmem>>, vector<2x1x32xf32>,
    %1217 = vector.shape_cast %1214 : vector<2x32xf32> to vector<2x1x32xf32>
    %c0_404 = arith.constant 0 : index
    %c7_405 = arith.constant 7 : index
    %c32_406 = arith.constant 32 : index
    %1218 = vector.load %arg17[%c0_404, %c7_405, %c32_406] : memref<2x16x64xf32, #tpu.memory_space<vmem>>, vector<2x1x32xf32>
    tpu.vector_store %arg17[%c0_404, %c7_405, %c32_406], %1217 {strides = array<i32>} : memref<2x16x64xf32, #tpu.memory_space<vmem>>, vector<2x1x32xf32>,
    %1219 = tpu.concatenate %1198, %1214 in 1 : vector<2x32xf32>, vector<2x32xf32> -> vector<2x64xf32>
    %1220 = arith.truncf %1219 : vector<2x64xf32> to vector<2x64xbf16>
    %cst_407 = arith.constant dense<0.000000e+00> : vector<2x256xf32>
    %1221 = tpu.matmul %1220, %785, %cst_407 {dimension_numbers = #tpu.dot_dimension_numbers<[1], [0], [0], [1], [0, 0, 1, 1], [], []>} : vector<2x64xbf16>, vector<64x256xbf16>, vector<2x256xf32> -> vector<2x256xf32>
    %c0_408 = arith.constant 0 : index
    %c9_409 = arith.constant 9 : index
    %c0_410 = arith.constant 0 : index
    %1222 = vector.load %arg15[%c0_408, %c9_409, %c0_410] : memref<2x16x256xf32, #tpu.memory_space<vmem>>, vector<2x1x128xf32>
    %c0_411 = arith.constant 0 : index
    %c6_412 = arith.constant 6 : index
    %c128_413 = arith.constant 128 : index
    %1223 = vector.load %arg15[%c0_411, %c6_412, %c128_413] : memref<2x16x256xf32, #tpu.memory_space<vmem>>, vector<2x1x128xf32>
    %1224 = vector.extract_strided_slice %1221 {offsets = [0, 0], sizes = [2, 128], strides = [1, 1]} : vector<2x256xf32> to vector<2x128xf32>
    %1225 = vector.shape_cast %1222 : vector<2x1x128xf32> to vector<2x128xf32>
    %1226 = arith.addf %1224, %1225 : vector<2x128xf32>
    %1227 = vector.extract_strided_slice %1221 {offsets = [0, 128], sizes = [2, 128], strides = [1, 1]} : vector<2x256xf32> to vector<2x128xf32>
    %1228 = vector.shape_cast %1223 : vector<2x1x128xf32> to vector<2x128xf32>
    %1229 = arith.addf %1227, %1228 : vector<2x128xf32>
    %1230 = vector.extract_strided_slice %1226 {offsets = [0, 0], sizes = [2, 96], strides = [1, 1]} : vector<2x128xf32> to vector<2x96xf32>
    %1231 = arith.negf %1230 : vector<2x96xf32>
    %1232 = math.exp %1231 : vector<2x96xf32>
    %cst_414 = arith.constant 1.000000e+00 : f32
    %1233 = vector.broadcast %cst_414 : f32 to vector<2x96xf32>
    %1234 = arith.addf %1233, %1232 : vector<2x96xf32>
    %1235 = arith.divf %1233, %1234 : vector<2x96xf32>
    %1236 = vector.extract_strided_slice %1226 {offsets = [0, 96], sizes = [2, 32], strides = [1, 1]} : vector<2x128xf32> to vector<2x32xf32>
    %1237 = math.tanh %1236 : vector<2x32xf32>
    %1238 = vector.extract_strided_slice %1235 {offsets = [0, 32], sizes = [2, 32], strides = [1, 1]} : vector<2x96xf32> to vector<2x32xf32>
    %1239 = arith.mulf %1238, %1195 : vector<2x32xf32>
    %1240 = vector.extract_strided_slice %1235 {offsets = [0, 0], sizes = [2, 32], strides = [1, 1]} : vector<2x96xf32> to vector<2x32xf32>
    %1241 = arith.mulf %1240, %1237 : vector<2x32xf32>
    %1242 = arith.addf %1239, %1241 : vector<2x32xf32>
    %1243 = vector.extract_strided_slice %1235 {offsets = [0, 64], sizes = [2, 32], strides = [1, 1]} : vector<2x96xf32> to vector<2x32xf32>
    %1244 = math.tanh %1242 : vector<2x32xf32>
    %1245 = arith.mulf %1243, %1244 : vector<2x32xf32>
    %1246 = vector.extract_strided_slice %1229 {offsets = [0, 0], sizes = [2, 96], strides = [1, 1]} : vector<2x128xf32> to vector<2x96xf32>
    %1247 = arith.negf %1246 : vector<2x96xf32>
    %1248 = math.exp %1247 : vector<2x96xf32>
    %cst_415 = arith.constant 1.000000e+00 : f32
    %1249 = vector.broadcast %cst_415 : f32 to vector<2x96xf32>
    %1250 = arith.addf %1249, %1248 : vector<2x96xf32>
    %1251 = arith.divf %1249, %1250 : vector<2x96xf32>
    %1252 = vector.extract_strided_slice %1229 {offsets = [0, 96], sizes = [2, 32], strides = [1, 1]} : vector<2x128xf32> to vector<2x32xf32>
    %1253 = math.tanh %1252 : vector<2x32xf32>
    %1254 = vector.extract_strided_slice %1251 {offsets = [0, 32], sizes = [2, 32], strides = [1, 1]} : vector<2x96xf32> to vector<2x32xf32>
    %1255 = arith.mulf %1254, %1211 : vector<2x32xf32>
    %1256 = vector.extract_strided_slice %1251 {offsets = [0, 0], sizes = [2, 32], strides = [1, 1]} : vector<2x96xf32> to vector<2x32xf32>
    %1257 = arith.mulf %1256, %1253 : vector<2x32xf32>
    %1258 = arith.addf %1255, %1257 : vector<2x32xf32>
    %1259 = vector.extract_strided_slice %1251 {offsets = [0, 64], sizes = [2, 32], strides = [1, 1]} : vector<2x96xf32> to vector<2x32xf32>
    %1260 = math.tanh %1258 : vector<2x32xf32>
    %1261 = arith.mulf %1259, %1260 : vector<2x32xf32>
    %1262 = vector.shape_cast %1245 : vector<2x32xf32> to vector<2x1x32xf32>
    %c0_416 = arith.constant 0 : index
    %c9_417 = arith.constant 9 : index
    %c0_418 = arith.constant 0 : index
    %1263 = vector.load %arg17[%c0_416, %c9_417, %c0_418] : memref<2x16x64xf32, #tpu.memory_space<vmem>>, vector<2x1x32xf32>
    tpu.vector_store %arg17[%c0_416, %c9_417, %c0_418], %1262 {strides = array<i32>} : memref<2x16x64xf32, #tpu.memory_space<vmem>>, vector<2x1x32xf32>,
    %1264 = vector.shape_cast %1261 : vector<2x32xf32> to vector<2x1x32xf32>
    %c0_419 = arith.constant 0 : index
    %c6_420 = arith.constant 6 : index
    %c32_421 = arith.constant 32 : index
    %1265 = vector.load %arg17[%c0_419, %c6_420, %c32_421] : memref<2x16x64xf32, #tpu.memory_space<vmem>>, vector<2x1x32xf32>
    tpu.vector_store %arg17[%c0_419, %c6_420, %c32_421], %1264 {strides = array<i32>} : memref<2x16x64xf32, #tpu.memory_space<vmem>>, vector<2x1x32xf32>,
    %1266 = tpu.concatenate %1245, %1261 in 1 : vector<2x32xf32>, vector<2x32xf32> -> vector<2x64xf32>
    %1267 = arith.truncf %1266 : vector<2x64xf32> to vector<2x64xbf16>
    %cst_422 = arith.constant dense<0.000000e+00> : vector<2x256xf32>
    %1268 = tpu.matmul %1267, %785, %cst_422 {dimension_numbers = #tpu.dot_dimension_numbers<[1], [0], [0], [1], [0, 0, 1, 1], [], []>} : vector<2x64xbf16>, vector<64x256xbf16>, vector<2x256xf32> -> vector<2x256xf32>
    %c0_423 = arith.constant 0 : index
    %c10_424 = arith.constant 10 : index
    %c0_425 = arith.constant 0 : index
    %1269 = vector.load %arg15[%c0_423, %c10_424, %c0_425] : memref<2x16x256xf32, #tpu.memory_space<vmem>>, vector<2x1x128xf32>
    %c0_426 = arith.constant 0 : index
    %c5_427 = arith.constant 5 : index
    %c128_428 = arith.constant 128 : index
    %1270 = vector.load %arg15[%c0_426, %c5_427, %c128_428] : memref<2x16x256xf32, #tpu.memory_space<vmem>>, vector<2x1x128xf32>
    %1271 = vector.extract_strided_slice %1268 {offsets = [0, 0], sizes = [2, 128], strides = [1, 1]} : vector<2x256xf32> to vector<2x128xf32>
    %1272 = vector.shape_cast %1269 : vector<2x1x128xf32> to vector<2x128xf32>
    %1273 = arith.addf %1271, %1272 : vector<2x128xf32>
    %1274 = vector.extract_strided_slice %1268 {offsets = [0, 128], sizes = [2, 128], strides = [1, 1]} : vector<2x256xf32> to vector<2x128xf32>
    %1275 = vector.shape_cast %1270 : vector<2x1x128xf32> to vector<2x128xf32>
    %1276 = arith.addf %1274, %1275 : vector<2x128xf32>
    %1277 = vector.extract_strided_slice %1273 {offsets = [0, 0], sizes = [2, 96], strides = [1, 1]} : vector<2x128xf32> to vector<2x96xf32>
    %1278 = arith.negf %1277 : vector<2x96xf32>
    %1279 = math.exp %1278 : vector<2x96xf32>
    %cst_429 = arith.constant 1.000000e+00 : f32
    %1280 = vector.broadcast %cst_429 : f32 to vector<2x96xf32>
    %1281 = arith.addf %1280, %1279 : vector<2x96xf32>
    %1282 = arith.divf %1280, %1281 : vector<2x96xf32>
    %1283 = vector.extract_strided_slice %1273 {offsets = [0, 96], sizes = [2, 32], strides = [1, 1]} : vector<2x128xf32> to vector<2x32xf32>
    %1284 = math.tanh %1283 : vector<2x32xf32>
    %1285 = vector.extract_strided_slice %1282 {offsets = [0, 32], sizes = [2, 32], strides = [1, 1]} : vector<2x96xf32> to vector<2x32xf32>
    %1286 = arith.mulf %1285, %1242 : vector<2x32xf32>
    %1287 = vector.extract_strided_slice %1282 {offsets = [0, 0], sizes = [2, 32], strides = [1, 1]} : vector<2x96xf32> to vector<2x32xf32>
    %1288 = arith.mulf %1287, %1284 : vector<2x32xf32>
    %1289 = arith.addf %1286, %1288 : vector<2x32xf32>
    %1290 = vector.extract_strided_slice %1282 {offsets = [0, 64], sizes = [2, 32], strides = [1, 1]} : vector<2x96xf32> to vector<2x32xf32>
    %1291 = math.tanh %1289 : vector<2x32xf32>
    %1292 = arith.mulf %1290, %1291 : vector<2x32xf32>
    %1293 = vector.extract_strided_slice %1276 {offsets = [0, 0], sizes = [2, 96], strides = [1, 1]} : vector<2x128xf32> to vector<2x96xf32>
    %1294 = arith.negf %1293 : vector<2x96xf32>
    %1295 = math.exp %1294 : vector<2x96xf32>
    %cst_430 = arith.constant 1.000000e+00 : f32
    %1296 = vector.broadcast %cst_430 : f32 to vector<2x96xf32>
    %1297 = arith.addf %1296, %1295 : vector<2x96xf32>
    %1298 = arith.divf %1296, %1297 : vector<2x96xf32>
    %1299 = vector.extract_strided_slice %1276 {offsets = [0, 96], sizes = [2, 32], strides = [1, 1]} : vector<2x128xf32> to vector<2x32xf32>
    %1300 = math.tanh %1299 : vector<2x32xf32>
    %1301 = vector.extract_strided_slice %1298 {offsets = [0, 32], sizes = [2, 32], strides = [1, 1]} : vector<2x96xf32> to vector<2x32xf32>
    %1302 = arith.mulf %1301, %1258 : vector<2x32xf32>
    %1303 = vector.extract_strided_slice %1298 {offsets = [0, 0], sizes = [2, 32], strides = [1, 1]} : vector<2x96xf32> to vector<2x32xf32>
    %1304 = arith.mulf %1303, %1300 : vector<2x32xf32>
    %1305 = arith.addf %1302, %1304 : vector<2x32xf32>
    %1306 = vector.extract_strided_slice %1298 {offsets = [0, 64], sizes = [2, 32], strides = [1, 1]} : vector<2x96xf32> to vector<2x32xf32>
    %1307 = math.tanh %1305 : vector<2x32xf32>
    %1308 = arith.mulf %1306, %1307 : vector<2x32xf32>
    %1309 = vector.shape_cast %1292 : vector<2x32xf32> to vector<2x1x32xf32>
    %c0_431 = arith.constant 0 : index
    %c10_432 = arith.constant 10 : index
    %c0_433 = arith.constant 0 : index
    %1310 = vector.load %arg17[%c0_431, %c10_432, %c0_433] : memref<2x16x64xf32, #tpu.memory_space<vmem>>, vector<2x1x32xf32>
    tpu.vector_store %arg17[%c0_431, %c10_432, %c0_433], %1309 {strides = array<i32>} : memref<2x16x64xf32, #tpu.memory_space<vmem>>, vector<2x1x32xf32>,
    %1311 = vector.shape_cast %1308 : vector<2x32xf32> to vector<2x1x32xf32>
    %c0_434 = arith.constant 0 : index
    %c5_435 = arith.constant 5 : index
    %c32_436 = arith.constant 32 : index
    %1312 = vector.load %arg17[%c0_434, %c5_435, %c32_436] : memref<2x16x64xf32, #tpu.memory_space<vmem>>, vector<2x1x32xf32>
    tpu.vector_store %arg17[%c0_434, %c5_435, %c32_436], %1311 {strides = array<i32>} : memref<2x16x64xf32, #tpu.memory_space<vmem>>, vector<2x1x32xf32>,
    %1313 = tpu.concatenate %1292, %1308 in 1 : vector<2x32xf32>, vector<2x32xf32> -> vector<2x64xf32>
    %1314 = arith.truncf %1313 : vector<2x64xf32> to vector<2x64xbf16>
    %cst_437 = arith.constant dense<0.000000e+00> : vector<2x256xf32>
    %1315 = tpu.matmul %1314, %785, %cst_437 {dimension_numbers = #tpu.dot_dimension_numbers<[1], [0], [0], [1], [0, 0, 1, 1], [], []>} : vector<2x64xbf16>, vector<64x256xbf16>, vector<2x256xf32> -> vector<2x256xf32>
    %c0_438 = arith.constant 0 : index
    %c11_439 = arith.constant 11 : index
    %c0_440 = arith.constant 0 : index
    %1316 = vector.load %arg15[%c0_438, %c11_439, %c0_440] : memref<2x16x256xf32, #tpu.memory_space<vmem>>, vector<2x1x128xf32>
    %c0_441 = arith.constant 0 : index
    %c4_442 = arith.constant 4 : index
    %c128_443 = arith.constant 128 : index
    %1317 = vector.load %arg15[%c0_441, %c4_442, %c128_443] : memref<2x16x256xf32, #tpu.memory_space<vmem>>, vector<2x1x128xf32>
    %1318 = vector.extract_strided_slice %1315 {offsets = [0, 0], sizes = [2, 128], strides = [1, 1]} : vector<2x256xf32> to vector<2x128xf32>
    %1319 = vector.shape_cast %1316 : vector<2x1x128xf32> to vector<2x128xf32>
    %1320 = arith.addf %1318, %1319 : vector<2x128xf32>
    %1321 = vector.extract_strided_slice %1315 {offsets = [0, 128], sizes = [2, 128], strides = [1, 1]} : vector<2x256xf32> to vector<2x128xf32>
    %1322 = vector.shape_cast %1317 : vector<2x1x128xf32> to vector<2x128xf32>
    %1323 = arith.addf %1321, %1322 : vector<2x128xf32>
    %1324 = vector.extract_strided_slice %1320 {offsets = [0, 0], sizes = [2, 96], strides = [1, 1]} : vector<2x128xf32> to vector<2x96xf32>
    %1325 = arith.negf %1324 : vector<2x96xf32>
    %1326 = math.exp %1325 : vector<2x96xf32>
    %cst_444 = arith.constant 1.000000e+00 : f32
    %1327 = vector.broadcast %cst_444 : f32 to vector<2x96xf32>
    %1328 = arith.addf %1327, %1326 : vector<2x96xf32>
    %1329 = arith.divf %1327, %1328 : vector<2x96xf32>
    %1330 = vector.extract_strided_slice %1320 {offsets = [0, 96], sizes = [2, 32], strides = [1, 1]} : vector<2x128xf32> to vector<2x32xf32>
    %1331 = math.tanh %1330 : vector<2x32xf32>
    %1332 = vector.extract_strided_slice %1329 {offsets = [0, 32], sizes = [2, 32], strides = [1, 1]} : vector<2x96xf32> to vector<2x32xf32>
    %1333 = arith.mulf %1332, %1289 : vector<2x32xf32>
    %1334 = vector.extract_strided_slice %1329 {offsets = [0, 0], sizes = [2, 32], strides = [1, 1]} : vector<2x96xf32> to vector<2x32xf32>
    %1335 = arith.mulf %1334, %1331 : vector<2x32xf32>
    %1336 = arith.addf %1333, %1335 : vector<2x32xf32>
    %1337 = vector.extract_strided_slice %1329 {offsets = [0, 64], sizes = [2, 32], strides = [1, 1]} : vector<2x96xf32> to vector<2x32xf32>
    %1338 = math.tanh %1336 : vector<2x32xf32>
    %1339 = arith.mulf %1337, %1338 : vector<2x32xf32>
    %1340 = vector.extract_strided_slice %1323 {offsets = [0, 0], sizes = [2, 96], strides = [1, 1]} : vector<2x128xf32> to vector<2x96xf32>
    %1341 = arith.negf %1340 : vector<2x96xf32>
    %1342 = math.exp %1341 : vector<2x96xf32>
    %cst_445 = arith.constant 1.000000e+00 : f32
    %1343 = vector.broadcast %cst_445 : f32 to vector<2x96xf32>
    %1344 = arith.addf %1343, %1342 : vector<2x96xf32>
    %1345 = arith.divf %1343, %1344 : vector<2x96xf32>
    %1346 = vector.extract_strided_slice %1323 {offsets = [0, 96], sizes = [2, 32], strides = [1, 1]} : vector<2x128xf32> to vector<2x32xf32>
    %1347 = math.tanh %1346 : vector<2x32xf32>
    %1348 = vector.extract_strided_slice %1345 {offsets = [0, 32], sizes = [2, 32], strides = [1, 1]} : vector<2x96xf32> to vector<2x32xf32>
    %1349 = arith.mulf %1348, %1305 : vector<2x32xf32>
    %1350 = vector.extract_strided_slice %1345 {offsets = [0, 0], sizes = [2, 32], strides = [1, 1]} : vector<2x96xf32> to vector<2x32xf32>
    %1351 = arith.mulf %1350, %1347 : vector<2x32xf32>
    %1352 = arith.addf %1349, %1351 : vector<2x32xf32>
    %1353 = vector.extract_strided_slice %1345 {offsets = [0, 64], sizes = [2, 32], strides = [1, 1]} : vector<2x96xf32> to vector<2x32xf32>
    %1354 = math.tanh %1352 : vector<2x32xf32>
    %1355 = arith.mulf %1353, %1354 : vector<2x32xf32>
    %1356 = vector.shape_cast %1339 : vector<2x32xf32> to vector<2x1x32xf32>
    %c0_446 = arith.constant 0 : index
    %c11_447 = arith.constant 11 : index
    %c0_448 = arith.constant 0 : index
    %1357 = vector.load %arg17[%c0_446, %c11_447, %c0_448] : memref<2x16x64xf32, #tpu.memory_space<vmem>>, vector<2x1x32xf32>
    tpu.vector_store %arg17[%c0_446, %c11_447, %c0_448], %1356 {strides = array<i32>} : memref<2x16x64xf32, #tpu.memory_space<vmem>>, vector<2x1x32xf32>,
    %1358 = vector.shape_cast %1355 : vector<2x32xf32> to vector<2x1x32xf32>
    %c0_449 = arith.constant 0 : index
    %c4_450 = arith.constant 4 : index
    %c32_451 = arith.constant 32 : index
    %1359 = vector.load %arg17[%c0_449, %c4_450, %c32_451] : memref<2x16x64xf32, #tpu.memory_space<vmem>>, vector<2x1x32xf32>
    tpu.vector_store %arg17[%c0_449, %c4_450, %c32_451], %1358 {strides = array<i32>} : memref<2x16x64xf32, #tpu.memory_space<vmem>>, vector<2x1x32xf32>,
    %1360 = tpu.concatenate %1339, %1355 in 1 : vector<2x32xf32>, vector<2x32xf32> -> vector<2x64xf32>
    %1361 = arith.truncf %1360 : vector<2x64xf32> to vector<2x64xbf16>
    %cst_452 = arith.constant dense<0.000000e+00> : vector<2x256xf32>
    %1362 = tpu.matmul %1361, %785, %cst_452 {dimension_numbers = #tpu.dot_dimension_numbers<[1], [0], [0], [1], [0, 0, 1, 1], [], []>} : vector<2x64xbf16>, vector<64x256xbf16>, vector<2x256xf32> -> vector<2x256xf32>
    %c0_453 = arith.constant 0 : index
    %c12_454 = arith.constant 12 : index
    %c0_455 = arith.constant 0 : index
    %1363 = vector.load %arg15[%c0_453, %c12_454, %c0_455] : memref<2x16x256xf32, #tpu.memory_space<vmem>>, vector<2x1x128xf32>
    %c0_456 = arith.constant 0 : index
    %c3_457 = arith.constant 3 : index
    %c128_458 = arith.constant 128 : index
    %1364 = vector.load %arg15[%c0_456, %c3_457, %c128_458] : memref<2x16x256xf32, #tpu.memory_space<vmem>>, vector<2x1x128xf32>
    %1365 = vector.extract_strided_slice %1362 {offsets = [0, 0], sizes = [2, 128], strides = [1, 1]} : vector<2x256xf32> to vector<2x128xf32>
    %1366 = vector.shape_cast %1363 : vector<2x1x128xf32> to vector<2x128xf32>
    %1367 = arith.addf %1365, %1366 : vector<2x128xf32>
    %1368 = vector.extract_strided_slice %1362 {offsets = [0, 128], sizes = [2, 128], strides = [1, 1]} : vector<2x256xf32> to vector<2x128xf32>
    %1369 = vector.shape_cast %1364 : vector<2x1x128xf32> to vector<2x128xf32>
    %1370 = arith.addf %1368, %1369 : vector<2x128xf32>
    %1371 = vector.extract_strided_slice %1367 {offsets = [0, 0], sizes = [2, 96], strides = [1, 1]} : vector<2x128xf32> to vector<2x96xf32>
    %1372 = arith.negf %1371 : vector<2x96xf32>
    %1373 = math.exp %1372 : vector<2x96xf32>
    %cst_459 = arith.constant 1.000000e+00 : f32
    %1374 = vector.broadcast %cst_459 : f32 to vector<2x96xf32>
    %1375 = arith.addf %1374, %1373 : vector<2x96xf32>
    %1376 = arith.divf %1374, %1375 : vector<2x96xf32>
    %1377 = vector.extract_strided_slice %1367 {offsets = [0, 96], sizes = [2, 32], strides = [1, 1]} : vector<2x128xf32> to vector<2x32xf32>
    %1378 = math.tanh %1377 : vector<2x32xf32>
    %1379 = vector.extract_strided_slice %1376 {offsets = [0, 32], sizes = [2, 32], strides = [1, 1]} : vector<2x96xf32> to vector<2x32xf32>
    %1380 = arith.mulf %1379, %1336 : vector<2x32xf32>
    %1381 = vector.extract_strided_slice %1376 {offsets = [0, 0], sizes = [2, 32], strides = [1, 1]} : vector<2x96xf32> to vector<2x32xf32>
    %1382 = arith.mulf %1381, %1378 : vector<2x32xf32>
    %1383 = arith.addf %1380, %1382 : vector<2x32xf32>
    %1384 = vector.extract_strided_slice %1376 {offsets = [0, 64], sizes = [2, 32], strides = [1, 1]} : vector<2x96xf32> to vector<2x32xf32>
    %1385 = math.tanh %1383 : vector<2x32xf32>
    %1386 = arith.mulf %1384, %1385 : vector<2x32xf32>
    %1387 = vector.extract_strided_slice %1370 {offsets = [0, 0], sizes = [2, 96], strides = [1, 1]} : vector<2x128xf32> to vector<2x96xf32>
    %1388 = arith.negf %1387 : vector<2x96xf32>
    %1389 = math.exp %1388 : vector<2x96xf32>
    %cst_460 = arith.constant 1.000000e+00 : f32
    %1390 = vector.broadcast %cst_460 : f32 to vector<2x96xf32>
    %1391 = arith.addf %1390, %1389 : vector<2x96xf32>
    %1392 = arith.divf %1390, %1391 : vector<2x96xf32>
    %1393 = vector.extract_strided_slice %1370 {offsets = [0, 96], sizes = [2, 32], strides = [1, 1]} : vector<2x128xf32> to vector<2x32xf32>
    %1394 = math.tanh %1393 : vector<2x32xf32>
    %1395 = vector.extract_strided_slice %1392 {offsets = [0, 32], sizes = [2, 32], strides = [1, 1]} : vector<2x96xf32> to vector<2x32xf32>
    %1396 = arith.mulf %1395, %1352 : vector<2x32xf32>
    %1397 = vector.extract_strided_slice %1392 {offsets = [0, 0], sizes = [2, 32], strides = [1, 1]} : vector<2x96xf32> to vector<2x32xf32>
    %1398 = arith.mulf %1397, %1394 : vector<2x32xf32>
    %1399 = arith.addf %1396, %1398 : vector<2x32xf32>
    %1400 = vector.extract_strided_slice %1392 {offsets = [0, 64], sizes = [2, 32], strides = [1, 1]} : vector<2x96xf32> to vector<2x32xf32>
    %1401 = math.tanh %1399 : vector<2x32xf32>
    %1402 = arith.mulf %1400, %1401 : vector<2x32xf32>
    %1403 = vector.shape_cast %1386 : vector<2x32xf32> to vector<2x1x32xf32>
    %c0_461 = arith.constant 0 : index
    %c12_462 = arith.constant 12 : index
    %c0_463 = arith.constant 0 : index
    %1404 = vector.load %arg17[%c0_461, %c12_462, %c0_463] : memref<2x16x64xf32, #tpu.memory_space<vmem>>, vector<2x1x32xf32>
    tpu.vector_store %arg17[%c0_461, %c12_462, %c0_463], %1403 {strides = array<i32>} : memref<2x16x64xf32, #tpu.memory_space<vmem>>, vector<2x1x32xf32>,
    %1405 = vector.shape_cast %1402 : vector<2x32xf32> to vector<2x1x32xf32>
    %c0_464 = arith.constant 0 : index
    %c3_465 = arith.constant 3 : index
    %c32_466 = arith.constant 32 : index
    %1406 = vector.load %arg17[%c0_464, %c3_465, %c32_466] : memref<2x16x64xf32, #tpu.memory_space<vmem>>, vector<2x1x32xf32>
    tpu.vector_store %arg17[%c0_464, %c3_465, %c32_466], %1405 {strides = array<i32>} : memref<2x16x64xf32, #tpu.memory_space<vmem>>, vector<2x1x32xf32>,
    %1407 = tpu.concatenate %1386, %1402 in 1 : vector<2x32xf32>, vector<2x32xf32> -> vector<2x64xf32>
    %1408 = arith.truncf %1407 : vector<2x64xf32> to vector<2x64xbf16>
    %cst_467 = arith.constant dense<0.000000e+00> : vector<2x256xf32>
    %1409 = tpu.matmul %1408, %785, %cst_467 {dimension_numbers = #tpu.dot_dimension_numbers<[1], [0], [0], [1], [0, 0, 1, 1], [], []>} : vector<2x64xbf16>, vector<64x256xbf16>, vector<2x256xf32> -> vector<2x256xf32>
    %c0_468 = arith.constant 0 : index
    %c13_469 = arith.constant 13 : index
    %c0_470 = arith.constant 0 : index
    %1410 = vector.load %arg15[%c0_468, %c13_469, %c0_470] : memref<2x16x256xf32, #tpu.memory_space<vmem>>, vector<2x1x128xf32>
    %c0_471 = arith.constant 0 : index
    %c2_472 = arith.constant 2 : index
    %c128_473 = arith.constant 128 : index
    %1411 = vector.load %arg15[%c0_471, %c2_472, %c128_473] : memref<2x16x256xf32, #tpu.memory_space<vmem>>, vector<2x1x128xf32>
    %1412 = vector.extract_strided_slice %1409 {offsets = [0, 0], sizes = [2, 128], strides = [1, 1]} : vector<2x256xf32> to vector<2x128xf32>
    %1413 = vector.shape_cast %1410 : vector<2x1x128xf32> to vector<2x128xf32>
    %1414 = arith.addf %1412, %1413 : vector<2x128xf32>
    %1415 = vector.extract_strided_slice %1409 {offsets = [0, 128], sizes = [2, 128], strides = [1, 1]} : vector<2x256xf32> to vector<2x128xf32>
    %1416 = vector.shape_cast %1411 : vector<2x1x128xf32> to vector<2x128xf32>
    %1417 = arith.addf %1415, %1416 : vector<2x128xf32>
    %1418 = vector.extract_strided_slice %1414 {offsets = [0, 0], sizes = [2, 96], strides = [1, 1]} : vector<2x128xf32> to vector<2x96xf32>
    %1419 = arith.negf %1418 : vector<2x96xf32>
    %1420 = math.exp %1419 : vector<2x96xf32>
    %cst_474 = arith.constant 1.000000e+00 : f32
    %1421 = vector.broadcast %cst_474 : f32 to vector<2x96xf32>
    %1422 = arith.addf %1421, %1420 : vector<2x96xf32>
    %1423 = arith.divf %1421, %1422 : vector<2x96xf32>
    %1424 = vector.extract_strided_slice %1414 {offsets = [0, 96], sizes = [2, 32], strides = [1, 1]} : vector<2x128xf32> to vector<2x32xf32>
    %1425 = math.tanh %1424 : vector<2x32xf32>
    %1426 = vector.extract_strided_slice %1423 {offsets = [0, 32], sizes = [2, 32], strides = [1, 1]} : vector<2x96xf32> to vector<2x32xf32>
    %1427 = arith.mulf %1426, %1383 : vector<2x32xf32>
    %1428 = vector.extract_strided_slice %1423 {offsets = [0, 0], sizes = [2, 32], strides = [1, 1]} : vector<2x96xf32> to vector<2x32xf32>
    %1429 = arith.mulf %1428, %1425 : vector<2x32xf32>
    %1430 = arith.addf %1427, %1429 : vector<2x32xf32>
    %1431 = vector.extract_strided_slice %1423 {offsets = [0, 64], sizes = [2, 32], strides = [1, 1]} : vector<2x96xf32> to vector<2x32xf32>
    %1432 = math.tanh %1430 : vector<2x32xf32>
    %1433 = arith.mulf %1431, %1432 : vector<2x32xf32>
    %1434 = vector.extract_strided_slice %1417 {offsets = [0, 0], sizes = [2, 96], strides = [1, 1]} : vector<2x128xf32> to vector<2x96xf32>
    %1435 = arith.negf %1434 : vector<2x96xf32>
    %1436 = math.exp %1435 : vector<2x96xf32>
    %cst_475 = arith.constant 1.000000e+00 : f32
    %1437 = vector.broadcast %cst_475 : f32 to vector<2x96xf32>
    %1438 = arith.addf %1437, %1436 : vector<2x96xf32>
    %1439 = arith.divf %1437, %1438 : vector<2x96xf32>
    %1440 = vector.extract_strided_slice %1417 {offsets = [0, 96], sizes = [2, 32], strides = [1, 1]} : vector<2x128xf32> to vector<2x32xf32>
    %1441 = math.tanh %1440 : vector<2x32xf32>
    %1442 = vector.extract_strided_slice %1439 {offsets = [0, 32], sizes = [2, 32], strides = [1, 1]} : vector<2x96xf32> to vector<2x32xf32>
    %1443 = arith.mulf %1442, %1399 : vector<2x32xf32>
    %1444 = vector.extract_strided_slice %1439 {offsets = [0, 0], sizes = [2, 32], strides = [1, 1]} : vector<2x96xf32> to vector<2x32xf32>
    %1445 = arith.mulf %1444, %1441 : vector<2x32xf32>
    %1446 = arith.addf %1443, %1445 : vector<2x32xf32>
    %1447 = vector.extract_strided_slice %1439 {offsets = [0, 64], sizes = [2, 32], strides = [1, 1]} : vector<2x96xf32> to vector<2x32xf32>
    %1448 = math.tanh %1446 : vector<2x32xf32>
    %1449 = arith.mulf %1447, %1448 : vector<2x32xf32>
    %1450 = vector.shape_cast %1433 : vector<2x32xf32> to vector<2x1x32xf32>
    %c0_476 = arith.constant 0 : index
    %c13_477 = arith.constant 13 : index
    %c0_478 = arith.constant 0 : index
    %1451 = vector.load %arg17[%c0_476, %c13_477, %c0_478] : memref<2x16x64xf32, #tpu.memory_space<vmem>>, vector<2x1x32xf32>
    tpu.vector_store %arg17[%c0_476, %c13_477, %c0_478], %1450 {strides = array<i32>} : memref<2x16x64xf32, #tpu.memory_space<vmem>>, vector<2x1x32xf32>,
    %1452 = vector.shape_cast %1449 : vector<2x32xf32> to vector<2x1x32xf32>
    %c0_479 = arith.constant 0 : index
    %c2_480 = arith.constant 2 : index
    %c32_481 = arith.constant 32 : index
    %1453 = vector.load %arg17[%c0_479, %c2_480, %c32_481] : memref<2x16x64xf32, #tpu.memory_space<vmem>>, vector<2x1x32xf32>
    tpu.vector_store %arg17[%c0_479, %c2_480, %c32_481], %1452 {strides = array<i32>} : memref<2x16x64xf32, #tpu.memory_space<vmem>>, vector<2x1x32xf32>,
    %1454 = tpu.concatenate %1433, %1449 in 1 : vector<2x32xf32>, vector<2x32xf32> -> vector<2x64xf32>
    %1455 = arith.truncf %1454 : vector<2x64xf32> to vector<2x64xbf16>
    %cst_482 = arith.constant dense<0.000000e+00> : vector<2x256xf32>
    %1456 = tpu.matmul %1455, %785, %cst_482 {dimension_numbers = #tpu.dot_dimension_numbers<[1], [0], [0], [1], [0, 0, 1, 1], [], []>} : vector<2x64xbf16>, vector<64x256xbf16>, vector<2x256xf32> -> vector<2x256xf32>
    %c0_483 = arith.constant 0 : index
    %c14_484 = arith.constant 14 : index
    %c0_485 = arith.constant 0 : index
    %1457 = vector.load %arg15[%c0_483, %c14_484, %c0_485] : memref<2x16x256xf32, #tpu.memory_space<vmem>>, vector<2x1x128xf32>
    %c0_486 = arith.constant 0 : index
    %c1_487 = arith.constant 1 : index
    %c128_488 = arith.constant 128 : index
    %1458 = vector.load %arg15[%c0_486, %c1_487, %c128_488] : memref<2x16x256xf32, #tpu.memory_space<vmem>>, vector<2x1x128xf32>
    %1459 = vector.extract_strided_slice %1456 {offsets = [0, 0], sizes = [2, 128], strides = [1, 1]} : vector<2x256xf32> to vector<2x128xf32>
    %1460 = vector.shape_cast %1457 : vector<2x1x128xf32> to vector<2x128xf32>
    %1461 = arith.addf %1459, %1460 : vector<2x128xf32>
    %1462 = vector.extract_strided_slice %1456 {offsets = [0, 128], sizes = [2, 128], strides = [1, 1]} : vector<2x256xf32> to vector<2x128xf32>
    %1463 = vector.shape_cast %1458 : vector<2x1x128xf32> to vector<2x128xf32>
    %1464 = arith.addf %1462, %1463 : vector<2x128xf32>
    %1465 = vector.extract_strided_slice %1461 {offsets = [0, 0], sizes = [2, 96], strides = [1, 1]} : vector<2x128xf32> to vector<2x96xf32>
    %1466 = arith.negf %1465 : vector<2x96xf32>
    %1467 = math.exp %1466 : vector<2x96xf32>
    %cst_489 = arith.constant 1.000000e+00 : f32
    %1468 = vector.broadcast %cst_489 : f32 to vector<2x96xf32>
    %1469 = arith.addf %1468, %1467 : vector<2x96xf32>
    %1470 = arith.divf %1468, %1469 : vector<2x96xf32>
    %1471 = vector.extract_strided_slice %1461 {offsets = [0, 96], sizes = [2, 32], strides = [1, 1]} : vector<2x128xf32> to vector<2x32xf32>
    %1472 = math.tanh %1471 : vector<2x32xf32>
    %1473 = vector.extract_strided_slice %1470 {offsets = [0, 32], sizes = [2, 32], strides = [1, 1]} : vector<2x96xf32> to vector<2x32xf32>
    %1474 = arith.mulf %1473, %1430 : vector<2x32xf32>
    %1475 = vector.extract_strided_slice %1470 {offsets = [0, 0], sizes = [2, 32], strides = [1, 1]} : vector<2x96xf32> to vector<2x32xf32>
    %1476 = arith.mulf %1475, %1472 : vector<2x32xf32>
    %1477 = arith.addf %1474, %1476 : vector<2x32xf32>
    %1478 = vector.extract_strided_slice %1470 {offsets = [0, 64], sizes = [2, 32], strides = [1, 1]} : vector<2x96xf32> to vector<2x32xf32>
    %1479 = math.tanh %1477 : vector<2x32xf32>
    %1480 = arith.mulf %1478, %1479 : vector<2x32xf32>
    %1481 = vector.extract_strided_slice %1464 {offsets = [0, 0], sizes = [2, 96], strides = [1, 1]} : vector<2x128xf32> to vector<2x96xf32>
    %1482 = arith.negf %1481 : vector<2x96xf32>
    %1483 = math.exp %1482 : vector<2x96xf32>
    %cst_490 = arith.constant 1.000000e+00 : f32
    %1484 = vector.broadcast %cst_490 : f32 to vector<2x96xf32>
    %1485 = arith.addf %1484, %1483 : vector<2x96xf32>
    %1486 = arith.divf %1484, %1485 : vector<2x96xf32>
    %1487 = vector.extract_strided_slice %1464 {offsets = [0, 96], sizes = [2, 32], strides = [1, 1]} : vector<2x128xf32> to vector<2x32xf32>
    %1488 = math.tanh %1487 : vector<2x32xf32>
    %1489 = vector.extract_strided_slice %1486 {offsets = [0, 32], sizes = [2, 32], strides = [1, 1]} : vector<2x96xf32> to vector<2x32xf32>
    %1490 = arith.mulf %1489, %1446 : vector<2x32xf32>
    %1491 = vector.extract_strided_slice %1486 {offsets = [0, 0], sizes = [2, 32], strides = [1, 1]} : vector<2x96xf32> to vector<2x32xf32>
    %1492 = arith.mulf %1491, %1488 : vector<2x32xf32>
    %1493 = arith.addf %1490, %1492 : vector<2x32xf32>
    %1494 = vector.extract_strided_slice %1486 {offsets = [0, 64], sizes = [2, 32], strides = [1, 1]} : vector<2x96xf32> to vector<2x32xf32>
    %1495 = math.tanh %1493 : vector<2x32xf32>
    %1496 = arith.mulf %1494, %1495 : vector<2x32xf32>
    %1497 = vector.shape_cast %1480 : vector<2x32xf32> to vector<2x1x32xf32>
    %c0_491 = arith.constant 0 : index
    %c14_492 = arith.constant 14 : index
    %c0_493 = arith.constant 0 : index
    %1498 = vector.load %arg17[%c0_491, %c14_492, %c0_493] : memref<2x16x64xf32, #tpu.memory_space<vmem>>, vector<2x1x32xf32>
    tpu.vector_store %arg17[%c0_491, %c14_492, %c0_493], %1497 {strides = array<i32>} : memref<2x16x64xf32, #tpu.memory_space<vmem>>, vector<2x1x32xf32>,
    %1499 = vector.shape_cast %1496 : vector<2x32xf32> to vector<2x1x32xf32>
    %c0_494 = arith.constant 0 : index
    %c1_495 = arith.constant 1 : index
    %c32_496 = arith.constant 32 : index
    %1500 = vector.load %arg17[%c0_494, %c1_495, %c32_496] : memref<2x16x64xf32, #tpu.memory_space<vmem>>, vector<2x1x32xf32>
    tpu.vector_store %arg17[%c0_494, %c1_495, %c32_496], %1499 {strides = array<i32>} : memref<2x16x64xf32, #tpu.memory_space<vmem>>, vector<2x1x32xf32>,
    %1501 = tpu.concatenate %1480, %1496 in 1 : vector<2x32xf32>, vector<2x32xf32> -> vector<2x64xf32>
    %1502 = arith.truncf %1501 : vector<2x64xf32> to vector<2x64xbf16>
    %cst_497 = arith.constant dense<0.000000e+00> : vector<2x256xf32>
    %1503 = tpu.matmul %1502, %785, %cst_497 {dimension_numbers = #tpu.dot_dimension_numbers<[1], [0], [0], [1], [0, 0, 1, 1], [], []>} : vector<2x64xbf16>, vector<64x256xbf16>, vector<2x256xf32> -> vector<2x256xf32>
    %c0_498 = arith.constant 0 : index
    %c15_499 = arith.constant 15 : index
    %c0_500 = arith.constant 0 : index
    %1504 = vector.load %arg15[%c0_498, %c15_499, %c0_500] : memref<2x16x256xf32, #tpu.memory_space<vmem>>, vector<2x1x128xf32>
    %c0_501 = arith.constant 0 : index
    %c0_502 = arith.constant 0 : index
    %c128_503 = arith.constant 128 : index
    %1505 = vector.load %arg15[%c0_501, %c0_502, %c128_503] : memref<2x16x256xf32, #tpu.memory_space<vmem>>, vector<2x1x128xf32>
    %1506 = vector.extract_strided_slice %1503 {offsets = [0, 0], sizes = [2, 128], strides = [1, 1]} : vector<2x256xf32> to vector<2x128xf32>
    %1507 = vector.shape_cast %1504 : vector<2x1x128xf32> to vector<2x128xf32>
    %1508 = arith.addf %1506, %1507 : vector<2x128xf32>
    %1509 = vector.extract_strided_slice %1503 {offsets = [0, 128], sizes = [2, 128], strides = [1, 1]} : vector<2x256xf32> to vector<2x128xf32>
    %1510 = vector.shape_cast %1505 : vector<2x1x128xf32> to vector<2x128xf32>
    %1511 = arith.addf %1509, %1510 : vector<2x128xf32>
    %1512 = vector.extract_strided_slice %1508 {offsets = [0, 0], sizes = [2, 96], strides = [1, 1]} : vector<2x128xf32> to vector<2x96xf32>
    %1513 = arith.negf %1512 : vector<2x96xf32>
    %1514 = math.exp %1513 : vector<2x96xf32>
    %cst_504 = arith.constant 1.000000e+00 : f32
    %1515 = vector.broadcast %cst_504 : f32 to vector<2x96xf32>
    %1516 = arith.addf %1515, %1514 : vector<2x96xf32>
    %1517 = arith.divf %1515, %1516 : vector<2x96xf32>
    %1518 = vector.extract_strided_slice %1508 {offsets = [0, 96], sizes = [2, 32], strides = [1, 1]} : vector<2x128xf32> to vector<2x32xf32>
    %1519 = math.tanh %1518 : vector<2x32xf32>
    %1520 = vector.extract_strided_slice %1517 {offsets = [0, 32], sizes = [2, 32], strides = [1, 1]} : vector<2x96xf32> to vector<2x32xf32>
    %1521 = arith.mulf %1520, %1477 : vector<2x32xf32>
    %1522 = vector.extract_strided_slice %1517 {offsets = [0, 0], sizes = [2, 32], strides = [1, 1]} : vector<2x96xf32> to vector<2x32xf32>
    %1523 = arith.mulf %1522, %1519 : vector<2x32xf32>
    %1524 = arith.addf %1521, %1523 : vector<2x32xf32>
    %1525 = vector.extract_strided_slice %1517 {offsets = [0, 64], sizes = [2, 32], strides = [1, 1]} : vector<2x96xf32> to vector<2x32xf32>
    %1526 = math.tanh %1524 : vector<2x32xf32>
    %1527 = arith.mulf %1525, %1526 : vector<2x32xf32>
    %1528 = vector.extract_strided_slice %1511 {offsets = [0, 0], sizes = [2, 96], strides = [1, 1]} : vector<2x128xf32> to vector<2x96xf32>
    %1529 = arith.negf %1528 : vector<2x96xf32>
    %1530 = math.exp %1529 : vector<2x96xf32>
    %cst_505 = arith.constant 1.000000e+00 : f32
    %1531 = vector.broadcast %cst_505 : f32 to vector<2x96xf32>
    %1532 = arith.addf %1531, %1530 : vector<2x96xf32>
    %1533 = arith.divf %1531, %1532 : vector<2x96xf32>
    %1534 = vector.extract_strided_slice %1511 {offsets = [0, 96], sizes = [2, 32], strides = [1, 1]} : vector<2x128xf32> to vector<2x32xf32>
    %1535 = math.tanh %1534 : vector<2x32xf32>
    %1536 = vector.extract_strided_slice %1533 {offsets = [0, 32], sizes = [2, 32], strides = [1, 1]} : vector<2x96xf32> to vector<2x32xf32>
    %1537 = arith.mulf %1536, %1493 : vector<2x32xf32>
    %1538 = vector.extract_strided_slice %1533 {offsets = [0, 0], sizes = [2, 32], strides = [1, 1]} : vector<2x96xf32> to vector<2x32xf32>
    %1539 = arith.mulf %1538, %1535 : vector<2x32xf32>
    %1540 = arith.addf %1537, %1539 : vector<2x32xf32>
    %1541 = vector.extract_strided_slice %1533 {offsets = [0, 64], sizes = [2, 32], strides = [1, 1]} : vector<2x96xf32> to vector<2x32xf32>
    %1542 = math.tanh %1540 : vector<2x32xf32>
    %1543 = arith.mulf %1541, %1542 : vector<2x32xf32>
    %1544 = vector.shape_cast %1527 : vector<2x32xf32> to vector<2x1x32xf32>
    %c0_506 = arith.constant 0 : index
    %c15_507 = arith.constant 15 : index
    %c0_508 = arith.constant 0 : index
    %1545 = vector.load %arg17[%c0_506, %c15_507, %c0_508] : memref<2x16x64xf32, #tpu.memory_space<vmem>>, vector<2x1x32xf32>
    tpu.vector_store %arg17[%c0_506, %c15_507, %c0_508], %1544 {strides = array<i32>} : memref<2x16x64xf32, #tpu.memory_space<vmem>>, vector<2x1x32xf32>,
    %1546 = vector.shape_cast %1543 : vector<2x32xf32> to vector<2x1x32xf32>
    %c0_509 = arith.constant 0 : index
    %c0_510 = arith.constant 0 : index
    %c32_511 = arith.constant 32 : index
    %1547 = vector.load %arg17[%c0_509, %c0_510, %c32_511] : memref<2x16x64xf32, #tpu.memory_space<vmem>>, vector<2x1x32xf32>
    tpu.vector_store %arg17[%c0_509, %c0_510, %c32_511], %1546 {strides = array<i32>} : memref<2x16x64xf32, #tpu.memory_space<vmem>>, vector<2x1x32xf32>,
    %c0_512 = arith.constant 0 : index
    %c0_513 = arith.constant 0 : index
    %c0_514 = arith.constant 0 : index
    %1548 = vector.load %arg17[%c0_512, %c0_513, %c0_514] : memref<2x16x64xf32, #tpu.memory_space<vmem>>, vector<2x16x64xf32>
    %c0_515 = arith.constant 0 : index
    %c0_516 = arith.constant 0 : index
    %1549 = vector.load %arg9[%c0_515, %c0_516] : memref<1x64xf32, #tpu.memory_space<vmem>>, vector<1x64xf32>
    %1550 = vector.shape_cast %1549 : vector<1x64xf32> to vector<1x1x64xf32>
    %1551 = vector.broadcast %1550 : vector<1x1x64xf32> to vector<2x16x64xf32>
    %1552 = arith.mulf %1548, %1551 : vector<2x16x64xf32>
    %cst_517 = arith.constant dense<0.000000e+00> : vector<2x16xf32>
    %1553 = vector.multi_reduction <add>, %1552, %cst_517 [2] : vector<2x16x64xf32> to vector<2x16xf32>
    %cst_518 = arith.constant dense<0xFF800000> : vector<2xf32>
    %1554 = vector.multi_reduction <maximumf>, %1553, %cst_518 [1] : vector<2x16xf32> to vector<2xf32>
    %1555 = vector.shape_cast %1554 : vector<2xf32> to vector<2x1xf32>
    %1556 = vector.broadcast %1555 : vector<2x1xf32> to vector<2x16xf32>
    %1557 = arith.subf %1553, %1556 : vector<2x16xf32>
    %1558 = math.exp %1557 : vector<2x16xf32>
    %cst_519 = arith.constant dense<0.000000e+00> : vector<2xf32>
    %1559 = vector.multi_reduction <add>, %1558, %cst_519 [1] : vector<2x16xf32> to vector<2xf32>
    %1560 = vector.shape_cast %1559 : vector<2xf32> to vector<2x1xf32>
    %1561 = tpu.reciprocal %1560 {approx = true} : vector<2x1xf32> -> vector<2x1xf32>
    %1562 = vector.broadcast %1561 : vector<2x1xf32> to vector<2x16xf32>
    %1563 = arith.mulf %1558, %1562 : vector<2x16xf32>
    %1564 = vector.shape_cast %1563 : vector<2x16xf32> to vector<2x16x1xf32>
    %1565 = vector.broadcast %1564 : vector<2x16x1xf32> to vector<2x16x64xf32>
    %1566 = arith.mulf %1565, %1548 : vector<2x16x64xf32>
    %cst_520 = arith.constant dense<0.000000e+00> : vector<2x64xf32>
    %1567 = vector.multi_reduction <add>, %1566, %cst_520 [1] : vector<2x16x64xf32> to vector<2x64xf32>
    %1568 = arith.truncf %1567 : vector<2x64xf32> to vector<2x64xbf16>
    %c0_521 = arith.constant 0 : index
    %c0_522 = arith.constant 0 : index
    %1569 = vector.load %arg10[%c0_521, %c0_522] : memref<64x5xbf16, #tpu.memory_space<vmem>>, vector<64x5xbf16>
    %cst_523 = arith.constant dense<0.000000e+00> : vector<2x5xf32>
    %1570 = tpu.matmul %1568, %1569, %cst_523 {dimension_numbers = #tpu.dot_dimension_numbers<[1], [0], [0], [1], [0, 0, 1, 1], [], []>} : vector<2x64xbf16>, vector<64x5xbf16>, vector<2x5xf32> -> vector<2x5xf32>
    %c0_524 = arith.constant 0 : index
    %c0_525 = arith.constant 0 : index
    %1571 = vector.load %arg11[%c0_524, %c0_525] : memref<1x5xf32, #tpu.memory_space<vmem>>, vector<1x5xf32>
    %1572 = vector.broadcast %1571 : vector<1x5xf32> to vector<2x5xf32>
    %1573 = arith.addf %1570, %1572 : vector<2x5xf32>
    %c0_526 = arith.constant 0 : index
    %c0_527 = arith.constant 0 : index
    %1574 = vector.load %arg12[%c0_526, %c0_527] : memref<2x5xf32, #tpu.memory_space<vmem>>, vector<2x5xf32>
    tpu.vector_store %arg12[%c0_526, %c0_527], %1573 {strides = array<i32>} : memref<2x5xf32, #tpu.memory_space<vmem>>, vector<2x5xf32>,
    return
  }
}

</mosaic_0001>

<llo_original>
// kernel: gesture_forward.1
$region0: #{gesture_forward.1}
  #allocation0 [shape = 'u32[]', space=smem, size = 0x4, offset = 0x4, fixed_abs, tag = 'smem constant byte address 0x4 - core index']
  #allocation1 [shape = 'u32[72,128]{1,0:T(1,128)}', space=vmem, size = 0x9000, scoped, tag = 'internal scratch']
  #allocation2 [shape = 'f32[2,18,8]{2,1,0:T(8,128)}', space=vmem, size = 0x6000, scoped, tag = 'scratch operand']
  #allocation3 [shape = 'f32[2,16,256]{2,1,0:T(8,128)}', space=vmem, size = 0x8000, scoped, tag = 'scratch operand']
  #allocation4 [shape = 'f32[2,16,256]{2,1,0:T(8,128)}', space=vmem, size = 0x8000, scoped, tag = 'scratch operand']
  #allocation5 [shape = 'f32[2,16,64]{2,1,0:T(8,128)}', space=vmem, size = 0x4000, scoped, tag = 'scratch operand']
  #allocation6 [shape = 'f32[2,16,64]{2,1,0:T(8,128)}', space=vmem, size = 0x4000, scoped, tag = 'scratch operand']
  %s0 = inlined_call_operand.vmem [shape: f32[2,16,8], index: 0, kind: input, shape index: {}]
  %s1 = inlined_call_operand.vmem [shape: bf16[24,64], index: 1, kind: input, shape index: {}]
  %s2 = inlined_call_operand.vmem [shape: f32[1,64], index: 2, kind: input, shape index: {}]
  %s3 = inlined_call_operand.vmem [shape: bf16[64,256], index: 3, kind: input, shape index: {}]
  %s4 = inlined_call_operand.hbm [shape: bf16[64,256], index: 4, kind: input, shape index: {}]
  %s5 = inlined_call_operand.vmem [shape: f32[1,256], index: 5, kind: input, shape index: {}]
  %s6 = inlined_call_operand.hbm [shape: bf16[64,256], index: 6, kind: input, shape index: {}]
  %s7 = inlined_call_operand.hbm [shape: bf16[64,256], index: 7, kind: input, shape index: {}]
  %s8 = inlined_call_operand.vmem [shape: f32[1,256], index: 8, kind: input, shape index: {}]
  %s9 = inlined_call_operand.hbm [shape: f32[1,64], index: 9, kind: input, shape index: {}]
  %s10 = inlined_call_operand.vmem [shape: bf16[64,5], index: 10, kind: input, shape index: {}]
  %s11 = inlined_call_operand.vmem [shape: f32[1,5], index: 11, kind: input, shape index: {}]
  %s12 = inlined_call_operand.hbm [shape: f32[2,5], index: 12, kind: output, shape index: {}]
  %s13 = sld [smem:[#allocation0]]
  $region74: #{gesture_forward.1} parent=0
    _
  %s15 = ssub.s32 1, %s13
  %s16 = scalar_select 0, %s15, %s13
  $region1: #{gesture_forward.1} parent=0
    #allocation7 [shape = 'u8[32768]{0}', space=vmem, size = 0x8000, scoped, tag = 'input window, operand 4, single buffered']
    #allocation8 [shape = 's32[1]{0}', space=sflag, size = 0x4, scoped, tag = 'scoped memory for gesture_forward.1']
    #allocation9 [shape = 's32[1]{0}', space=sflag, size = 0x4, scoped, tag = 'scoped memory for gesture_forward.1']
    #allocation10 [shape = 'u8[32768]{0}', space=vmem, size = 0x8000, scoped, tag = 'input window, operand 6, single buffered']
    #allocation11 [shape = 's32[1]{0}', space=sflag, size = 0x4, scoped, tag = 'scoped memory for gesture_forward.1']
    #allocation12 [shape = 'u8[32768]{0}', space=vmem, size = 0x8000, scoped, tag = 'input window, operand 7, single buffered']
    #allocation13 [shape = 'u8[512]{0}', space=vmem, size = 0x400, scoped, tag = 'input window, operand 9, single buffered']
    #allocation14 [shape = 's32[1]{0}', space=sflag, size = 0x4, scoped, tag = 'scoped memory for gesture_forward.1']
    #allocation15 [shape = 'u8[1024]{0}', space=vmem, size = 0x400, scoped, tag = 'output window, operand 0, single buffered']
    %17 = vsyncpa [#allocation8], 0
    %18 = vsyncpa [#allocation11], 0
    %19 = vsyncpa [#allocation14], 0
    %20 = vsyncpa [#allocation9], 0
    // Predicated region
    $region2: #{gesture_forward.1} parent=1 // pred_check
      _
    $region3: #{gesture_forward.1} parent=1 // pred_check_branch
      %22 = sbr.rel (0) target = $region5
    $region4: #{gesture_forward.1} parent=1 // pred_region
      _
    $region5: #{gesture_forward.1} parent=1 // pred_fallthru
      _
    // Predicated region
    $region6: #{gesture_forward.1} parent=1 // pred_check
      _
    $region7: #{gesture_forward.1} parent=1 // pred_check_branch
      %24 = sbr.rel (0) target = $region9
    $region8: #{gesture_forward.1} parent=1 // pred_region
      _
    $region9: #{gesture_forward.1} parent=1 // pred_fallthru
      _
    // Predicated region
    $region10: #{gesture_forward.1} parent=1 // pred_check
      _
    $region11: #{gesture_forward.1} parent=1 // pred_check_branch
      %26 = sbr.rel (0) target = $region13
    $region12: #{gesture_forward.1} parent=1 // pred_region
      _
    $region13: #{gesture_forward.1} parent=1 // pred_fallthru
      _
    // Predicated region
    $region14: #{gesture_forward.1} parent=1 // pred_check
      _
    $region15: #{gesture_forward.1} parent=1 // pred_check_branch
      %28 = sbr.rel (0) target = $region17
    $region16: #{gesture_forward.1} parent=1 // pred_region
      _
    $region17: #{gesture_forward.1} parent=1 // pred_fallthru
      _
    // Predicated region
    $region18: #{gesture_forward.1} parent=1 // pred_check
      _
    $region19: #{gesture_forward.1} parent=1 // pred_check_branch
      %30 = sbr.rel (0) target = $region21
    $region20: #{gesture_forward.1} parent=1 // pred_region
      %32 = vsyncadd [#allocation8], 0
      %s33 = sshll.u32 %s4, 4
      %s34 = int_to_ptr.hbm [resolvable:$true] %s33
      %s35 = sshll.u32 [#allocation7], 4
      %s36 = int_to_ptr.vmem [resolvable:$true] %s35
      %41 = dma.hbm_to_vmem [thread:$0]  %s34, 1024, %s36, [#allocation8], 128, 128, 8
    $region21: #{gesture_forward.1} parent=1 // pred_fallthru
      _
    // Predicated region
    $region22: #{gesture_forward.1} parent=1 // pred_check
      _
    $region23: #{gesture_forward.1} parent=1 // pred_check_branch
      %43 = sbr.rel (0) target = $region25
    $region24: #{gesture_forward.1} parent=1 // pred_region
      _
    $region25: #{gesture_forward.1} parent=1 // pred_fallthru
      _
    // Predicated region
    $region26: #{gesture_forward.1} parent=1 // pred_check
      _
    $region27: #{gesture_forward.1} parent=1 // pred_check_branch
      %45 = sbr.rel (0) target = $region29
    $region28: #{gesture_forward.1} parent=1 // pred_region
      %47 = vsyncadd [#allocation11], 0
      %s48 = sshll.u32 %s6, 4
      %s49 = int_to_ptr.hbm [resolvable:$true] %s48
      %s50 = sshll.u32 [#allocation10], 4
      %s51 = int_to_ptr.vmem [resolvable:$true] %s50
      %56 = dma.hbm_to_vmem [thread:$0]  %s49, 1024, %s51, [#allocation11], 128, 128, 8
    $region29: #{gesture_forward.1} parent=1 // pred_fallthru
      _
    // Predicated region
    $region30: #{gesture_forward.1} parent=1 // pred_check
      _
    $region31: #{gesture_forward.1} parent=1 // pred_check_branch
      %58 = sbr.rel (0) target = $region33
    $region32: #{gesture_forward.1} parent=1 // pred_region
      %60 = vsyncadd [#allocation11], 0
      %s61 = sshll.u32 %s7, 4
      %s62 = int_to_ptr.hbm [resolvable:$true] %s61
      %s63 = sshll.u32 [#allocation12], 4
      %s64 = int_to_ptr.vmem [resolvable:$true] %s63
      %69 = dma.hbm_to_vmem [thread:$0]  %s62, 1024, %s64, [#allocation11], 128, 128, 8
    $region33: #{gesture_forward.1} parent=1 // pred_fallthru
      _
    // Predicated region
    $region34: #{gesture_forward.1} parent=1 // pred_check
      _
    $region35: #{gesture_forward.1} parent=1 // pred_check_branch
      %71 = sbr.rel (0) target = $region37
    $region36: #{gesture_forward.1} parent=1 // pred_region
      _
    $region37: #{gesture_forward.1} parent=1 // pred_fallthru
      _
    // Predicated region
    $region38: #{gesture_forward.1} parent=1 // pred_check
      _
    $region39: #{gesture_forward.1} parent=1 // pred_check_branch
      %73 = sbr.rel (0) target = $region41
    $region40: #{gesture_forward.1} parent=1 // pred_region
      %75 = vsyncadd [#allocation14], 0
      %s77 = sshll.u32 %s9, 4
      %s78 = int_to_ptr.hbm [resolvable:$true] %s77
      %s79 = sshll.u32 [#allocation13], 4
      %s80 = int_to_ptr.vmem [resolvable:$true] %s79
      %82 = dma.hbm_to_vmem [thread:$0]  %s78, 16, %s80, [#allocation14]
    $region41: #{gesture_forward.1} parent=1 // pred_fallthru
      _
    // Predicated region
    $region42: #{gesture_forward.1} parent=1 // pred_check
      _
    $region43: #{gesture_forward.1} parent=1 // pred_check_branch
      %84 = sbr.rel (0) target = $region45
    $region44: #{gesture_forward.1} parent=1 // pred_region
      _
    $region45: #{gesture_forward.1} parent=1 // pred_fallthru
      _
    // Predicated region
    $region46: #{gesture_forward.1} parent=1 // pred_check
      _
    $region47: #{gesture_forward.1} parent=1 // pred_check_branch
      %86 = sbr.rel (0) target = $region49
    $region48: #{gesture_forward.1} parent=1 // pred_region
      _
    $region49: #{gesture_forward.1} parent=1 // pred_fallthru
      _
    // Predicated region
    $region50: #{gesture_forward.1} parent=1 // pred_check
      _
    $region51: #{gesture_forward.1} parent=1 // pred_check_branch
      %88 = sbr.rel (0) target = $region53
    $region52: #{gesture_forward.1} parent=1 // pred_region
      %90 = dma.done [#allocation8], 1024
    $region53: #{gesture_forward.1} parent=1 // pred_fallthru
      _
    // Predicated region
    $region54: #{gesture_forward.1} parent=1 // pred_check
      _
    $region55: #{gesture_forward.1} parent=1 // pred_check_branch
      %92 = sbr.rel (0) target = $region57
    $region56: #{gesture_forward.1} parent=1 // pred_region
      %94 = dma.done [#allocation11], 1024
    $region57: #{gesture_forward.1} parent=1 // pred_fallthru
      _
    // Predicated region
    $region58: #{gesture_forward.1} parent=1 // pred_check
      _
    $region59: #{gesture_forward.1} parent=1 // pred_check_branch
      %96 = sbr.rel (0) target = $region61
    $region60: #{gesture_forward.1} parent=1 // pred_region
      %98 = dma.done [#allocation11], 1024
    $region61: #{gesture_forward.1} parent=1 // pred_fallthru
      _
    // Predicated region
    $region62: #{gesture_forward.1} parent=1 // pred_check
      _
    $region63: #{gesture_forward.1} parent=1 // pred_check_branch
      %100 = sbr.rel (0) target = $region65
    $region64: #{gesture_forward.1} parent=1 // pred_region
      %102 = dma.done [#allocation14], 16
    $region65: #{gesture_forward.1} parent=1 // pred_fallthru
      _
    %v104 = vld [vmem:[%s0] sm:$0xff]
    %v105 = vld [vmem:[%s0 + $0x8] sm:$0xff]
    %v106 = vld [vmem:[%s0 + $0x10] sm:$0xff]
    %v107 = vld [vmem:[%s0 + $0x18] sm:$0xff]
    %vm108 = vcmask 57344
    %109 = vst.msk [vmem:[#allocation2] sm:$0x1] %vm108, 0.0
    %110 = vst.msk [vmem:[#allocation2 + $0x18] sm:$0x1] %vm108, 0.0
    %111 = vst.msk [vmem:[#allocation2 + $0x11] sm:$0x1] %vm108, 0.0
    %112 = vst.msk [vmem:[#allocation2 + $0x29] sm:$0x1] %vm108, 0.0
    %vm113 = vcmask 64512
    %114 = vst.msk [vmem:[#allocation2 + $0x1] sm:$0xff] %vm113, %v104
    %115 = vst.msk [vmem:[#allocation2 + $0x9] sm:$0xff] %vm113, %v105
    %116 = vst.msk [vmem:[#allocation2 + $0x19] sm:$0xff] %vm113, %v106
    %117 = vst.msk [vmem:[#allocation2 + $0x21] sm:$0xff] %vm113, %v107
    %v118 = vld [vmem:[#allocation2] sm:$0xff]
    %v119 = vld [vmem:[#allocation2 + $0x8] sm:$0xff]
    %v120 = vld [vmem:[#allocation2 + $0x10] sm:$0x3]
    %v121 = vld [vmem:[#allocation2 + $0x18] sm:$0xff]
    %v122 = vld [vmem:[#allocation2 + $0x20] sm:$0xff]
    %v123 = vld [vmem:[#allocation2 + $0x28] sm:$0x3]
    %vm130 = vcmask 1046528
    %v131 = vrot.slane %v118, 1
    %v132 = vrot.slane %v119, 1
    %v133 = vsel %vm130, %v131, %v132
    %v134 = vrot.slane %v120, 1
    %v135 = vsel %vm130, %v132, %v134
    %v136 = vrot.slane %v121, 1
    %v137 = vrot.slane %v122, 1
    %v138 = vsel %vm130, %v136, %v137
    %v139 = vrot.slane %v123, 1
    %v140 = vsel %vm130, %v137, %v139
    %141 = vrot.lane.b32.xlu0 %v133, 8
    %v142 = vpop.permute.xlu0 %141
    %143 = vrot.lane.b32.xlu0 %v135, 8
    %v144 = vpop.permute.xlu0 %143
    %145 = vrot.lane.b32.xlu0 %v138, 8
    %v146 = vpop.permute.xlu0 %145
    %147 = vrot.lane.b32.xlu0 %v140, 8
    %v148 = vpop.permute.xlu0 %147
    %vm153 = vcmask 1045504
    %v154 = vrot.slane %v118, 2
    %v155 = vrot.slane %v119, 2
    %v156 = vsel %vm153, %v154, %v155
    %v157 = vrot.slane %v120, 2
    %v158 = vsel %vm153, %v155, %v157
    %v159 = vrot.slane %v121, 2
    %v160 = vrot.slane %v122, 2
    %v161 = vsel %vm153, %v159, %v160
    %v162 = vrot.slane %v123, 2
    %v163 = vsel %vm153, %v160, %v162
    %164 = vrot.lane.b32.xlu0 %v156, 16
    %v165 = vpop.permute.xlu0 %164
    %166 = vrot.lane.b32.xlu0 %v158, 16
    %v167 = vpop.permute.xlu0 %166
    %168 = vrot.lane.b32.xlu0 %v161, 16
    %v169 = vpop.permute.xlu0 %168
    %170 = vrot.lane.b32.xlu0 %v163, 16
    %v171 = vpop.permute.xlu0 %170
    %v176 = vsel %vm113, %v118, %v142
    %v177 = vsel %vm113, %v119, %v144
    %v178 = vsel %vm113, %v121, %v146
    %v179 = vsel %vm113, %v122, %v148
    %vm180 = vcmask 130048
    %v181 = vsel %vm180, %v176, %v165
    %v182 = vsel %vm180, %v177, %v167
    %v183 = vsel %vm180, %v178, %v169
    %v184 = vsel %vm180, %v179, %v171
    %v185 = vpack.c.bf16 %v182, %v181
    %v186 = vpack.c.bf16 %v184, %v183
    %v187 = vld [vmem:[%s1] sm:$0xf]
    %v188 = vld [vmem:[%s1 + $0x4] sm:$0xf]
    %v189 = vld [vmem:[%s1 + $0x8] sm:$0xf]
    %v190 = vld [vmem:[%s2] sm:$0x1]
    %v192 = vperm.slane %v190, 0
    %v197 = vunpack.c.l.b16 %v187
    %v198 = vunpack.c.l.b16 %v188
    %v199 = vunpack.c.l.b16 %v189
    %v200 = vpack.c.b16 %v198, %v197
    %v201 = vpack.c.b16 %v199, %v199
    %vm203 = vcmask 195584
    %v205 = vsel %vm203, %v185, 0
    %v208 = vsel %vm203, %v186, 0
    %vm210 = vcmask 1043456
    %v212 = vsel %vm210, %v201, 0
    %214 = vmatpush.bf16.msra.mxu0 0
    %215 = vmatpush.bf16.msra.mxu0 0
    %216 = vmatpush.bf16.msra.mxu0 0
    %217 = vmatpush.bf16.msra.mxu0 0
    %218 = vmatpush.bf16.msra.mxu0 0
    %219 = vmatpush.bf16.msra.mxu0 0
    %220 = vmatpush.bf16.msra.mxu0 %v212
    %221 = vmatpush.bf16.msra.mxu0 %v200
    %222 = vmatmul.bf16.gmra.mxu0 %v205
    %v223 = vpop.f32.mrf.mxu0
    %v224 = vadd.f32 %v192, %v223
    %v225 = vpop.f32.mrf.mxu0
    %v226 = vadd.f32 %v192, %v225
    %227 = vmatmul.bf16.gmra.mxu0 %v208
    %v228 = vpop.f32.mrf.mxu0
    %v229 = vadd.f32 %v192, %v228
    %v230 = vpop.f32.mrf.mxu0
    %v231 = vadd.f32 %v192, %v230
    %232 = vdwg.mxu0
    %v233 = vmax.f32 %v224, 0.0
    %v234 = vmax.f32 %v226, 0.0
    %v235 = vmax.f32 %v229, 0.0
    %v236 = vmax.f32 %v231, 0.0
    %v237 = vld [vmem:[#allocation7] sm:$0xff]
    %v238 = vld [vmem:[#allocation7 + $0x8] sm:$0xff]
    %v239 = vld [vmem:[#allocation7 + $0x10] sm:$0xff]
    %v240 = vld [vmem:[#allocation7 + $0x18] sm:$0xff]
    %v241 = vld [vmem:[#allocation7 + $0x20] sm:$0xff]
    %v242 = vld [vmem:[#allocation7 + $0x28] sm:$0xff]
    %v243 = vld [vmem:[#allocation7 + $0x30] sm:$0xff]
    %v244 = vld [vmem:[#allocation7 + $0x38] sm:$0xff]
    %v245 = vpack.c.bf16 %v234, %v233
    %v246 = vpack.c.bf16 %v236, %v235
    %v247 = vld [vmem:[%s3] sm:$0xff]
    %v248 = vld [vmem:[%s3 + $0x8] sm:$0xff]
    %v249 = vld [vmem:[%s3 + $0x10] sm:$0xff]
    %v250 = vld [vmem:[%s3 + $0x18] sm:$0xff]
    %v251 = vld [vmem:[%s3 + $0x20] sm:$0xff]
    %v252 = vld [vmem:[%s3 + $0x28] sm:$0xff]
    %v253 = vld [vmem:[%s3 + $0x30] sm:$0xff]
    %v254 = vld [vmem:[%s3 + $0x38] sm:$0xff]
    %v255 = vld [vmem:[%s5] sm:$0x3]
    %v257 = vperm.slane %v255, 0
    %v258 = vperm.slane %v255, 1
    %v269 = vunpack.c.l.b16 %v247
    %v270 = vunpack.c.h.b16 %v247
    %v271 = vunpack.c.l.b16 %v248
    %v272 = vunpack.c.h.b16 %v248
    %v273 = vunpack.c.l.b16 %v249
    %v274 = vunpack.c.h.b16 %v249
    %v275 = vunpack.c.l.b16 %v250
    %v276 = vunpack.c.h.b16 %v250
    %v277 = vunpack.c.l.b16 %v251
    %v278 = vunpack.c.h.b16 %v251
    %v279 = vunpack.c.l.b16 %v252
    %v280 = vunpack.c.h.b16 %v252
    %v281 = vunpack.c.l.b16 %v253
    %v282 = vunpack.c.h.b16 %v253
    %v283 = vunpack.c.l.b16 %v254
    %v284 = vunpack.c.h.b16 %v254
    %v285 = vpack.c.b16 %v271, %v269
    %v286 = vpack.c.b16 %v272, %v270
    %v287 = vpack.c.b16 %v275, %v273
    %v288 = vpack.c.b16 %v276, %v274
    %v289 = vpack.c.b16 %v279, %v277
    %v290 = vpack.c.b16 %v280, %v278
    %v291 = vpack.c.b16 %v283, %v281
    %v292 = vpack.c.b16 %v284, %v282
    %vm301 = vcmask 523264
    %v303 = vsel %vm301, %v245, 0
    %v306 = vsel %vm301, %v246, 0
    %308 = vmatpush.bf16.msra.mxu0 0
    %309 = vmatpush.bf16.msra.mxu0 0
    %310 = vmatpush.bf16.msra.mxu0 0
    %311 = vmatpush.bf16.msra.mxu0 0
    %312 = vmatpush.bf16.msra.mxu0 %v291
    %313 = vmatpush.bf16.msra.mxu0 %v289
    %314 = vmatpush.bf16.msra.mxu0 %v287
    %315 = vmatpush.bf16.msra.mxu0 %v285
    %316 = vmatmul.bf16.gmra.mxu0 %v303
    %v317 = vpop.f32.mrf.mxu0
    %v318 = vadd.f32 %v257, %v317
    %v319 = vpop.f32.mrf.mxu0
    %v320 = vadd.f32 %v257, %v319
    %321 = vmatmul.bf16.gmra.mxu0 %v306
    %v322 = vpop.f32.mrf.mxu0
    %v323 = vadd.f32 %v257, %v322
    %v324 = vpop.f32.mrf.mxu0
    %v325 = vadd.f32 %v257, %v324
    %326 = vdwg.mxu0
    %327 = vmatpush.bf16.msra.mxu0 0
    %328 = vmatpush.bf16.msra.mxu0 0
    %329 = vmatpush.bf16.msra.mxu0 0
    %330 = vmatpush.bf16.msra.mxu0 0
    %331 = vmatpush.bf16.msra.mxu0 %v292
    %332 = vmatpush.bf16.msra.mxu0 %v290
    %333 = vmatpush.bf16.msra.mxu0 %v288
    %334 = vmatpush.bf16.msra.mxu0 %v286
    %335 = vmatmul.bf16.gmra.mxu0 %v303
    %v336 = vpop.f32.mrf.mxu0
    %v337 = vadd.f32 %v258, %v336
    %v338 = vpop.f32.mrf.mxu0
    %v339 = vadd.f32 %v258, %v338
    %340 = vmatmul.bf16.gmra.mxu0 %v306
    %v341 = vpop.f32.mrf.mxu0
    %v342 = vadd.f32 %v258, %v341
    %v343 = vpop.f32.mrf.mxu0
    %v344 = vadd.f32 %v258, %v343
    %345 = vdwg.mxu0
    %346 = vst [vmem:[#allocation3] sm:$0xff] %v318
    %347 = vst [vmem:[#allocation3 + $0x8] sm:$0xff] %v337
    %348 = vst [vmem:[#allocation3 + $0x10] sm:$0xff] %v320
    %349 = vst [vmem:[#allocation3 + $0x18] sm:$0xff] %v339
    %350 = vst [vmem:[#allocation3 + $0x20] sm:$0xff] %v323
    %351 = vst [vmem:[#allocation3 + $0x28] sm:$0xff] %v342
    %352 = vst [vmem:[#allocation3 + $0x30] sm:$0xff] %v325
    %353 = vst [vmem:[#allocation3 + $0x38] sm:$0xff] %v344
    %v362 = vunpack.c.l.b16 %v237
    %v363 = vunpack.c.h.b16 %v237
    %v364 = vunpack.c.l.b16 %v238
    %v365 = vunpack.c.h.b16 %v238
    %v366 = vunpack.c.l.b16 %v239
    %v367 = vunpack.c.h.b16 %v239
    %v368 = vunpack.c.l.b16 %v240
    %v369 = vunpack.c.h.b16 %v240
    %v370 = vunpack.c.l.b16 %v241
    %v371 = vunpack.c.h.b16 %v241
    %v372 = vunpack.c.l.b16 %v242
    %v373 = vunpack.c.h.b16 %v242
    %v374 = vunpack.c.l.b16 %v243
    %v375 = vunpack.c.h.b16 %v243
    %v376 = vunpack.c.l.b16 %v244
    %v377 = vunpack.c.h.b16 %v244
    %v378 = vpack.c.b16 %v364, %v362
    %v379 = vpack.c.b16 %v365, %v363
    %v380 = vpack.c.b16 %v368, %v366
    %v381 = vpack.c.b16 %v369, %v367
    %v382 = vpack.c.b16 %v372, %v370
    %v383 = vpack.c.b16 %v373, %v371
    %v384 = vpack.c.b16 %v376, %v374
    %v385 = vpack.c.b16 %v377, %v375
    %v395 = vsel %vm301, 0, 0
    %397 = vmatpush.bf16.msra.mxu0 0
    %398 = vmatpush.bf16.msra.mxu0 0
    %399 = vmatpush.bf16.msra.mxu0 0
    %400 = vmatpush.bf16.msra.mxu0 0
    %401 = vmatpush.bf16.msra.mxu0 %v384
    %402 = vmatpush.bf16.msra.mxu0 %v382
    %403 = vmatpush.bf16.msra.mxu0 %v380
    %404 = vmatpush.bf16.msra.mxu0 %v378
    %405 = vmatmul.bf16.gmra.mxu0 %v395
    %v406 = vpop.f32.mrf.mxu0
    %v407 = vadd.f32 0.0, %v406
    %v408 = vpop.f32.mrf.mxu0
    %409 = vdwg.mxu0
    %410 = vmatpush.bf16.msra.mxu0 0
    %411 = vmatpush.bf16.msra.mxu0 0
    %412 = vmatpush.bf16.msra.mxu0 0
    %413 = vmatpush.bf16.msra.mxu0 0
    %414 = vmatpush.bf16.msra.mxu0 %v385
    %415 = vmatpush.bf16.msra.mxu0 %v383
    %416 = vmatpush.bf16.msra.mxu0 %v381
    %417 = vmatpush.bf16.msra.mxu0 %v379
    %418 = vmatmul.bf16.gmra.mxu0 %v395
    %v419 = vpop.f32.mrf.mxu0
    %v420 = vadd.f32 0.0, %v419
    %v421 = vpop.f32.mrf.mxu0
    %422 = vdwg.mxu0
    %v423 = vld [vmem:[#allocation3] ss:$0 sm:$0xff]
    %v424 = vld [vmem:[#allocation3 + $0x20] ss:$0 sm:$0xff]
    %v425 = vld [vmem:[#allocation3 + $0x1f] ss:$0 sm:$0xff]
    %v426 = vld [vmem:[#allocation3 + $0x3f] ss:$0 sm:$0xff]
    %vm429 = vcmask 1041409
    %v430 = vsel %vm429, %v424, %v423
    %v432 = vadd.f32 %v407, %v430
    %v435 = vsel %vm429, %v426, %v425
    %v437 = vadd.f32 %v420, %v435
    %v438 = vxor.u32 %v432, 2147483648
    %v439 = vmul.f32 %v438, 1.442695
    %v440 = vpow.pop %v439
    %v441 = vadd.f32 %v440, 1.0
    %v442 = vrcp.pop %v441
    %v443 = vmul.f32 %v441, %v442
    %v444 = vsub.f32 1.0, %v443
    %v445 = vmul.f32 %v442, %v444
    %v446 = vadd.f32 %v442, %v445
    %vm447 = vweird.f32 %v441
    %vm448 = vweird.f32 %v442
    %vm449 = vmor %vm447, %vm448
    %v450 = vsel %vm449, %v442, %v446
    %v451 = vand.u32 2147483647, %v441
    %vm452 = vcmp.eq.f32.partialorder %v451, 8.507059e+37
    %v453 = vand.u32 %v441, 2147483648
    %v454 = vor.u32 1.1754944e-38, %v453
    %v455 = vsel %vm452, %v454, %v450
    %v456 = vmul.f32 1.0, %v455
    %v457 = vtanh.pop %v432
    %v458 = vmul.f32 %v456, 0.0
    %460 = vrot.lane.b32.xlu0 %v457, 32
    %v461 = vpop.permute.xlu0 %460
    %v463 = vmul.f32 %v456, %v461
    %465 = vrot.lane.b32.xlu0 %v463, 32
    %v466 = vpop.permute.xlu0 %465
    %v468 = vadd.f32 %v458, %v466
    %v469 = vtanh.pop %v468
    %471 = vrot.lane.b32.xlu0 %v469, 32
    %v472 = vpop.permute.xlu0 %471
    %v474 = vmul.f32 %v456, %v472
    %v475 = vxor.u32 %v437, 2147483648
    %v476 = vmul.f32 %v475, 1.442695
    %v477 = vpow.pop %v476
    %v478 = vadd.f32 %v477, 1.0
    %v479 = vrcp.pop %v478
    %v480 = vmul.f32 %v478, %v479
    %v481 = vsub.f32 1.0, %v480
    %v482 = vmul.f32 %v479, %v481
    %v483 = vadd.f32 %v479, %v482
    %vm484 = vweird.f32 %v478
    %vm485 = vweird.f32 %v479
    %vm486 = vmor %vm484, %vm485
    %v487 = vsel %vm486, %v479, %v483
    %v488 = vand.u32 2147483647, %v478
    %vm489 = vcmp.eq.f32.partialorder %v488, 8.507059e+37
    %v490 = vand.u32 %v478, 2147483648
    %v491 = vor.u32 1.1754944e-38, %v490
    %v492 = vsel %vm489, %v491, %v487
    %v493 = vmul.f32 1.0, %v492
    %v494 = vtanh.pop %v437
    %v495 = vmul.f32 %v493, 0.0
    %497 = vrot.lane.b32.xlu0 %v494, 32
    %v498 = vpop.permute.xlu0 %497
    %v500 = vmul.f32 %v493, %v498
    %502 = vrot.lane.b32.xlu0 %v500, 32
    %v503 = vpop.permute.xlu0 %502
    %v505 = vadd.f32 %v495, %v503
    %v506 = vtanh.pop %v505
    %508 = vrot.lane.b32.xlu0 %v506, 32
    %v509 = vpop.permute.xlu0 %508
    %v511 = vmul.f32 %v493, %v509
    %v513 = vrot.slane %v474, 1
    %v514 = vperm.slane %v474, 0
    %v515 = vperm.slane %v513, 0
    %516 = vrot.lane.b32.xlu0 %v514, 64
    %v517 = vpop.permute.xlu0 %516
    %518 = vrot.lane.b32.xlu0 %v515, 64
    %v519 = vpop.permute.xlu0 %518
    %vm522 = vcmask 253952
    %523 = vst.msk [vmem:[#allocation5] sm:$0x1] %vm522, %v517
    %524 = vst.msk [vmem:[#allocation5 + $0x10] sm:$0x1] %vm522, %v519
    %v526 = vrot.slane %v511, 1
    %v527 = vperm.slane %v511, 0
    %v528 = vperm.slane %v526, 0
    %529 = vrot.lane.b32.xlu0 %v527, 96
    %v530 = vpop.permute.xlu0 %529
    %531 = vrot.lane.b32.xlu0 %v528, 96
    %v532 = vpop.permute.xlu0 %531
    %vm535 = vcmask 516352
    %536 = vst.msk [vmem:[#allocation5 + $0xf] sm:$0x1] %vm535, %v530
    %537 = vst.msk [vmem:[#allocation5 + $0x1f] sm:$0x1] %vm535, %v532
    %538 = vrot.lane.b32.xlu0 %v474, 64
    %v539 = vpop.permute.xlu0 %538
    %541 = vrot.lane.b32.xlu0 %v511, 96
    %v542 = vpop.permute.xlu0 %541
    %vm544 = vcmask 261120
    %v545 = vsel %vm544, %v539, %v542
    %v546 = vpack.c.bf16 %v545, %v545
    %v548 = vsel %vm301, %v546, 0
    %550 = vmatpush.bf16.msra.mxu0 0
    %551 = vmatpush.bf16.msra.mxu0 0
    %552 = vmatpush.bf16.msra.mxu0 0
    %553 = vmatpush.bf16.msra.mxu0 0
    %554 = vmatpush.bf16.msra.mxu0 %v384
    %555 = vmatpush.bf16.msra.mxu0 %v382
    %556 = vmatpush.bf16.msra.mxu0 %v380
    %557 = vmatpush.bf16.msra.mxu0 %v378
    %558 = vmatmul.bf16.gmra.mxu0 %v548
    %v559 = vpop.f32.mrf.mxu0
    %v560 = vadd.f32 0.0, %v559
    %v561 = vpop.f32.mrf.mxu0
    %562 = vdwg.mxu0
    %563 = vmatpush.bf16.msra.mxu0 0
    %564 = vmatpush.bf16.msra.mxu0 0
    %565 = vmatpush.bf16.msra.mxu0 0
    %566 = vmatpush.bf16.msra.mxu0 0
    %567 = vmatpush.bf16.msra.mxu0 %v385
    %568 = vmatpush.bf16.msra.mxu0 %v383
    %569 = vmatpush.bf16.msra.mxu0 %v381
    %570 = vmatpush.bf16.msra.mxu0 %v379
    %571 = vmatmul.bf16.gmra.mxu0 %v548
    %v572 = vpop.f32.mrf.mxu0
    %v573 = vadd.f32 0.0, %v572
    %v574 = vpop.f32.mrf.mxu0
    %575 = vdwg.mxu0
    %v576 = vld [vmem:[#allocation3 + $0x1] ss:$0 sm:$0xff]
    %v577 = vld [vmem:[#allocation3 + $0x21] ss:$0 sm:$0xff]
    %v578 = vld [vmem:[#allocation3 + $0x1e] ss:$0 sm:$0xff]
    %v579 = vld [vmem:[#allocation3 + $0x3e] ss:$0 sm:$0xff]
    %v582 = vsel %vm429, %v577, %v576
    %v584 = vadd.f32 %v560, %v582
    %v587 = vsel %vm429, %v579, %v578
    %v589 = vadd.f32 %v573, %v587
    %v590 = vxor.u32 %v584, 2147483648
    %v591 = vmul.f32 %v590, 1.442695
    %v592 = vpow.pop %v591
    %v593 = vadd.f32 %v592, 1.0
    %v594 = vrcp.pop %v593
    %v595 = vmul.f32 %v593, %v594
    %v596 = vsub.f32 1.0, %v595
    %v597 = vmul.f32 %v594, %v596
    %v598 = vadd.f32 %v594, %v597
    %vm599 = vweird.f32 %v593
    %vm600 = vweird.f32 %v594
    %vm601 = vmor %vm599, %vm600
    %v602 = vsel %vm601, %v594, %v598
    %v603 = vand.u32 2147483647, %v593
    %vm604 = vcmp.eq.f32.partialorder %v603, 8.507059e+37
    %v605 = vand.u32 %v593, 2147483648
    %v606 = vor.u32 1.1754944e-38, %v605
    %v607 = vsel %vm604, %v606, %v602
    %v608 = vmul.f32 1.0, %v607
    %v609 = vtanh.pop %v584
    %v610 = vmul.f32 %v608, %v468
    %612 = vrot.lane.b32.xlu0 %v609, 32
    %v613 = vpop.permute.xlu0 %612
    %v615 = vmul.f32 %v608, %v613
    %617 = vrot.lane.b32.xlu0 %v615, 32
    %v618 = vpop.permute.xlu0 %617
    %v620 = vadd.f32 %v610, %v618
    %v621 = vtanh.pop %v620
    %623 = vrot.lane.b32.xlu0 %v621, 32
    %v624 = vpop.permute.xlu0 %623
    %v626 = vmul.f32 %v608, %v624
    %v627 = vxor.u32 %v589, 2147483648
    %v628 = vmul.f32 %v627, 1.442695
    %v629 = vpow.pop %v628
    %v630 = vadd.f32 %v629, 1.0
    %v631 = vrcp.pop %v630
    %v632 = vmul.f32 %v630, %v631
    %v633 = vsub.f32 1.0, %v632
    %v634 = vmul.f32 %v631, %v633
    %v635 = vadd.f32 %v631, %v634
    %vm636 = vweird.f32 %v630
    %vm637 = vweird.f32 %v631
    %vm638 = vmor %vm636, %vm637
    %v639 = vsel %vm638, %v631, %v635
    %v640 = vand.u32 2147483647, %v630
    %vm641 = vcmp.eq.f32.partialorder %v640, 8.507059e+37
    %v642 = vand.u32 %v630, 2147483648
    %v643 = vor.u32 1.1754944e-38, %v642
    %v644 = vsel %vm641, %v643, %v639
    %v645 = vmul.f32 1.0, %v644
    %v646 = vtanh.pop %v589
    %v647 = vmul.f32 %v645, %v505
    %649 = vrot.lane.b32.xlu0 %v646, 32
    %v650 = vpop.permute.xlu0 %649
    %v652 = vmul.f32 %v645, %v650
    %654 = vrot.lane.b32.xlu0 %v652, 32
    %v655 = vpop.permute.xlu0 %654
    %v657 = vadd.f32 %v647, %v655
    %v658 = vtanh.pop %v657
    %660 = vrot.lane.b32.xlu0 %v658, 32
    %v661 = vpop.permute.xlu0 %660
    %v663 = vmul.f32 %v645, %v661
    %v665 = vrot.slane %v626, 1
    %v666 = vperm.slane %v626, 0
    %v667 = vperm.slane %v665, 0
    %668 = vrot.lane.b32.xlu0 %v666, 64
    %v669 = vpop.permute.xlu0 %668
    %670 = vrot.lane.b32.xlu0 %v667, 64
    %v671 = vpop.permute.xlu0 %670
    %674 = vst.msk [vmem:[#allocation5 + $0x1] sm:$0x1] %vm522, %v669
    %675 = vst.msk [vmem:[#allocation5 + $0x11] sm:$0x1] %vm522, %v671
    %v677 = vrot.slane %v663, 1
    %v678 = vperm.slane %v663, 0
    %v679 = vperm.slane %v677, 0
    %680 = vrot.lane.b32.xlu0 %v678, 96
    %v681 = vpop.permute.xlu0 %680
    %682 = vrot.lane.b32.xlu0 %v679, 96
    %v683 = vpop.permute.xlu0 %682
    %686 = vst.msk [vmem:[#allocation5 + $0xe] sm:$0x1] %vm535, %v681
    %687 = vst.msk [vmem:[#allocation5 + $0x1e] sm:$0x1] %vm535, %v683
    %688 = vrot.lane.b32.xlu0 %v626, 64
    %v689 = vpop.permute.xlu0 %688
    %691 = vrot.lane.b32.xlu0 %v663, 96
    %v692 = vpop.permute.xlu0 %691
    %v694 = vsel %vm544, %v689, %v692
    %v695 = vpack.c.bf16 %v694, %v694
    %v697 = vsel %vm301, %v695, 0
    %699 = vmatpush.bf16.msra.mxu0 0
    %700 = vmatpush.bf16.msra.mxu0 0
    %701 = vmatpush.bf16.msra.mxu0 0
    %702 = vmatpush.bf16.msra.mxu0 0
    %703 = vmatpush.bf16.msra.mxu0 %v384
    %704 = vmatpush.bf16.msra.mxu0 %v382
    %705 = vmatpush.bf16.msra.mxu0 %v380
    %706 = vmatpush.bf16.msra.mxu0 %v378
    %707 = vmatmul.bf16.gmra.mxu0 %v697
    %v708 = vpop.f32.mrf.mxu0
    %v709 = vadd.f32 0.0, %v708
    %v710 = vpop.f32.mrf.mxu0
    %711 = vdwg.mxu0
    %712 = vmatpush.bf16.msra.mxu0 0
    %713 = vmatpush.bf16.msra.mxu0 0
    %714 = vmatpush.bf16.msra.mxu0 0
    %715 = vmatpush.bf16.msra.mxu0 0
    %716 = vmatpush.bf16.msra.mxu0 %v385
    %717 = vmatpush.bf16.msra.mxu0 %v383
    %718 = vmatpush.bf16.msra.mxu0 %v381
    %719 = vmatpush.bf16.msra.mxu0 %v379
    %720 = vmatmul.bf16.gmra.mxu0 %v697
    %v721 = vpop.f32.mrf.mxu0
    %v722 = vadd.f32 0.0, %v721
    %v723 = vpop.f32.mrf.mxu0
    %724 = vdwg.mxu0
    %v725 = vld [vmem:[#allocation3 + $0x2] ss:$0 sm:$0xff]
    %v726 = vld [vmem:[#allocation3 + $0x22] ss:$0 sm:$0xff]
    %v727 = vld [vmem:[#allocation3 + $0x1d] ss:$0 sm:$0xff]
    %v728 = vld [vmem:[#allocation3 + $0x3d] ss:$0 sm:$0xff]
    %v731 = vsel %vm429, %v726, %v725
    %v733 = vadd.f32 %v709, %v731
    %v736 = vsel %vm429, %v728, %v727
    %v738 = vadd.f32 %v722, %v736
    %v739 = vxor.u32 %v733, 2147483648
    %v740 = vmul.f32 %v739, 1.442695
    %v741 = vpow.pop %v740
    %v742 = vadd.f32 %v741, 1.0
    %v743 = vrcp.pop %v742
    %v744 = vmul.f32 %v742, %v743
    %v745 = vsub.f32 1.0, %v744
    %v746 = vmul.f32 %v743, %v745
    %v747 = vadd.f32 %v743, %v746
    %vm748 = vweird.f32 %v742
    %vm749 = vweird.f32 %v743
    %vm750 = vmor %vm748, %vm749
    %v751 = vsel %vm750, %v743, %v747
    %v752 = vand.u32 2147483647, %v742
    %vm753 = vcmp.eq.f32.partialorder %v752, 8.507059e+37
    %v754 = vand.u32 %v742, 2147483648
    %v755 = vor.u32 1.1754944e-38, %v754
    %v756 = vsel %vm753, %v755, %v751
    %v757 = vmul.f32 1.0, %v756
    %v758 = vtanh.pop %v733
    %v759 = vmul.f32 %v757, %v620
    %761 = vrot.lane.b32.xlu0 %v758, 32
    %v762 = vpop.permute.xlu0 %761
    %v764 = vmul.f32 %v757, %v762
    %766 = vrot.lane.b32.xlu0 %v764, 32
    %v767 = vpop.permute.xlu0 %766
    %v769 = vadd.f32 %v759, %v767
    %v770 = vtanh.pop %v769
    %772 = vrot.lane.b32.xlu0 %v770, 32
    %v773 = vpop.permute.xlu0 %772
    %v775 = vmul.f32 %v757, %v773
    %v776 = vxor.u32 %v738, 2147483648
    %v777 = vmul.f32 %v776, 1.442695
    %v778 = vpow.pop %v777
    %v779 = vadd.f32 %v778, 1.0
    %v780 = vrcp.pop %v779
    %v781 = vmul.f32 %v779, %v780
    %v782 = vsub.f32 1.0, %v781
    %v783 = vmul.f32 %v780, %v782
    %v784 = vadd.f32 %v780, %v783
    %vm785 = vweird.f32 %v779
    %vm786 = vweird.f32 %v780
    %vm787 = vmor %vm785, %vm786
    %v788 = vsel %vm787, %v780, %v784
    %v789 = vand.u32 2147483647, %v779
    %vm790 = vcmp.eq.f32.partialorder %v789, 8.507059e+37
    %v791 = vand.u32 %v779, 2147483648
    %v792 = vor.u32 1.1754944e-38, %v791
    %v793 = vsel %vm790, %v792, %v788
    %v794 = vmul.f32 1.0, %v793
    %v795 = vtanh.pop %v738
    %v796 = vmul.f32 %v794, %v657
    %798 = vrot.lane.b32.xlu0 %v795, 32
    %v799 = vpop.permute.xlu0 %798
    %v801 = vmul.f32 %v794, %v799
    %803 = vrot.lane.b32.xlu0 %v801, 32
    %v804 = vpop.permute.xlu0 %803
    %v806 = vadd.f32 %v796, %v804
    %v807 = vtanh.pop %v806
    %809 = vrot.lane.b32.xlu0 %v807, 32
    %v810 = vpop.permute.xlu0 %809
    %v812 = vmul.f32 %v794, %v810
    %v814 = vrot.slane %v775, 1
    %v815 = vperm.slane %v775, 0
    %v816 = vperm.slane %v814, 0
    %817 = vrot.lane.b32.xlu0 %v815, 64
    %v818 = vpop.permute.xlu0 %817
    %819 = vrot.lane.b32.xlu0 %v816, 64
    %v820 = vpop.permute.xlu0 %819
    %823 = vst.msk [vmem:[#allocation5 + $0x2] sm:$0x1] %vm522, %v818
    %824 = vst.msk [vmem:[#allocation5 + $0x12] sm:$0x1] %vm522, %v820
    %v826 = vrot.slane %v812, 1
    %v827 = vperm.slane %v812, 0
    %v828 = vperm.slane %v826, 0
    %829 = vrot.lane.b32.xlu0 %v827, 96
    %v830 = vpop.permute.xlu0 %829
    %831 = vrot.lane.b32.xlu0 %v828, 96
    %v832 = vpop.permute.xlu0 %831
    %835 = vst.msk [vmem:[#allocation5 + $0xd] sm:$0x1] %vm535, %v830
    %836 = vst.msk [vmem:[#allocation5 + $0x1d] sm:$0x1] %vm535, %v832
    %837 = vrot.lane.b32.xlu0 %v775, 64
    %v838 = vpop.permute.xlu0 %837
    %840 = vrot.lane.b32.xlu0 %v812, 96
    %v841 = vpop.permute.xlu0 %840
    %v843 = vsel %vm544, %v838, %v841
    %v844 = vpack.c.bf16 %v843, %v843
    %v846 = vsel %vm301, %v844, 0
    %848 = vmatpush.bf16.msra.mxu0 0
    %849 = vmatpush.bf16.msra.mxu0 0
    %850 = vmatpush.bf16.msra.mxu0 0
    %851 = vmatpush.bf16.msra.mxu0 0
    %852 = vmatpush.bf16.msra.mxu0 %v384
    %853 = vmatpush.bf16.msra.mxu0 %v382
    %854 = vmatpush.bf16.msra.mxu0 %v380
    %855 = vmatpush.bf16.msra.mxu0 %v378
    %856 = vmatmul.bf16.gmra.mxu0 %v846
    %v857 = vpop.f32.mrf.mxu0
    %v858 = vadd.f32 0.0, %v857
    %v859 = vpop.f32.mrf.mxu0
    %860 = vdwg.mxu0
    %861 = vmatpush.bf16.msra.mxu0 0
    %862 = vmatpush.bf16.msra.mxu0 0
    %863 = vmatpush.bf16.msra.mxu0 0
    %864 = vmatpush.bf16.msra.mxu0 0
    %865 = vmatpush.bf16.msra.mxu0 %v385
    %866 = vmatpush.bf16.msra.mxu0 %v383
    %867 = vmatpush.bf16.msra.mxu0 %v381
    %868 = vmatpush.bf16.msra.mxu0 %v379
    %869 = vmatmul.bf16.gmra.mxu0 %v846
    %v870 = vpop.f32.mrf.mxu0
    %v871 = vadd.f32 0.0, %v870
    %v872 = vpop.f32.mrf.mxu0
    %873 = vdwg.mxu0
    %v874 = vld [vmem:[#allocation3 + $0x3] ss:$0 sm:$0xff]
    %v875 = vld [vmem:[#allocation3 + $0x23] ss:$0 sm:$0xff]
    %v876 = vld [vmem:[#allocation3 + $0x1c] ss:$0 sm:$0xff]
    %v877 = vld [vmem:[#allocation3 + $0x3c] ss:$0 sm:$0xff]
    %v880 = vsel %vm429, %v875, %v874
    %v882 = vadd.f32 %v858, %v880
    %v885 = vsel %vm429, %v877, %v876
    %v887 = vadd.f32 %v871, %v885
    %v888 = vxor.u32 %v882, 2147483648
    %v889 = vmul.f32 %v888, 1.442695
    %v890 = vpow.pop %v889
    %v891 = vadd.f32 %v890, 1.0
    %v892 = vrcp.pop %v891
    %v893 = vmul.f32 %v891, %v892
    %v894 = vsub.f32 1.0, %v893
    %v895 = vmul.f32 %v892, %v894
    %v896 = vadd.f32 %v892, %v895
    %vm897 = vweird.f32 %v891
    %vm898 = vweird.f32 %v892
    %vm899 = vmor %vm897, %vm898
    %v900 = vsel %vm899, %v892, %v896
    %v901 = vand.u32 2147483647, %v891
    %vm902 = vcmp.eq.f32.partialorder %v901, 8.507059e+37
    %v903 = vand.u32 %v891, 2147483648
    %v904 = vor.u32 1.1754944e-38, %v903
    %v905 = vsel %vm902, %v904, %v900
    %v906 = vmul.f32 1.0, %v905
    %v907 = vtanh.pop %v882
    %v908 = vmul.f32 %v906, %v769
    %910 = vrot.lane.b32.xlu0 %v907, 32
    %v911 = vpop.permute.xlu0 %910
    %v913 = vmul.f32 %v906, %v911
    %915 = vrot.lane.b32.xlu0 %v913, 32
    %v916 = vpop.permute.xlu0 %915
    %v918 = vadd.f32 %v908, %v916
    %v919 = vtanh.pop %v918
    %921 = vrot.lane.b32.xlu0 %v919, 32
    %v922 = vpop.permute.xlu0 %921
    %v924 = vmul.f32 %v906, %v922
    %v925 = vxor.u32 %v887, 2147483648
    %v926 = vmul.f32 %v925, 1.442695
    %v927 = vpow.pop %v926
    %v928 = vadd.f32 %v927, 1.0
    %v929 = vrcp.pop %v928
    %v930 = vmul.f32 %v928, %v929
    %v931 = vsub.f32 1.0, %v930
    %v932 = vmul.f32 %v929, %v931
    %v933 = vadd.f32 %v929, %v932
    %vm934 = vweird.f32 %v928
    %vm935 = vweird.f32 %v929
    %vm936 = vmor %vm934, %vm935
    %v937 = vsel %vm936, %v929, %v933
    %v938 = vand.u32 2147483647, %v928
    %vm939 = vcmp.eq.f32.partialorder %v938, 8.507059e+37
    %v940 = vand.u32 %v928, 2147483648
    %v941 = vor.u32 1.1754944e-38, %v940
    %v942 = vsel %vm939, %v941, %v937
    %v943 = vmul.f32 1.0, %v942
    %v944 = vtanh.pop %v887
    %v945 = vmul.f32 %v943, %v806
    %947 = vrot.lane.b32.xlu0 %v944, 32
    %v948 = vpop.permute.xlu0 %947
    %v950 = vmul.f32 %v943, %v948
    %952 = vrot.lane.b32.xlu0 %v950, 32
    %v953 = vpop.permute.xlu0 %952
    %v955 = vadd.f32 %v945, %v953
    %v956 = vtanh.pop %v955
    %958 = vrot.lane.b32.xlu0 %v956, 32
    %v959 = vpop.permute.xlu0 %958
    %v961 = vmul.f32 %v943, %v959
    %v963 = vrot.slane %v924, 1
    %v964 = vperm.slane %v924, 0
    %v965 = vperm.slane %v963, 0
    %966 = vrot.lane.b32.xlu0 %v964, 64
    %v967 = vpop.permute.xlu0 %966
    %968 = vrot.lane.b32.xlu0 %v965, 64
    %v969 = vpop.permute.xlu0 %968
    %972 = vst.msk [vmem:[#allocation5 + $0x3] sm:$0x1] %vm522, %v967
    %973 = vst.msk [vmem:[#allocation5 + $0x13] sm:$0x1] %vm522, %v969
    %v975 = vrot.slane %v961, 1
    %v976 = vperm.slane %v961, 0
    %v977 = vperm.slane %v975, 0
    %978 = vrot.lane.b32.xlu0 %v976, 96
    %v979 = vpop.permute.xlu0 %978
    %980 = vrot.lane.b32.xlu0 %v977, 96
    %v981 = vpop.permute.xlu0 %980
    %984 = vst.msk [vmem:[#allocation5 + $0xc] sm:$0x1] %vm535, %v979
    %985 = vst.msk [vmem:[#allocation5 + $0x1c] sm:$0x1] %vm535, %v981
    %986 = vrot.lane.b32.xlu0 %v924, 64
    %v987 = vpop.permute.xlu0 %986
    %989 = vrot.lane.b32.xlu0 %v961, 96
    %v990 = vpop.permute.xlu0 %989
    %v992 = vsel %vm544, %v987, %v990
    %v993 = vpack.c.bf16 %v992, %v992
    %v995 = vsel %vm301, %v993, 0
    %997 = vmatpush.bf16.msra.mxu0 0
    %998 = vmatpush.bf16.msra.mxu0 0
    %999 = vmatpush.bf16.msra.mxu0 0
    %1000 = vmatpush.bf16.msra.mxu0 0
    %1001 = vmatpush.bf16.msra.mxu0 %v384
    %1002 = vmatpush.bf16.msra.mxu0 %v382
    %1003 = vmatpush.bf16.msra.mxu0 %v380
    %1004 = vmatpush.bf16.msra.mxu0 %v378
    %1005 = vmatmul.bf16.gmra.mxu0 %v995
    %v1006 = vpop.f32.mrf.mxu0
    %v1007 = vadd.f32 0.0, %v1006
    %v1008 = vpop.f32.mrf.mxu0
    %1009 = vdwg.mxu0
    %1010 = vmatpush.bf16.msra.mxu0 0
    %1011 = vmatpush.bf16.msra.mxu0 0
    %1012 = vmatpush.bf16.msra.mxu0 0
    %1013 = vmatpush.bf16.msra.mxu0 0
    %1014 = vmatpush.bf16.msra.mxu0 %v385
    %1015 = vmatpush.bf16.msra.mxu0 %v383
    %1016 = vmatpush.bf16.msra.mxu0 %v381
    %1017 = vmatpush.bf16.msra.mxu0 %v379
    %1018 = vmatmul.bf16.gmra.mxu0 %v995
    %v1019 = vpop.f32.mrf.mxu0
    %v1020 = vadd.f32 0.0, %v1019
    %v1021 = vpop.f32.mrf.mxu0
    %1022 = vdwg.mxu0
    %v1023 = vld [vmem:[#allocation3 + $0x4] ss:$0 sm:$0xff]
    %v1024 = vld [vmem:[#allocation3 + $0x24] ss:$0 sm:$0xff]
    %v1025 = vld [vmem:[#allocation3 + $0x1b] ss:$0 sm:$0xff]
    %v1026 = vld [vmem:[#allocation3 + $0x3b] ss:$0 sm:$0xff]
    %v1029 = vsel %vm429, %v1024, %v1023
    %v1031 = vadd.f32 %v1007, %v1029
    %v1034 = vsel %vm429, %v1026, %v1025
    %v1036 = vadd.f32 %v1020, %v1034
    %v1037 = vxor.u32 %v1031, 2147483648
    %v1038 = vmul.f32 %v1037, 1.442695
    %v1039 = vpow.pop %v1038
    %v1040 = vadd.f32 %v1039, 1.0
    %v1041 = vrcp.pop %v1040
    %v1042 = vmul.f32 %v1040, %v1041
    %v1043 = vsub.f32 1.0, %v1042
    %v1044 = vmul.f32 %v1041, %v1043
    %v1045 = vadd.f32 %v1041, %v1044
    %vm1046 = vweird.f32 %v1040
    %vm1047 = vweird.f32 %v1041
    %vm1048 = vmor %vm1046, %vm1047
    %v1049 = vsel %vm1048, %v1041, %v1045
    %v1050 = vand.u32 2147483647, %v1040
    %vm1051 = vcmp.eq.f32.partialorder %v1050, 8.507059e+37
    %v1052 = vand.u32 %v1040, 2147483648
    %v1053 = vor.u32 1.1754944e-38, %v1052
    %v1054 = vsel %vm1051, %v1053, %v1049
    %v1055 = vmul.f32 1.0, %v1054
    %v1056 = vtanh.pop %v1031
    %v1057 = vmul.f32 %v1055, %v918
    %1059 = vrot.lane.b32.xlu0 %v1056, 32
    %v1060 = vpop.permute.xlu0 %1059
    %v1062 = vmul.f32 %v1055, %v1060
    %1064 = vrot.lane.b32.xlu0 %v1062, 32
    %v1065 = vpop.permute.xlu0 %1064
    %v1067 = vadd.f32 %v1057, %v1065
    %v1068 = vtanh.pop %v1067
    %1070 = vrot.lane.b32.xlu0 %v1068, 32
    %v1071 = vpop.permute.xlu0 %1070
    %v1073 = vmul.f32 %v1055, %v1071
    %v1074 = vxor.u32 %v1036, 2147483648
    %v1075 = vmul.f32 %v1074, 1.442695
    %v1076 = vpow.pop %v1075
    %v1077 = vadd.f32 %v1076, 1.0
    %v1078 = vrcp.pop %v1077
    %v1079 = vmul.f32 %v1077, %v1078
    %v1080 = vsub.f32 1.0, %v1079
    %v1081 = vmul.f32 %v1078, %v1080
    %v1082 = vadd.f32 %v1078, %v1081
    %vm1083 = vweird.f32 %v1077
    %vm1084 = vweird.f32 %v1078
    %vm1085 = vmor %vm1083, %vm1084
    %v1086 = vsel %vm1085, %v1078, %v1082
    %v1087 = vand.u32 2147483647, %v1077
    %vm1088 = vcmp.eq.f32.partialorder %v1087, 8.507059e+37
    %v1089 = vand.u32 %v1077, 2147483648
    %v1090 = vor.u32 1.1754944e-38, %v1089
    %v1091 = vsel %vm1088, %v1090, %v1086
    %v1092 = vmul.f32 1.0, %v1091
    %v1093 = vtanh.pop %v1036
    %v1094 = vmul.f32 %v1092, %v955
    %1096 = vrot.lane.b32.xlu0 %v1093, 32
    %v1097 = vpop.permute.xlu0 %1096
    %v1099 = vmul.f32 %v1092, %v1097
    %1101 = vrot.lane.b32.xlu0 %v1099, 32
    %v1102 = vpop.permute.xlu0 %1101
    %v1104 = vadd.f32 %v1094, %v1102
    %v1105 = vtanh.pop %v1104
    %1107 = vrot.lane.b32.xlu0 %v1105, 32
    %v1108 = vpop.permute.xlu0 %1107
    %v1110 = vmul.f32 %v1092, %v1108
    %v1112 = vrot.slane %v1073, 1
    %v1113 = vperm.slane %v1073, 0
    %v1114 = vperm.slane %v1112, 0
    %1115 = vrot.lane.b32.xlu0 %v1113, 64
    %v1116 = vpop.permute.xlu0 %1115
    %1117 = vrot.lane.b32.xlu0 %v1114, 64
    %v1118 = vpop.permute.xlu0 %1117
    %1121 = vst.msk [vmem:[#allocation5 + $0x4] sm:$0x1] %vm522, %v1116
    %1122 = vst.msk [vmem:[#allocation5 + $0x14] sm:$0x1] %vm522, %v1118
    %v1124 = vrot.slane %v1110, 1
    %v1125 = vperm.slane %v1110, 0
    %v1126 = vperm.slane %v1124, 0
    %1127 = vrot.lane.b32.xlu0 %v1125, 96
    %v1128 = vpop.permute.xlu0 %1127
    %1129 = vrot.lane.b32.xlu0 %v1126, 96
    %v1130 = vpop.permute.xlu0 %1129
    %1133 = vst.msk [vmem:[#allocation5 + $0xb] sm:$0x1] %vm535, %v1128
    %1134 = vst.msk [vmem:[#allocation5 + $0x1b] sm:$0x1] %vm535, %v1130
    %1135 = vrot.lane.b32.xlu0 %v1073, 64
    %v1136 = vpop.permute.xlu0 %1135
    %1138 = vrot.lane.b32.xlu0 %v1110, 96
    %v1139 = vpop.permute.xlu0 %1138
    %v1141 = vsel %vm544, %v1136, %v1139
    %v1142 = vpack.c.bf16 %v1141, %v1141
    %v1144 = vsel %vm301, %v1142, 0
    %1146 = vmatpush.bf16.msra.mxu0 0
    %1147 = vmatpush.bf16.msra.mxu0 0
    %1148 = vmatpush.bf16.msra.mxu0 0
    %1149 = vmatpush.bf16.msra.mxu0 0
    %1150 = vmatpush.bf16.msra.mxu0 %v384
    %1151 = vmatpush.bf16.msra.mxu0 %v382
    %1152 = vmatpush.bf16.msra.mxu0 %v380
    %1153 = vmatpush.bf16.msra.mxu0 %v378
    %1154 = vmatmul.bf16.gmra.mxu0 %v1144
    %v1155 = vpop.f32.mrf.mxu0
    %v1156 = vadd.f32 0.0, %v1155
    %v1157 = vpop.f32.mrf.mxu0
    %1158 = vdwg.mxu0
    %1159 = vmatpush.bf16.msra.mxu0 0
    %1160 = vmatpush.bf16.msra.mxu0 0
    %1161 = vmatpush.bf16.msra.mxu0 0
    %1162 = vmatpush.bf16.msra.mxu0 0
    %1163 = vmatpush.bf16.msra.mxu0 %v385
    %1164 = vmatpush.bf16.msra.mxu0 %v383
    %1165 = vmatpush.bf16.msra.mxu0 %v381
    %1166 = vmatpush.bf16.msra.mxu0 %v379
    %1167 = vmatmul.bf16.gmra.mxu0 %v1144
    %v1168 = vpop.f32.mrf.mxu0
    %v1169 = vadd.f32 0.0, %v1168
    %v1170 = vpop.f32.mrf.mxu0
    %1171 = vdwg.mxu0
    %v1172 = vld [vmem:[#allocation3 + $0x5] ss:$0 sm:$0xff]
    %v1173 = vld [vmem:[#allocation3 + $0x25] ss:$0 sm:$0xff]
    %v1174 = vld [vmem:[#allocation3 + $0x1a] ss:$0 sm:$0xff]
    %v1175 = vld [vmem:[#allocation3 + $0x3a] ss:$0 sm:$0xff]
    %v1178 = vsel %vm429, %v1173, %v1172
    %v1180 = vadd.f32 %v1156, %v1178
    %v1183 = vsel %vm429, %v1175, %v1174
    %v1185 = vadd.f32 %v1169, %v1183
    %v1186 = vxor.u32 %v1180, 2147483648
    %v1187 = vmul.f32 %v1186, 1.442695
    %v1188 = vpow.pop %v1187
    %v1189 = vadd.f32 %v1188, 1.0
    %v1190 = vrcp.pop %v1189
    %v1191 = vmul.f32 %v1189, %v1190
    %v1192 = vsub.f32 1.0, %v1191
    %v1193 = vmul.f32 %v1190, %v1192
    %v1194 = vadd.f32 %v1190, %v1193
    %vm1195 = vweird.f32 %v1189
    %vm1196 = vweird.f32 %v1190
    %vm1197 = vmor %vm1195, %vm1196
    %v1198 = vsel %vm1197, %v1190, %v1194
    %v1199 = vand.u32 2147483647, %v1189
    %vm1200 = vcmp.eq.f32.partialorder %v1199, 8.507059e+37
    %v1201 = vand.u32 %v1189, 2147483648
    %v1202 = vor.u32 1.1754944e-38, %v1201
    %v1203 = vsel %vm1200, %v1202, %v1198
    %v1204 = vmul.f32 1.0, %v1203
    %v1205 = vtanh.pop %v1180
    %v1206 = vmul.f32 %v1204, %v1067
    %1208 = vrot.lane.b32.xlu0 %v1205, 32
    %v1209 = vpop.permute.xlu0 %1208
    %v1211 = vmul.f32 %v1204, %v1209
    %1213 = vrot.lane.b32.xlu0 %v1211, 32
    %v1214 = vpop.permute.xlu0 %1213
    %v1216 = vadd.f32 %v1206, %v1214
    %v1217 = vtanh.pop %v1216
    %1219 = vrot.lane.b32.xlu0 %v1217, 32
    %v1220 = vpop.permute.xlu0 %1219
    %v1222 = vmul.f32 %v1204, %v1220
    %v1223 = vxor.u32 %v1185, 2147483648
    %v1224 = vmul.f32 %v1223, 1.442695
    %v1225 = vpow.pop %v1224
    %v1226 = vadd.f32 %v1225, 1.0
    %v1227 = vrcp.pop %v1226
    %v1228 = vmul.f32 %v1226, %v1227
    %v1229 = vsub.f32 1.0, %v1228
    %v1230 = vmul.f32 %v1227, %v1229
    %v1231 = vadd.f32 %v1227, %v1230
    %vm1232 = vweird.f32 %v1226
    %vm1233 = vweird.f32 %v1227
    %vm1234 = vmor %vm1232, %vm1233
    %v1235 = vsel %vm1234, %v1227, %v1231
    %v1236 = vand.u32 2147483647, %v1226
    %vm1237 = vcmp.eq.f32.partialorder %v1236, 8.507059e+37
    %v1238 = vand.u32 %v1226, 2147483648
    %v1239 = vor.u32 1.1754944e-38, %v1238
    %v1240 = vsel %vm1237, %v1239, %v1235
    %v1241 = vmul.f32 1.0, %v1240
    %v1242 = vtanh.pop %v1185
    %v1243 = vmul.f32 %v1241, %v1104
    %1245 = vrot.lane.b32.xlu0 %v1242, 32
    %v1246 = vpop.permute.xlu0 %1245
    %v1248 = vmul.f32 %v1241, %v1246
    %1250 = vrot.lane.b32.xlu0 %v1248, 32
    %v1251 = vpop.permute.xlu0 %1250
    %v1253 = vadd.f32 %v1243, %v1251
    %v1254 = vtanh.pop %v1253
    %1256 = vrot.lane.b32.xlu0 %v1254, 32
    %v1257 = vpop.permute.xlu0 %1256
    %v1259 = vmul.f32 %v1241, %v1257
    %v1261 = vrot.slane %v1222, 1
    %v1262 = vperm.slane %v1222, 0
    %v1263 = vperm.slane %v1261, 0
    %1264 = vrot.lane.b32.xlu0 %v1262, 64
    %v1265 = vpop.permute.xlu0 %1264
    %1266 = vrot.lane.b32.xlu0 %v1263, 64
    %v1267 = vpop.permute.xlu0 %1266
    %1270 = vst.msk [vmem:[#allocation5 + $0x5] sm:$0x1] %vm522, %v1265
    %1271 = vst.msk [vmem:[#allocation5 + $0x15] sm:$0x1] %vm522, %v1267
    %v1273 = vrot.slane %v1259, 1
    %v1274 = vperm.slane %v1259, 0
    %v1275 = vperm.slane %v1273, 0
    %1276 = vrot.lane.b32.xlu0 %v1274, 96
    %v1277 = vpop.permute.xlu0 %1276
    %1278 = vrot.lane.b32.xlu0 %v1275, 96
    %v1279 = vpop.permute.xlu0 %1278
    %1282 = vst.msk [vmem:[#allocation5 + $0xa] sm:$0x1] %vm535, %v1277
    %1283 = vst.msk [vmem:[#allocation5 + $0x1a] sm:$0x1] %vm535, %v1279
    %1284 = vrot.lane.b32.xlu0 %v1222, 64
    %v1285 = vpop.permute.xlu0 %1284
    %1287 = vrot.lane.b32.xlu0 %v1259, 96
    %v1288 = vpop.permute.xlu0 %1287
    %v1290 = vsel %vm544, %v1285, %v1288
    %v1291 = vpack.c.bf16 %v1290, %v1290
    %v1293 = vsel %vm301, %v1291, 0
    %1295 = vmatpush.bf16.msra.mxu0 0
    %1296 = vmatpush.bf16.msra.mxu0 0
    %1297 = vmatpush.bf16.msra.mxu0 0
    %1298 = vmatpush.bf16.msra.mxu0 0
    %1299 = vmatpush.bf16.msra.mxu0 %v384
    %1300 = vmatpush.bf16.msra.mxu0 %v382
    %1301 = vmatpush.bf16.msra.mxu0 %v380
    %1302 = vmatpush.bf16.msra.mxu0 %v378
    %1303 = vmatmul.bf16.gmra.mxu0 %v1293
    %v1304 = vpop.f32.mrf.mxu0
    %v1305 = vadd.f32 0.0, %v1304
    %v1306 = vpop.f32.mrf.mxu0
    %1307 = vdwg.mxu0
    %1308 = vmatpush.bf16.msra.mxu0 0
    %1309 = vmatpush.bf16.msra.mxu0 0
    %1310 = vmatpush.bf16.msra.mxu0 0
    %1311 = vmatpush.bf16.msra.mxu0 0
    %1312 = vmatpush.bf16.msra.mxu0 %v385
    %1313 = vmatpush.bf16.msra.mxu0 %v383
    %1314 = vmatpush.bf16.msra.mxu0 %v381
    %1315 = vmatpush.bf16.msra.mxu0 %v379
    %1316 = vmatmul.bf16.gmra.mxu0 %v1293
    %v1317 = vpop.f32.mrf.mxu0
    %v1318 = vadd.f32 0.0, %v1317
    %v1319 = vpop.f32.mrf.mxu0
    %1320 = vdwg.mxu0
    %v1321 = vld [vmem:[#allocation3 + $0x6] ss:$0 sm:$0xff]
    %v1322 = vld [vmem:[#allocation3 + $0x26] ss:$0 sm:$0xff]
    %v1323 = vld [vmem:[#allocation3 + $0x19] ss:$0 sm:$0xff]
    %v1324 = vld [vmem:[#allocation3 + $0x39] ss:$0 sm:$0xff]
    %v1327 = vsel %vm429, %v1322, %v1321
    %v1329 = vadd.f32 %v1305, %v1327
    %v1332 = vsel %vm429, %v1324, %v1323
    %v1334 = vadd.f32 %v1318, %v1332
    %v1335 = vxor.u32 %v1329, 2147483648
    %v1336 = vmul.f32 %v1335, 1.442695
    %v1337 = vpow.pop %v1336
    %v1338 = vadd.f32 %v1337, 1.0
    %v1339 = vrcp.pop %v1338
    %v1340 = vmul.f32 %v1338, %v1339
    %v1341 = vsub.f32 1.0, %v1340
    %v1342 = vmul.f32 %v1339, %v1341
    %v1343 = vadd.f32 %v1339, %v1342
    %vm1344 = vweird.f32 %v1338
    %vm1345 = vweird.f32 %v1339
    %vm1346 = vmor %vm1344, %vm1345
    %v1347 = vsel %vm1346, %v1339, %v1343
    %v1348 = vand.u32 2147483647, %v1338
    %vm1349 = vcmp.eq.f32.partialorder %v1348, 8.507059e+37
    %v1350 = vand.u32 %v1338, 2147483648
    %v1351 = vor.u32 1.1754944e-38, %v1350
    %v1352 = vsel %vm1349, %v1351, %v1347
    %v1353 = vmul.f32 1.0, %v1352
    %v1354 = vtanh.pop %v1329
    %v1355 = vmul.f32 %v1353, %v1216
    %1357 = vrot.lane.b32.xlu0 %v1354, 32
    %v1358 = vpop.permute.xlu0 %1357
    %v1360 = vmul.f32 %v1353, %v1358
    %1362 = vrot.lane.b32.xlu0 %v1360, 32
    %v1363 = vpop.permute.xlu0 %1362
    %v1365 = vadd.f32 %v1355, %v1363
    %v1366 = vtanh.pop %v1365
    %1368 = vrot.lane.b32.xlu0 %v1366, 32
    %v1369 = vpop.permute.xlu0 %1368
    %v1371 = vmul.f32 %v1353, %v1369
    %v1372 = vxor.u32 %v1334, 2147483648
    %v1373 = vmul.f32 %v1372, 1.442695
    %v1374 = vpow.pop %v1373
    %v1375 = vadd.f32 %v1374, 1.0
    %v1376 = vrcp.pop %v1375
    %v1377 = vmul.f32 %v1375, %v1376
    %v1378 = vsub.f32 1.0, %v1377
    %v1379 = vmul.f32 %v1376, %v1378
    %v1380 = vadd.f32 %v1376, %v1379
    %vm1381 = vweird.f32 %v1375
    %vm1382 = vweird.f32 %v1376
    %vm1383 = vmor %vm1381, %vm1382
    %v1384 = vsel %vm1383, %v1376, %v1380
    %v1385 = vand.u32 2147483647, %v1375
    %vm1386 = vcmp.eq.f32.partialorder %v1385, 8.507059e+37
    %v1387 = vand.u32 %v1375, 2147483648
    %v1388 = vor.u32 1.1754944e-38, %v1387
    %v1389 = vsel %vm1386, %v1388, %v1384
    %v1390 = vmul.f32 1.0, %v1389
    %v1391 = vtanh.pop %v1334
    %v1392 = vmul.f32 %v1390, %v1253
    %1394 = vrot.lane.b32.xlu0 %v1391, 32
    %v1395 = vpop.permute.xlu0 %1394
    %v1397 = vmul.f32 %v1390, %v1395
    %1399 = vrot.lane.b32.xlu0 %v1397, 32
    %v1400 = vpop.permute.xlu0 %1399
    %v1402 = vadd.f32 %v1392, %v1400
    %v1403 = vtanh.pop %v1402
    %1405 = vrot.lane.b32.xlu0 %v1403, 32
    %v1406 = vpop.permute.xlu0 %1405
    %v1408 = vmul.f32 %v1390, %v1406
    %v1410 = vrot.slane %v1371, 1
    %v1411 = vperm.slane %v1371, 0
    %v1412 = vperm.slane %v1410, 0
    %1413 = vrot.lane.b32.xlu0 %v1411, 64
    %v1414 = vpop.permute.xlu0 %1413
    %1415 = vrot.lane.b32.xlu0 %v1412, 64
    %v1416 = vpop.permute.xlu0 %1415
    %1419 = vst.msk [vmem:[#allocation5 + $0x6] sm:$0x1] %vm522, %v1414
    %1420 = vst.msk [vmem:[#allocation5 + $0x16] sm:$0x1] %vm522, %v1416
    %v1422 = vrot.slane %v1408, 1
    %v1423 = vperm.slane %v1408, 0
    %v1424 = vperm.slane %v1422, 0
    %1425 = vrot.lane.b32.xlu0 %v1423, 96
    %v1426 = vpop.permute.xlu0 %1425
    %1427 = vrot.lane.b32.xlu0 %v1424, 96
    %v1428 = vpop.permute.xlu0 %1427
    %1431 = vst.msk [vmem:[#allocation5 + $0x9] sm:$0x1] %vm535, %v1426
    %1432 = vst.msk [vmem:[#allocation5 + $0x19] sm:$0x1] %vm535, %v1428
    %1433 = vrot.lane.b32.xlu0 %v1371, 64
    %v1434 = vpop.permute.xlu0 %1433
    %1436 = vrot.lane.b32.xlu0 %v1408, 96
    %v1437 = vpop.permute.xlu0 %1436
    %v1439 = vsel %vm544, %v1434, %v1437
    %v1440 = vpack.c.bf16 %v1439, %v1439
    %v1442 = vsel %vm301, %v1440, 0
    %1444 = vmatpush.bf16.msra.mxu0 0
    %1445 = vmatpush.bf16.msra.mxu0 0
    %1446 = vmatpush.bf16.msra.mxu0 0
    %1447 = vmatpush.bf16.msra.mxu0 0
    %1448 = vmatpush.bf16.msra.mxu0 %v384
    %1449 = vmatpush.bf16.msra.mxu0 %v382
    %1450 = vmatpush.bf16.msra.mxu0 %v380
    %1451 = vmatpush.bf16.msra.mxu0 %v378
    %1452 = vmatmul.bf16.gmra.mxu0 %v1442
    %v1453 = vpop.f32.mrf.mxu0
    %v1454 = vadd.f32 0.0, %v1453
    %v1455 = vpop.f32.mrf.mxu0
    %1456 = vdwg.mxu0
    %1457 = vmatpush.bf16.msra.mxu0 0
    %1458 = vmatpush.bf16.msra.mxu0 0
    %1459 = vmatpush.bf16.msra.mxu0 0
    %1460 = vmatpush.bf16.msra.mxu0 0
    %1461 = vmatpush.bf16.msra.mxu0 %v385
    %1462 = vmatpush.bf16.msra.mxu0 %v383
    %1463 = vmatpush.bf16.msra.mxu0 %v381
    %1464 = vmatpush.bf16.msra.mxu0 %v379
    %1465 = vmatmul.bf16.gmra.mxu0 %v1442
    %v1466 = vpop.f32.mrf.mxu0
    %v1467 = vadd.f32 0.0, %v1466
    %v1468 = vpop.f32.mrf.mxu0
    %1469 = vdwg.mxu0
    %v1470 = vld [vmem:[#allocation3 + $0x7] ss:$0 sm:$0xff]
    %v1471 = vld [vmem:[#allocation3 + $0x27] ss:$0 sm:$0xff]
    %v1472 = vld [vmem:[#allocation3 + $0x18] ss:$0 sm:$0xff]
    %v1473 = vld [vmem:[#allocation3 + $0x38] ss:$0 sm:$0xff]
    %v1476 = vsel %vm429, %v1471, %v1470
    %v1478 = vadd.f32 %v1454, %v1476
    %v1481 = vsel %vm429, %v1473, %v1472
    %v1483 = vadd.f32 %v1467, %v1481
    %v1484 = vxor.u32 %v1478, 2147483648
    %v1485 = vmul.f32 %v1484, 1.442695
    %v1486 = vpow.pop %v1485
    %v1487 = vadd.f32 %v1486, 1.0
    %v1488 = vrcp.pop %v1487
    %v1489 = vmul.f32 %v1487, %v1488
    %v1490 = vsub.f32 1.0, %v1489
    %v1491 = vmul.f32 %v1488, %v1490
    %v1492 = vadd.f32 %v1488, %v1491
    %vm1493 = vweird.f32 %v1487
    %vm1494 = vweird.f32 %v1488
    %vm1495 = vmor %vm1493, %vm1494
    %v1496 = vsel %vm1495, %v1488, %v1492
    %v1497 = vand.u32 2147483647, %v1487
    %vm1498 = vcmp.eq.f32.partialorder %v1497, 8.507059e+37
    %v1499 = vand.u32 %v1487, 2147483648
    %v1500 = vor.u32 1.1754944e-38, %v1499
    %v1501 = vsel %vm1498, %v1500, %v1496
    %v1502 = vmul.f32 1.0, %v1501
    %v1503 = vtanh.pop %v1478
    %v1504 = vmul.f32 %v1502, %v1365
    %1506 = vrot.lane.b32.xlu0 %v1503, 32
    %v1507 = vpop.permute.xlu0 %1506
    %v1509 = vmul.f32 %v1502, %v1507
    %1511 = vrot.lane.b32.xlu0 %v1509, 32
    %v1512 = vpop.permute.xlu0 %1511
    %v1514 = vadd.f32 %v1504, %v1512
    %v1515 = vtanh.pop %v1514
    %1517 = vrot.lane.b32.xlu0 %v1515, 32
    %v1518 = vpop.permute.xlu0 %1517
    %v1520 = vmul.f32 %v1502, %v1518
    %v1521 = vxor.u32 %v1483, 2147483648
    %v1522 = vmul.f32 %v1521, 1.442695
    %v1523 = vpow.pop %v1522
    %v1524 = vadd.f32 %v1523, 1.0
    %v1525 = vrcp.pop %v1524
    %v1526 = vmul.f32 %v1524, %v1525
    %v1527 = vsub.f32 1.0, %v1526
    %v1528 = vmul.f32 %v1525, %v1527
    %v1529 = vadd.f32 %v1525, %v1528
    %vm1530 = vweird.f32 %v1524
    %vm1531 = vweird.f32 %v1525
    %vm1532 = vmor %vm1530, %vm1531
    %v1533 = vsel %vm1532, %v1525, %v1529
    %v1534 = vand.u32 2147483647, %v1524
    %vm1535 = vcmp.eq.f32.partialorder %v1534, 8.507059e+37
    %v1536 = vand.u32 %v1524, 2147483648
    %v1537 = vor.u32 1.1754944e-38, %v1536
    %v1538 = vsel %vm1535, %v1537, %v1533
    %v1539 = vmul.f32 1.0, %v1538
    %v1540 = vtanh.pop %v1483
    %v1541 = vmul.f32 %v1539, %v1402
    %1543 = vrot.lane.b32.xlu0 %v1540, 32
    %v1544 = vpop.permute.xlu0 %1543
    %v1546 = vmul.f32 %v1539, %v1544
    %1548 = vrot.lane.b32.xlu0 %v1546, 32
    %v1549 = vpop.permute.xlu0 %1548
    %v1551 = vadd.f32 %v1541, %v1549
    %v1552 = vtanh.pop %v1551
    %1554 = vrot.lane.b32.xlu0 %v1552, 32
    %v1555 = vpop.permute.xlu0 %1554
    %v1557 = vmul.f32 %v1539, %v1555
    %v1559 = vrot.slane %v1520, 1
    %v1560 = vperm.slane %v1520, 0
    %v1561 = vperm.slane %v1559, 0
    %1562 = vrot.lane.b32.xlu0 %v1560, 64
    %v1563 = vpop.permute.xlu0 %1562
    %1564 = vrot.lane.b32.xlu0 %v1561, 64
    %v1565 = vpop.permute.xlu0 %1564
    %1568 = vst.msk [vmem:[#allocation5 + $0x7] sm:$0x1] %vm522, %v1563
    %1569 = vst.msk [vmem:[#allocation5 + $0x17] sm:$0x1] %vm522, %v1565
    %v1571 = vrot.slane %v1557, 1
    %v1572 = vperm.slane %v1557, 0
    %v1573 = vperm.slane %v1571, 0
    %1574 = vrot.lane.b32.xlu0 %v1572, 96
    %v1575 = vpop.permute.xlu0 %1574
    %1576 = vrot.lane.b32.xlu0 %v1573, 96
    %v1577 = vpop.permute.xlu0 %1576
    %1580 = vst.msk [vmem:[#allocation5 + $0x8] sm:$0x1] %vm535, %v1575
    %1581 = vst.msk [vmem:[#allocation5 + $0x18] sm:$0x1] %vm535, %v1577
    %1582 = vrot.lane.b32.xlu0 %v1520, 64
    %v1583 = vpop.permute.xlu0 %1582
    %1585 = vrot.lane.b32.xlu0 %v1557, 96
    %v1586 = vpop.permute.xlu0 %1585
    %v1588 = vsel %vm544, %v1583, %v1586
    %v1589 = vpack.c.bf16 %v1588, %v1588
    %v1591 = vsel %vm301, %v1589, 0
    %1593 = vmatpush.bf16.msra.mxu0 0
    %1594 = vmatpush.bf16.msra.mxu0 0
    %1595 = vmatpush.bf16.msra.mxu0 0
    %1596 = vmatpush.bf16.msra.mxu0 0
    %1597 = vmatpush.bf16.msra.mxu0 %v384
    %1598 = vmatpush.bf16.msra.mxu0 %v382
    %1599 = vmatpush.bf16.msra.mxu0 %v380
    %1600 = vmatpush.bf16.msra.mxu0 %v378
    %1601 = vmatmul.bf16.gmra.mxu0 %v1591
    %v1602 = vpop.f32.mrf.mxu0
    %v1603 = vadd.f32 0.0, %v1602
    %v1604 = vpop.f32.mrf.mxu0
    %1605 = vdwg.mxu0
    %1606 = vmatpush.bf16.msra.mxu0 0
    %1607 = vmatpush.bf16.msra.mxu0 0
    %1608 = vmatpush.bf16.msra.mxu0 0
    %1609 = vmatpush.bf16.msra.mxu0 0
    %1610 = vmatpush.bf16.msra.mxu0 %v385
    %1611 = vmatpush.bf16.msra.mxu0 %v383
    %1612 = vmatpush.bf16.msra.mxu0 %v381
    %1613 = vmatpush.bf16.msra.mxu0 %v379
    %1614 = vmatmul.bf16.gmra.mxu0 %v1591
    %v1615 = vpop.f32.mrf.mxu0
    %v1616 = vadd.f32 0.0, %v1615
    %v1617 = vpop.f32.mrf.mxu0
    %1618 = vdwg.mxu0
    %v1619 = vld [vmem:[#allocation3 + $0x10] ss:$0 sm:$0xff]
    %v1620 = vld [vmem:[#allocation3 + $0x30] ss:$0 sm:$0xff]
    %v1621 = vld [vmem:[#allocation3 + $0xf] ss:$0 sm:$0xff]
    %v1622 = vld [vmem:[#allocation3 + $0x2f] ss:$0 sm:$0xff]
    %v1625 = vsel %vm429, %v1620, %v1619
    %v1627 = vadd.f32 %v1603, %v1625
    %v1630 = vsel %vm429, %v1622, %v1621
    %v1632 = vadd.f32 %v1616, %v1630
    %v1633 = vxor.u32 %v1627, 2147483648
    %v1634 = vmul.f32 %v1633, 1.442695
    %v1635 = vpow.pop %v1634
    %v1636 = vadd.f32 %v1635, 1.0
    %v1637 = vrcp.pop %v1636
    %v1638 = vmul.f32 %v1636, %v1637
    %v1639 = vsub.f32 1.0, %v1638
    %v1640 = vmul.f32 %v1637, %v1639
    %v1641 = vadd.f32 %v1637, %v1640
    %vm1642 = vweird.f32 %v1636
    %vm1643 = vweird.f32 %v1637
    %vm1644 = vmor %vm1642, %vm1643
    %v1645 = vsel %vm1644, %v1637, %v1641
    %v1646 = vand.u32 2147483647, %v1636
    %vm1647 = vcmp.eq.f32.partialorder %v1646, 8.507059e+37
    %v1648 = vand.u32 %v1636, 2147483648
    %v1649 = vor.u32 1.1754944e-38, %v1648
    %v1650 = vsel %vm1647, %v1649, %v1645
    %v1651 = vmul.f32 1.0, %v1650
    %v1652 = vtanh.pop %v1627
    %v1653 = vmul.f32 %v1651, %v1514
    %1655 = vrot.lane.b32.xlu0 %v1652, 32
    %v1656 = vpop.permute.xlu0 %1655
    %v1658 = vmul.f32 %v1651, %v1656
    %1660 = vrot.lane.b32.xlu0 %v1658, 32
    %v1661 = vpop.permute.xlu0 %1660
    %v1663 = vadd.f32 %v1653, %v1661
    %v1664 = vtanh.pop %v1663
    %1666 = vrot.lane.b32.xlu0 %v1664, 32
    %v1667 = vpop.permute.xlu0 %1666
    %v1669 = vmul.f32 %v1651, %v1667
    %v1670 = vxor.u32 %v1632, 2147483648
    %v1671 = vmul.f32 %v1670, 1.442695
    %v1672 = vpow.pop %v1671
    %v1673 = vadd.f32 %v1672, 1.0
    %v1674 = vrcp.pop %v1673
    %v1675 = vmul.f32 %v1673, %v1674
    %v1676 = vsub.f32 1.0, %v1675
    %v1677 = vmul.f32 %v1674, %v1676
    %v1678 = vadd.f32 %v1674, %v1677
    %vm1679 = vweird.f32 %v1673
    %vm1680 = vweird.f32 %v1674
    %vm1681 = vmor %vm1679, %vm1680
    %v1682 = vsel %vm1681, %v1674, %v1678
    %v1683 = vand.u32 2147483647, %v1673
    %vm1684 = vcmp.eq.f32.partialorder %v1683, 8.507059e+37
    %v1685 = vand.u32 %v1673, 2147483648
    %v1686 = vor.u32 1.1754944e-38, %v1685
    %v1687 = vsel %vm1684, %v1686, %v1682
    %v1688 = vmul.f32 1.0, %v1687
    %v1689 = vtanh.pop %v1632
    %v1690 = vmul.f32 %v1688, %v1551
    %1692 = vrot.lane.b32.xlu0 %v1689, 32
    %v1693 = vpop.permute.xlu0 %1692
    %v1695 = vmul.f32 %v1688, %v1693
    %1697 = vrot.lane.b32.xlu0 %v1695, 32
    %v1698 = vpop.permute.xlu0 %1697
    %v1700 = vadd.f32 %v1690, %v1698
    %v1701 = vtanh.pop %v1700
    %1703 = vrot.lane.b32.xlu0 %v1701, 32
    %v1704 = vpop.permute.xlu0 %1703
    %v1706 = vmul.f32 %v1688, %v1704
    %v1708 = vrot.slane %v1669, 1
    %v1709 = vperm.slane %v1669, 0
    %v1710 = vperm.slane %v1708, 0
    %1711 = vrot.lane.b32.xlu0 %v1709, 64
    %v1712 = vpop.permute.xlu0 %1711
    %1713 = vrot.lane.b32.xlu0 %v1710, 64
    %v1714 = vpop.permute.xlu0 %1713
    %1717 = vst.msk [vmem:[#allocation5 + $0x8] sm:$0x1] %vm522, %v1712
    %1718 = vst.msk [vmem:[#allocation5 + $0x18] sm:$0x1] %vm522, %v1714
    %v1720 = vrot.slane %v1706, 1
    %v1721 = vperm.slane %v1706, 0
    %v1722 = vperm.slane %v1720, 0
    %1723 = vrot.lane.b32.xlu0 %v1721, 96
    %v1724 = vpop.permute.xlu0 %1723
    %1725 = vrot.lane.b32.xlu0 %v1722, 96
    %v1726 = vpop.permute.xlu0 %1725
    %1729 = vst.msk [vmem:[#allocation5 + $0x7] sm:$0x1] %vm535, %v1724
    %1730 = vst.msk [vmem:[#allocation5 + $0x17] sm:$0x1] %vm535, %v1726
    %1731 = vrot.lane.b32.xlu0 %v1669, 64
    %v1732 = vpop.permute.xlu0 %1731
    %1734 = vrot.lane.b32.xlu0 %v1706, 96
    %v1735 = vpop.permute.xlu0 %1734
    %v1737 = vsel %vm544, %v1732, %v1735
    %v1738 = vpack.c.bf16 %v1737, %v1737
    %v1740 = vsel %vm301, %v1738, 0
    %1742 = vmatpush.bf16.msra.mxu0 0
    %1743 = vmatpush.bf16.msra.mxu0 0
    %1744 = vmatpush.bf16.msra.mxu0 0
    %1745 = vmatpush.bf16.msra.mxu0 0
    %1746 = vmatpush.bf16.msra.mxu0 %v384
    %1747 = vmatpush.bf16.msra.mxu0 %v382
    %1748 = vmatpush.bf16.msra.mxu0 %v380
    %1749 = vmatpush.bf16.msra.mxu0 %v378
    %1750 = vmatmul.bf16.gmra.mxu0 %v1740
    %v1751 = vpop.f32.mrf.mxu0
    %v1752 = vadd.f32 0.0, %v1751
    %v1753 = vpop.f32.mrf.mxu0
    %1754 = vdwg.mxu0
    %1755 = vmatpush.bf16.msra.mxu0 0
    %1756 = vmatpush.bf16.msra.mxu0 0
    %1757 = vmatpush.bf16.msra.mxu0 0
    %1758 = vmatpush.bf16.msra.mxu0 0
    %1759 = vmatpush.bf16.msra.mxu0 %v385
    %1760 = vmatpush.bf16.msra.mxu0 %v383
    %1761 = vmatpush.bf16.msra.mxu0 %v381
    %1762 = vmatpush.bf16.msra.mxu0 %v379
    %1763 = vmatmul.bf16.gmra.mxu0 %v1740
    %v1764 = vpop.f32.mrf.mxu0
    %v1765 = vadd.f32 0.0, %v1764
    %v1766 = vpop.f32.mrf.mxu0
    %1767 = vdwg.mxu0
    %v1768 = vld [vmem:[#allocation3 + $0x11] ss:$0 sm:$0xff]
    %v1769 = vld [vmem:[#allocation3 + $0x31] ss:$0 sm:$0xff]
    %v1770 = vld [vmem:[#allocation3 + $0xe] ss:$0 sm:$0xff]
    %v1771 = vld [vmem:[#allocation3 + $0x2e] ss:$0 sm:$0xff]
    %v1774 = vsel %vm429, %v1769, %v1768
    %v1776 = vadd.f32 %v1752, %v1774
    %v1779 = vsel %vm429, %v1771, %v1770
    %v1781 = vadd.f32 %v1765, %v1779
    %v1782 = vxor.u32 %v1776, 2147483648
    %v1783 = vmul.f32 %v1782, 1.442695
    %v1784 = vpow.pop %v1783
    %v1785 = vadd.f32 %v1784, 1.0
    %v1786 = vrcp.pop %v1785
    %v1787 = vmul.f32 %v1785, %v1786
    %v1788 = vsub.f32 1.0, %v1787
    %v1789 = vmul.f32 %v1786, %v1788
    %v1790 = vadd.f32 %v1786, %v1789
    %vm1791 = vweird.f32 %v1785
    %vm1792 = vweird.f32 %v1786
    %vm1793 = vmor %vm1791, %vm1792
    %v1794 = vsel %vm1793, %v1786, %v1790
    %v1795 = vand.u32 2147483647, %v1785
    %vm1796 = vcmp.eq.f32.partialorder %v1795, 8.507059e+37
    %v1797 = vand.u32 %v1785, 2147483648
    %v1798 = vor.u32 1.1754944e-38, %v1797
    %v1799 = vsel %vm1796, %v1798, %v1794
    %v1800 = vmul.f32 1.0, %v1799
    %v1801 = vtanh.pop %v1776
    %v1802 = vmul.f32 %v1800, %v1663
    %1804 = vrot.lane.b32.xlu0 %v1801, 32
    %v1805 = vpop.permute.xlu0 %1804
    %v1807 = vmul.f32 %v1800, %v1805
    %1809 = vrot.lane.b32.xlu0 %v1807, 32
    %v1810 = vpop.permute.xlu0 %1809
    %v1812 = vadd.f32 %v1802, %v1810
    %v1813 = vtanh.pop %v1812
    %1815 = vrot.lane.b32.xlu0 %v1813, 32
    %v1816 = vpop.permute.xlu0 %1815
    %v1818 = vmul.f32 %v1800, %v1816
    %v1819 = vxor.u32 %v1781, 2147483648
    %v1820 = vmul.f32 %v1819, 1.442695
    %v1821 = vpow.pop %v1820
    %v1822 = vadd.f32 %v1821, 1.0
    %v1823 = vrcp.pop %v1822
    %v1824 = vmul.f32 %v1822, %v1823
    %v1825 = vsub.f32 1.0, %v1824
    %v1826 = vmul.f32 %v1823, %v1825
    %v1827 = vadd.f32 %v1823, %v1826
    %vm1828 = vweird.f32 %v1822
    %vm1829 = vweird.f32 %v1823
    %vm1830 = vmor %vm1828, %vm1829
    %v1831 = vsel %vm1830, %v1823, %v1827
    %v1832 = vand.u32 2147483647, %v1822
    %vm1833 = vcmp.eq.f32.partialorder %v1832, 8.507059e+37
    %v1834 = vand.u32 %v1822, 2147483648
    %v1835 = vor.u32 1.1754944e-38, %v1834
    %v1836 = vsel %vm1833, %v1835, %v1831
    %v1837 = vmul.f32 1.0, %v1836
    %v1838 = vtanh.pop %v1781
    %v1839 = vmul.f32 %v1837, %v1700
    %1841 = vrot.lane.b32.xlu0 %v1838, 32
    %v1842 = vpop.permute.xlu0 %1841
    %v1844 = vmul.f32 %v1837, %v1842
    %1846 = vrot.lane.b32.xlu0 %v1844, 32
    %v1847 = vpop.permute.xlu0 %1846
    %v1849 = vadd.f32 %v1839, %v1847
    %v1850 = vtanh.pop %v1849
    %1852 = vrot.lane.b32.xlu0 %v1850, 32
    %v1853 = vpop.permute.xlu0 %1852
    %v1855 = vmul.f32 %v1837, %v1853
    %v1857 = vrot.slane %v1818, 1
    %v1858 = vperm.slane %v1818, 0
    %v1859 = vperm.slane %v1857, 0
    %1860 = vrot.lane.b32.xlu0 %v1858, 64
    %v1861 = vpop.permute.xlu0 %1860
    %1862 = vrot.lane.b32.xlu0 %v1859, 64
    %v1863 = vpop.permute.xlu0 %1862
    %1866 = vst.msk [vmem:[#allocation5 + $0x9] sm:$0x1] %vm522, %v1861
    %1867 = vst.msk [vmem:[#allocation5 + $0x19] sm:$0x1] %vm522, %v1863
    %v1869 = vrot.slane %v1855, 1
    %v1870 = vperm.slane %v1855, 0
    %v1871 = vperm.slane %v1869, 0
    %1872 = vrot.lane.b32.xlu0 %v1870, 96
    %v1873 = vpop.permute.xlu0 %1872
    %1874 = vrot.lane.b32.xlu0 %v1871, 96
    %v1875 = vpop.permute.xlu0 %1874
    %1878 = vst.msk [vmem:[#allocation5 + $0x6] sm:$0x1] %vm535, %v1873
    %1879 = vst.msk [vmem:[#allocation5 + $0x16] sm:$0x1] %vm535, %v1875
    %1880 = vrot.lane.b32.xlu0 %v1818, 64
    %v1881 = vpop.permute.xlu0 %1880
    %1883 = vrot.lane.b32.xlu0 %v1855, 96
    %v1884 = vpop.permute.xlu0 %1883
    %v1886 = vsel %vm544, %v1881, %v1884
    %v1887 = vpack.c.bf16 %v1886, %v1886
    %v1889 = vsel %vm301, %v1887, 0
    %1891 = vmatpush.bf16.msra.mxu0 0
    %1892 = vmatpush.bf16.msra.mxu0 0
    %1893 = vmatpush.bf16.msra.mxu0 0
    %1894 = vmatpush.bf16.msra.mxu0 0
    %1895 = vmatpush.bf16.msra.mxu0 %v384
    %1896 = vmatpush.bf16.msra.mxu0 %v382
    %1897 = vmatpush.bf16.msra.mxu0 %v380
    %1898 = vmatpush.bf16.msra.mxu0 %v378
    %1899 = vmatmul.bf16.gmra.mxu0 %v1889
    %v1900 = vpop.f32.mrf.mxu0
    %v1901 = vadd.f32 0.0, %v1900
    %v1902 = vpop.f32.mrf.mxu0
    %1903 = vdwg.mxu0
    %1904 = vmatpush.bf16.msra.mxu0 0
    %1905 = vmatpush.bf16.msra.mxu0 0
    %1906 = vmatpush.bf16.msra.mxu0 0
    %1907 = vmatpush.bf16.msra.mxu0 0
    %1908 = vmatpush.bf16.msra.mxu0 %v385
    %1909 = vmatpush.bf16.msra.mxu0 %v383
    %1910 = vmatpush.bf16.msra.mxu0 %v381
    %1911 = vmatpush.bf16.msra.mxu0 %v379
    %1912 = vmatmul.bf16.gmra.mxu0 %v1889
    %v1913 = vpop.f32.mrf.mxu0
    %v1914 = vadd.f32 0.0, %v1913
    %v1915 = vpop.f32.mrf.mxu0
    %1916 = vdwg.mxu0
    %v1917 = vld [vmem:[#allocation3 + $0x12] ss:$0 sm:$0xff]
    %v1918 = vld [vmem:[#allocation3 + $0x32] ss:$0 sm:$0xff]
    %v1919 = vld [vmem:[#allocation3 + $0xd] ss:$0 sm:$0xff]
    %v1920 = vld [vmem:[#allocation3 + $0x2d] ss:$0 sm:$0xff]
    %v1923 = vsel %vm429, %v1918, %v1917
    %v1925 = vadd.f32 %v1901, %v1923
    %v1928 = vsel %vm429, %v1920, %v1919
    %v1930 = vadd.f32 %v1914, %v1928
    %v1931 = vxor.u32 %v1925, 2147483648
    %v1932 = vmul.f32 %v1931, 1.442695
    %v1933 = vpow.pop %v1932
    %v1934 = vadd.f32 %v1933, 1.0
    %v1935 = vrcp.pop %v1934
    %v1936 = vmul.f32 %v1934, %v1935
    %v1937 = vsub.f32 1.0, %v1936
    %v1938 = vmul.f32 %v1935, %v1937
    %v1939 = vadd.f32 %v1935, %v1938
    %vm1940 = vweird.f32 %v1934
    %vm1941 = vweird.f32 %v1935
    %vm1942 = vmor %vm1940, %vm1941
    %v1943 = vsel %vm1942, %v1935, %v1939
    %v1944 = vand.u32 2147483647, %v1934
    %vm1945 = vcmp.eq.f32.partialorder %v1944, 8.507059e+37
    %v1946 = vand.u32 %v1934, 2147483648
    %v1947 = vor.u32 1.1754944e-38, %v1946
    %v1948 = vsel %vm1945, %v1947, %v1943
    %v1949 = vmul.f32 1.0, %v1948
    %v1950 = vtanh.pop %v1925
    %v1951 = vmul.f32 %v1949, %v1812
    %1953 = vrot.lane.b32.xlu0 %v1950, 32
    %v1954 = vpop.permute.xlu0 %1953
    %v1956 = vmul.f32 %v1949, %v1954
    %1958 = vrot.lane.b32.xlu0 %v1956, 32
    %v1959 = vpop.permute.xlu0 %1958
    %v1961 = vadd.f32 %v1951, %v1959
    %v1962 = vtanh.pop %v1961
    %1964 = vrot.lane.b32.xlu0 %v1962, 32
    %v1965 = vpop.permute.xlu0 %1964
    %v1967 = vmul.f32 %v1949, %v1965
    %v1968 = vxor.u32 %v1930, 2147483648
    %v1969 = vmul.f32 %v1968, 1.442695
    %v1970 = vpow.pop %v1969
    %v1971 = vadd.f32 %v1970, 1.0
    %v1972 = vrcp.pop %v1971
    %v1973 = vmul.f32 %v1971, %v1972
    %v1974 = vsub.f32 1.0, %v1973
    %v1975 = vmul.f32 %v1972, %v1974
    %v1976 = vadd.f32 %v1972, %v1975
    %vm1977 = vweird.f32 %v1971
    %vm1978 = vweird.f32 %v1972
    %vm1979 = vmor %vm1977, %vm1978
    %v1980 = vsel %vm1979, %v1972, %v1976
    %v1981 = vand.u32 2147483647, %v1971
    %vm1982 = vcmp.eq.f32.partialorder %v1981, 8.507059e+37
    %v1983 = vand.u32 %v1971, 2147483648
    %v1984 = vor.u32 1.1754944e-38, %v1983
    %v1985 = vsel %vm1982, %v1984, %v1980
    %v1986 = vmul.f32 1.0, %v1985
    %v1987 = vtanh.pop %v1930
    %v1988 = vmul.f32 %v1986, %v1849
    %1990 = vrot.lane.b32.xlu0 %v1987, 32
    %v1991 = vpop.permute.xlu0 %1990
    %v1993 = vmul.f32 %v1986, %v1991
    %1995 = vrot.lane.b32.xlu0 %v1993, 32
    %v1996 = vpop.permute.xlu0 %1995
    %v1998 = vadd.f32 %v1988, %v1996
    %v1999 = vtanh.pop %v1998
    %2001 = vrot.lane.b32.xlu0 %v1999, 32
    %v2002 = vpop.permute.xlu0 %2001
    %v2004 = vmul.f32 %v1986, %v2002
    %v2006 = vrot.slane %v1967, 1
    %v2007 = vperm.slane %v1967, 0
    %v2008 = vperm.slane %v2006, 0
    %2009 = vrot.lane.b32.xlu0 %v2007, 64
    %v2010 = vpop.permute.xlu0 %2009
    %2011 = vrot.lane.b32.xlu0 %v2008, 64
    %v2012 = vpop.permute.xlu0 %2011
    %2015 = vst.msk [vmem:[#allocation5 + $0xa] sm:$0x1] %vm522, %v2010
    %2016 = vst.msk [vmem:[#allocation5 + $0x1a] sm:$0x1] %vm522, %v2012
    %v2018 = vrot.slane %v2004, 1
    %v2019 = vperm.slane %v2004, 0
    %v2020 = vperm.slane %v2018, 0
    %2021 = vrot.lane.b32.xlu0 %v2019, 96
    %v2022 = vpop.permute.xlu0 %2021
    %2023 = vrot.lane.b32.xlu0 %v2020, 96
    %v2024 = vpop.permute.xlu0 %2023
    %2027 = vst.msk [vmem:[#allocation5 + $0x5] sm:$0x1] %vm535, %v2022
    %2028 = vst.msk [vmem:[#allocation5 + $0x15] sm:$0x1] %vm535, %v2024
    %2029 = vrot.lane.b32.xlu0 %v1967, 64
    %v2030 = vpop.permute.xlu0 %2029
    %2032 = vrot.lane.b32.xlu0 %v2004, 96
    %v2033 = vpop.permute.xlu0 %2032
    %v2035 = vsel %vm544, %v2030, %v2033
    %v2036 = vpack.c.bf16 %v2035, %v2035
    %v2038 = vsel %vm301, %v2036, 0
    %2040 = vmatpush.bf16.msra.mxu0 0
    %2041 = vmatpush.bf16.msra.mxu0 0
    %2042 = vmatpush.bf16.msra.mxu0 0
    %2043 = vmatpush.bf16.msra.mxu0 0
    %2044 = vmatpush.bf16.msra.mxu0 %v384
    %2045 = vmatpush.bf16.msra.mxu0 %v382
    %2046 = vmatpush.bf16.msra.mxu0 %v380
    %2047 = vmatpush.bf16.msra.mxu0 %v378
    %2048 = vmatmul.bf16.gmra.mxu0 %v2038
    %v2049 = vpop.f32.mrf.mxu0
    %v2050 = vadd.f32 0.0, %v2049
    %v2051 = vpop.f32.mrf.mxu0
    %2052 = vdwg.mxu0
    %2053 = vmatpush.bf16.msra.mxu0 0
    %2054 = vmatpush.bf16.msra.mxu0 0
    %2055 = vmatpush.bf16.msra.mxu0 0
    %2056 = vmatpush.bf16.msra.mxu0 0
    %2057 = vmatpush.bf16.msra.mxu0 %v385
    %2058 = vmatpush.bf16.msra.mxu0 %v383
    %2059 = vmatpush.bf16.msra.mxu0 %v381
    %2060 = vmatpush.bf16.msra.mxu0 %v379
    %2061 = vmatmul.bf16.gmra.mxu0 %v2038
    %v2062 = vpop.f32.mrf.mxu0
    %v2063 = vadd.f32 0.0, %v2062
    %v2064 = vpop.f32.mrf.mxu0
    %2065 = vdwg.mxu0
    %v2066 = vld [vmem:[#allocation3 + $0x13] ss:$0 sm:$0xff]
    %v2067 = vld [vmem:[#allocation3 + $0x33] ss:$0 sm:$0xff]
    %v2068 = vld [vmem:[#allocation3 + $0xc] ss:$0 sm:$0xff]
    %v2069 = vld [vmem:[#allocation3 + $0x2c] ss:$0 sm:$0xff]
    %v2072 = vsel %vm429, %v2067, %v2066
    %v2074 = vadd.f32 %v2050, %v2072
    %v2077 = vsel %vm429, %v2069, %v2068
    %v2079 = vadd.f32 %v2063, %v2077
    %v2080 = vxor.u32 %v2074, 2147483648
    %v2081 = vmul.f32 %v2080, 1.442695
    %v2082 = vpow.pop %v2081
    %v2083 = vadd.f32 %v2082, 1.0
    %v2084 = vrcp.pop %v2083
    %v2085 = vmul.f32 %v2083, %v2084
    %v2086 = vsub.f32 1.0, %v2085
    %v2087 = vmul.f32 %v2084, %v2086
    %v2088 = vadd.f32 %v2084, %v2087
    %vm2089 = vweird.f32 %v2083
    %vm2090 = vweird.f32 %v2084
    %vm2091 = vmor %vm2089, %vm2090
    %v2092 = vsel %vm2091, %v2084, %v2088
    %v2093 = vand.u32 2147483647, %v2083
    %vm2094 = vcmp.eq.f32.partialorder %v2093, 8.507059e+37
    %v2095 = vand.u32 %v2083, 2147483648
    %v2096 = vor.u32 1.1754944e-38, %v2095
    %v2097 = vsel %vm2094, %v2096, %v2092
    %v2098 = vmul.f32 1.0, %v2097
    %v2099 = vtanh.pop %v2074
    %v2100 = vmul.f32 %v2098, %v1961
    %2102 = vrot.lane.b32.xlu0 %v2099, 32
    %v2103 = vpop.permute.xlu0 %2102
    %v2105 = vmul.f32 %v2098, %v2103
    %2107 = vrot.lane.b32.xlu0 %v2105, 32
    %v2108 = vpop.permute.xlu0 %2107
    %v2110 = vadd.f32 %v2100, %v2108
    %v2111 = vtanh.pop %v2110
    %2113 = vrot.lane.b32.xlu0 %v2111, 32
    %v2114 = vpop.permute.xlu0 %2113
    %v2116 = vmul.f32 %v2098, %v2114
    %v2117 = vxor.u32 %v2079, 2147483648
    %v2118 = vmul.f32 %v2117, 1.442695
    %v2119 = vpow.pop %v2118
    %v2120 = vadd.f32 %v2119, 1.0
    %v2121 = vrcp.pop %v2120
    %v2122 = vmul.f32 %v2120, %v2121
    %v2123 = vsub.f32 1.0, %v2122
    %v2124 = vmul.f32 %v2121, %v2123
    %v2125 = vadd.f32 %v2121, %v2124
    %vm2126 = vweird.f32 %v2120
    %vm2127 = vweird.f32 %v2121
    %vm2128 = vmor %vm2126, %vm2127
    %v2129 = vsel %vm2128, %v2121, %v2125
    %v2130 = vand.u32 2147483647, %v2120
    %vm2131 = vcmp.eq.f32.partialorder %v2130, 8.507059e+37
    %v2132 = vand.u32 %v2120, 2147483648
    %v2133 = vor.u32 1.1754944e-38, %v2132
    %v2134 = vsel %vm2131, %v2133, %v2129
    %v2135 = vmul.f32 1.0, %v2134
    %v2136 = vtanh.pop %v2079
    %v2137 = vmul.f32 %v2135, %v1998
    %2139 = vrot.lane.b32.xlu0 %v2136, 32
    %v2140 = vpop.permute.xlu0 %2139
    %v2142 = vmul.f32 %v2135, %v2140
    %2144 = vrot.lane.b32.xlu0 %v2142, 32
    %v2145 = vpop.permute.xlu0 %2144
    %v2147 = vadd.f32 %v2137, %v2145
    %v2148 = vtanh.pop %v2147
    %2150 = vrot.lane.b32.xlu0 %v2148, 32
    %v2151 = vpop.permute.xlu0 %2150
    %v2153 = vmul.f32 %v2135, %v2151
    %v2155 = vrot.slane %v2116, 1
    %v2156 = vperm.slane %v2116, 0
    %v2157 = vperm.slane %v2155, 0
    %2158 = vrot.lane.b32.xlu0 %v2156, 64
    %v2159 = vpop.permute.xlu0 %2158
    %2160 = vrot.lane.b32.xlu0 %v2157, 64
    %v2161 = vpop.permute.xlu0 %2160
    %2164 = vst.msk [vmem:[#allocation5 + $0xb] sm:$0x1] %vm522, %v2159
    %2165 = vst.msk [vmem:[#allocation5 + $0x1b] sm:$0x1] %vm522, %v2161
    %v2167 = vrot.slane %v2153, 1
    %v2168 = vperm.slane %v2153, 0
    %v2169 = vperm.slane %v2167, 0
    %2170 = vrot.lane.b32.xlu0 %v2168, 96
    %v2171 = vpop.permute.xlu0 %2170
    %2172 = vrot.lane.b32.xlu0 %v2169, 96
    %v2173 = vpop.permute.xlu0 %2172
    %2176 = vst.msk [vmem:[#allocation5 + $0x4] sm:$0x1] %vm535, %v2171
    %2177 = vst.msk [vmem:[#allocation5 + $0x14] sm:$0x1] %vm535, %v2173
    %2178 = vrot.lane.b32.xlu0 %v2116, 64
    %v2179 = vpop.permute.xlu0 %2178
    %2181 = vrot.lane.b32.xlu0 %v2153, 96
    %v2182 = vpop.permute.xlu0 %2181
    %v2184 = vsel %vm544, %v2179, %v2182
    %v2185 = vpack.c.bf16 %v2184, %v2184
    %v2187 = vsel %vm301, %v2185, 0
    %2189 = vmatpush.bf16.msra.mxu0 0
    %2190 = vmatpush.bf16.msra.mxu0 0
    %2191 = vmatpush.bf16.msra.mxu0 0
    %2192 = vmatpush.bf16.msra.mxu0 0
    %2193 = vmatpush.bf16.msra.mxu0 %v384
    %2194 = vmatpush.bf16.msra.mxu0 %v382
    %2195 = vmatpush.bf16.msra.mxu0 %v380
    %2196 = vmatpush.bf16.msra.mxu0 %v378
    %2197 = vmatmul.bf16.gmra.mxu0 %v2187
    %v2198 = vpop.f32.mrf.mxu0
    %v2199 = vadd.f32 0.0, %v2198
    %v2200 = vpop.f32.mrf.mxu0
    %2201 = vdwg.mxu0
    %2202 = vmatpush.bf16.msra.mxu0 0
    %2203 = vmatpush.bf16.msra.mxu0 0
    %2204 = vmatpush.bf16.msra.mxu0 0
    %2205 = vmatpush.bf16.msra.mxu0 0
    %2206 = vmatpush.bf16.msra.mxu0 %v385
    %2207 = vmatpush.bf16.msra.mxu0 %v383
    %2208 = vmatpush.bf16.msra.mxu0 %v381
    %2209 = vmatpush.bf16.msra.mxu0 %v379
    %2210 = vmatmul.bf16.gmra.mxu0 %v2187
    %v2211 = vpop.f32.mrf.mxu0
    %v2212 = vadd.f32 0.0, %v2211
    %v2213 = vpop.f32.mrf.mxu0
    %2214 = vdwg.mxu0
    %v2215 = vld [vmem:[#allocation3 + $0x14] ss:$0 sm:$0xff]
    %v2216 = vld [vmem:[#allocation3 + $0x34] ss:$0 sm:$0xff]
    %v2217 = vld [vmem:[#allocation3 + $0xb] ss:$0 sm:$0xff]
    %v2218 = vld [vmem:[#allocation3 + $0x2b] ss:$0 sm:$0xff]
    %v2221 = vsel %vm429, %v2216, %v2215
    %v2223 = vadd.f32 %v2199, %v2221
    %v2226 = vsel %vm429, %v2218, %v2217
    %v2228 = vadd.f32 %v2212, %v2226
    %v2229 = vxor.u32 %v2223, 2147483648
    %v2230 = vmul.f32 %v2229, 1.442695
    %v2231 = vpow.pop %v2230
    %v2232 = vadd.f32 %v2231, 1.0
    %v2233 = vrcp.pop %v2232
    %v2234 = vmul.f32 %v2232, %v2233
    %v2235 = vsub.f32 1.0, %v2234
    %v2236 = vmul.f32 %v2233, %v2235
    %v2237 = vadd.f32 %v2233, %v2236
    %vm2238 = vweird.f32 %v2232
    %vm2239 = vweird.f32 %v2233
    %vm2240 = vmor %vm2238, %vm2239
    %v2241 = vsel %vm2240, %v2233, %v2237
    %v2242 = vand.u32 2147483647, %v2232
    %vm2243 = vcmp.eq.f32.partialorder %v2242, 8.507059e+37
    %v2244 = vand.u32 %v2232, 2147483648
    %v2245 = vor.u32 1.1754944e-38, %v2244
    %v2246 = vsel %vm2243, %v2245, %v2241
    %v2247 = vmul.f32 1.0, %v2246
    %v2248 = vtanh.pop %v2223
    %v2249 = vmul.f32 %v2247, %v2110
    %2251 = vrot.lane.b32.xlu0 %v2248, 32
    %v2252 = vpop.permute.xlu0 %2251
    %v2254 = vmul.f32 %v2247, %v2252
    %2256 = vrot.lane.b32.xlu0 %v2254, 32
    %v2257 = vpop.permute.xlu0 %2256
    %v2259 = vadd.f32 %v2249, %v2257
    %v2260 = vtanh.pop %v2259
    %2262 = vrot.lane.b32.xlu0 %v2260, 32
    %v2263 = vpop.permute.xlu0 %2262
    %v2265 = vmul.f32 %v2247, %v2263
    %v2266 = vxor.u32 %v2228, 2147483648
    %v2267 = vmul.f32 %v2266, 1.442695
    %v2268 = vpow.pop %v2267
    %v2269 = vadd.f32 %v2268, 1.0
    %v2270 = vrcp.pop %v2269
    %v2271 = vmul.f32 %v2269, %v2270
    %v2272 = vsub.f32 1.0, %v2271
    %v2273 = vmul.f32 %v2270, %v2272
    %v2274 = vadd.f32 %v2270, %v2273
    %vm2275 = vweird.f32 %v2269
    %vm2276 = vweird.f32 %v2270
    %vm2277 = vmor %vm2275, %vm2276
    %v2278 = vsel %vm2277, %v2270, %v2274
    %v2279 = vand.u32 2147483647, %v2269
    %vm2280 = vcmp.eq.f32.partialorder %v2279, 8.507059e+37
    %v2281 = vand.u32 %v2269, 2147483648
    %v2282 = vor.u32 1.1754944e-38, %v2281
    %v2283 = vsel %vm2280, %v2282, %v2278
    %v2284 = vmul.f32 1.0, %v2283
    %v2285 = vtanh.pop %v2228
    %v2286 = vmul.f32 %v2284, %v2147
    %2288 = vrot.lane.b32.xlu0 %v2285, 32
    %v2289 = vpop.permute.xlu0 %2288
    %v2291 = vmul.f32 %v2284, %v2289
    %2293 = vrot.lane.b32.xlu0 %v2291, 32
    %v2294 = vpop.permute.xlu0 %2293
    %v2296 = vadd.f32 %v2286, %v2294
    %v2297 = vtanh.pop %v2296
    %2299 = vrot.lane.b32.xlu0 %v2297, 32
    %v2300 = vpop.permute.xlu0 %2299
    %v2302 = vmul.f32 %v2284, %v2300
    %v2304 = vrot.slane %v2265, 1
    %v2305 = vperm.slane %v2265, 0
    %v2306 = vperm.slane %v2304, 0
    %2307 = vrot.lane.b32.xlu0 %v2305, 64
    %v2308 = vpop.permute.xlu0 %2307
    %2309 = vrot.lane.b32.xlu0 %v2306, 64
    %v2310 = vpop.permute.xlu0 %2309
    %2313 = vst.msk [vmem:[#allocation5 + $0xc] sm:$0x1] %vm522, %v2308
    %2314 = vst.msk [vmem:[#allocation5 + $0x1c] sm:$0x1] %vm522, %v2310
    %v2316 = vrot.slane %v2302, 1
    %v2317 = vperm.slane %v2302, 0
    %v2318 = vperm.slane %v2316, 0
    %2319 = vrot.lane.b32.xlu0 %v2317, 96
    %v2320 = vpop.permute.xlu0 %2319
    %2321 = vrot.lane.b32.xlu0 %v2318, 96
    %v2322 = vpop.permute.xlu0 %2321
    %2325 = vst.msk [vmem:[#allocation5 + $0x3] sm:$0x1] %vm535, %v2320
    %2326 = vst.msk [vmem:[#allocation5 + $0x13] sm:$0x1] %vm535, %v2322
    %2327 = vrot.lane.b32.xlu0 %v2265, 64
    %v2328 = vpop.permute.xlu0 %2327
    %2330 = vrot.lane.b32.xlu0 %v2302, 96
    %v2331 = vpop.permute.xlu0 %2330
    %v2333 = vsel %vm544, %v2328, %v2331
    %v2334 = vpack.c.bf16 %v2333, %v2333
    %v2336 = vsel %vm301, %v2334, 0
    %2338 = vmatpush.bf16.msra.mxu0 0
    %2339 = vmatpush.bf16.msra.mxu0 0
    %2340 = vmatpush.bf16.msra.mxu0 0
    %2341 = vmatpush.bf16.msra.mxu0 0
    %2342 = vmatpush.bf16.msra.mxu0 %v384
    %2343 = vmatpush.bf16.msra.mxu0 %v382
    %2344 = vmatpush.bf16.msra.mxu0 %v380
    %2345 = vmatpush.bf16.msra.mxu0 %v378
    %2346 = vmatmul.bf16.gmra.mxu0 %v2336
    %v2347 = vpop.f32.mrf.mxu0
    %v2348 = vadd.f32 0.0, %v2347
    %v2349 = vpop.f32.mrf.mxu0
    %2350 = vdwg.mxu0
    %2351 = vmatpush.bf16.msra.mxu0 0
    %2352 = vmatpush.bf16.msra.mxu0 0
    %2353 = vmatpush.bf16.msra.mxu0 0
    %2354 = vmatpush.bf16.msra.mxu0 0
    %2355 = vmatpush.bf16.msra.mxu0 %v385
    %2356 = vmatpush.bf16.msra.mxu0 %v383
    %2357 = vmatpush.bf16.msra.mxu0 %v381
    %2358 = vmatpush.bf16.msra.mxu0 %v379
    %2359 = vmatmul.bf16.gmra.mxu0 %v2336
    %v2360 = vpop.f32.mrf.mxu0
    %v2361 = vadd.f32 0.0, %v2360
    %v2362 = vpop.f32.mrf.mxu0
    %2363 = vdwg.mxu0
    %v2364 = vld [vmem:[#allocation3 + $0x15] ss:$0 sm:$0xff]
    %v2365 = vld [vmem:[#allocation3 + $0x35] ss:$0 sm:$0xff]
    %v2366 = vld [vmem:[#allocation3 + $0xa] ss:$0 sm:$0xff]
    %v2367 = vld [vmem:[#allocation3 + $0x2a] ss:$0 sm:$0xff]
    %v2370 = vsel %vm429, %v2365, %v2364
    %v2372 = vadd.f32 %v2348, %v2370
    %v2375 = vsel %vm429, %v2367, %v2366
    %v2377 = vadd.f32 %v2361, %v2375
    %v2378 = vxor.u32 %v2372, 2147483648
    %v2379 = vmul.f32 %v2378, 1.442695
    %v2380 = vpow.pop %v2379
    %v2381 = vadd.f32 %v2380, 1.0
    %v2382 = vrcp.pop %v2381
    %v2383 = vmul.f32 %v2381, %v2382
    %v2384 = vsub.f32 1.0, %v2383
    %v2385 = vmul.f32 %v2382, %v2384
    %v2386 = vadd.f32 %v2382, %v2385
    %vm2387 = vweird.f32 %v2381
    %vm2388 = vweird.f32 %v2382
    %vm2389 = vmor %vm2387, %vm2388
    %v2390 = vsel %vm2389, %v2382, %v2386
    %v2391 = vand.u32 2147483647, %v2381
    %vm2392 = vcmp.eq.f32.partialorder %v2391, 8.507059e+37
    %v2393 = vand.u32 %v2381, 2147483648
    %v2394 = vor.u32 1.1754944e-38, %v2393
    %v2395 = vsel %vm2392, %v2394, %v2390
    %v2396 = vmul.f32 1.0, %v2395
    %v2397 = vtanh.pop %v2372
    %v2398 = vmul.f32 %v2396, %v2259
    %2400 = vrot.lane.b32.xlu0 %v2397, 32
    %v2401 = vpop.permute.xlu0 %2400
    %v2403 = vmul.f32 %v2396, %v2401
    %2405 = vrot.lane.b32.xlu0 %v2403, 32
    %v2406 = vpop.permute.xlu0 %2405
    %v2408 = vadd.f32 %v2398, %v2406
    %v2409 = vtanh.pop %v2408
    %2411 = vrot.lane.b32.xlu0 %v2409, 32
    %v2412 = vpop.permute.xlu0 %2411
    %v2414 = vmul.f32 %v2396, %v2412
    %v2415 = vxor.u32 %v2377, 2147483648
    %v2416 = vmul.f32 %v2415, 1.442695
    %v2417 = vpow.pop %v2416
    %v2418 = vadd.f32 %v2417, 1.0
    %v2419 = vrcp.pop %v2418
    %v2420 = vmul.f32 %v2418, %v2419
    %v2421 = vsub.f32 1.0, %v2420
    %v2422 = vmul.f32 %v2419, %v2421
    %v2423 = vadd.f32 %v2419, %v2422
    %vm2424 = vweird.f32 %v2418
    %vm2425 = vweird.f32 %v2419
    %vm2426 = vmor %vm2424, %vm2425
    %v2427 = vsel %vm2426, %v2419, %v2423
    %v2428 = vand.u32 2147483647, %v2418
    %vm2429 = vcmp.eq.f32.partialorder %v2428, 8.507059e+37
    %v2430 = vand.u32 %v2418, 2147483648
    %v2431 = vor.u32 1.1754944e-38, %v2430
    %v2432 = vsel %vm2429, %v2431, %v2427
    %v2433 = vmul.f32 1.0, %v2432
    %v2434 = vtanh.pop %v2377
    %v2435 = vmul.f32 %v2433, %v2296
    %2437 = vrot.lane.b32.xlu0 %v2434, 32
    %v2438 = vpop.permute.xlu0 %2437
    %v2440 = vmul.f32 %v2433, %v2438
    %2442 = vrot.lane.b32.xlu0 %v2440, 32
    %v2443 = vpop.permute.xlu0 %2442
    %v2445 = vadd.f32 %v2435, %v2443
    %v2446 = vtanh.pop %v2445
    %2448 = vrot.lane.b32.xlu0 %v2446, 32
    %v2449 = vpop.permute.xlu0 %2448
    %v2451 = vmul.f32 %v2433, %v2449
    %v2453 = vrot.slane %v2414, 1
    %v2454 = vperm.slane %v2414, 0
    %v2455 = vperm.slane %v2453, 0
    %2456 = vrot.lane.b32.xlu0 %v2454, 64
    %v2457 = vpop.permute.xlu0 %2456
    %2458 = vrot.lane.b32.xlu0 %v2455, 64
    %v2459 = vpop.permute.xlu0 %2458
    %2462 = vst.msk [vmem:[#allocation5 + $0xd] sm:$0x1] %vm522, %v2457
    %2463 = vst.msk [vmem:[#allocation5 + $0x1d] sm:$0x1] %vm522, %v2459
    %v2465 = vrot.slane %v2451, 1
    %v2466 = vperm.slane %v2451, 0
    %v2467 = vperm.slane %v2465, 0
    %2468 = vrot.lane.b32.xlu0 %v2466, 96
    %v2469 = vpop.permute.xlu0 %2468
    %2470 = vrot.lane.b32.xlu0 %v2467, 96
    %v2471 = vpop.permute.xlu0 %2470
    %2474 = vst.msk [vmem:[#allocation5 + $0x2] sm:$0x1] %vm535, %v2469
    %2475 = vst.msk [vmem:[#allocation5 + $0x12] sm:$0x1] %vm535, %v2471
    %2476 = vrot.lane.b32.xlu0 %v2414, 64
    %v2477 = vpop.permute.xlu0 %2476
    %2479 = vrot.lane.b32.xlu0 %v2451, 96
    %v2480 = vpop.permute.xlu0 %2479
    %v2482 = vsel %vm544, %v2477, %v2480
    %v2483 = vpack.c.bf16 %v2482, %v2482
    %v2485 = vsel %vm301, %v2483, 0
    %2487 = vmatpush.bf16.msra.mxu0 0
    %2488 = vmatpush.bf16.msra.mxu0 0
    %2489 = vmatpush.bf16.msra.mxu0 0
    %2490 = vmatpush.bf16.msra.mxu0 0
    %2491 = vmatpush.bf16.msra.mxu0 %v384
    %2492 = vmatpush.bf16.msra.mxu0 %v382
    %2493 = vmatpush.bf16.msra.mxu0 %v380
    %2494 = vmatpush.bf16.msra.mxu0 %v378
    %2495 = vmatmul.bf16.gmra.mxu0 %v2485
    %v2496 = vpop.f32.mrf.mxu0
    %v2497 = vadd.f32 0.0, %v2496
    %v2498 = vpop.f32.mrf.mxu0
    %2499 = vdwg.mxu0
    %2500 = vmatpush.bf16.msra.mxu0 0
    %2501 = vmatpush.bf16.msra.mxu0 0
    %2502 = vmatpush.bf16.msra.mxu0 0
    %2503 = vmatpush.bf16.msra.mxu0 0
    %2504 = vmatpush.bf16.msra.mxu0 %v385
    %2505 = vmatpush.bf16.msra.mxu0 %v383
    %2506 = vmatpush.bf16.msra.mxu0 %v381
    %2507 = vmatpush.bf16.msra.mxu0 %v379
    %2508 = vmatmul.bf16.gmra.mxu0 %v2485
    %v2509 = vpop.f32.mrf.mxu0
    %v2510 = vadd.f32 0.0, %v2509
    %v2511 = vpop.f32.mrf.mxu0
    %2512 = vdwg.mxu0
    %v2513 = vld [vmem:[#allocation3 + $0x16] ss:$0 sm:$0xff]
    %v2514 = vld [vmem:[#allocation3 + $0x36] ss:$0 sm:$0xff]
    %v2515 = vld [vmem:[#allocation3 + $0x9] ss:$0 sm:$0xff]
    %v2516 = vld [vmem:[#allocation3 + $0x29] ss:$0 sm:$0xff]
    %v2519 = vsel %vm429, %v2514, %v2513
    %v2521 = vadd.f32 %v2497, %v2519
    %v2524 = vsel %vm429, %v2516, %v2515
    %v2526 = vadd.f32 %v2510, %v2524
    %v2527 = vxor.u32 %v2521, 2147483648
    %v2528 = vmul.f32 %v2527, 1.442695
    %v2529 = vpow.pop %v2528
    %v2530 = vadd.f32 %v2529, 1.0
    %v2531 = vrcp.pop %v2530
    %v2532 = vmul.f32 %v2530, %v2531
    %v2533 = vsub.f32 1.0, %v2532
    %v2534 = vmul.f32 %v2531, %v2533
    %v2535 = vadd.f32 %v2531, %v2534
    %vm2536 = vweird.f32 %v2530
    %vm2537 = vweird.f32 %v2531
    %vm2538 = vmor %vm2536, %vm2537
    %v2539 = vsel %vm2538, %v2531, %v2535
    %v2540 = vand.u32 2147483647, %v2530
    %vm2541 = vcmp.eq.f32.partialorder %v2540, 8.507059e+37
    %v2542 = vand.u32 %v2530, 2147483648
    %v2543 = vor.u32 1.1754944e-38, %v2542
    %v2544 = vsel %vm2541, %v2543, %v2539
    %v2545 = vmul.f32 1.0, %v2544
    %v2546 = vtanh.pop %v2521
    %v2547 = vmul.f32 %v2545, %v2408
    %2549 = vrot.lane.b32.xlu0 %v2546, 32
    %v2550 = vpop.permute.xlu0 %2549
    %v2552 = vmul.f32 %v2545, %v2550
    %2554 = vrot.lane.b32.xlu0 %v2552, 32
    %v2555 = vpop.permute.xlu0 %2554
    %v2557 = vadd.f32 %v2547, %v2555
    %v2558 = vtanh.pop %v2557
    %2560 = vrot.lane.b32.xlu0 %v2558, 32
    %v2561 = vpop.permute.xlu0 %2560
    %v2563 = vmul.f32 %v2545, %v2561
    %v2564 = vxor.u32 %v2526, 2147483648
    %v2565 = vmul.f32 %v2564, 1.442695
    %v2566 = vpow.pop %v2565
    %v2567 = vadd.f32 %v2566, 1.0
    %v2568 = vrcp.pop %v2567
    %v2569 = vmul.f32 %v2567, %v2568
    %v2570 = vsub.f32 1.0, %v2569
    %v2571 = vmul.f32 %v2568, %v2570
    %v2572 = vadd.f32 %v2568, %v2571
    %vm2573 = vweird.f32 %v2567
    %vm2574 = vweird.f32 %v2568
    %vm2575 = vmor %vm2573, %vm2574
    %v2576 = vsel %vm2575, %v2568, %v2572
    %v2577 = vand.u32 2147483647, %v2567
    %vm2578 = vcmp.eq.f32.partialorder %v2577, 8.507059e+37
    %v2579 = vand.u32 %v2567, 2147483648
    %v2580 = vor.u32 1.1754944e-38, %v2579
    %v2581 = vsel %vm2578, %v2580, %v2576
    %v2582 = vmul.f32 1.0, %v2581
    %v2583 = vtanh.pop %v2526
    %v2584 = vmul.f32 %v2582, %v2445
    %2586 = vrot.lane.b32.xlu0 %v2583, 32
    %v2587 = vpop.permute.xlu0 %2586
    %v2589 = vmul.f32 %v2582, %v2587
    %2591 = vrot.lane.b32.xlu0 %v2589, 32
    %v2592 = vpop.permute.xlu0 %2591
    %v2594 = vadd.f32 %v2584, %v2592
    %v2595 = vtanh.pop %v2594
    %2597 = vrot.lane.b32.xlu0 %v2595, 32
    %v2598 = vpop.permute.xlu0 %2597
    %v2600 = vmul.f32 %v2582, %v2598
    %v2602 = vrot.slane %v2563, 1
    %v2603 = vperm.slane %v2563, 0
    %v2604 = vperm.slane %v2602, 0
    %2605 = vrot.lane.b32.xlu0 %v2603, 64
    %v2606 = vpop.permute.xlu0 %2605
    %2607 = vrot.lane.b32.xlu0 %v2604, 64
    %v2608 = vpop.permute.xlu0 %2607
    %2611 = vst.msk [vmem:[#allocation5 + $0xe] sm:$0x1] %vm522, %v2606
    %2612 = vst.msk [vmem:[#allocation5 + $0x1e] sm:$0x1] %vm522, %v2608
    %v2614 = vrot.slane %v2600, 1
    %v2615 = vperm.slane %v2600, 0
    %v2616 = vperm.slane %v2614, 0
    %2617 = vrot.lane.b32.xlu0 %v2615, 96
    %v2618 = vpop.permute.xlu0 %2617
    %2619 = vrot.lane.b32.xlu0 %v2616, 96
    %v2620 = vpop.permute.xlu0 %2619
    %2623 = vst.msk [vmem:[#allocation5 + $0x1] sm:$0x1] %vm535, %v2618
    %2624 = vst.msk [vmem:[#allocation5 + $0x11] sm:$0x1] %vm535, %v2620
    %2625 = vrot.lane.b32.xlu0 %v2563, 64
    %v2626 = vpop.permute.xlu0 %2625
    %2628 = vrot.lane.b32.xlu0 %v2600, 96
    %v2629 = vpop.permute.xlu0 %2628
    %v2631 = vsel %vm544, %v2626, %v2629
    %v2632 = vpack.c.bf16 %v2631, %v2631
    %v2634 = vsel %vm301, %v2632, 0
    %2636 = vmatpush.bf16.msra.mxu0 0
    %2637 = vmatpush.bf16.msra.mxu0 0
    %2638 = vmatpush.bf16.msra.mxu0 0
    %2639 = vmatpush.bf16.msra.mxu0 0
    %2640 = vmatpush.bf16.msra.mxu0 %v384
    %2641 = vmatpush.bf16.msra.mxu0 %v382
    %2642 = vmatpush.bf16.msra.mxu0 %v380
    %2643 = vmatpush.bf16.msra.mxu0 %v378
    %2644 = vmatmul.bf16.gmra.mxu0 %v2634
    %v2645 = vpop.f32.mrf.mxu0
    %v2646 = vadd.f32 0.0, %v2645
    %v2647 = vpop.f32.mrf.mxu0
    %2648 = vdwg.mxu0
    %2649 = vmatpush.bf16.msra.mxu0 0
    %2650 = vmatpush.bf16.msra.mxu0 0
    %2651 = vmatpush.bf16.msra.mxu0 0
    %2652 = vmatpush.bf16.msra.mxu0 0
    %2653 = vmatpush.bf16.msra.mxu0 %v385
    %2654 = vmatpush.bf16.msra.mxu0 %v383
    %2655 = vmatpush.bf16.msra.mxu0 %v381
    %2656 = vmatpush.bf16.msra.mxu0 %v379
    %2657 = vmatmul.bf16.gmra.mxu0 %v2634
    %v2658 = vpop.f32.mrf.mxu0
    %v2659 = vadd.f32 0.0, %v2658
    %v2660 = vpop.f32.mrf.mxu0
    %2661 = vdwg.mxu0
    %v2662 = vld [vmem:[#allocation3 + $0x17] ss:$0 sm:$0xff]
    %v2663 = vld [vmem:[#allocation3 + $0x37] ss:$0 sm:$0xff]
    %v2664 = vld [vmem:[#allocation3 + $0x8] ss:$0 sm:$0xff]
    %v2665 = vld [vmem:[#allocation3 + $0x28] ss:$0 sm:$0xff]
    %v2668 = vsel %vm429, %v2663, %v2662
    %v2670 = vadd.f32 %v2646, %v2668
    %v2673 = vsel %vm429, %v2665, %v2664
    %v2675 = vadd.f32 %v2659, %v2673
    %v2676 = vxor.u32 %v2670, 2147483648
    %v2677 = vmul.f32 %v2676, 1.442695
    %v2678 = vpow.pop %v2677
    %v2679 = vadd.f32 %v2678, 1.0
    %v2680 = vrcp.pop %v2679
    %v2681 = vmul.f32 %v2679, %v2680
    %v2682 = vsub.f32 1.0, %v2681
    %v2683 = vmul.f32 %v2680, %v2682
    %v2684 = vadd.f32 %v2680, %v2683
    %vm2685 = vweird.f32 %v2679
    %vm2686 = vweird.f32 %v2680
    %vm2687 = vmor %vm2685, %vm2686
    %v2688 = vsel %vm2687, %v2680, %v2684
    %v2689 = vand.u32 2147483647, %v2679
    %vm2690 = vcmp.eq.f32.partialorder %v2689, 8.507059e+37
    %v2691 = vand.u32 %v2679, 2147483648
    %v2692 = vor.u32 1.1754944e-38, %v2691
    %v2693 = vsel %vm2690, %v2692, %v2688
    %v2694 = vmul.f32 1.0, %v2693
    %v2695 = vtanh.pop %v2670
    %v2696 = vmul.f32 %v2694, %v2557
    %2698 = vrot.lane.b32.xlu0 %v2695, 32
    %v2699 = vpop.permute.xlu0 %2698
    %v2701 = vmul.f32 %v2694, %v2699
    %2703 = vrot.lane.b32.xlu0 %v2701, 32
    %v2704 = vpop.permute.xlu0 %2703
    %v2706 = vadd.f32 %v2696, %v2704
    %v2707 = vtanh.pop %v2706
    %2709 = vrot.lane.b32.xlu0 %v2707, 32
    %v2710 = vpop.permute.xlu0 %2709
    %v2712 = vmul.f32 %v2694, %v2710
    %v2713 = vxor.u32 %v2675, 2147483648
    %v2714 = vmul.f32 %v2713, 1.442695
    %v2715 = vpow.pop %v2714
    %v2716 = vadd.f32 %v2715, 1.0
    %v2717 = vrcp.pop %v2716
    %v2718 = vmul.f32 %v2716, %v2717
    %v2719 = vsub.f32 1.0, %v2718
    %v2720 = vmul.f32 %v2717, %v2719
    %v2721 = vadd.f32 %v2717, %v2720
    %vm2722 = vweird.f32 %v2716
    %vm2723 = vweird.f32 %v2717
    %vm2724 = vmor %vm2722, %vm2723
    %v2725 = vsel %vm2724, %v2717, %v2721
    %v2726 = vand.u32 2147483647, %v2716
    %vm2727 = vcmp.eq.f32.partialorder %v2726, 8.507059e+37
    %v2728 = vand.u32 %v2716, 2147483648
    %v2729 = vor.u32 1.1754944e-38, %v2728
    %v2730 = vsel %vm2727, %v2729, %v2725
    %v2731 = vmul.f32 1.0, %v2730
    %v2732 = vtanh.pop %v2675
    %v2733 = vmul.f32 %v2731, %v2594
    %2735 = vrot.lane.b32.xlu0 %v2732, 32
    %v2736 = vpop.permute.xlu0 %2735
    %v2738 = vmul.f32 %v2731, %v2736
    %2740 = vrot.lane.b32.xlu0 %v2738, 32
    %v2741 = vpop.permute.xlu0 %2740
    %v2743 = vadd.f32 %v2733, %v2741
    %v2744 = vtanh.pop %v2743
    %2746 = vrot.lane.b32.xlu0 %v2744, 32
    %v2747 = vpop.permute.xlu0 %2746
    %v2749 = vmul.f32 %v2731, %v2747
    %v2751 = vrot.slane %v2712, 1
    %v2752 = vperm.slane %v2712, 0
    %v2753 = vperm.slane %v2751, 0
    %2754 = vrot.lane.b32.xlu0 %v2752, 64
    %v2755 = vpop.permute.xlu0 %2754
    %2756 = vrot.lane.b32.xlu0 %v2753, 64
    %v2757 = vpop.permute.xlu0 %2756
    %2760 = vst.msk [vmem:[#allocation5 + $0xf] sm:$0x1] %vm522, %v2755
    %2761 = vst.msk [vmem:[#allocation5 + $0x1f] sm:$0x1] %vm522, %v2757
    %v2763 = vrot.slane %v2749, 1
    %v2764 = vperm.slane %v2749, 0
    %v2765 = vperm.slane %v2763, 0
    %2766 = vrot.lane.b32.xlu0 %v2764, 96
    %v2767 = vpop.permute.xlu0 %2766
    %2768 = vrot.lane.b32.xlu0 %v2765, 96
    %v2769 = vpop.permute.xlu0 %2768
    %2772 = vst.msk [vmem:[#allocation5] sm:$0x1] %vm535, %v2767
    %2773 = vst.msk [vmem:[#allocation5 + $0x10] sm:$0x1] %vm535, %v2769
    %v2774 = vld [vmem:[#allocation5] sm:$0xff]
    %v2775 = vld [vmem:[#allocation5 + $0x8] sm:$0xff]
    %v2776 = vld [vmem:[#allocation5 + $0x10] sm:$0xff]
    %v2777 = vld [vmem:[#allocation5 + $0x18] sm:$0xff]
    %v2778 = vld [vmem:[#allocation12] sm:$0xff]
    %v2779 = vld [vmem:[#allocation12 + $0x8] sm:$0xff]
    %v2780 = vld [vmem:[#allocation12 + $0x10] sm:$0xff]
    %v2781 = vld [vmem:[#allocation12 + $0x18] sm:$0xff]
    %v2782 = vld [vmem:[#allocation12 + $0x20] sm:$0xff]
    %v2783 = vld [vmem:[#allocation12 + $0x28] sm:$0xff]
    %v2784 = vld [vmem:[#allocation12 + $0x30] sm:$0xff]
    %v2785 = vld [vmem:[#allocation12 + $0x38] sm:$0xff]
    %v2786 = vpack.c.bf16 %v2775, %v2774
    %v2787 = vpack.c.bf16 %v2777, %v2776
    %v2788 = vld [vmem:[#allocation10] sm:$0xff]
    %v2789 = vld [vmem:[#allocation10 + $0x8] sm:$0xff]
    %v2790 = vld [vmem:[#allocation10 + $0x10] sm:$0xff]
    %v2791 = vld [vmem:[#allocation10 + $0x18] sm:$0xff]
    %v2792 = vld [vmem:[#allocation10 + $0x20] sm:$0xff]
    %v2793 = vld [vmem:[#allocation10 + $0x28] sm:$0xff]
    %v2794 = vld [vmem:[#allocation10 + $0x30] sm:$0xff]
    %v2795 = vld [vmem:[#allocation10 + $0x38] sm:$0xff]
    %v2796 = vld [vmem:[%s8] sm:$0x3]
    %v2798 = vperm.slane %v2796, 0
    %v2799 = vperm.slane %v2796, 1
    %v2810 = vunpack.c.l.b16 %v2788
    %v2811 = vunpack.c.h.b16 %v2788
    %v2812 = vunpack.c.l.b16 %v2789
    %v2813 = vunpack.c.h.b16 %v2789
    %v2814 = vunpack.c.l.b16 %v2790
    %v2815 = vunpack.c.h.b16 %v2790
    %v2816 = vunpack.c.l.b16 %v2791
    %v2817 = vunpack.c.h.b16 %v2791
    %v2818 = vunpack.c.l.b16 %v2792
    %v2819 = vunpack.c.h.b16 %v2792
    %v2820 = vunpack.c.l.b16 %v2793
    %v2821 = vunpack.c.h.b16 %v2793
    %v2822 = vunpack.c.l.b16 %v2794
    %v2823 = vunpack.c.h.b16 %v2794
    %v2824 = vunpack.c.l.b16 %v2795
    %v2825 = vunpack.c.h.b16 %v2795
    %v2826 = vpack.c.b16 %v2812, %v2810
    %v2827 = vpack.c.b16 %v2813, %v2811
    %v2828 = vpack.c.b16 %v2816, %v2814
    %v2829 = vpack.c.b16 %v2817, %v2815
    %v2830 = vpack.c.b16 %v2820, %v2818
    %v2831 = vpack.c.b16 %v2821, %v2819
    %v2832 = vpack.c.b16 %v2824, %v2822
    %v2833 = vpack.c.b16 %v2825, %v2823
    %v2843 = vsel %vm301, %v2786, 0
    %v2846 = vsel %vm301, %v2787, 0
    %2848 = vmatpush.bf16.msra.mxu0 0
    %2849 = vmatpush.bf16.msra.mxu0 0
    %2850 = vmatpush.bf16.msra.mxu0 0
    %2851 = vmatpush.bf16.msra.mxu0 0
    %2852 = vmatpush.bf16.msra.mxu0 %v2832
    %2853 = vmatpush.bf16.msra.mxu0 %v2830
    %2854 = vmatpush.bf16.msra.mxu0 %v2828
    %2855 = vmatpush.bf16.msra.mxu0 %v2826
    %2856 = vmatmul.bf16.gmra.mxu0 %v2843
    %v2857 = vpop.f32.mrf.mxu0
    %v2858 = vadd.f32 %v2798, %v2857
    %v2859 = vpop.f32.mrf.mxu0
    %v2860 = vadd.f32 %v2798, %v2859
    %2861 = vmatmul.bf16.gmra.mxu0 %v2846
    %v2862 = vpop.f32.mrf.mxu0
    %v2863 = vadd.f32 %v2798, %v2862
    %v2864 = vpop.f32.mrf.mxu0
    %v2865 = vadd.f32 %v2798, %v2864
    %2866 = vdwg.mxu0
    %2867 = vmatpush.bf16.msra.mxu0 0
    %2868 = vmatpush.bf16.msra.mxu0 0
    %2869 = vmatpush.bf16.msra.mxu0 0
    %2870 = vmatpush.bf16.msra.mxu0 0
    %2871 = vmatpush.bf16.msra.mxu0 %v2833
    %2872 = vmatpush.bf16.msra.mxu0 %v2831
    %2873 = vmatpush.bf16.msra.mxu0 %v2829
    %2874 = vmatpush.bf16.msra.mxu0 %v2827
    %2875 = vmatmul.bf16.gmra.mxu0 %v2843
    %v2876 = vpop.f32.mrf.mxu0
    %v2877 = vadd.f32 %v2799, %v2876
    %v2878 = vpop.f32.mrf.mxu0
    %v2879 = vadd.f32 %v2799, %v2878
    %2880 = vmatmul.bf16.gmra.mxu0 %v2846
    %v2881 = vpop.f32.mrf.mxu0
    %v2882 = vadd.f32 %v2799, %v2881
    %v2883 = vpop.f32.mrf.mxu0
    %v2884 = vadd.f32 %v2799, %v2883
    %2885 = vdwg.mxu0
    %2886 = vst [vmem:[#allocation4] sm:$0xff] %v2858
    %2887 = vst [vmem:[#allocation4 + $0x8] sm:$0xff] %v2877
    %2888 = vst [vmem:[#allocation4 + $0x10] sm:$0xff] %v2860
    %2889 = vst [vmem:[#allocation4 + $0x18] sm:$0xff] %v2879
    %2890 = vst [vmem:[#allocation4 + $0x20] sm:$0xff] %v2863
    %2891 = vst [vmem:[#allocation4 + $0x28] sm:$0xff] %v2882
    %2892 = vst [vmem:[#allocation4 + $0x30] sm:$0xff] %v2865
    %2893 = vst [vmem:[#allocation4 + $0x38] sm:$0xff] %v2884
    %v2902 = vunpack.c.l.b16 %v2778
    %v2903 = vunpack.c.h.b16 %v2778
    %v2904 = vunpack.c.l.b16 %v2779
    %v2905 = vunpack.c.h.b16 %v2779
    %v2906 = vunpack.c.l.b16 %v2780
    %v2907 = vunpack.c.h.b16 %v2780
    %v2908 = vunpack.c.l.b16 %v2781
    %v2909 = vunpack.c.h.b16 %v2781
    %v2910 = vunpack.c.l.b16 %v2782
    %v2911 = vunpack.c.h.b16 %v2782
    %v2912 = vunpack.c.l.b16 %v2783
    %v2913 = vunpack.c.h.b16 %v2783
    %v2914 = vunpack.c.l.b16 %v2784
    %v2915 = vunpack.c.h.b16 %v2784
    %v2916 = vunpack.c.l.b16 %v2785
    %v2917 = vunpack.c.h.b16 %v2785
    %v2918 = vpack.c.b16 %v2904, %v2902
    %v2919 = vpack.c.b16 %v2905, %v2903
    %v2920 = vpack.c.b16 %v2908, %v2906
    %v2921 = vpack.c.b16 %v2909, %v2907
    %v2922 = vpack.c.b16 %v2912, %v2910
    %v2923 = vpack.c.b16 %v2913, %v2911
    %v2924 = vpack.c.b16 %v2916, %v2914
    %v2925 = vpack.c.b16 %v2917, %v2915
    %2934 = vmatpush.bf16.msra.mxu0 0
    %2935 = vmatpush.bf16.msra.mxu0 0
    %2936 = vmatpush.bf16.msra.mxu0 0
    %2937 = vmatpush.bf16.msra.mxu0 0
    %2938 = vmatpush.bf16.msra.mxu0 %v2924
    %2939 = vmatpush.bf16.msra.mxu0 %v2922
    %2940 = vmatpush.bf16.msra.mxu0 %v2920
    %2941 = vmatpush.bf16.msra.mxu0 %v2918
    %2942 = vmatmul.bf16.gmra.mxu0 %v395
    %v2943 = vpop.f32.mrf.mxu0
    %v2944 = vadd.f32 0.0, %v2943
    %v2945 = vpop.f32.mrf.mxu0
    %2946 = vdwg.mxu0
    %2947 = vmatpush.bf16.msra.mxu0 0
    %2948 = vmatpush.bf16.msra.mxu0 0
    %2949 = vmatpush.bf16.msra.mxu0 0
    %2950 = vmatpush.bf16.msra.mxu0 0
    %2951 = vmatpush.bf16.msra.mxu0 %v2925
    %2952 = vmatpush.bf16.msra.mxu0 %v2923
    %2953 = vmatpush.bf16.msra.mxu0 %v2921
    %2954 = vmatpush.bf16.msra.mxu0 %v2919
    %2955 = vmatmul.bf16.gmra.mxu0 %v395
    %v2956 = vpop.f32.mrf.mxu0
    %v2957 = vadd.f32 0.0, %v2956
    %v2958 = vpop.f32.mrf.mxu0
    %2959 = vdwg.mxu0
    %v2960 = vld [vmem:[#allocation4] ss:$0 sm:$0xff]
    %v2961 = vld [vmem:[#allocation4 + $0x20] ss:$0 sm:$0xff]
    %v2962 = vld [vmem:[#allocation4 + $0x1f] ss:$0 sm:$0xff]
    %v2963 = vld [vmem:[#allocation4 + $0x3f] ss:$0 sm:$0xff]
    %v2966 = vsel %vm429, %v2961, %v2960
    %v2968 = vadd.f32 %v2944, %v2966
    %v2971 = vsel %vm429, %v2963, %v2962
    %v2973 = vadd.f32 %v2957, %v2971
    %v2974 = vxor.u32 %v2968, 2147483648
    %v2975 = vmul.f32 %v2974, 1.442695
    %v2976 = vpow.pop %v2975
    %v2977 = vadd.f32 %v2976, 1.0
    %v2978 = vrcp.pop %v2977
    %v2979 = vmul.f32 %v2977, %v2978
    %v2980 = vsub.f32 1.0, %v2979
    %v2981 = vmul.f32 %v2978, %v2980
    %v2982 = vadd.f32 %v2978, %v2981
    %vm2983 = vweird.f32 %v2977
    %vm2984 = vweird.f32 %v2978
    %vm2985 = vmor %vm2983, %vm2984
    %v2986 = vsel %vm2985, %v2978, %v2982
    %v2987 = vand.u32 2147483647, %v2977
    %vm2988 = vcmp.eq.f32.partialorder %v2987, 8.507059e+37
    %v2989 = vand.u32 %v2977, 2147483648
    %v2990 = vor.u32 1.1754944e-38, %v2989
    %v2991 = vsel %vm2988, %v2990, %v2986
    %v2992 = vmul.f32 1.0, %v2991
    %v2993 = vtanh.pop %v2968
    %v2994 = vmul.f32 %v2992, 0.0
    %2996 = vrot.lane.b32.xlu0 %v2993, 32
    %v2997 = vpop.permute.xlu0 %2996
    %v2999 = vmul.f32 %v2992, %v2997
    %3001 = vrot.lane.b32.xlu0 %v2999, 32
    %v3002 = vpop.permute.xlu0 %3001
    %v3004 = vadd.f32 %v2994, %v3002
    %v3005 = vtanh.pop %v3004
    %3007 = vrot.lane.b32.xlu0 %v3005, 32
    %v3008 = vpop.permute.xlu0 %3007
    %v3010 = vmul.f32 %v2992, %v3008
    %v3011 = vxor.u32 %v2973, 2147483648
    %v3012 = vmul.f32 %v3011, 1.442695
    %v3013 = vpow.pop %v3012
    %v3014 = vadd.f32 %v3013, 1.0
    %v3015 = vrcp.pop %v3014
    %v3016 = vmul.f32 %v3014, %v3015
    %v3017 = vsub.f32 1.0, %v3016
    %v3018 = vmul.f32 %v3015, %v3017
    %v3019 = vadd.f32 %v3015, %v3018
    %vm3020 = vweird.f32 %v3014
    %vm3021 = vweird.f32 %v3015
    %vm3022 = vmor %vm3020, %vm3021
    %v3023 = vsel %vm3022, %v3015, %v3019
    %v3024 = vand.u32 2147483647, %v3014
    %vm3025 = vcmp.eq.f32.partialorder %v3024, 8.507059e+37
    %v3026 = vand.u32 %v3014, 2147483648
    %v3027 = vor.u32 1.1754944e-38, %v3026
    %v3028 = vsel %vm3025, %v3027, %v3023
    %v3029 = vmul.f32 1.0, %v3028
    %v3030 = vtanh.pop %v2973
    %v3031 = vmul.f32 %v3029, 0.0
    %3033 = vrot.lane.b32.xlu0 %v3030, 32
    %v3034 = vpop.permute.xlu0 %3033
    %v3036 = vmul.f32 %v3029, %v3034
    %3038 = vrot.lane.b32.xlu0 %v3036, 32
    %v3039 = vpop.permute.xlu0 %3038
    %v3041 = vadd.f32 %v3031, %v3039
    %v3042 = vtanh.pop %v3041
    %3044 = vrot.lane.b32.xlu0 %v3042, 32
    %v3045 = vpop.permute.xlu0 %3044
    %v3047 = vmul.f32 %v3029, %v3045
    %v3049 = vrot.slane %v3010, 1
    %v3050 = vperm.slane %v3010, 0
    %v3051 = vperm.slane %v3049, 0
    %3052 = vrot.lane.b32.xlu0 %v3050, 64
    %v3053 = vpop.permute.xlu0 %3052
    %3054 = vrot.lane.b32.xlu0 %v3051, 64
    %v3055 = vpop.permute.xlu0 %3054
    %3058 = vst.msk [vmem:[#allocation6] sm:$0x1] %vm522, %v3053
    %3059 = vst.msk [vmem:[#allocation6 + $0x10] sm:$0x1] %vm522, %v3055
    %v3061 = vrot.slane %v3047, 1
    %v3062 = vperm.slane %v3047, 0
    %v3063 = vperm.slane %v3061, 0
    %3064 = vrot.lane.b32.xlu0 %v3062, 96
    %v3065 = vpop.permute.xlu0 %3064
    %3066 = vrot.lane.b32.xlu0 %v3063, 96
    %v3067 = vpop.permute.xlu0 %3066
    %3070 = vst.msk [vmem:[#allocation6 + $0xf] sm:$0x1] %vm535, %v3065
    %3071 = vst.msk [vmem:[#allocation6 + $0x1f] sm:$0x1] %vm535, %v3067
    %3072 = vrot.lane.b32.xlu0 %v3010, 64
    %v3073 = vpop.permute.xlu0 %3072
    %3075 = vrot.lane.b32.xlu0 %v3047, 96
    %v3076 = vpop.permute.xlu0 %3075
    %v3078 = vsel %vm544, %v3073, %v3076
    %v3079 = vpack.c.bf16 %v3078, %v3078
    %v3081 = vsel %vm301, %v3079, 0
    %3083 = vmatpush.bf16.msra.mxu0 0
    %3084 = vmatpush.bf16.msra.mxu0 0
    %3085 = vmatpush.bf16.msra.mxu0 0
    %3086 = vmatpush.bf16.msra.mxu0 0
    %3087 = vmatpush.bf16.msra.mxu0 %v2924
    %3088 = vmatpush.bf16.msra.mxu0 %v2922
    %3089 = vmatpush.bf16.msra.mxu0 %v2920
    %3090 = vmatpush.bf16.msra.mxu0 %v2918
    %3091 = vmatmul.bf16.gmra.mxu0 %v3081
    %v3092 = vpop.f32.mrf.mxu0
    %v3093 = vadd.f32 0.0, %v3092
    %v3094 = vpop.f32.mrf.mxu0
    %3095 = vdwg.mxu0
    %3096 = vmatpush.bf16.msra.mxu0 0
    %3097 = vmatpush.bf16.msra.mxu0 0
    %3098 = vmatpush.bf16.msra.mxu0 0
    %3099 = vmatpush.bf16.msra.mxu0 0
    %3100 = vmatpush.bf16.msra.mxu0 %v2925
    %3101 = vmatpush.bf16.msra.mxu0 %v2923
    %3102 = vmatpush.bf16.msra.mxu0 %v2921
    %3103 = vmatpush.bf16.msra.mxu0 %v2919
    %3104 = vmatmul.bf16.gmra.mxu0 %v3081
    %v3105 = vpop.f32.mrf.mxu0
    %v3106 = vadd.f32 0.0, %v3105
    %v3107 = vpop.f32.mrf.mxu0
    %3108 = vdwg.mxu0
    %v3109 = vld [vmem:[#allocation4 + $0x1] ss:$0 sm:$0xff]
    %v3110 = vld [vmem:[#allocation4 + $0x21] ss:$0 sm:$0xff]
    %v3111 = vld [vmem:[#allocation4 + $0x1e] ss:$0 sm:$0xff]
    %v3112 = vld [vmem:[#allocation4 + $0x3e] ss:$0 sm:$0xff]
    %v3115 = vsel %vm429, %v3110, %v3109
    %v3117 = vadd.f32 %v3093, %v3115
    %v3120 = vsel %vm429, %v3112, %v3111
    %v3122 = vadd.f32 %v3106, %v3120
    %v3123 = vxor.u32 %v3117, 2147483648
    %v3124 = vmul.f32 %v3123, 1.442695
    %v3125 = vpow.pop %v3124
    %v3126 = vadd.f32 %v3125, 1.0
    %v3127 = vrcp.pop %v3126
    %v3128 = vmul.f32 %v3126, %v3127
    %v3129 = vsub.f32 1.0, %v3128
    %v3130 = vmul.f32 %v3127, %v3129
    %v3131 = vadd.f32 %v3127, %v3130
    %vm3132 = vweird.f32 %v3126
    %vm3133 = vweird.f32 %v3127
    %vm3134 = vmor %vm3132, %vm3133
    %v3135 = vsel %vm3134, %v3127, %v3131
    %v3136 = vand.u32 2147483647, %v3126
    %vm3137 = vcmp.eq.f32.partialorder %v3136, 8.507059e+37
    %v3138 = vand.u32 %v3126, 2147483648
    %v3139 = vor.u32 1.1754944e-38, %v3138
    %v3140 = vsel %vm3137, %v3139, %v3135
    %v3141 = vmul.f32 1.0, %v3140
    %v3142 = vtanh.pop %v3117
    %v3143 = vmul.f32 %v3141, %v3004
    %3145 = vrot.lane.b32.xlu0 %v3142, 32
    %v3146 = vpop.permute.xlu0 %3145
    %v3148 = vmul.f32 %v3141, %v3146
    %3150 = vrot.lane.b32.xlu0 %v3148, 32
    %v3151 = vpop.permute.xlu0 %3150
    %v3153 = vadd.f32 %v3143, %v3151
    %v3154 = vtanh.pop %v3153
    %3156 = vrot.lane.b32.xlu0 %v3154, 32
    %v3157 = vpop.permute.xlu0 %3156
    %v3159 = vmul.f32 %v3141, %v3157
    %v3160 = vxor.u32 %v3122, 2147483648
    %v3161 = vmul.f32 %v3160, 1.442695
    %v3162 = vpow.pop %v3161
    %v3163 = vadd.f32 %v3162, 1.0
    %v3164 = vrcp.pop %v3163
    %v3165 = vmul.f32 %v3163, %v3164
    %v3166 = vsub.f32 1.0, %v3165
    %v3167 = vmul.f32 %v3164, %v3166
    %v3168 = vadd.f32 %v3164, %v3167
    %vm3169 = vweird.f32 %v3163
    %vm3170 = vweird.f32 %v3164
    %vm3171 = vmor %vm3169, %vm3170
    %v3172 = vsel %vm3171, %v3164, %v3168
    %v3173 = vand.u32 2147483647, %v3163
    %vm3174 = vcmp.eq.f32.partialorder %v3173, 8.507059e+37
    %v3175 = vand.u32 %v3163, 2147483648
    %v3176 = vor.u32 1.1754944e-38, %v3175
    %v3177 = vsel %vm3174, %v3176, %v3172
    %v3178 = vmul.f32 1.0, %v3177
    %v3179 = vtanh.pop %v3122
    %v3180 = vmul.f32 %v3178, %v3041
    %3182 = vrot.lane.b32.xlu0 %v3179, 32
    %v3183 = vpop.permute.xlu0 %3182
    %v3185 = vmul.f32 %v3178, %v3183
    %3187 = vrot.lane.b32.xlu0 %v3185, 32
    %v3188 = vpop.permute.xlu0 %3187
    %v3190 = vadd.f32 %v3180, %v3188
    %v3191 = vtanh.pop %v3190
    %3193 = vrot.lane.b32.xlu0 %v3191, 32
    %v3194 = vpop.permute.xlu0 %3193
    %v3196 = vmul.f32 %v3178, %v3194
    %v3198 = vrot.slane %v3159, 1
    %v3199 = vperm.slane %v3159, 0
    %v3200 = vperm.slane %v3198, 0
    %3201 = vrot.lane.b32.xlu0 %v3199, 64
    %v3202 = vpop.permute.xlu0 %3201
    %3203 = vrot.lane.b32.xlu0 %v3200, 64
    %v3204 = vpop.permute.xlu0 %3203
    %3207 = vst.msk [vmem:[#allocation6 + $0x1] sm:$0x1] %vm522, %v3202
    %3208 = vst.msk [vmem:[#allocation6 + $0x11] sm:$0x1] %vm522, %v3204
    %v3210 = vrot.slane %v3196, 1
    %v3211 = vperm.slane %v3196, 0
    %v3212 = vperm.slane %v3210, 0
    %3213 = vrot.lane.b32.xlu0 %v3211, 96
    %v3214 = vpop.permute.xlu0 %3213
    %3215 = vrot.lane.b32.xlu0 %v3212, 96
    %v3216 = vpop.permute.xlu0 %3215
    %3219 = vst.msk [vmem:[#allocation6 + $0xe] sm:$0x1] %vm535, %v3214
    %3220 = vst.msk [vmem:[#allocation6 + $0x1e] sm:$0x1] %vm535, %v3216
    %3221 = vrot.lane.b32.xlu0 %v3159, 64
    %v3222 = vpop.permute.xlu0 %3221
    %3224 = vrot.lane.b32.xlu0 %v3196, 96
    %v3225 = vpop.permute.xlu0 %3224
    %v3227 = vsel %vm544, %v3222, %v3225
    %v3228 = vpack.c.bf16 %v3227, %v3227
    %v3230 = vsel %vm301, %v3228, 0
    %3232 = vmatpush.bf16.msra.mxu0 0
    %3233 = vmatpush.bf16.msra.mxu0 0
    %3234 = vmatpush.bf16.msra.mxu0 0
    %3235 = vmatpush.bf16.msra.mxu0 0
    %3236 = vmatpush.bf16.msra.mxu0 %v2924
    %3237 = vmatpush.bf16.msra.mxu0 %v2922
    %3238 = vmatpush.bf16.msra.mxu0 %v2920
    %3239 = vmatpush.bf16.msra.mxu0 %v2918
    %3240 = vmatmul.bf16.gmra.mxu0 %v3230
    %v3241 = vpop.f32.mrf.mxu0
    %v3242 = vadd.f32 0.0, %v3241
    %v3243 = vpop.f32.mrf.mxu0
    %3244 = vdwg.mxu0
    %3245 = vmatpush.bf16.msra.mxu0 0
    %3246 = vmatpush.bf16.msra.mxu0 0
    %3247 = vmatpush.bf16.msra.mxu0 0
    %3248 = vmatpush.bf16.msra.mxu0 0
    %3249 = vmatpush.bf16.msra.mxu0 %v2925
    %3250 = vmatpush.bf16.msra.mxu0 %v2923
    %3251 = vmatpush.bf16.msra.mxu0 %v2921
    %3252 = vmatpush.bf16.msra.mxu0 %v2919
    %3253 = vmatmul.bf16.gmra.mxu0 %v3230
    %v3254 = vpop.f32.mrf.mxu0
    %v3255 = vadd.f32 0.0, %v3254
    %v3256 = vpop.f32.mrf.mxu0
    %3257 = vdwg.mxu0
    %v3258 = vld [vmem:[#allocation4 + $0x2] ss:$0 sm:$0xff]
    %v3259 = vld [vmem:[#allocation4 + $0x22] ss:$0 sm:$0xff]
    %v3260 = vld [vmem:[#allocation4 + $0x1d] ss:$0 sm:$0xff]
    %v3261 = vld [vmem:[#allocation4 + $0x3d] ss:$0 sm:$0xff]
    %v3264 = vsel %vm429, %v3259, %v3258
    %v3266 = vadd.f32 %v3242, %v3264
    %v3269 = vsel %vm429, %v3261, %v3260
    %v3271 = vadd.f32 %v3255, %v3269
    %v3272 = vxor.u32 %v3266, 2147483648
    %v3273 = vmul.f32 %v3272, 1.442695
    %v3274 = vpow.pop %v3273
    %v3275 = vadd.f32 %v3274, 1.0
    %v3276 = vrcp.pop %v3275
    %v3277 = vmul.f32 %v3275, %v3276
    %v3278 = vsub.f32 1.0, %v3277
    %v3279 = vmul.f32 %v3276, %v3278
    %v3280 = vadd.f32 %v3276, %v3279
    %vm3281 = vweird.f32 %v3275
    %vm3282 = vweird.f32 %v3276
    %vm3283 = vmor %vm3281, %vm3282
    %v3284 = vsel %vm3283, %v3276, %v3280
    %v3285 = vand.u32 2147483647, %v3275
    %vm3286 = vcmp.eq.f32.partialorder %v3285, 8.507059e+37
    %v3287 = vand.u32 %v3275, 2147483648
    %v3288 = vor.u32 1.1754944e-38, %v3287
    %v3289 = vsel %vm3286, %v3288, %v3284
    %v3290 = vmul.f32 1.0, %v3289
    %v3291 = vtanh.pop %v3266
    %v3292 = vmul.f32 %v3290, %v3153
    %3294 = vrot.lane.b32.xlu0 %v3291, 32
    %v3295 = vpop.permute.xlu0 %3294
    %v3297 = vmul.f32 %v3290, %v3295
    %3299 = vrot.lane.b32.xlu0 %v3297, 32
    %v3300 = vpop.permute.xlu0 %3299
    %v3302 = vadd.f32 %v3292, %v3300
    %v3303 = vtanh.pop %v3302
    %3305 = vrot.lane.b32.xlu0 %v3303, 32
    %v3306 = vpop.permute.xlu0 %3305
    %v3308 = vmul.f32 %v3290, %v3306
    %v3309 = vxor.u32 %v3271, 2147483648
    %v3310 = vmul.f32 %v3309, 1.442695
    %v3311 = vpow.pop %v3310
    %v3312 = vadd.f32 %v3311, 1.0
    %v3313 = vrcp.pop %v3312
    %v3314 = vmul.f32 %v3312, %v3313
    %v3315 = vsub.f32 1.0, %v3314
    %v3316 = vmul.f32 %v3313, %v3315
    %v3317 = vadd.f32 %v3313, %v3316
    %vm3318 = vweird.f32 %v3312
    %vm3319 = vweird.f32 %v3313
    %vm3320 = vmor %vm3318, %vm3319
    %v3321 = vsel %vm3320, %v3313, %v3317
    %v3322 = vand.u32 2147483647, %v3312
    %vm3323 = vcmp.eq.f32.partialorder %v3322, 8.507059e+37
    %v3324 = vand.u32 %v3312, 2147483648
    %v3325 = vor.u32 1.1754944e-38, %v3324
    %v3326 = vsel %vm3323, %v3325, %v3321
    %v3327 = vmul.f32 1.0, %v3326
    %v3328 = vtanh.pop %v3271
    %v3329 = vmul.f32 %v3327, %v3190
    %3331 = vrot.lane.b32.xlu0 %v3328, 32
    %v3332 = vpop.permute.xlu0 %3331
    %v3334 = vmul.f32 %v3327, %v3332
    %3336 = vrot.lane.b32.xlu0 %v3334, 32
    %v3337 = vpop.permute.xlu0 %3336
    %v3339 = vadd.f32 %v3329, %v3337
    %v3340 = vtanh.pop %v3339
    %3342 = vrot.lane.b32.xlu0 %v3340, 32
    %v3343 = vpop.permute.xlu0 %3342
    %v3345 = vmul.f32 %v3327, %v3343
    %v3347 = vrot.slane %v3308, 1
    %v3348 = vperm.slane %v3308, 0
    %v3349 = vperm.slane %v3347, 0
    %3350 = vrot.lane.b32.xlu0 %v3348, 64
    %v3351 = vpop.permute.xlu0 %3350
    %3352 = vrot.lane.b32.xlu0 %v3349, 64
    %v3353 = vpop.permute.xlu0 %3352
    %3356 = vst.msk [vmem:[#allocation6 + $0x2] sm:$0x1] %vm522, %v3351
    %3357 = vst.msk [vmem:[#allocation6 + $0x12] sm:$0x1] %vm522, %v3353
    %v3359 = vrot.slane %v3345, 1
    %v3360 = vperm.slane %v3345, 0
    %v3361 = vperm.slane %v3359, 0
    %3362 = vrot.lane.b32.xlu0 %v3360, 96
    %v3363 = vpop.permute.xlu0 %3362
    %3364 = vrot.lane.b32.xlu0 %v3361, 96
    %v3365 = vpop.permute.xlu0 %3364
    %3368 = vst.msk [vmem:[#allocation6 + $0xd] sm:$0x1] %vm535, %v3363
    %3369 = vst.msk [vmem:[#allocation6 + $0x1d] sm:$0x1] %vm535, %v3365
    %3370 = vrot.lane.b32.xlu0 %v3308, 64
    %v3371 = vpop.permute.xlu0 %3370
    %3373 = vrot.lane.b32.xlu0 %v3345, 96
    %v3374 = vpop.permute.xlu0 %3373
    %v3376 = vsel %vm544, %v3371, %v3374
    %v3377 = vpack.c.bf16 %v3376, %v3376
    %v3379 = vsel %vm301, %v3377, 0
    %3381 = vmatpush.bf16.msra.mxu0 0
    %3382 = vmatpush.bf16.msra.mxu0 0
    %3383 = vmatpush.bf16.msra.mxu0 0
    %3384 = vmatpush.bf16.msra.mxu0 0
    %3385 = vmatpush.bf16.msra.mxu0 %v2924
    %3386 = vmatpush.bf16.msra.mxu0 %v2922
    %3387 = vmatpush.bf16.msra.mxu0 %v2920
    %3388 = vmatpush.bf16.msra.mxu0 %v2918
    %3389 = vmatmul.bf16.gmra.mxu0 %v3379
    %v3390 = vpop.f32.mrf.mxu0
    %v3391 = vadd.f32 0.0, %v3390
    %v3392 = vpop.f32.mrf.mxu0
    %3393 = vdwg.mxu0
    %3394 = vmatpush.bf16.msra.mxu0 0
    %3395 = vmatpush.bf16.msra.mxu0 0
    %3396 = vmatpush.bf16.msra.mxu0 0
    %3397 = vmatpush.bf16.msra.mxu0 0
    %3398 = vmatpush.bf16.msra.mxu0 %v2925
    %3399 = vmatpush.bf16.msra.mxu0 %v2923
    %3400 = vmatpush.bf16.msra.mxu0 %v2921
    %3401 = vmatpush.bf16.msra.mxu0 %v2919
    %3402 = vmatmul.bf16.gmra.mxu0 %v3379
    %v3403 = vpop.f32.mrf.mxu0
    %v3404 = vadd.f32 0.0, %v3403
    %v3405 = vpop.f32.mrf.mxu0
    %3406 = vdwg.mxu0
    %v3407 = vld [vmem:[#allocation4 + $0x3] ss:$0 sm:$0xff]
    %v3408 = vld [vmem:[#allocation4 + $0x23] ss:$0 sm:$0xff]
    %v3409 = vld [vmem:[#allocation4 + $0x1c] ss:$0 sm:$0xff]
    %v3410 = vld [vmem:[#allocation4 + $0x3c] ss:$0 sm:$0xff]
    %v3413 = vsel %vm429, %v3408, %v3407
    %v3415 = vadd.f32 %v3391, %v3413
    %v3418 = vsel %vm429, %v3410, %v3409
    %v3420 = vadd.f32 %v3404, %v3418
    %v3421 = vxor.u32 %v3415, 2147483648
    %v3422 = vmul.f32 %v3421, 1.442695
    %v3423 = vpow.pop %v3422
    %v3424 = vadd.f32 %v3423, 1.0
    %v3425 = vrcp.pop %v3424
    %v3426 = vmul.f32 %v3424, %v3425
    %v3427 = vsub.f32 1.0, %v3426
    %v3428 = vmul.f32 %v3425, %v3427
    %v3429 = vadd.f32 %v3425, %v3428
    %vm3430 = vweird.f32 %v3424
    %vm3431 = vweird.f32 %v3425
    %vm3432 = vmor %vm3430, %vm3431
    %v3433 = vsel %vm3432, %v3425, %v3429
    %v3434 = vand.u32 2147483647, %v3424
    %vm3435 = vcmp.eq.f32.partialorder %v3434, 8.507059e+37
    %v3436 = vand.u32 %v3424, 2147483648
    %v3437 = vor.u32 1.1754944e-38, %v3436
    %v3438 = vsel %vm3435, %v3437, %v3433
    %v3439 = vmul.f32 1.0, %v3438
    %v3440 = vtanh.pop %v3415
    %v3441 = vmul.f32 %v3439, %v3302
    %3443 = vrot.lane.b32.xlu0 %v3440, 32
    %v3444 = vpop.permute.xlu0 %3443
    %v3446 = vmul.f32 %v3439, %v3444
    %3448 = vrot.lane.b32.xlu0 %v3446, 32
    %v3449 = vpop.permute.xlu0 %3448
    %v3451 = vadd.f32 %v3441, %v3449
    %v3452 = vtanh.pop %v3451
    %3454 = vrot.lane.b32.xlu0 %v3452, 32
    %v3455 = vpop.permute.xlu0 %3454
    %v3457 = vmul.f32 %v3439, %v3455
    %v3458 = vxor.u32 %v3420, 2147483648
    %v3459 = vmul.f32 %v3458, 1.442695
    %v3460 = vpow.pop %v3459
    %v3461 = vadd.f32 %v3460, 1.0
    %v3462 = vrcp.pop %v3461
    %v3463 = vmul.f32 %v3461, %v3462
    %v3464 = vsub.f32 1.0, %v3463
    %v3465 = vmul.f32 %v3462, %v3464
    %v3466 = vadd.f32 %v3462, %v3465
    %vm3467 = vweird.f32 %v3461
    %vm3468 = vweird.f32 %v3462
    %vm3469 = vmor %vm3467, %vm3468
    %v3470 = vsel %vm3469, %v3462, %v3466
    %v3471 = vand.u32 2147483647, %v3461
    %vm3472 = vcmp.eq.f32.partialorder %v3471, 8.507059e+37
    %v3473 = vand.u32 %v3461, 2147483648
    %v3474 = vor.u32 1.1754944e-38, %v3473
    %v3475 = vsel %vm3472, %v3474, %v3470
    %v3476 = vmul.f32 1.0, %v3475
    %v3477 = vtanh.pop %v3420
    %v3478 = vmul.f32 %v3476, %v3339
    %3480 = vrot.lane.b32.xlu0 %v3477, 32
    %v3481 = vpop.permute.xlu0 %3480
    %v3483 = vmul.f32 %v3476, %v3481
    %3485 = vrot.lane.b32.xlu0 %v3483, 32
    %v3486 = vpop.permute.xlu0 %3485
    %v3488 = vadd.f32 %v3478, %v3486
    %v3489 = vtanh.pop %v3488
    %3491 = vrot.lane.b32.xlu0 %v3489, 32
    %v3492 = vpop.permute.xlu0 %3491
    %v3494 = vmul.f32 %v3476, %v3492
    %v3496 = vrot.slane %v3457, 1
    %v3497 = vperm.slane %v3457, 0
    %v3498 = vperm.slane %v3496, 0
    %3499 = vrot.lane.b32.xlu0 %v3497, 64
    %v3500 = vpop.permute.xlu0 %3499
    %3501 = vrot.lane.b32.xlu0 %v3498, 64
    %v3502 = vpop.permute.xlu0 %3501
    %3505 = vst.msk [vmem:[#allocation6 + $0x3] sm:$0x1] %vm522, %v3500
    %3506 = vst.msk [vmem:[#allocation6 + $0x13] sm:$0x1] %vm522, %v3502
    %v3508 = vrot.slane %v3494, 1
    %v3509 = vperm.slane %v3494, 0
    %v3510 = vperm.slane %v3508, 0
    %3511 = vrot.lane.b32.xlu0 %v3509, 96
    %v3512 = vpop.permute.xlu0 %3511
    %3513 = vrot.lane.b32.xlu0 %v3510, 96
    %v3514 = vpop.permute.xlu0 %3513
    %3517 = vst.msk [vmem:[#allocation6 + $0xc] sm:$0x1] %vm535, %v3512
    %3518 = vst.msk [vmem:[#allocation6 + $0x1c] sm:$0x1] %vm535, %v3514
    %3519 = vrot.lane.b32.xlu0 %v3457, 64
    %v3520 = vpop.permute.xlu0 %3519
    %3522 = vrot.lane.b32.xlu0 %v3494, 96
    %v3523 = vpop.permute.xlu0 %3522
    %v3525 = vsel %vm544, %v3520, %v3523
    %v3526 = vpack.c.bf16 %v3525, %v3525
    %v3528 = vsel %vm301, %v3526, 0
    %3530 = vmatpush.bf16.msra.mxu0 0
    %3531 = vmatpush.bf16.msra.mxu0 0
    %3532 = vmatpush.bf16.msra.mxu0 0
    %3533 = vmatpush.bf16.msra.mxu0 0
    %3534 = vmatpush.bf16.msra.mxu0 %v2924
    %3535 = vmatpush.bf16.msra.mxu0 %v2922
    %3536 = vmatpush.bf16.msra.mxu0 %v2920
    %3537 = vmatpush.bf16.msra.mxu0 %v2918
    %3538 = vmatmul.bf16.gmra.mxu0 %v3528
    %v3539 = vpop.f32.mrf.mxu0
    %v3540 = vadd.f32 0.0, %v3539
    %v3541 = vpop.f32.mrf.mxu0
    %3542 = vdwg.mxu0
    %3543 = vmatpush.bf16.msra.mxu0 0
    %3544 = vmatpush.bf16.msra.mxu0 0
    %3545 = vmatpush.bf16.msra.mxu0 0
    %3546 = vmatpush.bf16.msra.mxu0 0
    %3547 = vmatpush.bf16.msra.mxu0 %v2925
    %3548 = vmatpush.bf16.msra.mxu0 %v2923
    %3549 = vmatpush.bf16.msra.mxu0 %v2921
    %3550 = vmatpush.bf16.msra.mxu0 %v2919
    %3551 = vmatmul.bf16.gmra.mxu0 %v3528
    %v3552 = vpop.f32.mrf.mxu0
    %v3553 = vadd.f32 0.0, %v3552
    %v3554 = vpop.f32.mrf.mxu0
    %3555 = vdwg.mxu0
    %v3556 = vld [vmem:[#allocation4 + $0x4] ss:$0 sm:$0xff]
    %v3557 = vld [vmem:[#allocation4 + $0x24] ss:$0 sm:$0xff]
    %v3558 = vld [vmem:[#allocation4 + $0x1b] ss:$0 sm:$0xff]
    %v3559 = vld [vmem:[#allocation4 + $0x3b] ss:$0 sm:$0xff]
    %v3562 = vsel %vm429, %v3557, %v3556
    %v3564 = vadd.f32 %v3540, %v3562
    %v3567 = vsel %vm429, %v3559, %v3558
    %v3569 = vadd.f32 %v3553, %v3567
    %v3570 = vxor.u32 %v3564, 2147483648
    %v3571 = vmul.f32 %v3570, 1.442695
    %v3572 = vpow.pop %v3571
    %v3573 = vadd.f32 %v3572, 1.0
    %v3574 = vrcp.pop %v3573
    %v3575 = vmul.f32 %v3573, %v3574
    %v3576 = vsub.f32 1.0, %v3575
    %v3577 = vmul.f32 %v3574, %v3576
    %v3578 = vadd.f32 %v3574, %v3577
    %vm3579 = vweird.f32 %v3573
    %vm3580 = vweird.f32 %v3574
    %vm3581 = vmor %vm3579, %vm3580
    %v3582 = vsel %vm3581, %v3574, %v3578
    %v3583 = vand.u32 2147483647, %v3573
    %vm3584 = vcmp.eq.f32.partialorder %v3583, 8.507059e+37
    %v3585 = vand.u32 %v3573, 2147483648
    %v3586 = vor.u32 1.1754944e-38, %v3585
    %v3587 = vsel %vm3584, %v3586, %v3582
    %v3588 = vmul.f32 1.0, %v3587
    %v3589 = vtanh.pop %v3564
    %v3590 = vmul.f32 %v3588, %v3451
    %3592 = vrot.lane.b32.xlu0 %v3589, 32
    %v3593 = vpop.permute.xlu0 %3592
    %v3595 = vmul.f32 %v3588, %v3593
    %3597 = vrot.lane.b32.xlu0 %v3595, 32
    %v3598 = vpop.permute.xlu0 %3597
    %v3600 = vadd.f32 %v3590, %v3598
    %v3601 = vtanh.pop %v3600
    %3603 = vrot.lane.b32.xlu0 %v3601, 32
    %v3604 = vpop.permute.xlu0 %3603
    %v3606 = vmul.f32 %v3588, %v3604
    %v3607 = vxor.u32 %v3569, 2147483648
    %v3608 = vmul.f32 %v3607, 1.442695
    %v3609 = vpow.pop %v3608
    %v3610 = vadd.f32 %v3609, 1.0
    %v3611 = vrcp.pop %v3610
    %v3612 = vmul.f32 %v3610, %v3611
    %v3613 = vsub.f32 1.0, %v3612
    %v3614 = vmul.f32 %v3611, %v3613
    %v3615 = vadd.f32 %v3611, %v3614
    %vm3616 = vweird.f32 %v3610
    %vm3617 = vweird.f32 %v3611
    %vm3618 = vmor %vm3616, %vm3617
    %v3619 = vsel %vm3618, %v3611, %v3615
    %v3620 = vand.u32 2147483647, %v3610
    %vm3621 = vcmp.eq.f32.partialorder %v3620, 8.507059e+37
    %v3622 = vand.u32 %v3610, 2147483648
    %v3623 = vor.u32 1.1754944e-38, %v3622
    %v3624 = vsel %vm3621, %v3623, %v3619
    %v3625 = vmul.f32 1.0, %v3624
    %v3626 = vtanh.pop %v3569
    %v3627 = vmul.f32 %v3625, %v3488
    %3629 = vrot.lane.b32.xlu0 %v3626, 32
    %v3630 = vpop.permute.xlu0 %3629
    %v3632 = vmul.f32 %v3625, %v3630
    %3634 = vrot.lane.b32.xlu0 %v3632, 32
    %v3635 = vpop.permute.xlu0 %3634
    %v3637 = vadd.f32 %v3627, %v3635
    %v3638 = vtanh.pop %v3637
    %3640 = vrot.lane.b32.xlu0 %v3638, 32
    %v3641 = vpop.permute.xlu0 %3640
    %v3643 = vmul.f32 %v3625, %v3641
    %v3645 = vrot.slane %v3606, 1
    %v3646 = vperm.slane %v3606, 0
    %v3647 = vperm.slane %v3645, 0
    %3648 = vrot.lane.b32.xlu0 %v3646, 64
    %v3649 = vpop.permute.xlu0 %3648
    %3650 = vrot.lane.b32.xlu0 %v3647, 64
    %v3651 = vpop.permute.xlu0 %3650
    %3654 = vst.msk [vmem:[#allocation6 + $0x4] sm:$0x1] %vm522, %v3649
    %3655 = vst.msk [vmem:[#allocation6 + $0x14] sm:$0x1] %vm522, %v3651
    %v3657 = vrot.slane %v3643, 1
    %v3658 = vperm.slane %v3643, 0
    %v3659 = vperm.slane %v3657, 0
    %3660 = vrot.lane.b32.xlu0 %v3658, 96
    %v3661 = vpop.permute.xlu0 %3660
    %3662 = vrot.lane.b32.xlu0 %v3659, 96
    %v3663 = vpop.permute.xlu0 %3662
    %3666 = vst.msk [vmem:[#allocation6 + $0xb] sm:$0x1] %vm535, %v3661
    %3667 = vst.msk [vmem:[#allocation6 + $0x1b] sm:$0x1] %vm535, %v3663
    %3668 = vrot.lane.b32.xlu0 %v3606, 64
    %v3669 = vpop.permute.xlu0 %3668
    %3671 = vrot.lane.b32.xlu0 %v3643, 96
    %v3672 = vpop.permute.xlu0 %3671
    %v3674 = vsel %vm544, %v3669, %v3672
    %v3675 = vpack.c.bf16 %v3674, %v3674
    %v3677 = vsel %vm301, %v3675, 0
    %3679 = vmatpush.bf16.msra.mxu0 0
    %3680 = vmatpush.bf16.msra.mxu0 0
    %3681 = vmatpush.bf16.msra.mxu0 0
    %3682 = vmatpush.bf16.msra.mxu0 0
    %3683 = vmatpush.bf16.msra.mxu0 %v2924
    %3684 = vmatpush.bf16.msra.mxu0 %v2922
    %3685 = vmatpush.bf16.msra.mxu0 %v2920
    %3686 = vmatpush.bf16.msra.mxu0 %v2918
    %3687 = vmatmul.bf16.gmra.mxu0 %v3677
    %v3688 = vpop.f32.mrf.mxu0
    %v3689 = vadd.f32 0.0, %v3688
    %v3690 = vpop.f32.mrf.mxu0
    %3691 = vdwg.mxu0
    %3692 = vmatpush.bf16.msra.mxu0 0
    %3693 = vmatpush.bf16.msra.mxu0 0
    %3694 = vmatpush.bf16.msra.mxu0 0
    %3695 = vmatpush.bf16.msra.mxu0 0
    %3696 = vmatpush.bf16.msra.mxu0 %v2925
    %3697 = vmatpush.bf16.msra.mxu0 %v2923
    %3698 = vmatpush.bf16.msra.mxu0 %v2921
    %3699 = vmatpush.bf16.msra.mxu0 %v2919
    %3700 = vmatmul.bf16.gmra.mxu0 %v3677
    %v3701 = vpop.f32.mrf.mxu0
    %v3702 = vadd.f32 0.0, %v3701
    %v3703 = vpop.f32.mrf.mxu0
    %3704 = vdwg.mxu0
    %v3705 = vld [vmem:[#allocation4 + $0x5] ss:$0 sm:$0xff]
    %v3706 = vld [vmem:[#allocation4 + $0x25] ss:$0 sm:$0xff]
    %v3707 = vld [vmem:[#allocation4 + $0x1a] ss:$0 sm:$0xff]
    %v3708 = vld [vmem:[#allocation4 + $0x3a] ss:$0 sm:$0xff]
    %v3711 = vsel %vm429, %v3706, %v3705
    %v3713 = vadd.f32 %v3689, %v3711
    %v3716 = vsel %vm429, %v3708, %v3707
    %v3718 = vadd.f32 %v3702, %v3716
    %v3719 = vxor.u32 %v3713, 2147483648
    %v3720 = vmul.f32 %v3719, 1.442695
    %v3721 = vpow.pop %v3720
    %v3722 = vadd.f32 %v3721, 1.0
    %v3723 = vrcp.pop %v3722
    %v3724 = vmul.f32 %v3722, %v3723
    %v3725 = vsub.f32 1.0, %v3724
    %v3726 = vmul.f32 %v3723, %v3725
    %v3727 = vadd.f32 %v3723, %v3726
    %vm3728 = vweird.f32 %v3722
    %vm3729 = vweird.f32 %v3723
    %vm3730 = vmor %vm3728, %vm3729
    %v3731 = vsel %vm3730, %v3723, %v3727
    %v3732 = vand.u32 2147483647, %v3722
    %vm3733 = vcmp.eq.f32.partialorder %v3732, 8.507059e+37
    %v3734 = vand.u32 %v3722, 2147483648
    %v3735 = vor.u32 1.1754944e-38, %v3734
    %v3736 = vsel %vm3733, %v3735, %v3731
    %v3737 = vmul.f32 1.0, %v3736
    %v3738 = vtanh.pop %v3713
    %v3739 = vmul.f32 %v3737, %v3600
    %3741 = vrot.lane.b32.xlu0 %v3738, 32
    %v3742 = vpop.permute.xlu0 %3741
    %v3744 = vmul.f32 %v3737, %v3742
    %3746 = vrot.lane.b32.xlu0 %v3744, 32
    %v3747 = vpop.permute.xlu0 %3746
    %v3749 = vadd.f32 %v3739, %v3747
    %v3750 = vtanh.pop %v3749
    %3752 = vrot.lane.b32.xlu0 %v3750, 32
    %v3753 = vpop.permute.xlu0 %3752
    %v3755 = vmul.f32 %v3737, %v3753
    %v3756 = vxor.u32 %v3718, 2147483648
    %v3757 = vmul.f32 %v3756, 1.442695
    %v3758 = vpow.pop %v3757
    %v3759 = vadd.f32 %v3758, 1.0
    %v3760 = vrcp.pop %v3759
    %v3761 = vmul.f32 %v3759, %v3760
    %v3762 = vsub.f32 1.0, %v3761
    %v3763 = vmul.f32 %v3760, %v3762
    %v3764 = vadd.f32 %v3760, %v3763
    %vm3765 = vweird.f32 %v3759
    %vm3766 = vweird.f32 %v3760
    %vm3767 = vmor %vm3765, %vm3766
    %v3768 = vsel %vm3767, %v3760, %v3764
    %v3769 = vand.u32 2147483647, %v3759
    %vm3770 = vcmp.eq.f32.partialorder %v3769, 8.507059e+37
    %v3771 = vand.u32 %v3759, 2147483648
    %v3772 = vor.u32 1.1754944e-38, %v3771
    %v3773 = vsel %vm3770, %v3772, %v3768
    %v3774 = vmul.f32 1.0, %v3773
    %v3775 = vtanh.pop %v3718
    %v3776 = vmul.f32 %v3774, %v3637
    %3778 = vrot.lane.b32.xlu0 %v3775, 32
    %v3779 = vpop.permute.xlu0 %3778
    %v3781 = vmul.f32 %v3774, %v3779
    %3783 = vrot.lane.b32.xlu0 %v3781, 32
    %v3784 = vpop.permute.xlu0 %3783
    %v3786 = vadd.f32 %v3776, %v3784
    %v3787 = vtanh.pop %v3786
    %3789 = vrot.lane.b32.xlu0 %v3787, 32
    %v3790 = vpop.permute.xlu0 %3789
    %v3792 = vmul.f32 %v3774, %v3790
    %v3794 = vrot.slane %v3755, 1
    %v3795 = vperm.slane %v3755, 0
    %v3796 = vperm.slane %v3794, 0
    %3797 = vrot.lane.b32.xlu0 %v3795, 64
    %v3798 = vpop.permute.xlu0 %3797
    %3799 = vrot.lane.b32.xlu0 %v3796, 64
    %v3800 = vpop.permute.xlu0 %3799
    %3803 = vst.msk [vmem:[#allocation6 + $0x5] sm:$0x1] %vm522, %v3798
    %3804 = vst.msk [vmem:[#allocation6 + $0x15] sm:$0x1] %vm522, %v3800
    %v3806 = vrot.slane %v3792, 1
    %v3807 = vperm.slane %v3792, 0
    %v3808 = vperm.slane %v3806, 0
    %3809 = vrot.lane.b32.xlu0 %v3807, 96
    %v3810 = vpop.permute.xlu0 %3809
    %3811 = vrot.lane.b32.xlu0 %v3808, 96
    %v3812 = vpop.permute.xlu0 %3811
    %3815 = vst.msk [vmem:[#allocation6 + $0xa] sm:$0x1] %vm535, %v3810
    %3816 = vst.msk [vmem:[#allocation6 + $0x1a] sm:$0x1] %vm535, %v3812
    %3817 = vrot.lane.b32.xlu0 %v3755, 64
    %v3818 = vpop.permute.xlu0 %3817
    %3820 = vrot.lane.b32.xlu0 %v3792, 96
    %v3821 = vpop.permute.xlu0 %3820
    %v3823 = vsel %vm544, %v3818, %v3821
    %v3824 = vpack.c.bf16 %v3823, %v3823
    %v3826 = vsel %vm301, %v3824, 0
    %3828 = vmatpush.bf16.msra.mxu0 0
    %3829 = vmatpush.bf16.msra.mxu0 0
    %3830 = vmatpush.bf16.msra.mxu0 0
    %3831 = vmatpush.bf16.msra.mxu0 0
    %3832 = vmatpush.bf16.msra.mxu0 %v2924
    %3833 = vmatpush.bf16.msra.mxu0 %v2922
    %3834 = vmatpush.bf16.msra.mxu0 %v2920
    %3835 = vmatpush.bf16.msra.mxu0 %v2918
    %3836 = vmatmul.bf16.gmra.mxu0 %v3826
    %v3837 = vpop.f32.mrf.mxu0
    %v3838 = vadd.f32 0.0, %v3837
    %v3839 = vpop.f32.mrf.mxu0
    %3840 = vdwg.mxu0
    %3841 = vmatpush.bf16.msra.mxu0 0
    %3842 = vmatpush.bf16.msra.mxu0 0
    %3843 = vmatpush.bf16.msra.mxu0 0
    %3844 = vmatpush.bf16.msra.mxu0 0
    %3845 = vmatpush.bf16.msra.mxu0 %v2925
    %3846 = vmatpush.bf16.msra.mxu0 %v2923
    %3847 = vmatpush.bf16.msra.mxu0 %v2921
    %3848 = vmatpush.bf16.msra.mxu0 %v2919
    %3849 = vmatmul.bf16.gmra.mxu0 %v3826
    %v3850 = vpop.f32.mrf.mxu0
    %v3851 = vadd.f32 0.0, %v3850
    %v3852 = vpop.f32.mrf.mxu0
    %3853 = vdwg.mxu0
    %v3854 = vld [vmem:[#allocation4 + $0x6] ss:$0 sm:$0xff]
    %v3855 = vld [vmem:[#allocation4 + $0x26] ss:$0 sm:$0xff]
    %v3856 = vld [vmem:[#allocation4 + $0x19] ss:$0 sm:$0xff]
    %v3857 = vld [vmem:[#allocation4 + $0x39] ss:$0 sm:$0xff]
    %v3860 = vsel %vm429, %v3855, %v3854
    %v3862 = vadd.f32 %v3838, %v3860
    %v3865 = vsel %vm429, %v3857, %v3856
    %v3867 = vadd.f32 %v3851, %v3865
    %v3868 = vxor.u32 %v3862, 2147483648
    %v3869 = vmul.f32 %v3868, 1.442695
    %v3870 = vpow.pop %v3869
    %v3871 = vadd.f32 %v3870, 1.0
    %v3872 = vrcp.pop %v3871
    %v3873 = vmul.f32 %v3871, %v3872
    %v3874 = vsub.f32 1.0, %v3873
    %v3875 = vmul.f32 %v3872, %v3874
    %v3876 = vadd.f32 %v3872, %v3875
    %vm3877 = vweird.f32 %v3871
    %vm3878 = vweird.f32 %v3872
    %vm3879 = vmor %vm3877, %vm3878
    %v3880 = vsel %vm3879, %v3872, %v3876
    %v3881 = vand.u32 2147483647, %v3871
    %vm3882 = vcmp.eq.f32.partialorder %v3881, 8.507059e+37
    %v3883 = vand.u32 %v3871, 2147483648
    %v3884 = vor.u32 1.1754944e-38, %v3883
    %v3885 = vsel %vm3882, %v3884, %v3880
    %v3886 = vmul.f32 1.0, %v3885
    %v3887 = vtanh.pop %v3862
    %v3888 = vmul.f32 %v3886, %v3749
    %3890 = vrot.lane.b32.xlu0 %v3887, 32
    %v3891 = vpop.permute.xlu0 %3890
    %v3893 = vmul.f32 %v3886, %v3891
    %3895 = vrot.lane.b32.xlu0 %v3893, 32
    %v3896 = vpop.permute.xlu0 %3895
    %v3898 = vadd.f32 %v3888, %v3896
    %v3899 = vtanh.pop %v3898
    %3901 = vrot.lane.b32.xlu0 %v3899, 32
    %v3902 = vpop.permute.xlu0 %3901
    %v3904 = vmul.f32 %v3886, %v3902
    %v3905 = vxor.u32 %v3867, 2147483648
    %v3906 = vmul.f32 %v3905, 1.442695
    %v3907 = vpow.pop %v3906
    %v3908 = vadd.f32 %v3907, 1.0
    %v3909 = vrcp.pop %v3908
    %v3910 = vmul.f32 %v3908, %v3909
    %v3911 = vsub.f32 1.0, %v3910
    %v3912 = vmul.f32 %v3909, %v3911
    %v3913 = vadd.f32 %v3909, %v3912
    %vm3914 = vweird.f32 %v3908
    %vm3915 = vweird.f32 %v3909
    %vm3916 = vmor %vm3914, %vm3915
    %v3917 = vsel %vm3916, %v3909, %v3913
    %v3918 = vand.u32 2147483647, %v3908
    %vm3919 = vcmp.eq.f32.partialorder %v3918, 8.507059e+37
    %v3920 = vand.u32 %v3908, 2147483648
    %v3921 = vor.u32 1.1754944e-38, %v3920
    %v3922 = vsel %vm3919, %v3921, %v3917
    %v3923 = vmul.f32 1.0, %v3922
    %v3924 = vtanh.pop %v3867
    %v3925 = vmul.f32 %v3923, %v3786
    %3927 = vrot.lane.b32.xlu0 %v3924, 32
    %v3928 = vpop.permute.xlu0 %3927
    %v3930 = vmul.f32 %v3923, %v3928
    %3932 = vrot.lane.b32.xlu0 %v3930, 32
    %v3933 = vpop.permute.xlu0 %3932
    %v3935 = vadd.f32 %v3925, %v3933
    %v3936 = vtanh.pop %v3935
    %3938 = vrot.lane.b32.xlu0 %v3936, 32
    %v3939 = vpop.permute.xlu0 %3938
    %v3941 = vmul.f32 %v3923, %v3939
    %v3943 = vrot.slane %v3904, 1
    %v3944 = vperm.slane %v3904, 0
    %v3945 = vperm.slane %v3943, 0
    %3946 = vrot.lane.b32.xlu0 %v3944, 64
    %v3947 = vpop.permute.xlu0 %3946
    %3948 = vrot.lane.b32.xlu0 %v3945, 64
    %v3949 = vpop.permute.xlu0 %3948
    %3952 = vst.msk [vmem:[#allocation6 + $0x6] sm:$0x1] %vm522, %v3947
    %3953 = vst.msk [vmem:[#allocation6 + $0x16] sm:$0x1] %vm522, %v3949
    %v3955 = vrot.slane %v3941, 1
    %v3956 = vperm.slane %v3941, 0
    %v3957 = vperm.slane %v3955, 0
    %3958 = vrot.lane.b32.xlu0 %v3956, 96
    %v3959 = vpop.permute.xlu0 %3958
    %3960 = vrot.lane.b32.xlu0 %v3957, 96
    %v3961 = vpop.permute.xlu0 %3960
    %3964 = vst.msk [vmem:[#allocation6 + $0x9] sm:$0x1] %vm535, %v3959
    %3965 = vst.msk [vmem:[#allocation6 + $0x19] sm:$0x1] %vm535, %v3961
    %3966 = vrot.lane.b32.xlu0 %v3904, 64
    %v3967 = vpop.permute.xlu0 %3966
    %3969 = vrot.lane.b32.xlu0 %v3941, 96
    %v3970 = vpop.permute.xlu0 %3969
    %v3972 = vsel %vm544, %v3967, %v3970
    %v3973 = vpack.c.bf16 %v3972, %v3972
    %v3975 = vsel %vm301, %v3973, 0
    %3977 = vmatpush.bf16.msra.mxu0 0
    %3978 = vmatpush.bf16.msra.mxu0 0
    %3979 = vmatpush.bf16.msra.mxu0 0
    %3980 = vmatpush.bf16.msra.mxu0 0
    %3981 = vmatpush.bf16.msra.mxu0 %v2924
    %3982 = vmatpush.bf16.msra.mxu0 %v2922
    %3983 = vmatpush.bf16.msra.mxu0 %v2920
    %3984 = vmatpush.bf16.msra.mxu0 %v2918
    %3985 = vmatmul.bf16.gmra.mxu0 %v3975
    %v3986 = vpop.f32.mrf.mxu0
    %v3987 = vadd.f32 0.0, %v3986
    %v3988 = vpop.f32.mrf.mxu0
    %3989 = vdwg.mxu0
    %3990 = vmatpush.bf16.msra.mxu0 0
    %3991 = vmatpush.bf16.msra.mxu0 0
    %3992 = vmatpush.bf16.msra.mxu0 0
    %3993 = vmatpush.bf16.msra.mxu0 0
    %3994 = vmatpush.bf16.msra.mxu0 %v2925
    %3995 = vmatpush.bf16.msra.mxu0 %v2923
    %3996 = vmatpush.bf16.msra.mxu0 %v2921
    %3997 = vmatpush.bf16.msra.mxu0 %v2919
    %3998 = vmatmul.bf16.gmra.mxu0 %v3975
    %v3999 = vpop.f32.mrf.mxu0
    %v4000 = vadd.f32 0.0, %v3999
    %v4001 = vpop.f32.mrf.mxu0
    %4002 = vdwg.mxu0
    %v4003 = vld [vmem:[#allocation4 + $0x7] ss:$0 sm:$0xff]
    %v4004 = vld [vmem:[#allocation4 + $0x27] ss:$0 sm:$0xff]
    %v4005 = vld [vmem:[#allocation4 + $0x18] ss:$0 sm:$0xff]
    %v4006 = vld [vmem:[#allocation4 + $0x38] ss:$0 sm:$0xff]
    %v4009 = vsel %vm429, %v4004, %v4003
    %v4011 = vadd.f32 %v3987, %v4009
    %v4014 = vsel %vm429, %v4006, %v4005
    %v4016 = vadd.f32 %v4000, %v4014
    %v4017 = vxor.u32 %v4011, 2147483648
    %v4018 = vmul.f32 %v4017, 1.442695
    %v4019 = vpow.pop %v4018
    %v4020 = vadd.f32 %v4019, 1.0
    %v4021 = vrcp.pop %v4020
    %v4022 = vmul.f32 %v4020, %v4021
    %v4023 = vsub.f32 1.0, %v4022
    %v4024 = vmul.f32 %v4021, %v4023
    %v4025 = vadd.f32 %v4021, %v4024
    %vm4026 = vweird.f32 %v4020
    %vm4027 = vweird.f32 %v4021
    %vm4028 = vmor %vm4026, %vm4027
    %v4029 = vsel %vm4028, %v4021, %v4025
    %v4030 = vand.u32 2147483647, %v4020
    %vm4031 = vcmp.eq.f32.partialorder %v4030, 8.507059e+37
    %v4032 = vand.u32 %v4020, 2147483648
    %v4033 = vor.u32 1.1754944e-38, %v4032
    %v4034 = vsel %vm4031, %v4033, %v4029
    %v4035 = vmul.f32 1.0, %v4034
    %v4036 = vtanh.pop %v4011
    %v4037 = vmul.f32 %v4035, %v3898
    %4039 = vrot.lane.b32.xlu0 %v4036, 32
    %v4040 = vpop.permute.xlu0 %4039
    %v4042 = vmul.f32 %v4035, %v4040
    %4044 = vrot.lane.b32.xlu0 %v4042, 32
    %v4045 = vpop.permute.xlu0 %4044
    %v4047 = vadd.f32 %v4037, %v4045
    %v4048 = vtanh.pop %v4047
    %4050 = vrot.lane.b32.xlu0 %v4048, 32
    %v4051 = vpop.permute.xlu0 %4050
    %v4053 = vmul.f32 %v4035, %v4051
    %v4054 = vxor.u32 %v4016, 2147483648
    %v4055 = vmul.f32 %v4054, 1.442695
    %v4056 = vpow.pop %v4055
    %v4057 = vadd.f32 %v4056, 1.0
    %v4058 = vrcp.pop %v4057
    %v4059 = vmul.f32 %v4057, %v4058
    %v4060 = vsub.f32 1.0, %v4059
    %v4061 = vmul.f32 %v4058, %v4060
    %v4062 = vadd.f32 %v4058, %v4061
    %vm4063 = vweird.f32 %v4057
    %vm4064 = vweird.f32 %v4058
    %vm4065 = vmor %vm4063, %vm4064
    %v4066 = vsel %vm4065, %v4058, %v4062
    %v4067 = vand.u32 2147483647, %v4057
    %vm4068 = vcmp.eq.f32.partialorder %v4067, 8.507059e+37
    %v4069 = vand.u32 %v4057, 2147483648
    %v4070 = vor.u32 1.1754944e-38, %v4069
    %v4071 = vsel %vm4068, %v4070, %v4066
    %v4072 = vmul.f32 1.0, %v4071
    %v4073 = vtanh.pop %v4016
    %v4074 = vmul.f32 %v4072, %v3935
    %4076 = vrot.lane.b32.xlu0 %v4073, 32
    %v4077 = vpop.permute.xlu0 %4076
    %v4079 = vmul.f32 %v4072, %v4077
    %4081 = vrot.lane.b32.xlu0 %v4079, 32
    %v4082 = vpop.permute.xlu0 %4081
    %v4084 = vadd.f32 %v4074, %v4082
    %v4085 = vtanh.pop %v4084
    %4087 = vrot.lane.b32.xlu0 %v4085, 32
    %v4088 = vpop.permute.xlu0 %4087
    %v4090 = vmul.f32 %v4072, %v4088
    %v4092 = vrot.slane %v4053, 1
    %v4093 = vperm.slane %v4053, 0
    %v4094 = vperm.slane %v4092, 0
    %4095 = vrot.lane.b32.xlu0 %v4093, 64
    %v4096 = vpop.permute.xlu0 %4095
    %4097 = vrot.lane.b32.xlu0 %v4094, 64
    %v4098 = vpop.permute.xlu0 %4097
    %4101 = vst.msk [vmem:[#allocation6 + $0x7] sm:$0x1] %vm522, %v4096
    %4102 = vst.msk [vmem:[#allocation6 + $0x17] sm:$0x1] %vm522, %v4098
    %v4104 = vrot.slane %v4090, 1
    %v4105 = vperm.slane %v4090, 0
    %v4106 = vperm.slane %v4104, 0
    %4107 = vrot.lane.b32.xlu0 %v4105, 96
    %v4108 = vpop.permute.xlu0 %4107
    %4109 = vrot.lane.b32.xlu0 %v4106, 96
    %v4110 = vpop.permute.xlu0 %4109
    %4113 = vst.msk [vmem:[#allocation6 + $0x8] sm:$0x1] %vm535, %v4108
    %4114 = vst.msk [vmem:[#allocation6 + $0x18] sm:$0x1] %vm535, %v4110
    %4115 = vrot.lane.b32.xlu0 %v4053, 64
    %v4116 = vpop.permute.xlu0 %4115
    %4118 = vrot.lane.b32.xlu0 %v4090, 96
    %v4119 = vpop.permute.xlu0 %4118
    %v4121 = vsel %vm544, %v4116, %v4119
    %v4122 = vpack.c.bf16 %v4121, %v4121
    %v4124 = vsel %vm301, %v4122, 0
    %4126 = vmatpush.bf16.msra.mxu0 0
    %4127 = vmatpush.bf16.msra.mxu0 0
    %4128 = vmatpush.bf16.msra.mxu0 0
    %4129 = vmatpush.bf16.msra.mxu0 0
    %4130 = vmatpush.bf16.msra.mxu0 %v2924
    %4131 = vmatpush.bf16.msra.mxu0 %v2922
    %4132 = vmatpush.bf16.msra.mxu0 %v2920
    %4133 = vmatpush.bf16.msra.mxu0 %v2918
    %4134 = vmatmul.bf16.gmra.mxu0 %v4124
    %v4135 = vpop.f32.mrf.mxu0
    %v4136 = vadd.f32 0.0, %v4135
    %v4137 = vpop.f32.mrf.mxu0
    %4138 = vdwg.mxu0
    %4139 = vmatpush.bf16.msra.mxu0 0
    %4140 = vmatpush.bf16.msra.mxu0 0
    %4141 = vmatpush.bf16.msra.mxu0 0
    %4142 = vmatpush.bf16.msra.mxu0 0
    %4143 = vmatpush.bf16.msra.mxu0 %v2925
    %4144 = vmatpush.bf16.msra.mxu0 %v2923
    %4145 = vmatpush.bf16.msra.mxu0 %v2921
    %4146 = vmatpush.bf16.msra.mxu0 %v2919
    %4147 = vmatmul.bf16.gmra.mxu0 %v4124
    %v4148 = vpop.f32.mrf.mxu0
    %v4149 = vadd.f32 0.0, %v4148
    %v4150 = vpop.f32.mrf.mxu0
    %4151 = vdwg.mxu0
    %v4152 = vld [vmem:[#allocation4 + $0x10] ss:$0 sm:$0xff]
    %v4153 = vld [vmem:[#allocation4 + $0x30] ss:$0 sm:$0xff]
    %v4154 = vld [vmem:[#allocation4 + $0xf] ss:$0 sm:$0xff]
    %v4155 = vld [vmem:[#allocation4 + $0x2f] ss:$0 sm:$0xff]
    %v4158 = vsel %vm429, %v4153, %v4152
    %v4160 = vadd.f32 %v4136, %v4158
    %v4163 = vsel %vm429, %v4155, %v4154
    %v4165 = vadd.f32 %v4149, %v4163
    %v4166 = vxor.u32 %v4160, 2147483648
    %v4167 = vmul.f32 %v4166, 1.442695
    %v4168 = vpow.pop %v4167
    %v4169 = vadd.f32 %v4168, 1.0
    %v4170 = vrcp.pop %v4169
    %v4171 = vmul.f32 %v4169, %v4170
    %v4172 = vsub.f32 1.0, %v4171
    %v4173 = vmul.f32 %v4170, %v4172
    %v4174 = vadd.f32 %v4170, %v4173
    %vm4175 = vweird.f32 %v4169
    %vm4176 = vweird.f32 %v4170
    %vm4177 = vmor %vm4175, %vm4176
    %v4178 = vsel %vm4177, %v4170, %v4174
    %v4179 = vand.u32 2147483647, %v4169
    %vm4180 = vcmp.eq.f32.partialorder %v4179, 8.507059e+37
    %v4181 = vand.u32 %v4169, 2147483648
    %v4182 = vor.u32 1.1754944e-38, %v4181
    %v4183 = vsel %vm4180, %v4182, %v4178
    %v4184 = vmul.f32 1.0, %v4183
    %v4185 = vtanh.pop %v4160
    %v4186 = vmul.f32 %v4184, %v4047
    %4188 = vrot.lane.b32.xlu0 %v4185, 32
    %v4189 = vpop.permute.xlu0 %4188
    %v4191 = vmul.f32 %v4184, %v4189
    %4193 = vrot.lane.b32.xlu0 %v4191, 32
    %v4194 = vpop.permute.xlu0 %4193
    %v4196 = vadd.f32 %v4186, %v4194
    %v4197 = vtanh.pop %v4196
    %4199 = vrot.lane.b32.xlu0 %v4197, 32
    %v4200 = vpop.permute.xlu0 %4199
    %v4202 = vmul.f32 %v4184, %v4200
    %v4203 = vxor.u32 %v4165, 2147483648
    %v4204 = vmul.f32 %v4203, 1.442695
    %v4205 = vpow.pop %v4204
    %v4206 = vadd.f32 %v4205, 1.0
    %v4207 = vrcp.pop %v4206
    %v4208 = vmul.f32 %v4206, %v4207
    %v4209 = vsub.f32 1.0, %v4208
    %v4210 = vmul.f32 %v4207, %v4209
    %v4211 = vadd.f32 %v4207, %v4210
    %vm4212 = vweird.f32 %v4206
    %vm4213 = vweird.f32 %v4207
    %vm4214 = vmor %vm4212, %vm4213
    %v4215 = vsel %vm4214, %v4207, %v4211
    %v4216 = vand.u32 2147483647, %v4206
    %vm4217 = vcmp.eq.f32.partialorder %v4216, 8.507059e+37
    %v4218 = vand.u32 %v4206, 2147483648
    %v4219 = vor.u32 1.1754944e-38, %v4218
    %v4220 = vsel %vm4217, %v4219, %v4215
    %v4221 = vmul.f32 1.0, %v4220
    %v4222 = vtanh.pop %v4165
    %v4223 = vmul.f32 %v4221, %v4084
    %4225 = vrot.lane.b32.xlu0 %v4222, 32
    %v4226 = vpop.permute.xlu0 %4225
    %v4228 = vmul.f32 %v4221, %v4226
    %4230 = vrot.lane.b32.xlu0 %v4228, 32
    %v4231 = vpop.permute.xlu0 %4230
    %v4233 = vadd.f32 %v4223, %v4231
    %v4234 = vtanh.pop %v4233
    %4236 = vrot.lane.b32.xlu0 %v4234, 32
    %v4237 = vpop.permute.xlu0 %4236
    %v4239 = vmul.f32 %v4221, %v4237
    %v4241 = vrot.slane %v4202, 1
    %v4242 = vperm.slane %v4202, 0
    %v4243 = vperm.slane %v4241, 0
    %4244 = vrot.lane.b32.xlu0 %v4242, 64
    %v4245 = vpop.permute.xlu0 %4244
    %4246 = vrot.lane.b32.xlu0 %v4243, 64
    %v4247 = vpop.permute.xlu0 %4246
    %4250 = vst.msk [vmem:[#allocation6 + $0x8] sm:$0x1] %vm522, %v4245
    %4251 = vst.msk [vmem:[#allocation6 + $0x18] sm:$0x1] %vm522, %v4247
    %v4253 = vrot.slane %v4239, 1
    %v4254 = vperm.slane %v4239, 0
    %v4255 = vperm.slane %v4253, 0
    %4256 = vrot.lane.b32.xlu0 %v4254, 96
    %v4257 = vpop.permute.xlu0 %4256
    %4258 = vrot.lane.b32.xlu0 %v4255, 96
    %v4259 = vpop.permute.xlu0 %4258
    %4262 = vst.msk [vmem:[#allocation6 + $0x7] sm:$0x1] %vm535, %v4257
    %4263 = vst.msk [vmem:[#allocation6 + $0x17] sm:$0x1] %vm535, %v4259
    %4264 = vrot.lane.b32.xlu0 %v4202, 64
    %v4265 = vpop.permute.xlu0 %4264
    %4267 = vrot.lane.b32.xlu0 %v4239, 96
    %v4268 = vpop.permute.xlu0 %4267
    %v4270 = vsel %vm544, %v4265, %v4268
    %v4271 = vpack.c.bf16 %v4270, %v4270
    %v4273 = vsel %vm301, %v4271, 0
    %4275 = vmatpush.bf16.msra.mxu0 0
    %4276 = vmatpush.bf16.msra.mxu0 0
    %4277 = vmatpush.bf16.msra.mxu0 0
    %4278 = vmatpush.bf16.msra.mxu0 0
    %4279 = vmatpush.bf16.msra.mxu0 %v2924
    %4280 = vmatpush.bf16.msra.mxu0 %v2922
    %4281 = vmatpush.bf16.msra.mxu0 %v2920
    %4282 = vmatpush.bf16.msra.mxu0 %v2918
    %4283 = vmatmul.bf16.gmra.mxu0 %v4273
    %v4284 = vpop.f32.mrf.mxu0
    %v4285 = vadd.f32 0.0, %v4284
    %v4286 = vpop.f32.mrf.mxu0
    %4287 = vdwg.mxu0
    %4288 = vmatpush.bf16.msra.mxu0 0
    %4289 = vmatpush.bf16.msra.mxu0 0
    %4290 = vmatpush.bf16.msra.mxu0 0
    %4291 = vmatpush.bf16.msra.mxu0 0
    %4292 = vmatpush.bf16.msra.mxu0 %v2925
    %4293 = vmatpush.bf16.msra.mxu0 %v2923
    %4294 = vmatpush.bf16.msra.mxu0 %v2921
    %4295 = vmatpush.bf16.msra.mxu0 %v2919
    %4296 = vmatmul.bf16.gmra.mxu0 %v4273
    %v4297 = vpop.f32.mrf.mxu0
    %v4298 = vadd.f32 0.0, %v4297
    %v4299 = vpop.f32.mrf.mxu0
    %4300 = vdwg.mxu0
    %v4301 = vld [vmem:[#allocation4 + $0x11] ss:$0 sm:$0xff]
    %v4302 = vld [vmem:[#allocation4 + $0x31] ss:$0 sm:$0xff]
    %v4303 = vld [vmem:[#allocation4 + $0xe] ss:$0 sm:$0xff]
    %v4304 = vld [vmem:[#allocation4 + $0x2e] ss:$0 sm:$0xff]
    %v4307 = vsel %vm429, %v4302, %v4301
    %v4309 = vadd.f32 %v4285, %v4307
    %v4312 = vsel %vm429, %v4304, %v4303
    %v4314 = vadd.f32 %v4298, %v4312
    %v4315 = vxor.u32 %v4309, 2147483648
    %v4316 = vmul.f32 %v4315, 1.442695
    %v4317 = vpow.pop %v4316
    %v4318 = vadd.f32 %v4317, 1.0
    %v4319 = vrcp.pop %v4318
    %v4320 = vmul.f32 %v4318, %v4319
    %v4321 = vsub.f32 1.0, %v4320
    %v4322 = vmul.f32 %v4319, %v4321
    %v4323 = vadd.f32 %v4319, %v4322
    %vm4324 = vweird.f32 %v4318
    %vm4325 = vweird.f32 %v4319
    %vm4326 = vmor %vm4324, %vm4325
    %v4327 = vsel %vm4326, %v4319, %v4323
    %v4328 = vand.u32 2147483647, %v4318
    %vm4329 = vcmp.eq.f32.partialorder %v4328, 8.507059e+37
    %v4330 = vand.u32 %v4318, 2147483648
    %v4331 = vor.u32 1.1754944e-38, %v4330
    %v4332 = vsel %vm4329, %v4331, %v4327
    %v4333 = vmul.f32 1.0, %v4332
    %v4334 = vtanh.pop %v4309
    %v4335 = vmul.f32 %v4333, %v4196
    %4337 = vrot.lane.b32.xlu0 %v4334, 32
    %v4338 = vpop.permute.xlu0 %4337
    %v4340 = vmul.f32 %v4333, %v4338
    %4342 = vrot.lane.b32.xlu0 %v4340, 32
    %v4343 = vpop.permute.xlu0 %4342
    %v4345 = vadd.f32 %v4335, %v4343
    %v4346 = vtanh.pop %v4345
    %4348 = vrot.lane.b32.xlu0 %v4346, 32
    %v4349 = vpop.permute.xlu0 %4348
    %v4351 = vmul.f32 %v4333, %v4349
    %v4352 = vxor.u32 %v4314, 2147483648
    %v4353 = vmul.f32 %v4352, 1.442695
    %v4354 = vpow.pop %v4353
    %v4355 = vadd.f32 %v4354, 1.0
    %v4356 = vrcp.pop %v4355
    %v4357 = vmul.f32 %v4355, %v4356
    %v4358 = vsub.f32 1.0, %v4357
    %v4359 = vmul.f32 %v4356, %v4358
    %v4360 = vadd.f32 %v4356, %v4359
    %vm4361 = vweird.f32 %v4355
    %vm4362 = vweird.f32 %v4356
    %vm4363 = vmor %vm4361, %vm4362
    %v4364 = vsel %vm4363, %v4356, %v4360
    %v4365 = vand.u32 2147483647, %v4355
    %vm4366 = vcmp.eq.f32.partialorder %v4365, 8.507059e+37
    %v4367 = vand.u32 %v4355, 2147483648
    %v4368 = vor.u32 1.1754944e-38, %v4367
    %v4369 = vsel %vm4366, %v4368, %v4364
    %v4370 = vmul.f32 1.0, %v4369
    %v4371 = vtanh.pop %v4314
    %v4372 = vmul.f32 %v4370, %v4233
    %4374 = vrot.lane.b32.xlu0 %v4371, 32
    %v4375 = vpop.permute.xlu0 %4374
    %v4377 = vmul.f32 %v4370, %v4375
    %4379 = vrot.lane.b32.xlu0 %v4377, 32
    %v4380 = vpop.permute.xlu0 %4379
    %v4382 = vadd.f32 %v4372, %v4380
    %v4383 = vtanh.pop %v4382
    %4385 = vrot.lane.b32.xlu0 %v4383, 32
    %v4386 = vpop.permute.xlu0 %4385
    %v4388 = vmul.f32 %v4370, %v4386
    %v4390 = vrot.slane %v4351, 1
    %v4391 = vperm.slane %v4351, 0
    %v4392 = vperm.slane %v4390, 0
    %4393 = vrot.lane.b32.xlu0 %v4391, 64
    %v4394 = vpop.permute.xlu0 %4393
    %4395 = vrot.lane.b32.xlu0 %v4392, 64
    %v4396 = vpop.permute.xlu0 %4395
    %4399 = vst.msk [vmem:[#allocation6 + $0x9] sm:$0x1] %vm522, %v4394
    %4400 = vst.msk [vmem:[#allocation6 + $0x19] sm:$0x1] %vm522, %v4396
    %v4402 = vrot.slane %v4388, 1
    %v4403 = vperm.slane %v4388, 0
    %v4404 = vperm.slane %v4402, 0
    %4405 = vrot.lane.b32.xlu0 %v4403, 96
    %v4406 = vpop.permute.xlu0 %4405
    %4407 = vrot.lane.b32.xlu0 %v4404, 96
    %v4408 = vpop.permute.xlu0 %4407
    %4411 = vst.msk [vmem:[#allocation6 + $0x6] sm:$0x1] %vm535, %v4406
    %4412 = vst.msk [vmem:[#allocation6 + $0x16] sm:$0x1] %vm535, %v4408
    %4413 = vrot.lane.b32.xlu0 %v4351, 64
    %v4414 = vpop.permute.xlu0 %4413
    %4416 = vrot.lane.b32.xlu0 %v4388, 96
    %v4417 = vpop.permute.xlu0 %4416
    %v4419 = vsel %vm544, %v4414, %v4417
    %v4420 = vpack.c.bf16 %v4419, %v4419
    %v4422 = vsel %vm301, %v4420, 0
    %4424 = vmatpush.bf16.msra.mxu0 0
    %4425 = vmatpush.bf16.msra.mxu0 0
    %4426 = vmatpush.bf16.msra.mxu0 0
    %4427 = vmatpush.bf16.msra.mxu0 0
    %4428 = vmatpush.bf16.msra.mxu0 %v2924
    %4429 = vmatpush.bf16.msra.mxu0 %v2922
    %4430 = vmatpush.bf16.msra.mxu0 %v2920
    %4431 = vmatpush.bf16.msra.mxu0 %v2918
    %4432 = vmatmul.bf16.gmra.mxu0 %v4422
    %v4433 = vpop.f32.mrf.mxu0
    %v4434 = vadd.f32 0.0, %v4433
    %v4435 = vpop.f32.mrf.mxu0
    %4436 = vdwg.mxu0
    %4437 = vmatpush.bf16.msra.mxu0 0
    %4438 = vmatpush.bf16.msra.mxu0 0
    %4439 = vmatpush.bf16.msra.mxu0 0
    %4440 = vmatpush.bf16.msra.mxu0 0
    %4441 = vmatpush.bf16.msra.mxu0 %v2925
    %4442 = vmatpush.bf16.msra.mxu0 %v2923
    %4443 = vmatpush.bf16.msra.mxu0 %v2921
    %4444 = vmatpush.bf16.msra.mxu0 %v2919
    %4445 = vmatmul.bf16.gmra.mxu0 %v4422
    %v4446 = vpop.f32.mrf.mxu0
    %v4447 = vadd.f32 0.0, %v4446
    %v4448 = vpop.f32.mrf.mxu0
    %4449 = vdwg.mxu0
    %v4450 = vld [vmem:[#allocation4 + $0x12] ss:$0 sm:$0xff]
    %v4451 = vld [vmem:[#allocation4 + $0x32] ss:$0 sm:$0xff]
    %v4452 = vld [vmem:[#allocation4 + $0xd] ss:$0 sm:$0xff]
    %v4453 = vld [vmem:[#allocation4 + $0x2d] ss:$0 sm:$0xff]
    %v4456 = vsel %vm429, %v4451, %v4450
    %v4458 = vadd.f32 %v4434, %v4456
    %v4461 = vsel %vm429, %v4453, %v4452
    %v4463 = vadd.f32 %v4447, %v4461
    %v4464 = vxor.u32 %v4458, 2147483648
    %v4465 = vmul.f32 %v4464, 1.442695
    %v4466 = vpow.pop %v4465
    %v4467 = vadd.f32 %v4466, 1.0
    %v4468 = vrcp.pop %v4467
    %v4469 = vmul.f32 %v4467, %v4468
    %v4470 = vsub.f32 1.0, %v4469
    %v4471 = vmul.f32 %v4468, %v4470
    %v4472 = vadd.f32 %v4468, %v4471
    %vm4473 = vweird.f32 %v4467
    %vm4474 = vweird.f32 %v4468
    %vm4475 = vmor %vm4473, %vm4474
    %v4476 = vsel %vm4475, %v4468, %v4472
    %v4477 = vand.u32 2147483647, %v4467
    %vm4478 = vcmp.eq.f32.partialorder %v4477, 8.507059e+37
    %v4479 = vand.u32 %v4467, 2147483648
    %v4480 = vor.u32 1.1754944e-38, %v4479
    %v4481 = vsel %vm4478, %v4480, %v4476
    %v4482 = vmul.f32 1.0, %v4481
    %v4483 = vtanh.pop %v4458
    %v4484 = vmul.f32 %v4482, %v4345
    %4486 = vrot.lane.b32.xlu0 %v4483, 32
    %v4487 = vpop.permute.xlu0 %4486
    %v4489 = vmul.f32 %v4482, %v4487
    %4491 = vrot.lane.b32.xlu0 %v4489, 32
    %v4492 = vpop.permute.xlu0 %4491
    %v4494 = vadd.f32 %v4484, %v4492
    %v4495 = vtanh.pop %v4494
    %4497 = vrot.lane.b32.xlu0 %v4495, 32
    %v4498 = vpop.permute.xlu0 %4497
    %v4500 = vmul.f32 %v4482, %v4498
    %v4501 = vxor.u32 %v4463, 2147483648
    %v4502 = vmul.f32 %v4501, 1.442695
    %v4503 = vpow.pop %v4502
    %v4504 = vadd.f32 %v4503, 1.0
    %v4505 = vrcp.pop %v4504
    %v4506 = vmul.f32 %v4504, %v4505
    %v4507 = vsub.f32 1.0, %v4506
    %v4508 = vmul.f32 %v4505, %v4507
    %v4509 = vadd.f32 %v4505, %v4508
    %vm4510 = vweird.f32 %v4504
    %vm4511 = vweird.f32 %v4505
    %vm4512 = vmor %vm4510, %vm4511
    %v4513 = vsel %vm4512, %v4505, %v4509
    %v4514 = vand.u32 2147483647, %v4504
    %vm4515 = vcmp.eq.f32.partialorder %v4514, 8.507059e+37
    %v4516 = vand.u32 %v4504, 2147483648
    %v4517 = vor.u32 1.1754944e-38, %v4516
    %v4518 = vsel %vm4515, %v4517, %v4513
    %v4519 = vmul.f32 1.0, %v4518
    %v4520 = vtanh.pop %v4463
    %v4521 = vmul.f32 %v4519, %v4382
    %4523 = vrot.lane.b32.xlu0 %v4520, 32
    %v4524 = vpop.permute.xlu0 %4523
    %v4526 = vmul.f32 %v4519, %v4524
    %4528 = vrot.lane.b32.xlu0 %v4526, 32
    %v4529 = vpop.permute.xlu0 %4528
    %v4531 = vadd.f32 %v4521, %v4529
    %v4532 = vtanh.pop %v4531
    %4534 = vrot.lane.b32.xlu0 %v4532, 32
    %v4535 = vpop.permute.xlu0 %4534
    %v4537 = vmul.f32 %v4519, %v4535
    %v4539 = vrot.slane %v4500, 1
    %v4540 = vperm.slane %v4500, 0
    %v4541 = vperm.slane %v4539, 0
    %4542 = vrot.lane.b32.xlu0 %v4540, 64
    %v4543 = vpop.permute.xlu0 %4542
    %4544 = vrot.lane.b32.xlu0 %v4541, 64
    %v4545 = vpop.permute.xlu0 %4544
    %4548 = vst.msk [vmem:[#allocation6 + $0xa] sm:$0x1] %vm522, %v4543
    %4549 = vst.msk [vmem:[#allocation6 + $0x1a] sm:$0x1] %vm522, %v4545
    %v4551 = vrot.slane %v4537, 1
    %v4552 = vperm.slane %v4537, 0
    %v4553 = vperm.slane %v4551, 0
    %4554 = vrot.lane.b32.xlu0 %v4552, 96
    %v4555 = vpop.permute.xlu0 %4554
    %4556 = vrot.lane.b32.xlu0 %v4553, 96
    %v4557 = vpop.permute.xlu0 %4556
    %4560 = vst.msk [vmem:[#allocation6 + $0x5] sm:$0x1] %vm535, %v4555
    %4561 = vst.msk [vmem:[#allocation6 + $0x15] sm:$0x1] %vm535, %v4557
    %4562 = vrot.lane.b32.xlu0 %v4500, 64
    %v4563 = vpop.permute.xlu0 %4562
    %4565 = vrot.lane.b32.xlu0 %v4537, 96
    %v4566 = vpop.permute.xlu0 %4565
    %v4568 = vsel %vm544, %v4563, %v4566
    %v4569 = vpack.c.bf16 %v4568, %v4568
    %v4571 = vsel %vm301, %v4569, 0
    %4573 = vmatpush.bf16.msra.mxu0 0
    %4574 = vmatpush.bf16.msra.mxu0 0
    %4575 = vmatpush.bf16.msra.mxu0 0
    %4576 = vmatpush.bf16.msra.mxu0 0
    %4577 = vmatpush.bf16.msra.mxu0 %v2924
    %4578 = vmatpush.bf16.msra.mxu0 %v2922
    %4579 = vmatpush.bf16.msra.mxu0 %v2920
    %4580 = vmatpush.bf16.msra.mxu0 %v2918
    %4581 = vmatmul.bf16.gmra.mxu0 %v4571
    %v4582 = vpop.f32.mrf.mxu0
    %v4583 = vadd.f32 0.0, %v4582
    %v4584 = vpop.f32.mrf.mxu0
    %4585 = vdwg.mxu0
    %4586 = vmatpush.bf16.msra.mxu0 0
    %4587 = vmatpush.bf16.msra.mxu0 0
    %4588 = vmatpush.bf16.msra.mxu0 0
    %4589 = vmatpush.bf16.msra.mxu0 0
    %4590 = vmatpush.bf16.msra.mxu0 %v2925
    %4591 = vmatpush.bf16.msra.mxu0 %v2923
    %4592 = vmatpush.bf16.msra.mxu0 %v2921
    %4593 = vmatpush.bf16.msra.mxu0 %v2919
    %4594 = vmatmul.bf16.gmra.mxu0 %v4571
    %v4595 = vpop.f32.mrf.mxu0
    %v4596 = vadd.f32 0.0, %v4595
    %v4597 = vpop.f32.mrf.mxu0
    %4598 = vdwg.mxu0
    %v4599 = vld [vmem:[#allocation4 + $0x13] ss:$0 sm:$0xff]
    %v4600 = vld [vmem:[#allocation4 + $0x33] ss:$0 sm:$0xff]
    %v4601 = vld [vmem:[#allocation4 + $0xc] ss:$0 sm:$0xff]
    %v4602 = vld [vmem:[#allocation4 + $0x2c] ss:$0 sm:$0xff]
    %v4605 = vsel %vm429, %v4600, %v4599
    %v4607 = vadd.f32 %v4583, %v4605
    %v4610 = vsel %vm429, %v4602, %v4601
    %v4612 = vadd.f32 %v4596, %v4610
    %v4613 = vxor.u32 %v4607, 2147483648
    %v4614 = vmul.f32 %v4613, 1.442695
    %v4615 = vpow.pop %v4614
    %v4616 = vadd.f32 %v4615, 1.0
    %v4617 = vrcp.pop %v4616
    %v4618 = vmul.f32 %v4616, %v4617
    %v4619 = vsub.f32 1.0, %v4618
    %v4620 = vmul.f32 %v4617, %v4619
    %v4621 = vadd.f32 %v4617, %v4620
    %vm4622 = vweird.f32 %v4616
    %vm4623 = vweird.f32 %v4617
    %vm4624 = vmor %vm4622, %vm4623
    %v4625 = vsel %vm4624, %v4617, %v4621
    %v4626 = vand.u32 2147483647, %v4616
    %vm4627 = vcmp.eq.f32.partialorder %v4626, 8.507059e+37
    %v4628 = vand.u32 %v4616, 2147483648
    %v4629 = vor.u32 1.1754944e-38, %v4628
    %v4630 = vsel %vm4627, %v4629, %v4625
    %v4631 = vmul.f32 1.0, %v4630
    %v4632 = vtanh.pop %v4607
    %v4633 = vmul.f32 %v4631, %v4494
    %4635 = vrot.lane.b32.xlu0 %v4632, 32
    %v4636 = vpop.permute.xlu0 %4635
    %v4638 = vmul.f32 %v4631, %v4636
    %4640 = vrot.lane.b32.xlu0 %v4638, 32
    %v4641 = vpop.permute.xlu0 %4640
    %v4643 = vadd.f32 %v4633, %v4641
    %v4644 = vtanh.pop %v4643
    %4646 = vrot.lane.b32.xlu0 %v4644, 32
    %v4647 = vpop.permute.xlu0 %4646
    %v4649 = vmul.f32 %v4631, %v4647
    %v4650 = vxor.u32 %v4612, 2147483648
    %v4651 = vmul.f32 %v4650, 1.442695
    %v4652 = vpow.pop %v4651
    %v4653 = vadd.f32 %v4652, 1.0
    %v4654 = vrcp.pop %v4653
    %v4655 = vmul.f32 %v4653, %v4654
    %v4656 = vsub.f32 1.0, %v4655
    %v4657 = vmul.f32 %v4654, %v4656
    %v4658 = vadd.f32 %v4654, %v4657
    %vm4659 = vweird.f32 %v4653
    %vm4660 = vweird.f32 %v4654
    %vm4661 = vmor %vm4659, %vm4660
    %v4662 = vsel %vm4661, %v4654, %v4658
    %v4663 = vand.u32 2147483647, %v4653
    %vm4664 = vcmp.eq.f32.partialorder %v4663, 8.507059e+37
    %v4665 = vand.u32 %v4653, 2147483648
    %v4666 = vor.u32 1.1754944e-38, %v4665
    %v4667 = vsel %vm4664, %v4666, %v4662
    %v4668 = vmul.f32 1.0, %v4667
    %v4669 = vtanh.pop %v4612
    %v4670 = vmul.f32 %v4668, %v4531
    %4672 = vrot.lane.b32.xlu0 %v4669, 32
    %v4673 = vpop.permute.xlu0 %4672
    %v4675 = vmul.f32 %v4668, %v4673
    %4677 = vrot.lane.b32.xlu0 %v4675, 32
    %v4678 = vpop.permute.xlu0 %4677
    %v4680 = vadd.f32 %v4670, %v4678
    %v4681 = vtanh.pop %v4680
    %4683 = vrot.lane.b32.xlu0 %v4681, 32
    %v4684 = vpop.permute.xlu0 %4683
    %v4686 = vmul.f32 %v4668, %v4684
    %v4688 = vrot.slane %v4649, 1
    %v4689 = vperm.slane %v4649, 0
    %v4690 = vperm.slane %v4688, 0
    %4691 = vrot.lane.b32.xlu0 %v4689, 64
    %v4692 = vpop.permute.xlu0 %4691
    %4693 = vrot.lane.b32.xlu0 %v4690, 64
    %v4694 = vpop.permute.xlu0 %4693
    %4697 = vst.msk [vmem:[#allocation6 + $0xb] sm:$0x1] %vm522, %v4692
    %4698 = vst.msk [vmem:[#allocation6 + $0x1b] sm:$0x1] %vm522, %v4694
    %v4700 = vrot.slane %v4686, 1
    %v4701 = vperm.slane %v4686, 0
    %v4702 = vperm.slane %v4700, 0
    %4703 = vrot.lane.b32.xlu0 %v4701, 96
    %v4704 = vpop.permute.xlu0 %4703
    %4705 = vrot.lane.b32.xlu0 %v4702, 96
    %v4706 = vpop.permute.xlu0 %4705
    %4709 = vst.msk [vmem:[#allocation6 + $0x4] sm:$0x1] %vm535, %v4704
    %4710 = vst.msk [vmem:[#allocation6 + $0x14] sm:$0x1] %vm535, %v4706
    %4711 = vrot.lane.b32.xlu0 %v4649, 64
    %v4712 = vpop.permute.xlu0 %4711
    %4714 = vrot.lane.b32.xlu0 %v4686, 96
    %v4715 = vpop.permute.xlu0 %4714
    %v4717 = vsel %vm544, %v4712, %v4715
    %v4718 = vpack.c.bf16 %v4717, %v4717
    %v4720 = vsel %vm301, %v4718, 0
    %4722 = vmatpush.bf16.msra.mxu0 0
    %4723 = vmatpush.bf16.msra.mxu0 0
    %4724 = vmatpush.bf16.msra.mxu0 0
    %4725 = vmatpush.bf16.msra.mxu0 0
    %4726 = vmatpush.bf16.msra.mxu0 %v2924
    %4727 = vmatpush.bf16.msra.mxu0 %v2922
    %4728 = vmatpush.bf16.msra.mxu0 %v2920
    %4729 = vmatpush.bf16.msra.mxu0 %v2918
    %4730 = vmatmul.bf16.gmra.mxu0 %v4720
    %v4731 = vpop.f32.mrf.mxu0
    %v4732 = vadd.f32 0.0, %v4731
    %v4733 = vpop.f32.mrf.mxu0
    %4734 = vdwg.mxu0
    %4735 = vmatpush.bf16.msra.mxu0 0
    %4736 = vmatpush.bf16.msra.mxu0 0
    %4737 = vmatpush.bf16.msra.mxu0 0
    %4738 = vmatpush.bf16.msra.mxu0 0
    %4739 = vmatpush.bf16.msra.mxu0 %v2925
    %4740 = vmatpush.bf16.msra.mxu0 %v2923
    %4741 = vmatpush.bf16.msra.mxu0 %v2921
    %4742 = vmatpush.bf16.msra.mxu0 %v2919
    %4743 = vmatmul.bf16.gmra.mxu0 %v4720
    %v4744 = vpop.f32.mrf.mxu0
    %v4745 = vadd.f32 0.0, %v4744
    %v4746 = vpop.f32.mrf.mxu0
    %4747 = vdwg.mxu0
    %v4748 = vld [vmem:[#allocation4 + $0x14] ss:$0 sm:$0xff]
    %v4749 = vld [vmem:[#allocation4 + $0x34] ss:$0 sm:$0xff]
    %v4750 = vld [vmem:[#allocation4 + $0xb] ss:$0 sm:$0xff]
    %v4751 = vld [vmem:[#allocation4 + $0x2b] ss:$0 sm:$0xff]
    %v4754 = vsel %vm429, %v4749, %v4748
    %v4756 = vadd.f32 %v4732, %v4754
    %v4759 = vsel %vm429, %v4751, %v4750
    %v4761 = vadd.f32 %v4745, %v4759
    %v4762 = vxor.u32 %v4756, 2147483648
    %v4763 = vmul.f32 %v4762, 1.442695
    %v4764 = vpow.pop %v4763
    %v4765 = vadd.f32 %v4764, 1.0
    %v4766 = vrcp.pop %v4765
    %v4767 = vmul.f32 %v4765, %v4766
    %v4768 = vsub.f32 1.0, %v4767
    %v4769 = vmul.f32 %v4766, %v4768
    %v4770 = vadd.f32 %v4766, %v4769
    %vm4771 = vweird.f32 %v4765
    %vm4772 = vweird.f32 %v4766
    %vm4773 = vmor %vm4771, %vm4772
    %v4774 = vsel %vm4773, %v4766, %v4770
    %v4775 = vand.u32 2147483647, %v4765
    %vm4776 = vcmp.eq.f32.partialorder %v4775, 8.507059e+37
    %v4777 = vand.u32 %v4765, 2147483648
    %v4778 = vor.u32 1.1754944e-38, %v4777
    %v4779 = vsel %vm4776, %v4778, %v4774
    %v4780 = vmul.f32 1.0, %v4779
    %v4781 = vtanh.pop %v4756
    %v4782 = vmul.f32 %v4780, %v4643
    %4784 = vrot.lane.b32.xlu0 %v4781, 32
    %v4785 = vpop.permute.xlu0 %4784
    %v4787 = vmul.f32 %v4780, %v4785
    %4789 = vrot.lane.b32.xlu0 %v4787, 32
    %v4790 = vpop.permute.xlu0 %4789
    %v4792 = vadd.f32 %v4782, %v4790
    %v4793 = vtanh.pop %v4792
    %4795 = vrot.lane.b32.xlu0 %v4793, 32
    %v4796 = vpop.permute.xlu0 %4795
    %v4798 = vmul.f32 %v4780, %v4796
    %v4799 = vxor.u32 %v4761, 2147483648
    %v4800 = vmul.f32 %v4799, 1.442695
    %v4801 = vpow.pop %v4800
    %v4802 = vadd.f32 %v4801, 1.0
    %v4803 = vrcp.pop %v4802
    %v4804 = vmul.f32 %v4802, %v4803
    %v4805 = vsub.f32 1.0, %v4804
    %v4806 = vmul.f32 %v4803, %v4805
    %v4807 = vadd.f32 %v4803, %v4806
    %vm4808 = vweird.f32 %v4802
    %vm4809 = vweird.f32 %v4803
    %vm4810 = vmor %vm4808, %vm4809
    %v4811 = vsel %vm4810, %v4803, %v4807
    %v4812 = vand.u32 2147483647, %v4802
    %vm4813 = vcmp.eq.f32.partialorder %v4812, 8.507059e+37
    %v4814 = vand.u32 %v4802, 2147483648
    %v4815 = vor.u32 1.1754944e-38, %v4814
    %v4816 = vsel %vm4813, %v4815, %v4811
    %v4817 = vmul.f32 1.0, %v4816
    %v4818 = vtanh.pop %v4761
    %v4819 = vmul.f32 %v4817, %v4680
    %4821 = vrot.lane.b32.xlu0 %v4818, 32
    %v4822 = vpop.permute.xlu0 %4821
    %v4824 = vmul.f32 %v4817, %v4822
    %4826 = vrot.lane.b32.xlu0 %v4824, 32
    %v4827 = vpop.permute.xlu0 %4826
    %v4829 = vadd.f32 %v4819, %v4827
    %v4830 = vtanh.pop %v4829
    %4832 = vrot.lane.b32.xlu0 %v4830, 32
    %v4833 = vpop.permute.xlu0 %4832
    %v4835 = vmul.f32 %v4817, %v4833
    %v4837 = vrot.slane %v4798, 1
    %v4838 = vperm.slane %v4798, 0
    %v4839 = vperm.slane %v4837, 0
    %4840 = vrot.lane.b32.xlu0 %v4838, 64
    %v4841 = vpop.permute.xlu0 %4840
    %4842 = vrot.lane.b32.xlu0 %v4839, 64
    %v4843 = vpop.permute.xlu0 %4842
    %4846 = vst.msk [vmem:[#allocation6 + $0xc] sm:$0x1] %vm522, %v4841
    %4847 = vst.msk [vmem:[#allocation6 + $0x1c] sm:$0x1] %vm522, %v4843
    %v4849 = vrot.slane %v4835, 1
    %v4850 = vperm.slane %v4835, 0
    %v4851 = vperm.slane %v4849, 0
    %4852 = vrot.lane.b32.xlu0 %v4850, 96
    %v4853 = vpop.permute.xlu0 %4852
    %4854 = vrot.lane.b32.xlu0 %v4851, 96
    %v4855 = vpop.permute.xlu0 %4854
    %4858 = vst.msk [vmem:[#allocation6 + $0x3] sm:$0x1] %vm535, %v4853
    %4859 = vst.msk [vmem:[#allocation6 + $0x13] sm:$0x1] %vm535, %v4855
    %4860 = vrot.lane.b32.xlu0 %v4798, 64
    %v4861 = vpop.permute.xlu0 %4860
    %4863 = vrot.lane.b32.xlu0 %v4835, 96
    %v4864 = vpop.permute.xlu0 %4863
    %v4866 = vsel %vm544, %v4861, %v4864
    %v4867 = vpack.c.bf16 %v4866, %v4866
    %v4869 = vsel %vm301, %v4867, 0
    %4871 = vmatpush.bf16.msra.mxu0 0
    %4872 = vmatpush.bf16.msra.mxu0 0
    %4873 = vmatpush.bf16.msra.mxu0 0
    %4874 = vmatpush.bf16.msra.mxu0 0
    %4875 = vmatpush.bf16.msra.mxu0 %v2924
    %4876 = vmatpush.bf16.msra.mxu0 %v2922
    %4877 = vmatpush.bf16.msra.mxu0 %v2920
    %4878 = vmatpush.bf16.msra.mxu0 %v2918
    %4879 = vmatmul.bf16.gmra.mxu0 %v4869
    %v4880 = vpop.f32.mrf.mxu0
    %v4881 = vadd.f32 0.0, %v4880
    %v4882 = vpop.f32.mrf.mxu0
    %4883 = vdwg.mxu0
    %4884 = vmatpush.bf16.msra.mxu0 0
    %4885 = vmatpush.bf16.msra.mxu0 0
    %4886 = vmatpush.bf16.msra.mxu0 0
    %4887 = vmatpush.bf16.msra.mxu0 0
    %4888 = vmatpush.bf16.msra.mxu0 %v2925
    %4889 = vmatpush.bf16.msra.mxu0 %v2923
    %4890 = vmatpush.bf16.msra.mxu0 %v2921
    %4891 = vmatpush.bf16.msra.mxu0 %v2919
    %4892 = vmatmul.bf16.gmra.mxu0 %v4869
    %v4893 = vpop.f32.mrf.mxu0
    %v4894 = vadd.f32 0.0, %v4893
    %v4895 = vpop.f32.mrf.mxu0
    %4896 = vdwg.mxu0
    %v4897 = vld [vmem:[#allocation4 + $0x15] ss:$0 sm:$0xff]
    %v4898 = vld [vmem:[#allocation4 + $0x35] ss:$0 sm:$0xff]
    %v4899 = vld [vmem:[#allocation4 + $0xa] ss:$0 sm:$0xff]
    %v4900 = vld [vmem:[#allocation4 + $0x2a] ss:$0 sm:$0xff]
    %v4903 = vsel %vm429, %v4898, %v4897
    %v4905 = vadd.f32 %v4881, %v4903
    %v4908 = vsel %vm429, %v4900, %v4899
    %v4910 = vadd.f32 %v4894, %v4908
    %v4911 = vxor.u32 %v4905, 2147483648
    %v4912 = vmul.f32 %v4911, 1.442695
    %v4913 = vpow.pop %v4912
    %v4914 = vadd.f32 %v4913, 1.0
    %v4915 = vrcp.pop %v4914
    %v4916 = vmul.f32 %v4914, %v4915
    %v4917 = vsub.f32 1.0, %v4916
    %v4918 = vmul.f32 %v4915, %v4917
    %v4919 = vadd.f32 %v4915, %v4918
    %vm4920 = vweird.f32 %v4914
    %vm4921 = vweird.f32 %v4915
    %vm4922 = vmor %vm4920, %vm4921
    %v4923 = vsel %vm4922, %v4915, %v4919
    %v4924 = vand.u32 2147483647, %v4914
    %vm4925 = vcmp.eq.f32.partialorder %v4924, 8.507059e+37
    %v4926 = vand.u32 %v4914, 2147483648
    %v4927 = vor.u32 1.1754944e-38, %v4926
    %v4928 = vsel %vm4925, %v4927, %v4923
    %v4929 = vmul.f32 1.0, %v4928
    %v4930 = vtanh.pop %v4905
    %v4931 = vmul.f32 %v4929, %v4792
    %4933 = vrot.lane.b32.xlu0 %v4930, 32
    %v4934 = vpop.permute.xlu0 %4933
    %v4936 = vmul.f32 %v4929, %v4934
    %4938 = vrot.lane.b32.xlu0 %v4936, 32
    %v4939 = vpop.permute.xlu0 %4938
    %v4941 = vadd.f32 %v4931, %v4939
    %v4942 = vtanh.pop %v4941
    %4944 = vrot.lane.b32.xlu0 %v4942, 32
    %v4945 = vpop.permute.xlu0 %4944
    %v4947 = vmul.f32 %v4929, %v4945
    %v4948 = vxor.u32 %v4910, 2147483648
    %v4949 = vmul.f32 %v4948, 1.442695
    %v4950 = vpow.pop %v4949
    %v4951 = vadd.f32 %v4950, 1.0
    %v4952 = vrcp.pop %v4951
    %v4953 = vmul.f32 %v4951, %v4952
    %v4954 = vsub.f32 1.0, %v4953
    %v4955 = vmul.f32 %v4952, %v4954
    %v4956 = vadd.f32 %v4952, %v4955
    %vm4957 = vweird.f32 %v4951
    %vm4958 = vweird.f32 %v4952
    %vm4959 = vmor %vm4957, %vm4958
    %v4960 = vsel %vm4959, %v4952, %v4956
    %v4961 = vand.u32 2147483647, %v4951
    %vm4962 = vcmp.eq.f32.partialorder %v4961, 8.507059e+37
    %v4963 = vand.u32 %v4951, 2147483648
    %v4964 = vor.u32 1.1754944e-38, %v4963
    %v4965 = vsel %vm4962, %v4964, %v4960
    %v4966 = vmul.f32 1.0, %v4965
    %v4967 = vtanh.pop %v4910
    %v4968 = vmul.f32 %v4966, %v4829
    %4970 = vrot.lane.b32.xlu0 %v4967, 32
    %v4971 = vpop.permute.xlu0 %4970
    %v4973 = vmul.f32 %v4966, %v4971
    %4975 = vrot.lane.b32.xlu0 %v4973, 32
    %v4976 = vpop.permute.xlu0 %4975
    %v4978 = vadd.f32 %v4968, %v4976
    %v4979 = vtanh.pop %v4978
    %4981 = vrot.lane.b32.xlu0 %v4979, 32
    %v4982 = vpop.permute.xlu0 %4981
    %v4984 = vmul.f32 %v4966, %v4982
    %v4986 = vrot.slane %v4947, 1
    %v4987 = vperm.slane %v4947, 0
    %v4988 = vperm.slane %v4986, 0
    %4989 = vrot.lane.b32.xlu0 %v4987, 64
    %v4990 = vpop.permute.xlu0 %4989
    %4991 = vrot.lane.b32.xlu0 %v4988, 64
    %v4992 = vpop.permute.xlu0 %4991
    %4995 = vst.msk [vmem:[#allocation6 + $0xd] sm:$0x1] %vm522, %v4990
    %4996 = vst.msk [vmem:[#allocation6 + $0x1d] sm:$0x1] %vm522, %v4992
    %v4998 = vrot.slane %v4984, 1
    %v4999 = vperm.slane %v4984, 0
    %v5000 = vperm.slane %v4998, 0
    %5001 = vrot.lane.b32.xlu0 %v4999, 96
    %v5002 = vpop.permute.xlu0 %5001
    %5003 = vrot.lane.b32.xlu0 %v5000, 96
    %v5004 = vpop.permute.xlu0 %5003
    %5007 = vst.msk [vmem:[#allocation6 + $0x2] sm:$0x1] %vm535, %v5002
    %5008 = vst.msk [vmem:[#allocation6 + $0x12] sm:$0x1] %vm535, %v5004
    %5009 = vrot.lane.b32.xlu0 %v4947, 64
    %v5010 = vpop.permute.xlu0 %5009
    %5012 = vrot.lane.b32.xlu0 %v4984, 96
    %v5013 = vpop.permute.xlu0 %5012
    %v5015 = vsel %vm544, %v5010, %v5013
    %v5016 = vpack.c.bf16 %v5015, %v5015
    %v5018 = vsel %vm301, %v5016, 0
    %5020 = vmatpush.bf16.msra.mxu0 0
    %5021 = vmatpush.bf16.msra.mxu0 0
    %5022 = vmatpush.bf16.msra.mxu0 0
    %5023 = vmatpush.bf16.msra.mxu0 0
    %5024 = vmatpush.bf16.msra.mxu0 %v2924
    %5025 = vmatpush.bf16.msra.mxu0 %v2922
    %5026 = vmatpush.bf16.msra.mxu0 %v2920
    %5027 = vmatpush.bf16.msra.mxu0 %v2918
    %5028 = vmatmul.bf16.gmra.mxu0 %v5018
    %v5029 = vpop.f32.mrf.mxu0
    %v5030 = vadd.f32 0.0, %v5029
    %v5031 = vpop.f32.mrf.mxu0
    %5032 = vdwg.mxu0
    %5033 = vmatpush.bf16.msra.mxu0 0
    %5034 = vmatpush.bf16.msra.mxu0 0
    %5035 = vmatpush.bf16.msra.mxu0 0
    %5036 = vmatpush.bf16.msra.mxu0 0
    %5037 = vmatpush.bf16.msra.mxu0 %v2925
    %5038 = vmatpush.bf16.msra.mxu0 %v2923
    %5039 = vmatpush.bf16.msra.mxu0 %v2921
    %5040 = vmatpush.bf16.msra.mxu0 %v2919
    %5041 = vmatmul.bf16.gmra.mxu0 %v5018
    %v5042 = vpop.f32.mrf.mxu0
    %v5043 = vadd.f32 0.0, %v5042
    %v5044 = vpop.f32.mrf.mxu0
    %5045 = vdwg.mxu0
    %v5046 = vld [vmem:[#allocation4 + $0x16] ss:$0 sm:$0xff]
    %v5047 = vld [vmem:[#allocation4 + $0x36] ss:$0 sm:$0xff]
    %v5048 = vld [vmem:[#allocation4 + $0x9] ss:$0 sm:$0xff]
    %v5049 = vld [vmem:[#allocation4 + $0x29] ss:$0 sm:$0xff]
    %v5052 = vsel %vm429, %v5047, %v5046
    %v5054 = vadd.f32 %v5030, %v5052
    %v5057 = vsel %vm429, %v5049, %v5048
    %v5059 = vadd.f32 %v5043, %v5057
    %v5060 = vxor.u32 %v5054, 2147483648
    %v5061 = vmul.f32 %v5060, 1.442695
    %v5062 = vpow.pop %v5061
    %v5063 = vadd.f32 %v5062, 1.0
    %v5064 = vrcp.pop %v5063
    %v5065 = vmul.f32 %v5063, %v5064
    %v5066 = vsub.f32 1.0, %v5065
    %v5067 = vmul.f32 %v5064, %v5066
    %v5068 = vadd.f32 %v5064, %v5067
    %vm5069 = vweird.f32 %v5063
    %vm5070 = vweird.f32 %v5064
    %vm5071 = vmor %vm5069, %vm5070
    %v5072 = vsel %vm5071, %v5064, %v5068
    %v5073 = vand.u32 2147483647, %v5063
    %vm5074 = vcmp.eq.f32.partialorder %v5073, 8.507059e+37
    %v5075 = vand.u32 %v5063, 2147483648
    %v5076 = vor.u32 1.1754944e-38, %v5075
    %v5077 = vsel %vm5074, %v5076, %v5072
    %v5078 = vmul.f32 1.0, %v5077
    %v5079 = vtanh.pop %v5054
    %v5080 = vmul.f32 %v5078, %v4941
    %5082 = vrot.lane.b32.xlu0 %v5079, 32
    %v5083 = vpop.permute.xlu0 %5082
    %v5085 = vmul.f32 %v5078, %v5083
    %5087 = vrot.lane.b32.xlu0 %v5085, 32
    %v5088 = vpop.permute.xlu0 %5087
    %v5090 = vadd.f32 %v5080, %v5088
    %v5091 = vtanh.pop %v5090
    %5093 = vrot.lane.b32.xlu0 %v5091, 32
    %v5094 = vpop.permute.xlu0 %5093
    %v5096 = vmul.f32 %v5078, %v5094
    %v5097 = vxor.u32 %v5059, 2147483648
    %v5098 = vmul.f32 %v5097, 1.442695
    %v5099 = vpow.pop %v5098
    %v5100 = vadd.f32 %v5099, 1.0
    %v5101 = vrcp.pop %v5100
    %v5102 = vmul.f32 %v5100, %v5101
    %v5103 = vsub.f32 1.0, %v5102
    %v5104 = vmul.f32 %v5101, %v5103
    %v5105 = vadd.f32 %v5101, %v5104
    %vm5106 = vweird.f32 %v5100
    %vm5107 = vweird.f32 %v5101
    %vm5108 = vmor %vm5106, %vm5107
    %v5109 = vsel %vm5108, %v5101, %v5105
    %v5110 = vand.u32 2147483647, %v5100
    %vm5111 = vcmp.eq.f32.partialorder %v5110, 8.507059e+37
    %v5112 = vand.u32 %v5100, 2147483648
    %v5113 = vor.u32 1.1754944e-38, %v5112
    %v5114 = vsel %vm5111, %v5113, %v5109
    %v5115 = vmul.f32 1.0, %v5114
    %v5116 = vtanh.pop %v5059
    %v5117 = vmul.f32 %v5115, %v4978
    %5119 = vrot.lane.b32.xlu0 %v5116, 32
    %v5120 = vpop.permute.xlu0 %5119
    %v5122 = vmul.f32 %v5115, %v5120
    %5124 = vrot.lane.b32.xlu0 %v5122, 32
    %v5125 = vpop.permute.xlu0 %5124
    %v5127 = vadd.f32 %v5117, %v5125
    %v5128 = vtanh.pop %v5127
    %5130 = vrot.lane.b32.xlu0 %v5128, 32
    %v5131 = vpop.permute.xlu0 %5130
    %v5133 = vmul.f32 %v5115, %v5131
    %v5135 = vrot.slane %v5096, 1
    %v5136 = vperm.slane %v5096, 0
    %v5137 = vperm.slane %v5135, 0
    %5138 = vrot.lane.b32.xlu0 %v5136, 64
    %v5139 = vpop.permute.xlu0 %5138
    %5140 = vrot.lane.b32.xlu0 %v5137, 64
    %v5141 = vpop.permute.xlu0 %5140
    %5144 = vst.msk [vmem:[#allocation6 + $0xe] sm:$0x1] %vm522, %v5139
    %5145 = vst.msk [vmem:[#allocation6 + $0x1e] sm:$0x1] %vm522, %v5141
    %v5147 = vrot.slane %v5133, 1
    %v5148 = vperm.slane %v5133, 0
    %v5149 = vperm.slane %v5147, 0
    %5150 = vrot.lane.b32.xlu0 %v5148, 96
    %v5151 = vpop.permute.xlu0 %5150
    %5152 = vrot.lane.b32.xlu0 %v5149, 96
    %v5153 = vpop.permute.xlu0 %5152
    %5156 = vst.msk [vmem:[#allocation6 + $0x1] sm:$0x1] %vm535, %v5151
    %5157 = vst.msk [vmem:[#allocation6 + $0x11] sm:$0x1] %vm535, %v5153
    %5158 = vrot.lane.b32.xlu0 %v5096, 64
    %v5159 = vpop.permute.xlu0 %5158
    %5161 = vrot.lane.b32.xlu0 %v5133, 96
    %v5162 = vpop.permute.xlu0 %5161
    %v5164 = vsel %vm544, %v5159, %v5162
    %v5165 = vpack.c.bf16 %v5164, %v5164
    %v5167 = vsel %vm301, %v5165, 0
    %5169 = vmatpush.bf16.msra.mxu0 0
    %5170 = vmatpush.bf16.msra.mxu0 0
    %5171 = vmatpush.bf16.msra.mxu0 0
    %5172 = vmatpush.bf16.msra.mxu0 0
    %5173 = vmatpush.bf16.msra.mxu0 %v2924
    %5174 = vmatpush.bf16.msra.mxu0 %v2922
    %5175 = vmatpush.bf16.msra.mxu0 %v2920
    %5176 = vmatpush.bf16.msra.mxu0 %v2918
    %5177 = vmatmul.bf16.gmra.mxu0 %v5167
    %v5178 = vpop.f32.mrf.mxu0
    %v5179 = vadd.f32 0.0, %v5178
    %v5180 = vpop.f32.mrf.mxu0
    %5181 = vdwg.mxu0
    %5182 = vmatpush.bf16.msra.mxu0 0
    %5183 = vmatpush.bf16.msra.mxu0 0
    %5184 = vmatpush.bf16.msra.mxu0 0
    %5185 = vmatpush.bf16.msra.mxu0 0
    %5186 = vmatpush.bf16.msra.mxu0 %v2925
    %5187 = vmatpush.bf16.msra.mxu0 %v2923
    %5188 = vmatpush.bf16.msra.mxu0 %v2921
    %5189 = vmatpush.bf16.msra.mxu0 %v2919
    %5190 = vmatmul.bf16.gmra.mxu0 %v5167
    %v5191 = vpop.f32.mrf.mxu0
    %v5192 = vadd.f32 0.0, %v5191
    %v5193 = vpop.f32.mrf.mxu0
    %5194 = vdwg.mxu0
    %v5195 = vld [vmem:[#allocation4 + $0x17] ss:$0 sm:$0xff]
    %v5196 = vld [vmem:[#allocation4 + $0x37] ss:$0 sm:$0xff]
    %v5197 = vld [vmem:[#allocation4 + $0x8] ss:$0 sm:$0xff]
    %v5198 = vld [vmem:[#allocation4 + $0x28] ss:$0 sm:$0xff]
    %v5201 = vsel %vm429, %v5196, %v5195
    %v5203 = vadd.f32 %v5179, %v5201
    %v5206 = vsel %vm429, %v5198, %v5197
    %v5208 = vadd.f32 %v5192, %v5206
    %v5209 = vxor.u32 %v5203, 2147483648
    %v5210 = vmul.f32 %v5209, 1.442695
    %v5211 = vpow.pop %v5210
    %v5212 = vadd.f32 %v5211, 1.0
    %v5213 = vrcp.pop %v5212
    %v5214 = vmul.f32 %v5212, %v5213
    %v5215 = vsub.f32 1.0, %v5214
    %v5216 = vmul.f32 %v5213, %v5215
    %v5217 = vadd.f32 %v5213, %v5216
    %vm5218 = vweird.f32 %v5212
    %vm5219 = vweird.f32 %v5213
    %vm5220 = vmor %vm5218, %vm5219
    %v5221 = vsel %vm5220, %v5213, %v5217
    %v5222 = vand.u32 2147483647, %v5212
    %vm5223 = vcmp.eq.f32.partialorder %v5222, 8.507059e+37
    %v5224 = vand.u32 %v5212, 2147483648
    %v5225 = vor.u32 1.1754944e-38, %v5224
    %v5226 = vsel %vm5223, %v5225, %v5221
    %v5227 = vmul.f32 1.0, %v5226
    %v5228 = vtanh.pop %v5203
    %v5229 = vmul.f32 %v5227, %v5090
    %5231 = vrot.lane.b32.xlu0 %v5228, 32
    %v5232 = vpop.permute.xlu0 %5231
    %v5234 = vmul.f32 %v5227, %v5232
    %5236 = vrot.lane.b32.xlu0 %v5234, 32
    %v5237 = vpop.permute.xlu0 %5236
    %v5239 = vadd.f32 %v5229, %v5237
    %v5240 = vtanh.pop %v5239
    %5242 = vrot.lane.b32.xlu0 %v5240, 32
    %v5243 = vpop.permute.xlu0 %5242
    %v5245 = vmul.f32 %v5227, %v5243
    %v5246 = vxor.u32 %v5208, 2147483648
    %v5247 = vmul.f32 %v5246, 1.442695
    %v5248 = vpow.pop %v5247
    %v5249 = vadd.f32 %v5248, 1.0
    %v5250 = vrcp.pop %v5249
    %v5251 = vmul.f32 %v5249, %v5250
    %v5252 = vsub.f32 1.0, %v5251
    %v5253 = vmul.f32 %v5250, %v5252
    %v5254 = vadd.f32 %v5250, %v5253
    %vm5255 = vweird.f32 %v5249
    %vm5256 = vweird.f32 %v5250
    %vm5257 = vmor %vm5255, %vm5256
    %v5258 = vsel %vm5257, %v5250, %v5254
    %v5259 = vand.u32 2147483647, %v5249
    %vm5260 = vcmp.eq.f32.partialorder %v5259, 8.507059e+37
    %v5261 = vand.u32 %v5249, 2147483648
    %v5262 = vor.u32 1.1754944e-38, %v5261
    %v5263 = vsel %vm5260, %v5262, %v5258
    %v5264 = vmul.f32 1.0, %v5263
    %v5265 = vtanh.pop %v5208
    %v5266 = vmul.f32 %v5264, %v5127
    %5268 = vrot.lane.b32.xlu0 %v5265, 32
    %v5269 = vpop.permute.xlu0 %5268
    %v5271 = vmul.f32 %v5264, %v5269
    %5273 = vrot.lane.b32.xlu0 %v5271, 32
    %v5274 = vpop.permute.xlu0 %5273
    %v5276 = vadd.f32 %v5266, %v5274
    %v5277 = vtanh.pop %v5276
    %5279 = vrot.lane.b32.xlu0 %v5277, 32
    %v5280 = vpop.permute.xlu0 %5279
    %v5282 = vmul.f32 %v5264, %v5280
    %v5284 = vrot.slane %v5245, 1
    %v5285 = vperm.slane %v5245, 0
    %v5286 = vperm.slane %v5284, 0
    %5287 = vrot.lane.b32.xlu0 %v5285, 64
    %v5288 = vpop.permute.xlu0 %5287
    %5289 = vrot.lane.b32.xlu0 %v5286, 64
    %v5290 = vpop.permute.xlu0 %5289
    %5293 = vst.msk [vmem:[#allocation6 + $0xf] sm:$0x1] %vm522, %v5288
    %5294 = vst.msk [vmem:[#allocation6 + $0x1f] sm:$0x1] %vm522, %v5290
    %v5296 = vrot.slane %v5282, 1
    %v5297 = vperm.slane %v5282, 0
    %v5298 = vperm.slane %v5296, 0
    %5299 = vrot.lane.b32.xlu0 %v5297, 96
    %v5300 = vpop.permute.xlu0 %5299
    %5301 = vrot.lane.b32.xlu0 %v5298, 96
    %v5302 = vpop.permute.xlu0 %5301
    %5305 = vst.msk [vmem:[#allocation6] sm:$0x1] %vm535, %v5300
    %5306 = vst.msk [vmem:[#allocation6 + $0x10] sm:$0x1] %vm535, %v5302
    %v5307 = vld [vmem:[#allocation6] sm:$0xff]
    %v5308 = vld [vmem:[#allocation6 + $0x8] sm:$0xff]
    %v5309 = vld [vmem:[#allocation6 + $0x10] sm:$0xff]
    %v5310 = vld [vmem:[#allocation6 + $0x18] sm:$0xff]
    %v5311 = vld [vmem:[#allocation13] sm:$0x1]
    %v5313 = vperm.slane %v5311, 0
    %v5315 = vmul.f32 %v5307, %v5313
    %v5316 = vmul.f32 %v5308, %v5313
    %v5317 = vmul.f32 %v5309, %v5313
    %v5318 = vmul.f32 %v5310, %v5313
    %v5319 = vsel %vm301, %v5315, 0.0
    %5320 = vadd.xlane.f32.xlu0 %v5319
    %v5321 = vpop.xlane.xlu0 %5320
    %v5322 = vsel %vm301, %v5316, 0.0
    %5323 = vadd.xlane.f32.xlu0 %v5322
    %v5324 = vpop.xlane.xlu0 %5323
    %v5325 = vsel %vm301, %v5317, 0.0
    %5326 = vadd.xlane.f32.xlu0 %v5325
    %v5327 = vpop.xlane.xlu0 %5326
    %v5328 = vsel %vm301, %v5318, 0.0
    %5329 = vadd.xlane.f32.xlu0 %v5328
    %v5330 = vpop.xlane.xlu0 %5329
    %v5335 = vlaneseq
    %v5336 = vand.u32 %v5335, 127
    %v5337 = vperm.slane %v5321, %v5336
    %v5338 = vadd.s32 %v5336, 4294967288
    %v5339 = vperm.slane %v5324, %v5338
    %vm5340 = vcmask 130112
    %v5341 = vsel %vm5340, %v5339, %v5337
    %v5342 = vperm.slane %v5327, %v5336
    %v5343 = vperm.slane %v5330, %v5338
    %v5344 = vsel %vm5340, %v5343, %v5342
    %v5345 = vsel %vm429, %v5344, %v5341
    %vm5347 = vcmask 123904
    %v5348 = vsel %vm5347, %v5345, -inf
    %5349 = vmax.xlane.f32.xlu0 %v5348
    %v5350 = vpop.xlane.xlu0 %5349
    %v5352 = vperm.slane %v5350, 0
    %v5353 = vperm.slane %v5350, 1
    %v5356 = vsub.f32 %v5321, %v5352
    %v5357 = vsub.f32 %v5324, %v5352
    %v5358 = vsub.f32 %v5327, %v5353
    %v5359 = vsub.f32 %v5330, %v5353
    %v5360 = vmul.f32 %v5356, 1.442695
    %v5361 = vpow.pop %v5360
    %v5362 = vmul.f32 %v5357, 1.442695
    %v5363 = vpow.pop %v5362
    %v5364 = vmul.f32 %v5358, 1.442695
    %v5365 = vpow.pop %v5364
    %v5366 = vmul.f32 %v5359, 1.442695
    %v5367 = vpow.pop %v5366
    %5372 = vset.pattern.permute.xlu0 0
    %5373 = vperm.xlu0 %5372, %v5361
    %v5374 = vpop.permute.xlu0 %5373
    %5375 = vset.pattern.permute.xlu0 0
    %5376 = vperm.xlu0 %5375, %v5363
    %v5377 = vpop.permute.xlu0 %5376
    %5378 = vset.pattern.permute.xlu0 0
    %5379 = vperm.xlu0 %5378, %v5365
    %v5380 = vpop.permute.xlu0 %5379
    %5381 = vset.pattern.permute.xlu0 0
    %5382 = vperm.xlu0 %5381, %v5367
    %v5383 = vpop.permute.xlu0 %5382
    %v5384 = vperm.slane %v5374, %v5336
    %v5385 = vperm.slane %v5377, %v5338
    %v5386 = vsel %vm5340, %v5385, %v5384
    %v5387 = vperm.slane %v5380, %v5336
    %v5388 = vperm.slane %v5383, %v5338
    %v5389 = vsel %vm5340, %v5388, %v5387
    %v5390 = vsel %vm429, %v5389, %v5386
    %v5392 = vsel %vm5347, %v5390, 0.0
    %5393 = vadd.xlane.f32.xlu0 %v5392
    %v5394 = vpop.xlane.xlu0 %5393
    %v5395 = vrcp.pop %v5394
    %v5397 = vperm.slane %v5395, 0
    %v5398 = vperm.slane %v5395, 1
    %v5401 = vmul.f32 %v5361, %v5397
    %v5402 = vmul.f32 %v5363, %v5397
    %v5403 = vmul.f32 %v5365, %v5398
    %v5404 = vmul.f32 %v5367, %v5398
    %5406 = vset.pattern.permute.xlu0 0
    %5407 = vperm.xlu0 %5406, %v5401
    %v5408 = vpop.permute.xlu0 %5407
    %5411 = vset.pattern.permute.xlu0 0
    %5412 = vperm.xlu0 %5411, %v5402
    %v5413 = vpop.permute.xlu0 %5412
    %5416 = vset.pattern.permute.xlu0 0
    %5417 = vperm.xlu0 %5416, %v5403
    %v5418 = vpop.permute.xlu0 %5417
    %5421 = vset.pattern.permute.xlu0 0
    %5422 = vperm.xlu0 %5421, %v5404
    %v5423 = vpop.permute.xlu0 %5422
    %v5425 = vmul.f32 %v5408, %v5307
    %v5426 = vmul.f32 %v5413, %v5308
    %v5427 = vmul.f32 %v5418, %v5309
    %v5428 = vmul.f32 %v5423, %v5310
    %v5429 = vsel %vm301, %v5425, 0.0
    %v5430 = vsel %vm301, %v5426, 0.0
    %v5431 = vadd.f32 %v5429, %v5430
    %v5432 = vrot.slane %v5431, 4
    %v5433 = vadd.f32 %v5431, %v5432
    %v5434 = vrot.slane %v5433, 2
    %v5435 = vadd.f32 %v5433, %v5434
    %v5436 = vrot.slane %v5435, 1
    %v5437 = vadd.f32 %v5435, %v5436
    %v5438 = vsel %vm301, %v5427, 0.0
    %v5439 = vsel %vm301, %v5428, 0.0
    %v5440 = vadd.f32 %v5438, %v5439
    %v5441 = vrot.slane %v5440, 4
    %v5442 = vadd.f32 %v5440, %v5441
    %v5443 = vrot.slane %v5442, 2
    %v5444 = vadd.f32 %v5442, %v5443
    %v5445 = vrot.slane %v5444, 1
    %v5446 = vadd.f32 %v5444, %v5445
    %v5447 = vpack.c.bf16 %v5437, %v5437
    %v5448 = vpack.c.bf16 %v5446, %v5446
    %v5449 = vld [vmem:[%s10] sm:$0xf]
    %v5450 = vld [vmem:[%s10 + $0x4] sm:$0xf]
    %v5451 = vld [vmem:[%s10 + $0x8] sm:$0xf]
    %v5452 = vld [vmem:[%s10 + $0xc] sm:$0xf]
    %v5453 = vld [vmem:[%s10 + $0x10] sm:$0xf]
    %v5454 = vld [vmem:[%s10 + $0x14] sm:$0xf]
    %v5455 = vld [vmem:[%s10 + $0x18] sm:$0xf]
    %v5456 = vld [vmem:[%s10 + $0x1c] sm:$0xf]
    %v5457 = vld [vmem:[%s11] sm:$0x1]
    %v5459 = vperm.slane %v5457, 0
    %v5463 = vunpack.c.l.b16 %v5447
    %v5464 = vunpack.c.l.b16 %v5448
    %v5465 = vsel %vm429, %v5464, %v5463
    %v5466 = vpack.c.b16 %v5465, %v5465
    %v5475 = vunpack.c.l.b16 %v5449
    %v5476 = vunpack.c.l.b16 %v5450
    %v5477 = vunpack.c.l.b16 %v5451
    %v5478 = vunpack.c.l.b16 %v5452
    %v5479 = vunpack.c.l.b16 %v5453
    %v5480 = vunpack.c.l.b16 %v5454
    %v5481 = vunpack.c.l.b16 %v5455
    %v5482 = vunpack.c.l.b16 %v5456
    %v5483 = vpack.c.b16 %v5476, %v5475
    %v5484 = vpack.c.b16 %v5478, %v5477
    %v5485 = vpack.c.b16 %v5480, %v5479
    %v5486 = vpack.c.b16 %v5482, %v5481
    %v5492 = vsel %vm301, %v5466, 0
    %5494 = vmatpush.bf16.msra.mxu0 0
    %5495 = vmatpush.bf16.msra.mxu0 0
    %5496 = vmatpush.bf16.msra.mxu0 0
    %5497 = vmatpush.bf16.msra.mxu0 0
    %5498 = vmatpush.bf16.msra.mxu0 %v5486
    %5499 = vmatpush.bf16.msra.mxu0 %v5485
    %5500 = vmatpush.bf16.msra.mxu0 %v5484
    %5501 = vmatpush.bf16.msra.mxu0 %v5483
    %5502 = vmatmul.bf16.gmra.mxu0 %v5492
    %v5503 = vpop.f32.mrf.mxu0
    %v5504 = vadd.f32 %v5459, %v5503
    %v5505 = vpop.f32.mrf.mxu0
    %5506 = vdwg.mxu0
    %vm5507 = vcmask 33792
    %5508 = vst.msk [vmem:[#allocation15] sm:$0x3] %vm5507, %v5504
    // Predicated region
    $region66: #{gesture_forward.1} parent=1 // pred_check
      _
    $region67: #{gesture_forward.1} parent=1 // pred_check_branch
      %5510 = sbr.rel (0) target = $region69
    $region68: #{gesture_forward.1} parent=1 // pred_region
      %5512 = vsyncadd [#allocation9], 0
      %s5514 = sshll.u32 [#allocation15], 4
      %s5515 = int_to_ptr.vmem [resolvable:$true] %s5514
      %s5516 = sshll.u32 %s12, 4
      %s5517 = int_to_ptr.hbm [resolvable:$true] %s5516
      %5519 = dma.vmem_to_hbm [thread:$0]  %s5515, 32, %s5517, [#allocation9]
    $region69: #{gesture_forward.1} parent=1 // pred_fallthru
      _
    // Predicated region
    $region70: #{gesture_forward.1} parent=1 // pred_check
      _
    $region71: #{gesture_forward.1} parent=1 // pred_check_branch
      %5521 = sbr.rel (0) target = $region73
    $region72: #{gesture_forward.1} parent=1 // pred_region
      %5523 = dma.done [#allocation9], 32
    $region73: #{gesture_forward.1} parent=1 // pred_fallthru
      _
    %5524 = vsyncpa [#allocation8], 1
    %5525 = vsyncpa [#allocation11], 1
    %5526 = vsyncpa [#allocation14], 1
    %5527 = vsyncpa [#allocation9], 1

</llo_original>
